<compile_context>
chip_gen: v7x
topology: tpu7x:2x2x1
jax: 0.10.0
libtpu: 0.0.40
codegen_flags: <defaults>
</compile_context>

<pallas_src>
import jax
import jax.numpy as jnp
import numpy as np
from jax import lax
from jax.experimental import pallas as pl
from jax.experimental.pallas import tpu as pltpu

MID = 128     # mid_channels of every ProposalBlock
LANES = 128   # TPU lane width; conv1x1 outputs are zero-padded to this


# ------------------------------ wrapper glue -------------------------------- #

def _conv_out(n, k=3, s=2, p=1):
    return (n + 2 * p - k) // s + 1


def _sel_3x3_s2(n, h, w):
    """Static 0/1 gather matrices for a 3x3 stride-2 pad-1 conv.

    sel[t] @ x_flat picks, for every output position, the input row hit by
    tap t (zero row where the tap lands in padding). Shape (9, n*ho*wo, n*h*w).
    """
    # TODO(synk): O((n*h*w)^2) trace-time constant; replace with strided VMEM
    # slicing of the resident activation before scaling to real NTS-Net sizes.
    ho, wo = _conv_out(h), _conv_out(w)
    sel = np.zeros((9, n * ho * wo, n * h * w), np.float32)
    for kh in range(3):
        for kw in range(3):
            t = kh * 3 + kw
            for b in range(n):
                for oi in range(ho):
                    for oj in range(wo):
                        si, sj = 2 * oi + kh - 1, 2 * oj + kw - 1
                        if 0 <= si < h and 0 <= sj < w:
                            sel[t, b * ho * wo + oi * wo + oj,
                                b * h * w + si * w + sj] = 1.0
    return jnp.asarray(sel, jnp.bfloat16)


def _tap_masks(n, h, w):
    """(3, 3, n*h*w, 1) f32 validity mask of every 3x3 stride-1 pad-1 tap."""
    m1 = n * h * w
    p = np.arange(m1)
    i, j = (p // w) % h, p % w
    masks = np.zeros((3, 3, m1, 1), np.float32)
    for kh in range(3):
        for kw in range(3):
            dh, dw = kh - 1, kw - 1
            ok = (i + dh >= 0) & (i + dh < h) & (j + dw >= 0) & (j + dw < w)
            masks[kh, kw, :, 0] = ok
    return jnp.asarray(masks)


def _pad_lanes(a):
    """Zero-pad the last dim up to LANES (lane-dense output stores)."""
    return jnp.pad(a, [(0, 0)] * (a.ndim - 1) + [(0, LANES - a.shape[-1])])


# ------------------------------ fused kernel -------------------------------- #

def _make_fused_kernel(kt, wdim, m1, m2, m3):
    def _shift_rows(a, s):
        # b[p] = a[p + s], zero-filled at the ends (s in {-1, 0, +1}).
        if s == 0:
            return a
        z = jnp.zeros((abs(s), a.shape[1]), a.dtype)
        if s > 0:
            return jnp.concatenate([a[s:], z], axis=0)
        return jnp.concatenate([z, a[:s]], axis=0)

    def kernel(x_ref, w31_ref, mask_ref, b31_ref, w11_ref, b11_ref,
               sel2_ref, w2w_ref, b32_ref, w12_ref, b12_ref,
               sel3_ref, w3w_ref, b33_ref, w13_ref, b13_ref,
               z1_ref, z2_ref, z3_ref, acc_ref):
        k = pl.program_id(0)          # kernel-row index kh; dh = k - 1

        @pl.when(k == 0)
        def _init():
            acc_ref[...] = jnp.zeros_like(acc_ref)

        # dh shift = an 8-row-aligned window into the zero-padded, resident
        # activation slab (x_pad[r] = x_flat[r - W]); one slice per grid step.
        start = k * wdim
        if wdim % 8 == 0:
            start = pl.multiple_of(start, 8)
        xk = x_ref[pl.ds(start, m1), :]                         # (M1, Cin) bf16

        for tt in range(3):                                     # kw (static)
            dw = tt - 1
            prod = jnp.dot(xk, w31_ref[tt],
                           preferred_element_type=jnp.float32)  # (M1, MID) f32
            acc_ref[...] += _shift_rows(prod, dw) * mask_ref[0, tt]

        @pl.when(k == kt - 1)
        def _epilogue():
            def tidy(y_f32, w1_ref, b1_ref):
                # 1x1 conv kept in f32 (no extra rounding), lane-padded output.
                return jnp.dot(y_f32, w1_ref[...],
                               preferred_element_type=jnp.float32) + b1_ref[...]

            def stride2_block(y_prev_f32, sel_ref, wwide_ref, b3_ref, rows):
                # 3x3 stride-2 conv on the tiny previous activation, entirely
                # in VMEM: one wide matmul against the hstacked 9-tap weights,
                # then 9 gather-as-0/1-matmuls on lane-aligned 128-col slices.
                yw = jnp.dot(y_prev_f32.astype(jnp.bfloat16), wwide_ref[...],
                             preferred_element_type=jnp.float32)
                acc = jnp.zeros((rows, MID), jnp.float32)
                for t in range(9):
                    acc += jnp.dot(
                        sel_ref[t],
                        yw[:, t * MID:(t + 1) * MID].astype(jnp.bfloat16),
                        preferred_element_type=jnp.float32)
                return jnp.maximum(acc + b3_ref[...], 0.0)

            # branch1: ReLU + 1x1
            y1 = jnp.maximum(acc_ref[...] + b31_ref[...], 0.0)
            z1_ref[...] = tidy(y1, w11_ref, b11_ref)
            # branch2 (stride 2), entirely from VMEM
            y2 = stride2_block(y1, sel2_ref, w2w_ref, b32_ref, m2)
            z2_ref[...] = tidy(y2, w12_ref, b12_ref)
            # branch3 (stride 2); its y output is discarded (never stored)
            y3 = stride2_block(y2, sel3_ref, w3w_ref, b33_ref, m3)
            z3_ref[...] = tidy(y3, w13_ref, b13_ref)

    return kernel


# -------------------------------- network ----------------------------------- #

def proposal_net(x_nchw, p1, p2, p3):
    """Fused ProposalNet forward.  x_nchw: (N, 2048, H, W) float32."""
    w3_1, b3_1, w1_1, b1_1 = p1
    w3_2, b3_2, w1_2, b1_2 = p2
    w3_3, b3_3, w1_3, b1_3 = p3

    N, Cin, H, W = x_nchw.shape
    H2, W2 = _conv_out(H), _conv_out(W)        # branch2 output spatial
    H3, W3 = _conv_out(H2), _conv_out(W2)      # branch3 output spatial
    M1, M2, M3 = N * H * W, N * H2 * W2, N * H3 * W3
    KT = 3                                     # grid over the 3 kernel rows kh
    c1, c2, c3 = w1_1.shape[1], w1_2.shape[1], w1_3.shape[1]

    # Activation: single bf16 slab, zero-padded W rows each end so every dh
    # window of the kernel is an in-bounds, 8-row-aligned slice.
    x_flat = jnp.transpose(x_nchw, (0, 2, 3, 1)).reshape(M1, Cin).astype(jnp.bfloat16)
    x_pad = jnp.pad(x_flat, ((W, W), (0, 0)))
    XR = M1 + 2 * W

    # Branch1 3x3 weights, tap-major: contiguous 3-tap (1.5 MiB) block per step.
    w31 = w3_1.reshape(9, Cin, MID).astype(jnp.bfloat16)
    masks = _tap_masks(N, H, W)

    # Branch2/3 constants (all tiny, VMEM-resident): stride-2 gather matrices,
    # hstacked wide 3x3 weights, lane-padded 1x1 weights/biases.
    sel2 = _sel_3x3_s2(N, H, W)                                   # (9, M2, M1)
    sel3 = _sel_3x3_s2(N, H2, W2)                                 # (9, M3, M2)
    w2w = jnp.transpose(w3_2.reshape(9, MID, MID), (1, 0, 2)
                        ).reshape(MID, 9 * MID).astype(jnp.bfloat16)
    w3w = jnp.transpose(w3_3.reshape(9, MID, MID), (1, 0, 2)
                        ).reshape(MID, 9 * MID).astype(jnp.bfloat16)
    w11, w12, w13 = [_pad_lanes(w) for w in (w1_1, w1_2, w1_3)]   # f32
    b11, b12, b13 = [_pad_lanes(b.reshape(1, -1)) for b in (b1_1, b1_2, b1_3)]
    b31, b32, b33 = [b.reshape(1, MID) for b in (b3_1, b3_2, b3_3)]

    c2d = lambda k: (0, 0)
    c3d = lambda k: (0, 0, 0)

    z1p, z2p, z3p = pl.pallas_call(
        _make_fused_kernel(KT, W, M1, M2, M3),
        out_shape=(jax.ShapeDtypeStruct((M1, LANES), jnp.float32),
                   jax.ShapeDtypeStruct((M2, LANES), jnp.float32),
                   jax.ShapeDtypeStruct((M3, LANES), jnp.float32)),
        grid_spec=pltpu.PrefetchScalarGridSpec(
            num_scalar_prefetch=0,
            grid=(KT,),                                        # kh reduction
            in_specs=[
                pl.BlockSpec((XR, Cin), c2d),                        # x_pad (resident)
                pl.BlockSpec((3, Cin, MID), lambda k: (k, 0, 0)),    # branch1 W, 3 taps/step
                pl.BlockSpec((1, 3, M1, 1), lambda k: (k, 0, 0, 0)), # tap masks
                pl.BlockSpec((1, MID), c2d),                         # b3_1
                pl.BlockSpec((MID, LANES), c2d),                     # w1_1 (padded)
                pl.BlockSpec((1, LANES), c2d),                       # b1_1 (padded)
                pl.BlockSpec((9, M2, M1), c3d),                      # sel2
                pl.BlockSpec((MID, 9 * MID), c2d),                   # branch2 3x3 W (wide)
                pl.BlockSpec((1, MID), c2d),                         # b3_2
                pl.BlockSpec((MID, LANES), c2d),                     # w1_2 (padded)
                pl.BlockSpec((1, LANES), c2d),                       # b1_2 (padded)
                pl.BlockSpec((9, M3, M2), c3d),                      # sel3
                pl.BlockSpec((MID, 9 * MID), c2d),                   # branch3 3x3 W (wide)
                pl.BlockSpec((1, MID), c2d),                         # b3_3
                pl.BlockSpec((MID, LANES), c2d),                     # w1_3 (padded)
                pl.BlockSpec((1, LANES), c2d),                       # b1_3 (padded)
            ],
            out_specs=[
                pl.BlockSpec((M1, LANES), c2d),
                pl.BlockSpec((M2, LANES), c2d),
                pl.BlockSpec((M3, LANES), c2d),
            ],
            scratch_shapes=[pltpu.VMEM((M1, MID), jnp.float32)]),
        compiler_params=pltpu.CompilerParams(
            dimension_semantics=("arbitrary",)),
    )(x_pad, w31, masks, b31, w11, b11, sel2, w2w, b32, w12, b12,
      sel3, w3w, b33, w13, b13)

    def nchw_flat(zp, h, w, c):
        # Match PyTorch z.view(N, -1) on an NCHW tensor.
        z = zp[:, :c].reshape(N, h, w, c)
        return jnp.transpose(z, (0, 3, 1, 2)).reshape(N, -1)

    return jnp.concatenate([nchw_flat(z1p, H, W, c1),
                            nchw_flat(z2p, H2, W2, c2),
                            nchw_flat(z3p, H3, W3, c3)], axis=1)


# --------------------------- reference (pure JAX) ---------------------------- #

def _flatten_nchw(z_nhwc):
    return jnp.transpose(z_nhwc, (0, 3, 1, 2)).reshape(z_nhwc.shape[0], -1)


def _ref_block(x, w3, b3, w1, b1, stride):
    y = lax.conv_general_dilated(
        x, w3, (stride, stride), ((1, 1), (1, 1)),
        dimension_numbers=("NHWC", "HWIO", "NHWC"),
        precision=lax.Precision.HIGHEST)
    y = jnp.maximum(y + b3.reshape(1, 1, 1, -1), 0.0)
    z = jnp.einsum("nhwc,co->nhwo", y, w1,
                   precision=lax.Precision.HIGHEST) + b1.reshape(1, 1, 1, -1)
    return z, y


def ref_net(x_nchw, p1, p2, p3):
    x = jnp.transpose(x_nchw, (0, 2, 3, 1))
    z1, y1 = _ref_block(x, *p1, stride=1)
    z2, y2 = _ref_block(y1, *p2, stride=2)
    z3, _ = _ref_block(y2, *p3, stride=2)
    return jnp.concatenate(
        [_flatten_nchw(z1), _flatten_nchw(z2), _flatten_nchw(z3)], axis=1)


# -------------------------------- params ------------------------------------ #

def init_block(key, cin, cout, cmid=MID):
    k1, k2, k3, k4 = jax.random.split(key, 4)
    w3 = jax.random.normal(k1, (3, 3, cin, cmid), jnp.float32) * (2.0 / (9 * cin)) ** 0.5
    b3 = jax.random.normal(k2, (cmid,), jnp.float32) * 0.01
    w1 = jax.random.normal(k3, (cmid, cout), jnp.float32) * (2.0 / cmid) ** 0.5
    b1 = jax.random.normal(k4, (cout,), jnp.float32) * 0.01
    return w3, b3, w1, b1


# --------------------------------- main -------------------------------------- #

if __name__ == "__main__":
    key = jax.random.PRNGKey(0)
    kx, k1, k2, k3 = jax.random.split(key, 4)

    # Module fixes in_channels=2048 for branch1; use a small 8x8 feature map.
    N, C, H, W = 2, 2048, 8, 8
    x = jax.random.normal(kx, (N, C, H, W), jnp.float32)

    p1 = init_block(k1, 2048, 6)   # branch1: stride 1, out 6
    p2 = init_block(k2, MID, 6)    # branch2: stride 2, out 6
    p3 = init_block(k3, MID, 9)    # branch3: stride 2, out 9

    out = jax.jit(proposal_net)(x, p1, p2, p3)
    out = jax.block_until_ready(out)

    H2, W2 = _conv_out(H), _conv_out(W)
    H3, W3 = _conv_out(H2), _conv_out(W2)
    expected_cols = 6 * H * W + 6 * H2 * W2 + 9 * H3 * W3
    assert out.shape == (N, expected_cols), out.shape

    ref = jax.block_until_ready(ref_net(x, p1, p2, p3))
    err = float(jnp.max(jnp.abs(out - ref)))
    scale = float(jnp.max(jnp.abs(ref)))
    # bf16-operand / f32-accumulate kernel vs. f32 HIGHEST reference.
    assert err <= 3e-2 * scale, (err, scale)

    print("KERNEL_OK")
</pallas_src>

<mosaic_0001>
module attributes {stable_mosaic.version = 11 : i64} {
  func.func @kernel(%arg0: i32, %arg1: memref<144x2048xbf16, #tpu.memory_space<vmem>>, %arg2: memref<3x2048x128xbf16, #tpu.memory_space<vmem>>, %arg3: memref<1x3x128x1xf32, #tpu.memory_space<vmem>>, %arg4: memref<1x128xf32, #tpu.memory_space<vmem>>, %arg5: memref<128x128xf32, #tpu.memory_space<vmem>>, %arg6: memref<1x128xf32, #tpu.memory_space<vmem>>, %arg7: memref<9x32x128xbf16, #tpu.memory_space<vmem>>, %arg8: memref<128x1152xbf16, #tpu.memory_space<vmem>>, %arg9: memref<1x128xf32, #tpu.memory_space<vmem>>, %arg10: memref<128x128xf32, #tpu.memory_space<vmem>>, %arg11: memref<1x128xf32, #tpu.memory_space<vmem>>, %arg12: memref<9x8x32xbf16, #tpu.memory_space<vmem>>, %arg13: memref<128x1152xbf16, #tpu.memory_space<vmem>>, %arg14: memref<1x128xf32, #tpu.memory_space<vmem>>, %arg15: memref<128x128xf32, #tpu.memory_space<vmem>>, %arg16: memref<1x128xf32, #tpu.memory_space<vmem>>, %arg17: memref<128x128xf32, #tpu.memory_space<vmem>>, %arg18: memref<32x128xf32, #tpu.memory_space<vmem>>, %arg19: memref<8x128xf32, #tpu.memory_space<vmem>>, %arg20: memref<128x128xf32, #tpu.memory_space<vmem>>) attributes {dimension_semantics = [#tpu.dimension_semantics<arbitrary>], iteration_bounds = array<i64: 3>, scalar_prefetch = 0 : i64, scratch_operands = 1 : i64, tpu.core_type = #tpu.core_type<tc>, window_params = [{pipeline_mode = #tpu.pipeline_mode<synchronous>, transform_indices = @transform_0, window_bounds = array<i64: 144, 2048>}, {transform_indices = @transform_1, window_bounds = array<i64: 3, 2048, 128>}, {transform_indices = @transform_2, window_bounds = array<i64: 1, 3, 128, 1>}, {pipeline_mode = #tpu.pipeline_mode<synchronous>, transform_indices = @transform_3, window_bounds = array<i64: 1, 128>}, {pipeline_mode = #tpu.pipeline_mode<synchronous>, transform_indices = @transform_4, window_bounds = array<i64: 128, 128>}, {pipeline_mode = #tpu.pipeline_mode<synchronous>, transform_indices = @transform_5, window_bounds = array<i64: 1, 128>}, {pipeline_mode = #tpu.pipeline_mode<synchronous>, transform_indices = @transform_6, window_bounds = array<i64: 9, 32, 128>}, {pipeline_mode = #tpu.pipeline_mode<synchronous>, transform_indices = @transform_7, window_bounds = array<i64: 128, 1152>}, {pipeline_mode = #tpu.pipeline_mode<synchronous>, transform_indices = @transform_8, window_bounds = array<i64: 1, 128>}, {pipeline_mode = #tpu.pipeline_mode<synchronous>, transform_indices = @transform_9, window_bounds = array<i64: 128, 128>}, {pipeline_mode = #tpu.pipeline_mode<synchronous>, transform_indices = @transform_10, window_bounds = array<i64: 1, 128>}, {pipeline_mode = #tpu.pipeline_mode<synchronous>, transform_indices = @transform_11, window_bounds = array<i64: 9, 8, 32>}, {pipeline_mode = #tpu.pipeline_mode<synchronous>, transform_indices = @transform_12, window_bounds = array<i64: 128, 1152>}, {pipeline_mode = #tpu.pipeline_mode<synchronous>, transform_indices = @transform_13, window_bounds = array<i64: 1, 128>}, {pipeline_mode = #tpu.pipeline_mode<synchronous>, transform_indices = @transform_14, window_bounds = array<i64: 128, 128>}, {pipeline_mode = #tpu.pipeline_mode<synchronous>, transform_indices = @transform_15, window_bounds = array<i64: 1, 128>}, {pipeline_mode = #tpu.pipeline_mode<synchronous>, transform_indices = @transform_16, window_bounds = array<i64: 128, 128>}, {pipeline_mode = #tpu.pipeline_mode<synchronous>, transform_indices = @transform_17, window_bounds = array<i64: 32, 128>}, {pipeline_mode = #tpu.pipeline_mode<synchronous>, transform_indices = @transform_18, window_bounds = array<i64: 8, 128>}]} {
    %c0_i32 = arith.constant 0 : i32
    %0 = arith.cmpi eq, %arg0, %c0_i32 : i32
    %1 = arith.extui %0 : i1 to i32
    %c0_i32_0 = arith.constant 0 : i32
    %2 = arith.cmpi ne, %1, %c0_i32_0 : i32
    scf.if %2 {
      %cst_37 = arith.constant 0.000000e+00 : f32
      %46 = vector.broadcast %cst_37 : f32 to vector<128x128xf32>
      %c0_38 = arith.constant 0 : index
      %c0_39 = arith.constant 0 : index
      %47 = vector.load %arg20[%c0_38, %c0_39] : memref<128x128xf32, #tpu.memory_space<vmem>>, vector<128x128xf32>
      tpu.vector_store %arg20[%c0_38, %c0_39], %46 {strides = array<i32>} : memref<128x128xf32, #tpu.memory_space<vmem>>, vector<128x128xf32>,
    } else {
    }
    %c8_i32 = arith.constant 8 : i32
    %3 = arith.muli %arg0, %c8_i32 : i32
    %4 = tpu.assume_multiple %3, 8 : i32
    %5 = arith.index_cast %4 : i32 to index
    %c0 = arith.constant 0 : index
    %6 = vector.load %arg1[%5, %c0] : memref<144x2048xbf16, #tpu.memory_space<vmem>>, vector<128x2048xbf16>
    %c0_1 = arith.constant 0 : index
    %c0_2 = arith.constant 0 : index
    %c0_3 = arith.constant 0 : index
    %7 = vector.load %arg2[%c0_1, %c0_2, %c0_3] : memref<3x2048x128xbf16, #tpu.memory_space<vmem>>, vector<1x2048x128xbf16>
    %8 = vector.shape_cast %7 : vector<1x2048x128xbf16> to vector<2048x128xbf16>
    %cst = arith.constant dense<0.000000e+00> : vector<128x128xf32>
    %9 = tpu.matmul %6, %8, %cst {dimension_numbers = #tpu.dot_dimension_numbers<[1], [0], [0], [1], [0, 0, 1, 1], [], []>} : vector<128x2048xbf16>, vector<2048x128xbf16>, vector<128x128xf32> -> vector<128x128xf32>
    %c0_4 = arith.constant 0 : index
    %c0_5 = arith.constant 0 : index
    %10 = vector.load %arg20[%c0_4, %c0_5] : memref<128x128xf32, #tpu.memory_space<vmem>>, vector<128x128xf32>
    %cst_6 = arith.constant 0.000000e+00 : f32
    %11 = vector.broadcast %cst_6 : f32 to vector<1x128xf32>
    %12 = vector.extract_strided_slice %9 {offsets = [0, 0], sizes = [127, 128], strides = [1, 1]} : vector<128x128xf32> to vector<127x128xf32>
    %13 = tpu.concatenate %11, %12 in 0 : vector<1x128xf32>, vector<127x128xf32> -> vector<128x128xf32>
    %c0_7 = arith.constant 0 : index
    %c0_8 = arith.constant 0 : index
    %c0_9 = arith.constant 0 : index
    %c0_10 = arith.constant 0 : index
    %14 = vector.load %arg3[%c0_7, %c0_8, %c0_9, %c0_10] : memref<1x3x128x1xf32, #tpu.memory_space<vmem>>, vector<1x1x128x1xf32>
    %15 = vector.shape_cast %14 : vector<1x1x128x1xf32> to vector<128x1xf32>
    %16 = vector.broadcast %15 : vector<128x1xf32> to vector<128x128xf32>
    %17 = arith.mulf %13, %16 : vector<128x128xf32>
    %18 = arith.addf %10, %17 : vector<128x128xf32>
    %c0_11 = arith.constant 0 : index
    %c0_12 = arith.constant 0 : index
    %19 = vector.load %arg20[%c0_11, %c0_12] : memref<128x128xf32, #tpu.memory_space<vmem>>, vector<128x128xf32>
    tpu.vector_store %arg20[%c0_11, %c0_12], %18 {strides = array<i32>} : memref<128x128xf32, #tpu.memory_space<vmem>>, vector<128x128xf32>,
    %c1 = arith.constant 1 : index
    %c0_13 = arith.constant 0 : index
    %c0_14 = arith.constant 0 : index
    %20 = vector.load %arg2[%c1, %c0_13, %c0_14] : memref<3x2048x128xbf16, #tpu.memory_space<vmem>>, vector<1x2048x128xbf16>
    %21 = vector.shape_cast %20 : vector<1x2048x128xbf16> to vector<2048x128xbf16>
    %cst_15 = arith.constant dense<0.000000e+00> : vector<128x128xf32>
    %22 = tpu.matmul %6, %21, %cst_15 {dimension_numbers = #tpu.dot_dimension_numbers<[1], [0], [0], [1], [0, 0, 1, 1], [], []>} : vector<128x2048xbf16>, vector<2048x128xbf16>, vector<128x128xf32> -> vector<128x128xf32>
    %c0_16 = arith.constant 0 : index
    %c0_17 = arith.constant 0 : index
    %23 = vector.load %arg20[%c0_16, %c0_17] : memref<128x128xf32, #tpu.memory_space<vmem>>, vector<128x128xf32>
    %c0_18 = arith.constant 0 : index
    %c1_19 = arith.constant 1 : index
    %c0_20 = arith.constant 0 : index
    %c0_21 = arith.constant 0 : index
    %24 = vector.load %arg3[%c0_18, %c1_19, %c0_20, %c0_21] : memref<1x3x128x1xf32, #tpu.memory_space<vmem>>, vector<1x1x128x1xf32>
    %25 = vector.shape_cast %24 : vector<1x1x128x1xf32> to vector<128x1xf32>
    %26 = vector.broadcast %25 : vector<128x1xf32> to vector<128x128xf32>
    %27 = arith.mulf %22, %26 : vector<128x128xf32>
    %28 = arith.addf %23, %27 : vector<128x128xf32>
    %c0_22 = arith.constant 0 : index
    %c0_23 = arith.constant 0 : index
    %29 = vector.load %arg20[%c0_22, %c0_23] : memref<128x128xf32, #tpu.memory_space<vmem>>, vector<128x128xf32>
    tpu.vector_store %arg20[%c0_22, %c0_23], %28 {strides = array<i32>} : memref<128x128xf32, #tpu.memory_space<vmem>>, vector<128x128xf32>,
    %c2 = arith.constant 2 : index
    %c0_24 = arith.constant 0 : index
    %c0_25 = arith.constant 0 : index
    %30 = vector.load %arg2[%c2, %c0_24, %c0_25] : memref<3x2048x128xbf16, #tpu.memory_space<vmem>>, vector<1x2048x128xbf16>
    %31 = vector.shape_cast %30 : vector<1x2048x128xbf16> to vector<2048x128xbf16>
    %cst_26 = arith.constant dense<0.000000e+00> : vector<128x128xf32>
    %32 = tpu.matmul %6, %31, %cst_26 {dimension_numbers = #tpu.dot_dimension_numbers<[1], [0], [0], [1], [0, 0, 1, 1], [], []>} : vector<128x2048xbf16>, vector<2048x128xbf16>, vector<128x128xf32> -> vector<128x128xf32>
    %c0_27 = arith.constant 0 : index
    %c0_28 = arith.constant 0 : index
    %33 = vector.load %arg20[%c0_27, %c0_28] : memref<128x128xf32, #tpu.memory_space<vmem>>, vector<128x128xf32>
    %cst_29 = arith.constant 0.000000e+00 : f32
    %34 = vector.broadcast %cst_29 : f32 to vector<1x128xf32>
    %35 = vector.extract_strided_slice %32 {offsets = [1, 0], sizes = [127, 128], strides = [1, 1]} : vector<128x128xf32> to vector<127x128xf32>
    %36 = tpu.concatenate %35, %34 in 0 : vector<127x128xf32>, vector<1x128xf32> -> vector<128x128xf32>
    %c0_30 = arith.constant 0 : index
    %c2_31 = arith.constant 2 : index
    %c0_32 = arith.constant 0 : index
    %c0_33 = arith.constant 0 : index
    %37 = vector.load %arg3[%c0_30, %c2_31, %c0_32, %c0_33] : memref<1x3x128x1xf32, #tpu.memory_space<vmem>>, vector<1x1x128x1xf32>
    %38 = vector.shape_cast %37 : vector<1x1x128x1xf32> to vector<128x1xf32>
    %39 = vector.broadcast %38 : vector<128x1xf32> to vector<128x128xf32>
    %40 = arith.mulf %36, %39 : vector<128x128xf32>
    %41 = arith.addf %33, %40 : vector<128x128xf32>
    %c0_34 = arith.constant 0 : index
    %c0_35 = arith.constant 0 : index
    %42 = vector.load %arg20[%c0_34, %c0_35] : memref<128x128xf32, #tpu.memory_space<vmem>>, vector<128x128xf32>
    tpu.vector_store %arg20[%c0_34, %c0_35], %41 {strides = array<i32>} : memref<128x128xf32, #tpu.memory_space<vmem>>, vector<128x128xf32>,
    %c2_i32 = arith.constant 2 : i32
    %43 = arith.cmpi eq, %arg0, %c2_i32 : i32
    %44 = arith.extui %43 : i1 to i32
    %c0_i32_36 = arith.constant 0 : i32
    %45 = arith.cmpi ne, %44, %c0_i32_36 : i32
    scf.if %45 {
      %c0_37 = arith.constant 0 : index
      %c0_38 = arith.constant 0 : index
      %46 = vector.load %arg20[%c0_37, %c0_38] : memref<128x128xf32, #tpu.memory_space<vmem>>, vector<128x128xf32>
      %c0_39 = arith.constant 0 : index
      %c0_40 = arith.constant 0 : index
      %47 = vector.load %arg4[%c0_39, %c0_40] : memref<1x128xf32, #tpu.memory_space<vmem>>, vector<1x128xf32>
      %48 = vector.broadcast %47 : vector<1x128xf32> to vector<128x128xf32>
      %49 = arith.addf %46, %48 : vector<128x128xf32>
      %cst_41 = arith.constant 0.000000e+00 : f32
      %50 = vector.broadcast %cst_41 : f32 to vector<128x128xf32>
      %51 = arith.maximumf %49, %50 : vector<128x128xf32>
      %c0_42 = arith.constant 0 : index
      %c0_43 = arith.constant 0 : index
      %52 = vector.load %arg5[%c0_42, %c0_43] : memref<128x128xf32, #tpu.memory_space<vmem>>, vector<128x128xf32>
      %cst_44 = arith.constant dense<0.000000e+00> : vector<128x128xf32>
      %53 = tpu.matmul %51, %52, %cst_44 {dimension_numbers = #tpu.dot_dimension_numbers<[1], [0], [0], [1], [0, 0, 1, 1], [], []>} : vector<128x128xf32>, vector<128x128xf32>, vector<128x128xf32> -> vector<128x128xf32>
      %c0_45 = arith.constant 0 : index
      %c0_46 = arith.constant 0 : index
      %54 = vector.load %arg6[%c0_45, %c0_46] : memref<1x128xf32, #tpu.memory_space<vmem>>, vector<1x128xf32>
      %55 = vector.broadcast %54 : vector<1x128xf32> to vector<128x128xf32>
      %56 = arith.addf %53, %55 : vector<128x128xf32>
      %c0_47 = arith.constant 0 : index
      %c0_48 = arith.constant 0 : index
      %57 = vector.load %arg17[%c0_47, %c0_48] : memref<128x128xf32, #tpu.memory_space<vmem>>, vector<128x128xf32>
      tpu.vector_store %arg17[%c0_47, %c0_48], %56 {strides = array<i32>} : memref<128x128xf32, #tpu.memory_space<vmem>>, vector<128x128xf32>,
      %58 = arith.truncf %51 : vector<128x128xf32> to vector<128x128xbf16>
      %c0_49 = arith.constant 0 : index
      %c0_50 = arith.constant 0 : index
      %59 = vector.load %arg8[%c0_49, %c0_50] : memref<128x1152xbf16, #tpu.memory_space<vmem>>, vector<128x1152xbf16>
      %cst_51 = arith.constant dense<0.000000e+00> : vector<128x1152xf32>
      %60 = tpu.matmul %58, %59, %cst_51 {dimension_numbers = #tpu.dot_dimension_numbers<[1], [0], [0], [1], [0, 0, 1, 1], [], []>} : vector<128x128xbf16>, vector<128x1152xbf16>, vector<128x1152xf32> -> vector<128x1152xf32>
      %cst_52 = arith.constant 0.000000e+00 : f32
      %61 = vector.broadcast %cst_52 : f32 to vector<32x128xf32>
      %c0_53 = arith.constant 0 : index
      %c0_54 = arith.constant 0 : index
      %c0_55 = arith.constant 0 : index
      %62 = vector.load %arg7[%c0_53, %c0_54, %c0_55] : memref<9x32x128xbf16, #tpu.memory_space<vmem>>, vector<1x32x128xbf16>
      %63 = vector.shape_cast %62 : vector<1x32x128xbf16> to vector<32x128xbf16>
      %64 = vector.extract_strided_slice %60 {offsets = [0, 0], sizes = [128, 128], strides = [1, 1]} : vector<128x1152xf32> to vector<128x128xf32>
      %65 = arith.truncf %64 : vector<128x128xf32> to vector<128x128xbf16>
      %cst_56 = arith.constant dense<0.000000e+00> : vector<32x128xf32>
      %66 = tpu.matmul %63, %65, %cst_56 {dimension_numbers = #tpu.dot_dimension_numbers<[1], [0], [0], [1], [0, 0, 1, 1], [], []>} : vector<32x128xbf16>, vector<128x128xbf16>, vector<32x128xf32> -> vector<32x128xf32>
      %67 = arith.addf %61, %66 : vector<32x128xf32>
      %c1_57 = arith.constant 1 : index
      %c0_58 = arith.constant 0 : index
      %c0_59 = arith.constant 0 : index
      %68 = vector.load %arg7[%c1_57, %c0_58, %c0_59] : memref<9x32x128xbf16, #tpu.memory_space<vmem>>, vector<1x32x128xbf16>
      %69 = vector.shape_cast %68 : vector<1x32x128xbf16> to vector<32x128xbf16>
      %70 = vector.extract_strided_slice %60 {offsets = [0, 128], sizes = [128, 128], strides = [1, 1]} : vector<128x1152xf32> to vector<128x128xf32>
      %71 = arith.truncf %70 : vector<128x128xf32> to vector<128x128xbf16>
      %cst_60 = arith.constant dense<0.000000e+00> : vector<32x128xf32>
      %72 = tpu.matmul %69, %71, %cst_60 {dimension_numbers = #tpu.dot_dimension_numbers<[1], [0], [0], [1], [0, 0, 1, 1], [], []>} : vector<32x128xbf16>, vector<128x128xbf16>, vector<32x128xf32> -> vector<32x128xf32>
      %73 = arith.addf %67, %72 : vector<32x128xf32>
      %c2_61 = arith.constant 2 : index
      %c0_62 = arith.constant 0 : index
      %c0_63 = arith.constant 0 : index
      %74 = vector.load %arg7[%c2_61, %c0_62, %c0_63] : memref<9x32x128xbf16, #tpu.memory_space<vmem>>, vector<1x32x128xbf16>
      %75 = vector.shape_cast %74 : vector<1x32x128xbf16> to vector<32x128xbf16>
      %76 = vector.extract_strided_slice %60 {offsets = [0, 256], sizes = [128, 128], strides = [1, 1]} : vector<128x1152xf32> to vector<128x128xf32>
      %77 = arith.truncf %76 : vector<128x128xf32> to vector<128x128xbf16>
      %cst_64 = arith.constant dense<0.000000e+00> : vector<32x128xf32>
      %78 = tpu.matmul %75, %77, %cst_64 {dimension_numbers = #tpu.dot_dimension_numbers<[1], [0], [0], [1], [0, 0, 1, 1], [], []>} : vector<32x128xbf16>, vector<128x128xbf16>, vector<32x128xf32> -> vector<32x128xf32>
      %79 = arith.addf %73, %78 : vector<32x128xf32>
      %c3 = arith.constant 3 : index
      %c0_65 = arith.constant 0 : index
      %c0_66 = arith.constant 0 : index
      %80 = vector.load %arg7[%c3, %c0_65, %c0_66] : memref<9x32x128xbf16, #tpu.memory_space<vmem>>, vector<1x32x128xbf16>
      %81 = vector.shape_cast %80 : vector<1x32x128xbf16> to vector<32x128xbf16>
      %82 = vector.extract_strided_slice %60 {offsets = [0, 384], sizes = [128, 128], strides = [1, 1]} : vector<128x1152xf32> to vector<128x128xf32>
      %83 = arith.truncf %82 : vector<128x128xf32> to vector<128x128xbf16>
      %cst_67 = arith.constant dense<0.000000e+00> : vector<32x128xf32>
      %84 = tpu.matmul %81, %83, %cst_67 {dimension_numbers = #tpu.dot_dimension_numbers<[1], [0], [0], [1], [0, 0, 1, 1], [], []>} : vector<32x128xbf16>, vector<128x128xbf16>, vector<32x128xf32> -> vector<32x128xf32>
      %85 = arith.addf %79, %84 : vector<32x128xf32>
      %c4 = arith.constant 4 : index
      %c0_68 = arith.constant 0 : index
      %c0_69 = arith.constant 0 : index
      %86 = vector.load %arg7[%c4, %c0_68, %c0_69] : memref<9x32x128xbf16, #tpu.memory_space<vmem>>, vector<1x32x128xbf16>
      %87 = vector.shape_cast %86 : vector<1x32x128xbf16> to vector<32x128xbf16>
      %88 = vector.extract_strided_slice %60 {offsets = [0, 512], sizes = [128, 128], strides = [1, 1]} : vector<128x1152xf32> to vector<128x128xf32>
      %89 = arith.truncf %88 : vector<128x128xf32> to vector<128x128xbf16>
      %cst_70 = arith.constant dense<0.000000e+00> : vector<32x128xf32>
      %90 = tpu.matmul %87, %89, %cst_70 {dimension_numbers = #tpu.dot_dimension_numbers<[1], [0], [0], [1], [0, 0, 1, 1], [], []>} : vector<32x128xbf16>, vector<128x128xbf16>, vector<32x128xf32> -> vector<32x128xf32>
      %91 = arith.addf %85, %90 : vector<32x128xf32>
      %c5 = arith.constant 5 : index
      %c0_71 = arith.constant 0 : index
      %c0_72 = arith.constant 0 : index
      %92 = vector.load %arg7[%c5, %c0_71, %c0_72] : memref<9x32x128xbf16, #tpu.memory_space<vmem>>, vector<1x32x128xbf16>
      %93 = vector.shape_cast %92 : vector<1x32x128xbf16> to vector<32x128xbf16>
      %94 = vector.extract_strided_slice %60 {offsets = [0, 640], sizes = [128, 128], strides = [1, 1]} : vector<128x1152xf32> to vector<128x128xf32>
      %95 = arith.truncf %94 : vector<128x128xf32> to vector<128x128xbf16>
      %cst_73 = arith.constant dense<0.000000e+00> : vector<32x128xf32>
      %96 = tpu.matmul %93, %95, %cst_73 {dimension_numbers = #tpu.dot_dimension_numbers<[1], [0], [0], [1], [0, 0, 1, 1], [], []>} : vector<32x128xbf16>, vector<128x128xbf16>, vector<32x128xf32> -> vector<32x128xf32>
      %97 = arith.addf %91, %96 : vector<32x128xf32>
      %c6 = arith.constant 6 : index
      %c0_74 = arith.constant 0 : index
      %c0_75 = arith.constant 0 : index
      %98 = vector.load %arg7[%c6, %c0_74, %c0_75] : memref<9x32x128xbf16, #tpu.memory_space<vmem>>, vector<1x32x128xbf16>
      %99 = vector.shape_cast %98 : vector<1x32x128xbf16> to vector<32x128xbf16>
      %100 = vector.extract_strided_slice %60 {offsets = [0, 768], sizes = [128, 128], strides = [1, 1]} : vector<128x1152xf32> to vector<128x128xf32>
      %101 = arith.truncf %100 : vector<128x128xf32> to vector<128x128xbf16>
      %cst_76 = arith.constant dense<0.000000e+00> : vector<32x128xf32>
      %102 = tpu.matmul %99, %101, %cst_76 {dimension_numbers = #tpu.dot_dimension_numbers<[1], [0], [0], [1], [0, 0, 1, 1], [], []>} : vector<32x128xbf16>, vector<128x128xbf16>, vector<32x128xf32> -> vector<32x128xf32>
      %103 = arith.addf %97, %102 : vector<32x128xf32>
      %c7 = arith.constant 7 : index
      %c0_77 = arith.constant 0 : index
      %c0_78 = arith.constant 0 : index
      %104 = vector.load %arg7[%c7, %c0_77, %c0_78] : memref<9x32x128xbf16, #tpu.memory_space<vmem>>, vector<1x32x128xbf16>
      %105 = vector.shape_cast %104 : vector<1x32x128xbf16> to vector<32x128xbf16>
      %106 = vector.extract_strided_slice %60 {offsets = [0, 896], sizes = [128, 128], strides = [1, 1]} : vector<128x1152xf32> to vector<128x128xf32>
      %107 = arith.truncf %106 : vector<128x128xf32> to vector<128x128xbf16>
      %cst_79 = arith.constant dense<0.000000e+00> : vector<32x128xf32>
      %108 = tpu.matmul %105, %107, %cst_79 {dimension_numbers = #tpu.dot_dimension_numbers<[1], [0], [0], [1], [0, 0, 1, 1], [], []>} : vector<32x128xbf16>, vector<128x128xbf16>, vector<32x128xf32> -> vector<32x128xf32>
      %109 = arith.addf %103, %108 : vector<32x128xf32>
      %c8 = arith.constant 8 : index
      %c0_80 = arith.constant 0 : index
      %c0_81 = arith.constant 0 : index
      %110 = vector.load %arg7[%c8, %c0_80, %c0_81] : memref<9x32x128xbf16, #tpu.memory_space<vmem>>, vector<1x32x128xbf16>
      %111 = vector.shape_cast %110 : vector<1x32x128xbf16> to vector<32x128xbf16>
      %112 = vector.extract_strided_slice %60 {offsets = [0, 1024], sizes = [128, 128], strides = [1, 1]} : vector<128x1152xf32> to vector<128x128xf32>
      %113 = arith.truncf %112 : vector<128x128xf32> to vector<128x128xbf16>
      %cst_82 = arith.constant dense<0.000000e+00> : vector<32x128xf32>
      %114 = tpu.matmul %111, %113, %cst_82 {dimension_numbers = #tpu.dot_dimension_numbers<[1], [0], [0], [1], [0, 0, 1, 1], [], []>} : vector<32x128xbf16>, vector<128x128xbf16>, vector<32x128xf32> -> vector<32x128xf32>
      %115 = arith.addf %109, %114 : vector<32x128xf32>
      %c0_83 = arith.constant 0 : index
      %c0_84 = arith.constant 0 : index
      %116 = vector.load %arg9[%c0_83, %c0_84] : memref<1x128xf32, #tpu.memory_space<vmem>>, vector<1x128xf32>
      %117 = vector.broadcast %116 : vector<1x128xf32> to vector<32x128xf32>
      %118 = arith.addf %115, %117 : vector<32x128xf32>
      %cst_85 = arith.constant 0.000000e+00 : f32
      %119 = vector.broadcast %cst_85 : f32 to vector<32x128xf32>
      %120 = arith.maximumf %118, %119 : vector<32x128xf32>
      %c0_86 = arith.constant 0 : index
      %c0_87 = arith.constant 0 : index
      %121 = vector.load %arg10[%c0_86, %c0_87] : memref<128x128xf32, #tpu.memory_space<vmem>>, vector<128x128xf32>
      %cst_88 = arith.constant dense<0.000000e+00> : vector<32x128xf32>
      %122 = tpu.matmul %120, %121, %cst_88 {dimension_numbers = #tpu.dot_dimension_numbers<[1], [0], [0], [1], [0, 0, 1, 1], [], []>} : vector<32x128xf32>, vector<128x128xf32>, vector<32x128xf32> -> vector<32x128xf32>
      %c0_89 = arith.constant 0 : index
      %c0_90 = arith.constant 0 : index
      %123 = vector.load %arg11[%c0_89, %c0_90] : memref<1x128xf32, #tpu.memory_space<vmem>>, vector<1x128xf32>
      %124 = vector.broadcast %123 : vector<1x128xf32> to vector<32x128xf32>
      %125 = arith.addf %122, %124 : vector<32x128xf32>
      %c0_91 = arith.constant 0 : index
      %c0_92 = arith.constant 0 : index
      %126 = vector.load %arg18[%c0_91, %c0_92] : memref<32x128xf32, #tpu.memory_space<vmem>>, vector<32x128xf32>
      tpu.vector_store %arg18[%c0_91, %c0_92], %125 {strides = array<i32>} : memref<32x128xf32, #tpu.memory_space<vmem>>, vector<32x128xf32>,
      %127 = arith.truncf %120 : vector<32x128xf32> to vector<32x128xbf16>
      %c0_93 = arith.constant 0 : index
      %c0_94 = arith.constant 0 : index
      %128 = vector.load %arg13[%c0_93, %c0_94] : memref<128x1152xbf16, #tpu.memory_space<vmem>>, vector<128x1152xbf16>
      %cst_95 = arith.constant dense<0.000000e+00> : vector<32x1152xf32>
      %129 = tpu.matmul %127, %128, %cst_95 {dimension_numbers = #tpu.dot_dimension_numbers<[1], [0], [0], [1], [0, 0, 1, 1], [], []>} : vector<32x128xbf16>, vector<128x1152xbf16>, vector<32x1152xf32> -> vector<32x1152xf32>
      %cst_96 = arith.constant 0.000000e+00 : f32
      %130 = vector.broadcast %cst_96 : f32 to vector<8x128xf32>
      %c0_97 = arith.constant 0 : index
      %c0_98 = arith.constant 0 : index
      %c0_99 = arith.constant 0 : index
      %131 = vector.load %arg12[%c0_97, %c0_98, %c0_99] : memref<9x8x32xbf16, #tpu.memory_space<vmem>>, vector<1x8x32xbf16>
      %132 = vector.shape_cast %131 : vector<1x8x32xbf16> to vector<8x32xbf16>
      %133 = vector.extract_strided_slice %129 {offsets = [0, 0], sizes = [32, 128], strides = [1, 1]} : vector<32x1152xf32> to vector<32x128xf32>
      %134 = arith.truncf %133 : vector<32x128xf32> to vector<32x128xbf16>
      %cst_100 = arith.constant dense<0.000000e+00> : vector<8x128xf32>
      %135 = tpu.matmul %132, %134, %cst_100 {dimension_numbers = #tpu.dot_dimension_numbers<[1], [0], [0], [1], [0, 0, 1, 1], [], []>} : vector<8x32xbf16>, vector<32x128xbf16>, vector<8x128xf32> -> vector<8x128xf32>
      %136 = arith.addf %130, %135 : vector<8x128xf32>
      %c1_101 = arith.constant 1 : index
      %c0_102 = arith.constant 0 : index
      %c0_103 = arith.constant 0 : index
      %137 = vector.load %arg12[%c1_101, %c0_102, %c0_103] : memref<9x8x32xbf16, #tpu.memory_space<vmem>>, vector<1x8x32xbf16>
      %138 = vector.shape_cast %137 : vector<1x8x32xbf16> to vector<8x32xbf16>
      %139 = vector.extract_strided_slice %129 {offsets = [0, 128], sizes = [32, 128], strides = [1, 1]} : vector<32x1152xf32> to vector<32x128xf32>
      %140 = arith.truncf %139 : vector<32x128xf32> to vector<32x128xbf16>
      %cst_104 = arith.constant dense<0.000000e+00> : vector<8x128xf32>
      %141 = tpu.matmul %138, %140, %cst_104 {dimension_numbers = #tpu.dot_dimension_numbers<[1], [0], [0], [1], [0, 0, 1, 1], [], []>} : vector<8x32xbf16>, vector<32x128xbf16>, vector<8x128xf32> -> vector<8x128xf32>
      %142 = arith.addf %136, %141 : vector<8x128xf32>
      %c2_105 = arith.constant 2 : index
      %c0_106 = arith.constant 0 : index
      %c0_107 = arith.constant 0 : index
      %143 = vector.load %arg12[%c2_105, %c0_106, %c0_107] : memref<9x8x32xbf16, #tpu.memory_space<vmem>>, vector<1x8x32xbf16>
      %144 = vector.shape_cast %143 : vector<1x8x32xbf16> to vector<8x32xbf16>
      %145 = vector.extract_strided_slice %129 {offsets = [0, 256], sizes = [32, 128], strides = [1, 1]} : vector<32x1152xf32> to vector<32x128xf32>
      %146 = arith.truncf %145 : vector<32x128xf32> to vector<32x128xbf16>
      %cst_108 = arith.constant dense<0.000000e+00> : vector<8x128xf32>
      %147 = tpu.matmul %144, %146, %cst_108 {dimension_numbers = #tpu.dot_dimension_numbers<[1], [0], [0], [1], [0, 0, 1, 1], [], []>} : vector<8x32xbf16>, vector<32x128xbf16>, vector<8x128xf32> -> vector<8x128xf32>
      %148 = arith.addf %142, %147 : vector<8x128xf32>
      %c3_109 = arith.constant 3 : index
      %c0_110 = arith.constant 0 : index
      %c0_111 = arith.constant 0 : index
      %149 = vector.load %arg12[%c3_109, %c0_110, %c0_111] : memref<9x8x32xbf16, #tpu.memory_space<vmem>>, vector<1x8x32xbf16>
      %150 = vector.shape_cast %149 : vector<1x8x32xbf16> to vector<8x32xbf16>
      %151 = vector.extract_strided_slice %129 {offsets = [0, 384], sizes = [32, 128], strides = [1, 1]} : vector<32x1152xf32> to vector<32x128xf32>
      %152 = arith.truncf %151 : vector<32x128xf32> to vector<32x128xbf16>
      %cst_112 = arith.constant dense<0.000000e+00> : vector<8x128xf32>
      %153 = tpu.matmul %150, %152, %cst_112 {dimension_numbers = #tpu.dot_dimension_numbers<[1], [0], [0], [1], [0, 0, 1, 1], [], []>} : vector<8x32xbf16>, vector<32x128xbf16>, vector<8x128xf32> -> vector<8x128xf32>
      %154 = arith.addf %148, %153 : vector<8x128xf32>
      %c4_113 = arith.constant 4 : index
      %c0_114 = arith.constant 0 : index
      %c0_115 = arith.constant 0 : index
      %155 = vector.load %arg12[%c4_113, %c0_114, %c0_115] : memref<9x8x32xbf16, #tpu.memory_space<vmem>>, vector<1x8x32xbf16>
      %156 = vector.shape_cast %155 : vector<1x8x32xbf16> to vector<8x32xbf16>
      %157 = vector.extract_strided_slice %129 {offsets = [0, 512], sizes = [32, 128], strides = [1, 1]} : vector<32x1152xf32> to vector<32x128xf32>
      %158 = arith.truncf %157 : vector<32x128xf32> to vector<32x128xbf16>
      %cst_116 = arith.constant dense<0.000000e+00> : vector<8x128xf32>
      %159 = tpu.matmul %156, %158, %cst_116 {dimension_numbers = #tpu.dot_dimension_numbers<[1], [0], [0], [1], [0, 0, 1, 1], [], []>} : vector<8x32xbf16>, vector<32x128xbf16>, vector<8x128xf32> -> vector<8x128xf32>
      %160 = arith.addf %154, %159 : vector<8x128xf32>
      %c5_117 = arith.constant 5 : index
      %c0_118 = arith.constant 0 : index
      %c0_119 = arith.constant 0 : index
      %161 = vector.load %arg12[%c5_117, %c0_118, %c0_119] : memref<9x8x32xbf16, #tpu.memory_space<vmem>>, vector<1x8x32xbf16>
      %162 = vector.shape_cast %161 : vector<1x8x32xbf16> to vector<8x32xbf16>
      %163 = vector.extract_strided_slice %129 {offsets = [0, 640], sizes = [32, 128], strides = [1, 1]} : vector<32x1152xf32> to vector<32x128xf32>
      %164 = arith.truncf %163 : vector<32x128xf32> to vector<32x128xbf16>
      %cst_120 = arith.constant dense<0.000000e+00> : vector<8x128xf32>
      %165 = tpu.matmul %162, %164, %cst_120 {dimension_numbers = #tpu.dot_dimension_numbers<[1], [0], [0], [1], [0, 0, 1, 1], [], []>} : vector<8x32xbf16>, vector<32x128xbf16>, vector<8x128xf32> -> vector<8x128xf32>
      %166 = arith.addf %160, %165 : vector<8x128xf32>
      %c6_121 = arith.constant 6 : index
      %c0_122 = arith.constant 0 : index
      %c0_123 = arith.constant 0 : index
      %167 = vector.load %arg12[%c6_121, %c0_122, %c0_123] : memref<9x8x32xbf16, #tpu.memory_space<vmem>>, vector<1x8x32xbf16>
      %168 = vector.shape_cast %167 : vector<1x8x32xbf16> to vector<8x32xbf16>
      %169 = vector.extract_strided_slice %129 {offsets = [0, 768], sizes = [32, 128], strides = [1, 1]} : vector<32x1152xf32> to vector<32x128xf32>
      %170 = arith.truncf %169 : vector<32x128xf32> to vector<32x128xbf16>
      %cst_124 = arith.constant dense<0.000000e+00> : vector<8x128xf32>
      %171 = tpu.matmul %168, %170, %cst_124 {dimension_numbers = #tpu.dot_dimension_numbers<[1], [0], [0], [1], [0, 0, 1, 1], [], []>} : vector<8x32xbf16>, vector<32x128xbf16>, vector<8x128xf32> -> vector<8x128xf32>
      %172 = arith.addf %166, %171 : vector<8x128xf32>
      %c7_125 = arith.constant 7 : index
      %c0_126 = arith.constant 0 : index
      %c0_127 = arith.constant 0 : index
      %173 = vector.load %arg12[%c7_125, %c0_126, %c0_127] : memref<9x8x32xbf16, #tpu.memory_space<vmem>>, vector<1x8x32xbf16>
      %174 = vector.shape_cast %173 : vector<1x8x32xbf16> to vector<8x32xbf16>
      %175 = vector.extract_strided_slice %129 {offsets = [0, 896], sizes = [32, 128], strides = [1, 1]} : vector<32x1152xf32> to vector<32x128xf32>
      %176 = arith.truncf %175 : vector<32x128xf32> to vector<32x128xbf16>
      %cst_128 = arith.constant dense<0.000000e+00> : vector<8x128xf32>
      %177 = tpu.matmul %174, %176, %cst_128 {dimension_numbers = #tpu.dot_dimension_numbers<[1], [0], [0], [1], [0, 0, 1, 1], [], []>} : vector<8x32xbf16>, vector<32x128xbf16>, vector<8x128xf32> -> vector<8x128xf32>
      %178 = arith.addf %172, %177 : vector<8x128xf32>
      %c8_129 = arith.constant 8 : index
      %c0_130 = arith.constant 0 : index
      %c0_131 = arith.constant 0 : index
      %179 = vector.load %arg12[%c8_129, %c0_130, %c0_131] : memref<9x8x32xbf16, #tpu.memory_space<vmem>>, vector<1x8x32xbf16>
      %180 = vector.shape_cast %179 : vector<1x8x32xbf16> to vector<8x32xbf16>
      %181 = vector.extract_strided_slice %129 {offsets = [0, 1024], sizes = [32, 128], strides = [1, 1]} : vector<32x1152xf32> to vector<32x128xf32>
      %182 = arith.truncf %181 : vector<32x128xf32> to vector<32x128xbf16>
      %cst_132 = arith.constant dense<0.000000e+00> : vector<8x128xf32>
      %183 = tpu.matmul %180, %182, %cst_132 {dimension_numbers = #tpu.dot_dimension_numbers<[1], [0], [0], [1], [0, 0, 1, 1], [], []>} : vector<8x32xbf16>, vector<32x128xbf16>, vector<8x128xf32> -> vector<8x128xf32>
      %184 = arith.addf %178, %183 : vector<8x128xf32>
      %c0_133 = arith.constant 0 : index
      %c0_134 = arith.constant 0 : index
      %185 = vector.load %arg14[%c0_133, %c0_134] : memref<1x128xf32, #tpu.memory_space<vmem>>, vector<1x128xf32>
      %186 = vector.broadcast %185 : vector<1x128xf32> to vector<8x128xf32>
      %187 = arith.addf %184, %186 : vector<8x128xf32>
      %cst_135 = arith.constant 0.000000e+00 : f32
      %188 = vector.broadcast %cst_135 : f32 to vector<8x128xf32>
      %189 = arith.maximumf %187, %188 : vector<8x128xf32>
      %c0_136 = arith.constant 0 : index
      %c0_137 = arith.constant 0 : index
      %190 = vector.load %arg15[%c0_136, %c0_137] : memref<128x128xf32, #tpu.memory_space<vmem>>, vector<128x128xf32>
      %cst_138 = arith.constant dense<0.000000e+00> : vector<8x128xf32>
      %191 = tpu.matmul %189, %190, %cst_138 {dimension_numbers = #tpu.dot_dimension_numbers<[1], [0], [0], [1], [0, 0, 1, 1], [], []>} : vector<8x128xf32>, vector<128x128xf32>, vector<8x128xf32> -> vector<8x128xf32>
      %c0_139 = arith.constant 0 : index
      %c0_140 = arith.constant 0 : index
      %192 = vector.load %arg16[%c0_139, %c0_140] : memref<1x128xf32, #tpu.memory_space<vmem>>, vector<1x128xf32>
      %193 = vector.broadcast %192 : vector<1x128xf32> to vector<8x128xf32>
      %194 = arith.addf %191, %193 : vector<8x128xf32>
      %c0_141 = arith.constant 0 : index
      %c0_142 = arith.constant 0 : index
      %195 = vector.load %arg19[%c0_141, %c0_142] : memref<8x128xf32, #tpu.memory_space<vmem>>, vector<8x128xf32>
      tpu.vector_store %arg19[%c0_141, %c0_142], %194 {strides = array<i32>} : memref<8x128xf32, #tpu.memory_space<vmem>>, vector<8x128xf32>,
    } else {
    }
    return
  }
  func.func @transform_0(%arg0: i32) -> (i32, i32) {
    %c0_i32 = arith.constant 0 : i32
    %c0_i32_0 = arith.constant 0 : i32
    %c0_i32_1 = arith.constant 0 : i32
    return %c0_i32, %c0_i32_0 : i32, i32
  }
  func.func @transform_1(%arg0: i32) -> (i32, i32, i32) {
    %c0_i32 = arith.constant 0 : i32
    %c0_i32_0 = arith.constant 0 : i32
    %c0_i32_1 = arith.constant 0 : i32
    return %arg0, %c0_i32, %c0_i32_0 : i32, i32, i32
  }
  func.func @transform_2(%arg0: i32) -> (i32, i32, i32, i32) {
    %c0_i32 = arith.constant 0 : i32
    %c0_i32_0 = arith.constant 0 : i32
    %c0_i32_1 = arith.constant 0 : i32
    %c0_i32_2 = arith.constant 0 : i32
    return %arg0, %c0_i32, %c0_i32_0, %c0_i32_1 : i32, i32, i32, i32
  }
  func.func @transform_3(%arg0: i32) -> (i32, i32) {
    %c0_i32 = arith.constant 0 : i32
    %c0_i32_0 = arith.constant 0 : i32
    %c0_i32_1 = arith.constant 0 : i32
    return %c0_i32, %c0_i32_0 : i32, i32
  }
  func.func @transform_4(%arg0: i32) -> (i32, i32) {
    %c0_i32 = arith.constant 0 : i32
    %c0_i32_0 = arith.constant 0 : i32
    %c0_i32_1 = arith.constant 0 : i32
    return %c0_i32, %c0_i32_0 : i32, i32
  }
  func.func @transform_5(%arg0: i32) -> (i32, i32) {
    %c0_i32 = arith.constant 0 : i32
    %c0_i32_0 = arith.constant 0 : i32
    %c0_i32_1 = arith.constant 0 : i32
    return %c0_i32, %c0_i32_0 : i32, i32
  }
  func.func @transform_6(%arg0: i32) -> (i32, i32, i32) {
    %c0_i32 = arith.constant 0 : i32
    %c0_i32_0 = arith.constant 0 : i32
    %c0_i32_1 = arith.constant 0 : i32
    %c0_i32_2 = arith.constant 0 : i32
    return %c0_i32, %c0_i32_0, %c0_i32_1 : i32, i32, i32
  }
  func.func @transform_7(%arg0: i32) -> (i32, i32) {
    %c0_i32 = arith.constant 0 : i32
    %c0_i32_0 = arith.constant 0 : i32
    %c0_i32_1 = arith.constant 0 : i32
    return %c0_i32, %c0_i32_0 : i32, i32
  }
  func.func @transform_8(%arg0: i32) -> (i32, i32) {
    %c0_i32 = arith.constant 0 : i32
    %c0_i32_0 = arith.constant 0 : i32
    %c0_i32_1 = arith.constant 0 : i32
    return %c0_i32, %c0_i32_0 : i32, i32
  }
  func.func @transform_9(%arg0: i32) -> (i32, i32) {
    %c0_i32 = arith.constant 0 : i32
    %c0_i32_0 = arith.constant 0 : i32
    %c0_i32_1 = arith.constant 0 : i32
    return %c0_i32, %c0_i32_0 : i32, i32
  }
  func.func @transform_10(%arg0: i32) -> (i32, i32) {
    %c0_i32 = arith.constant 0 : i32
    %c0_i32_0 = arith.constant 0 : i32
    %c0_i32_1 = arith.constant 0 : i32
    return %c0_i32, %c0_i32_0 : i32, i32
  }
  func.func @transform_11(%arg0: i32) -> (i32, i32, i32) {
    %c0_i32 = arith.constant 0 : i32
    %c0_i32_0 = arith.constant 0 : i32
    %c0_i32_1 = arith.constant 0 : i32
    %c0_i32_2 = arith.constant 0 : i32
    return %c0_i32, %c0_i32_0, %c0_i32_1 : i32, i32, i32
  }
  func.func @transform_12(%arg0: i32) -> (i32, i32) {
    %c0_i32 = arith.constant 0 : i32
    %c0_i32_0 = arith.constant 0 : i32
    %c0_i32_1 = arith.constant 0 : i32
    return %c0_i32, %c0_i32_0 : i32, i32
  }
  func.func @transform_13(%arg0: i32) -> (i32, i32) {
    %c0_i32 = arith.constant 0 : i32
    %c0_i32_0 = arith.constant 0 : i32
    %c0_i32_1 = arith.constant 0 : i32
    return %c0_i32, %c0_i32_0 : i32, i32
  }
  func.func @transform_14(%arg0: i32) -> (i32, i32) {
    %c0_i32 = arith.constant 0 : i32
    %c0_i32_0 = arith.constant 0 : i32
    %c0_i32_1 = arith.constant 0 : i32
    return %c0_i32, %c0_i32_0 : i32, i32
  }
  func.func @transform_15(%arg0: i32) -> (i32, i32) {
    %c0_i32 = arith.constant 0 : i32
    %c0_i32_0 = arith.constant 0 : i32
    %c0_i32_1 = arith.constant 0 : i32
    return %c0_i32, %c0_i32_0 : i32, i32
  }
  func.func @transform_16(%arg0: i32) -> (i32, i32) {
    %c0_i32 = arith.constant 0 : i32
    %c0_i32_0 = arith.constant 0 : i32
    %c0_i32_1 = arith.constant 0 : i32
    return %c0_i32, %c0_i32_0 : i32, i32
  }
  func.func @transform_17(%arg0: i32) -> (i32, i32) {
    %c0_i32 = arith.constant 0 : i32
    %c0_i32_0 = arith.constant 0 : i32
    %c0_i32_1 = arith.constant 0 : i32
    return %c0_i32, %c0_i32_0 : i32, i32
  }
  func.func @transform_18(%arg0: i32) -> (i32, i32) {
    %c0_i32 = arith.constant 0 : i32
    %c0_i32_0 = arith.constant 0 : i32
    %c0_i32_1 = arith.constant 0 : i32
    return %c0_i32, %c0_i32_0 : i32, i32
  }
}

</mosaic_0001>

<llo_original>
// kernel: proposal_net.1
$region0: #{proposal_net.1}
  #allocation0 [shape = 'u32[]', space=smem, size = 0x4, offset = 0x4, fixed_abs, tag = 'smem constant byte address 0x4 - core index']
  #allocation1 [shape = 'u32[144,128]{1,0:T(1,128)}', space=vmem, size = 0x12000, scoped, tag = 'internal scratch']
  #allocation2 [shape = 'f32[128,128]{1,0:T(8,128)}', space=vmem, size = 0x10000, scoped, tag = 'scratch operand']
  %s0 = inlined_call_operand.vmem [shape: bf16[144,2048], index: 0, kind: input, shape index: {}]
  %s1 = inlined_call_operand.vmem [shape: bf16[9,2048,128], index: 1, kind: input, shape index: {}]
  %s2 = inlined_call_operand.vmem [shape: f32[3,3,128,1], index: 2, kind: input, shape index: {}]
  %s3 = inlined_call_operand.vmem [shape: f32[1,128], index: 3, kind: input, shape index: {}]
  %s4 = inlined_call_operand.vmem [shape: f32[128,128], index: 4, kind: input, shape index: {}]
  %s5 = inlined_call_operand.vmem [shape: f32[1,128], index: 5, kind: input, shape index: {}]
  %s6 = inlined_call_operand.vmem [shape: bf16[9,32,128], index: 6, kind: input, shape index: {}]
  %s7 = inlined_call_operand.vmem [shape: bf16[128,1152], index: 7, kind: input, shape index: {}]
  %s8 = inlined_call_operand.vmem [shape: f32[1,128], index: 8, kind: input, shape index: {}]
  %s9 = inlined_call_operand.vmem [shape: f32[128,128], index: 9, kind: input, shape index: {}]
  %s10 = inlined_call_operand.vmem [shape: f32[1,128], index: 10, kind: input, shape index: {}]
  %s11 = inlined_call_operand.vmem [shape: bf16[9,8,32], index: 11, kind: input, shape index: {}]
  %s12 = inlined_call_operand.vmem [shape: bf16[128,1152], index: 12, kind: input, shape index: {}]
  %s13 = inlined_call_operand.vmem [shape: f32[1,128], index: 13, kind: input, shape index: {}]
  %s14 = inlined_call_operand.vmem [shape: f32[128,128], index: 14, kind: input, shape index: {}]
  %s15 = inlined_call_operand.vmem [shape: f32[1,128], index: 15, kind: input, shape index: {}]
  %s16 = inlined_call_operand.vmem [shape: f32[128,128], index: 16, kind: output, shape index: {0}]
  %s17 = inlined_call_operand.vmem [shape: f32[32,128], index: 17, kind: output, shape index: {1}]
  %s18 = inlined_call_operand.vmem [shape: f32[8,128], index: 18, kind: output, shape index: {2}]
  %19 = xla_tuple %s16, %s17, %s18
  %s20 = sld [smem:[#allocation0]]
  $region121: #{proposal_net.1} parent=0
    _
  %s22 = ssub.s32 1, %s20
  %s23 = scalar_select 0, %s22, %s20
  loop: start=0, step=1, limit=5
  $region2: #{proposal_net.1} parent=0 // loop_pre_header
    _
  $region3: #{proposal_net.1} parent=0 // loop_header
    %s25 = sphi 0, %s29
    %p26 = scmp.ge.s32.totalorder %s25, 5
    %s33 = sphi 0, %s33
    %s35 = sphi 0, %s33
    %s36 = sphi 0, %s35
    %s50 = sphi 0, %s36
    %s56 = sphi 0, %s58
    %s59 = sphi 0, %s56
    %s60 = sphi 0, %s59
    %s76 = sphi 0, %s60
    %s82 = sphi 0, %s84
    %s85 = sphi 0, %s82
    %s86 = sphi 0, %s85
    %s102 = sphi 0, %s86
    %s106 = sphi 0, %s106
    %s108 = sphi 0, %s106
    %s109 = sphi 0, %s108
    %s123 = sphi 0, %s109
    %s127 = sphi 0, %s127
    %s129 = sphi 0, %s127
    %s130 = sphi 0, %s129
    %s144 = sphi 0, %s130
    %s148 = sphi 0, %s148
    %s150 = sphi 0, %s148
    %s151 = sphi 0, %s150
    %s165 = sphi 0, %s151
    %s169 = sphi 0, %s169
    %s171 = sphi 0, %s169
    %s172 = sphi 0, %s171
    %s186 = sphi 0, %s172
    %s190 = sphi 0, %s190
    %s192 = sphi 0, %s190
    %s193 = sphi 0, %s192
    %s207 = sphi 0, %s193
    %s211 = sphi 0, %s211
    %s213 = sphi 0, %s211
    %s214 = sphi 0, %s213
    %s228 = sphi 0, %s214
    %s232 = sphi 0, %s232
    %s234 = sphi 0, %s232
    %s235 = sphi 0, %s234
    %s249 = sphi 0, %s235
    %s253 = sphi 0, %s253
    %s255 = sphi 0, %s253
    %s256 = sphi 0, %s255
    %s270 = sphi 0, %s256
    %s274 = sphi 0, %s274
    %s276 = sphi 0, %s274
    %s277 = sphi 0, %s276
    %s291 = sphi 0, %s277
    %s295 = sphi 0, %s295
    %s297 = sphi 0, %s295
    %s298 = sphi 0, %s297
    %s312 = sphi 0, %s298
    %s316 = sphi 0, %s316
    %s318 = sphi 0, %s316
    %s319 = sphi 0, %s318
    %s333 = sphi 0, %s319
    %s337 = sphi 0, %s337
    %s339 = sphi 0, %s337
    %s340 = sphi 0, %s339
    %s354 = sphi 0, %s340
    %s358 = sphi 0, %s358
    %s360 = sphi 0, %s358
    %s361 = sphi 0, %s360
    %s375 = sphi 0, %s361
    %s379 = sphi 0, %s379
    %s381 = sphi 0, %s379
    %s382 = sphi 0, %s381
    %s396 = sphi 0, %s382
    %s400 = sphi 0, %s400
    %s402 = sphi 0, %s400
    %s403 = sphi 0, %s402
    %s417 = sphi 0, %s403
    %s421 = sphi 0, %s421
    %s423 = sphi 0, %s421
    %s424 = sphi 0, %s423
    %s438 = sphi 0, %s424
  $region4: #{proposal_net.1} parent=0 // loop_header_branch
    %28 = sbr.rel (%p26) target = $region8
  $region5: #{proposal_net.1} parent=0 // loop_body
    %s30 = ssub.s32 %s25, 1
    %s31 = ssub.s32 %s25, 2
    %s32 = sadd.s32 %s25, 1
    %s34 = sadd.s32 %s33, 1
    %p37 = scmp.eq.s32.totalorder %s25, 2
    %p38 = scmp.ne.s32.totalorder %s33, %s35
    %p39 = scmp.eq.s32.totalorder %s25, 0
    %p40 = por %p38, %p39
    %p41 = scmp.ne.s32.totalorder %s33, %s35
    %p42 = scmp.eq.s32.totalorder %s30, 2
    %p43 = por %p41, %p42
    %p44 = scmp.ne.s32.totalorder %s35, %s36
    %p45 = scmp.eq.s32.totalorder %s30, 0
    %p46 = por %p44, %p45
    %p47 = scmp.ne.s32.totalorder %s35, %s36
    %p48 = scmp.eq.s32.totalorder %s31, 2
    %p49 = por %p47, %p48
    %p51 = scmp.ne.s32.totalorder %s36, %s50
    %p52 = scmp.eq.s32.totalorder %s31, 0
    %p53 = por %p51, %p52
    %s54 = ssub.s32 %s25, %s32
    %p55 = scmp.eq.s32.totalorder %s54, 0
    %s57 = sadd.s32 %s56, 1
    %s58 = scalar_select %p55, %s56, %s57
    %p61 = pneg %p55
    %p62 = scmp.eq.s32.totalorder %s25, 2
    %p63 = por %p61, %p62
    %p64 = scmp.ne.s32.totalorder %s56, %s59
    %p65 = scmp.eq.s32.totalorder %s25, 0
    %p66 = por %p64, %p65
    %p67 = scmp.ne.s32.totalorder %s56, %s59
    %p68 = scmp.eq.s32.totalorder %s30, 2
    %p69 = por %p67, %p68
    %p70 = scmp.ne.s32.totalorder %s59, %s60
    %p71 = scmp.eq.s32.totalorder %s30, 0
    %p72 = por %p70, %p71
    %p73 = scmp.ne.s32.totalorder %s59, %s60
    %p74 = scmp.eq.s32.totalorder %s31, 2
    %p75 = por %p73, %p74
    %p77 = scmp.ne.s32.totalorder %s60, %s76
    %p78 = scmp.eq.s32.totalorder %s31, 0
    %p79 = por %p77, %p78
    %s80 = ssub.s32 %s25, %s32
    %p81 = scmp.eq.s32.totalorder %s80, 0
    %s83 = sadd.s32 %s82, 1
    %s84 = scalar_select %p81, %s82, %s83
    %p87 = pneg %p81
    %p88 = scmp.eq.s32.totalorder %s25, 2
    %p89 = por %p87, %p88
    %p90 = scmp.ne.s32.totalorder %s82, %s85
    %p91 = scmp.eq.s32.totalorder %s25, 0
    %p92 = por %p90, %p91
    %p93 = scmp.ne.s32.totalorder %s82, %s85
    %p94 = scmp.eq.s32.totalorder %s30, 2
    %p95 = por %p93, %p94
    %p96 = scmp.ne.s32.totalorder %s85, %s86
    %p97 = scmp.eq.s32.totalorder %s30, 0
    %p98 = por %p96, %p97
    %p99 = scmp.ne.s32.totalorder %s85, %s86
    %p100 = scmp.eq.s32.totalorder %s31, 2
    %p101 = por %p99, %p100
    %p103 = scmp.ne.s32.totalorder %s86, %s102
    %p104 = scmp.eq.s32.totalorder %s31, 0
    %p105 = por %p103, %p104
    %s107 = sadd.s32 %s106, 1
    %p110 = scmp.eq.s32.totalorder %s25, 2
    %p111 = scmp.ne.s32.totalorder %s106, %s108
    %p112 = scmp.eq.s32.totalorder %s25, 0
    %p113 = por %p111, %p112
    %p114 = scmp.ne.s32.totalorder %s106, %s108
    %p115 = scmp.eq.s32.totalorder %s30, 2
    %p116 = por %p114, %p115
    %p117 = scmp.ne.s32.totalorder %s108, %s109
    %p118 = scmp.eq.s32.totalorder %s30, 0
    %p119 = por %p117, %p118
    %p120 = scmp.ne.s32.totalorder %s108, %s109
    %p121 = scmp.eq.s32.totalorder %s31, 2
    %p122 = por %p120, %p121
    %p124 = scmp.ne.s32.totalorder %s109, %s123
    %p125 = scmp.eq.s32.totalorder %s31, 0
    %p126 = por %p124, %p125
    %s128 = sadd.s32 %s127, 1
    %p131 = scmp.eq.s32.totalorder %s25, 2
    %p132 = scmp.ne.s32.totalorder %s127, %s129
    %p133 = scmp.eq.s32.totalorder %s25, 0
    %p134 = por %p132, %p133
    %p135 = scmp.ne.s32.totalorder %s127, %s129
    %p136 = scmp.eq.s32.totalorder %s30, 2
    %p137 = por %p135, %p136
    %p138 = scmp.ne.s32.totalorder %s129, %s130
    %p139 = scmp.eq.s32.totalorder %s30, 0
    %p140 = por %p138, %p139
    %p141 = scmp.ne.s32.totalorder %s129, %s130
    %p142 = scmp.eq.s32.totalorder %s31, 2
    %p143 = por %p141, %p142
    %p145 = scmp.ne.s32.totalorder %s130, %s144
    %p146 = scmp.eq.s32.totalorder %s31, 0
    %p147 = por %p145, %p146
    %s149 = sadd.s32 %s148, 1
    %p152 = scmp.eq.s32.totalorder %s25, 2
    %p153 = scmp.ne.s32.totalorder %s148, %s150
    %p154 = scmp.eq.s32.totalorder %s25, 0
    %p155 = por %p153, %p154
    %p156 = scmp.ne.s32.totalorder %s148, %s150
    %p157 = scmp.eq.s32.totalorder %s30, 2
    %p158 = por %p156, %p157
    %p159 = scmp.ne.s32.totalorder %s150, %s151
    %p160 = scmp.eq.s32.totalorder %s30, 0
    %p161 = por %p159, %p160
    %p162 = scmp.ne.s32.totalorder %s150, %s151
    %p163 = scmp.eq.s32.totalorder %s31, 2
    %p164 = por %p162, %p163
    %p166 = scmp.ne.s32.totalorder %s151, %s165
    %p167 = scmp.eq.s32.totalorder %s31, 0
    %p168 = por %p166, %p167
    %s170 = sadd.s32 %s169, 1
    %p173 = scmp.eq.s32.totalorder %s25, 2
    %p174 = scmp.ne.s32.totalorder %s169, %s171
    %p175 = scmp.eq.s32.totalorder %s25, 0
    %p176 = por %p174, %p175
    %p177 = scmp.ne.s32.totalorder %s169, %s171
    %p178 = scmp.eq.s32.totalorder %s30, 2
    %p179 = por %p177, %p178
    %p180 = scmp.ne.s32.totalorder %s171, %s172
    %p181 = scmp.eq.s32.totalorder %s30, 0
    %p182 = por %p180, %p181
    %p183 = scmp.ne.s32.totalorder %s171, %s172
    %p184 = scmp.eq.s32.totalorder %s31, 2
    %p185 = por %p183, %p184
    %p187 = scmp.ne.s32.totalorder %s172, %s186
    %p188 = scmp.eq.s32.totalorder %s31, 0
    %p189 = por %p187, %p188
    %s191 = sadd.s32 %s190, 1
    %p194 = scmp.eq.s32.totalorder %s25, 2
    %p195 = scmp.ne.s32.totalorder %s190, %s192
    %p196 = scmp.eq.s32.totalorder %s25, 0
    %p197 = por %p195, %p196
    %p198 = scmp.ne.s32.totalorder %s190, %s192
    %p199 = scmp.eq.s32.totalorder %s30, 2
    %p200 = por %p198, %p199
    %p201 = scmp.ne.s32.totalorder %s192, %s193
    %p202 = scmp.eq.s32.totalorder %s30, 0
    %p203 = por %p201, %p202
    %p204 = scmp.ne.s32.totalorder %s192, %s193
    %p205 = scmp.eq.s32.totalorder %s31, 2
    %p206 = por %p204, %p205
    %p208 = scmp.ne.s32.totalorder %s193, %s207
    %p209 = scmp.eq.s32.totalorder %s31, 0
    %p210 = por %p208, %p209
    %s212 = sadd.s32 %s211, 1
    %p215 = scmp.eq.s32.totalorder %s25, 2
    %p216 = scmp.ne.s32.totalorder %s211, %s213
    %p217 = scmp.eq.s32.totalorder %s25, 0
    %p218 = por %p216, %p217
    %p219 = scmp.ne.s32.totalorder %s211, %s213
    %p220 = scmp.eq.s32.totalorder %s30, 2
    %p221 = por %p219, %p220
    %p222 = scmp.ne.s32.totalorder %s213, %s214
    %p223 = scmp.eq.s32.totalorder %s30, 0
    %p224 = por %p222, %p223
    %p225 = scmp.ne.s32.totalorder %s213, %s214
    %p226 = scmp.eq.s32.totalorder %s31, 2
    %p227 = por %p225, %p226
    %p229 = scmp.ne.s32.totalorder %s214, %s228
    %p230 = scmp.eq.s32.totalorder %s31, 0
    %p231 = por %p229, %p230
    %s233 = sadd.s32 %s232, 1
    %p236 = scmp.eq.s32.totalorder %s25, 2
    %p237 = scmp.ne.s32.totalorder %s232, %s234
    %p238 = scmp.eq.s32.totalorder %s25, 0
    %p239 = por %p237, %p238
    %p240 = scmp.ne.s32.totalorder %s232, %s234
    %p241 = scmp.eq.s32.totalorder %s30, 2
    %p242 = por %p240, %p241
    %p243 = scmp.ne.s32.totalorder %s234, %s235
    %p244 = scmp.eq.s32.totalorder %s30, 0
    %p245 = por %p243, %p244
    %p246 = scmp.ne.s32.totalorder %s234, %s235
    %p247 = scmp.eq.s32.totalorder %s31, 2
    %p248 = por %p246, %p247
    %p250 = scmp.ne.s32.totalorder %s235, %s249
    %p251 = scmp.eq.s32.totalorder %s31, 0
    %p252 = por %p250, %p251
    %s254 = sadd.s32 %s253, 1
    %p257 = scmp.eq.s32.totalorder %s25, 2
    %p258 = scmp.ne.s32.totalorder %s253, %s255
    %p259 = scmp.eq.s32.totalorder %s25, 0
    %p260 = por %p258, %p259
    %p261 = scmp.ne.s32.totalorder %s253, %s255
    %p262 = scmp.eq.s32.totalorder %s30, 2
    %p263 = por %p261, %p262
    %p264 = scmp.ne.s32.totalorder %s255, %s256
    %p265 = scmp.eq.s32.totalorder %s30, 0
    %p266 = por %p264, %p265
    %p267 = scmp.ne.s32.totalorder %s255, %s256
    %p268 = scmp.eq.s32.totalorder %s31, 2
    %p269 = por %p267, %p268
    %p271 = scmp.ne.s32.totalorder %s256, %s270
    %p272 = scmp.eq.s32.totalorder %s31, 0
    %p273 = por %p271, %p272
    %s275 = sadd.s32 %s274, 1
    %p278 = scmp.eq.s32.totalorder %s25, 2
    %p279 = scmp.ne.s32.totalorder %s274, %s276
    %p280 = scmp.eq.s32.totalorder %s25, 0
    %p281 = por %p279, %p280
    %p282 = scmp.ne.s32.totalorder %s274, %s276
    %p283 = scmp.eq.s32.totalorder %s30, 2
    %p284 = por %p282, %p283
    %p285 = scmp.ne.s32.totalorder %s276, %s277
    %p286 = scmp.eq.s32.totalorder %s30, 0
    %p287 = por %p285, %p286
    %p288 = scmp.ne.s32.totalorder %s276, %s277
    %p289 = scmp.eq.s32.totalorder %s31, 2
    %p290 = por %p288, %p289
    %p292 = scmp.ne.s32.totalorder %s277, %s291
    %p293 = scmp.eq.s32.totalorder %s31, 0
    %p294 = por %p292, %p293
    %s296 = sadd.s32 %s295, 1
    %p299 = scmp.eq.s32.totalorder %s25, 2
    %p300 = scmp.ne.s32.totalorder %s295, %s297
    %p301 = scmp.eq.s32.totalorder %s25, 0
    %p302 = por %p300, %p301
    %p303 = scmp.ne.s32.totalorder %s295, %s297
    %p304 = scmp.eq.s32.totalorder %s30, 2
    %p305 = por %p303, %p304
    %p306 = scmp.ne.s32.totalorder %s297, %s298
    %p307 = scmp.eq.s32.totalorder %s30, 0
    %p308 = por %p306, %p307
    %p309 = scmp.ne.s32.totalorder %s297, %s298
    %p310 = scmp.eq.s32.totalorder %s31, 2
    %p311 = por %p309, %p310
    %p313 = scmp.ne.s32.totalorder %s298, %s312
    %p314 = scmp.eq.s32.totalorder %s31, 0
    %p315 = por %p313, %p314
    %s317 = sadd.s32 %s316, 1
    %p320 = scmp.eq.s32.totalorder %s25, 2
    %p321 = scmp.ne.s32.totalorder %s316, %s318
    %p322 = scmp.eq.s32.totalorder %s25, 0
    %p323 = por %p321, %p322
    %p324 = scmp.ne.s32.totalorder %s316, %s318
    %p325 = scmp.eq.s32.totalorder %s30, 2
    %p326 = por %p324, %p325
    %p327 = scmp.ne.s32.totalorder %s318, %s319
    %p328 = scmp.eq.s32.totalorder %s30, 0
    %p329 = por %p327, %p328
    %p330 = scmp.ne.s32.totalorder %s318, %s319
    %p331 = scmp.eq.s32.totalorder %s31, 2
    %p332 = por %p330, %p331
    %p334 = scmp.ne.s32.totalorder %s319, %s333
    %p335 = scmp.eq.s32.totalorder %s31, 0
    %p336 = por %p334, %p335
    %s338 = sadd.s32 %s337, 1
    %p341 = scmp.eq.s32.totalorder %s25, 2
    %p342 = scmp.ne.s32.totalorder %s337, %s339
    %p343 = scmp.eq.s32.totalorder %s25, 0
    %p344 = por %p342, %p343
    %p345 = scmp.ne.s32.totalorder %s337, %s339
    %p346 = scmp.eq.s32.totalorder %s30, 2
    %p347 = por %p345, %p346
    %p348 = scmp.ne.s32.totalorder %s339, %s340
    %p349 = scmp.eq.s32.totalorder %s30, 0
    %p350 = por %p348, %p349
    %p351 = scmp.ne.s32.totalorder %s339, %s340
    %p352 = scmp.eq.s32.totalorder %s31, 2
    %p353 = por %p351, %p352
    %p355 = scmp.ne.s32.totalorder %s340, %s354
    %p356 = scmp.eq.s32.totalorder %s31, 0
    %p357 = por %p355, %p356
    %s359 = sadd.s32 %s358, 1
    %p362 = scmp.eq.s32.totalorder %s25, 2
    %p363 = scmp.ne.s32.totalorder %s358, %s360
    %p364 = scmp.eq.s32.totalorder %s25, 0
    %p365 = por %p363, %p364
    %p366 = scmp.ne.s32.totalorder %s358, %s360
    %p367 = scmp.eq.s32.totalorder %s30, 2
    %p368 = por %p366, %p367
    %p369 = scmp.ne.s32.totalorder %s360, %s361
    %p370 = scmp.eq.s32.totalorder %s30, 0
    %p371 = por %p369, %p370
    %p372 = scmp.ne.s32.totalorder %s360, %s361
    %p373 = scmp.eq.s32.totalorder %s31, 2
    %p374 = por %p372, %p373
    %p376 = scmp.ne.s32.totalorder %s361, %s375
    %p377 = scmp.eq.s32.totalorder %s31, 0
    %p378 = por %p376, %p377
    %s380 = sadd.s32 %s379, 1
    %p383 = scmp.eq.s32.totalorder %s25, 2
    %p384 = scmp.ne.s32.totalorder %s379, %s381
    %p385 = scmp.eq.s32.totalorder %s25, 0
    %p386 = por %p384, %p385
    %p387 = scmp.ne.s32.totalorder %s379, %s381
    %p388 = scmp.eq.s32.totalorder %s30, 2
    %p389 = por %p387, %p388
    %p390 = scmp.ne.s32.totalorder %s381, %s382
    %p391 = scmp.eq.s32.totalorder %s30, 0
    %p392 = por %p390, %p391
    %p393 = scmp.ne.s32.totalorder %s381, %s382
    %p394 = scmp.eq.s32.totalorder %s31, 2
    %p395 = por %p393, %p394
    %p397 = scmp.ne.s32.totalorder %s382, %s396
    %p398 = scmp.eq.s32.totalorder %s31, 0
    %p399 = por %p397, %p398
    %s401 = sadd.s32 %s400, 1
    %p404 = scmp.eq.s32.totalorder %s25, 2
    %p405 = scmp.ne.s32.totalorder %s400, %s402
    %p406 = scmp.eq.s32.totalorder %s25, 0
    %p407 = por %p405, %p406
    %p408 = scmp.ne.s32.totalorder %s400, %s402
    %p409 = scmp.eq.s32.totalorder %s30, 2
    %p410 = por %p408, %p409
    %p411 = scmp.ne.s32.totalorder %s402, %s403
    %p412 = scmp.eq.s32.totalorder %s30, 0
    %p413 = por %p411, %p412
    %p414 = scmp.ne.s32.totalorder %s402, %s403
    %p415 = scmp.eq.s32.totalorder %s31, 2
    %p416 = por %p414, %p415
    %p418 = scmp.ne.s32.totalorder %s403, %s417
    %p419 = scmp.eq.s32.totalorder %s31, 0
    %p420 = por %p418, %p419
    %s422 = sadd.s32 %s421, 1
    %p425 = scmp.eq.s32.totalorder %s25, 2
    %p426 = scmp.ne.s32.totalorder %s421, %s423
    %p427 = scmp.eq.s32.totalorder %s25, 0
    %p428 = por %p426, %p427
    %p429 = scmp.ne.s32.totalorder %s421, %s423
    %p430 = scmp.eq.s32.totalorder %s30, 2
    %p431 = por %p429, %p430
    %p432 = scmp.ne.s32.totalorder %s423, %s424
    %p433 = scmp.eq.s32.totalorder %s30, 0
    %p434 = por %p432, %p433
    %p435 = scmp.ne.s32.totalorder %s423, %s424
    %p436 = scmp.eq.s32.totalorder %s31, 2
    %p437 = por %p435, %p436
    %p439 = scmp.ne.s32.totalorder %s424, %s438
    %p440 = scmp.eq.s32.totalorder %s31, 0
    %p441 = por %p439, %p440
    %p442 = scmp.le.s32.totalorder 1, %s25
    %p443 = scmp.lt.s32.totalorder %s25, 4
    %p444 = pnand %p442, %p443
    %p445 = pneg %p444
    // Predicated region
    $region9: #{proposal_net.1} parent=5 // pred_check
      _
    $region10: #{proposal_net.1} parent=5 // pred_check_branch
      %447 = sbr.rel (%p444) target = $region12
    $region11: #{proposal_net.1} parent=5 // pred_region
      %s448 = ssub.s32 %s25, 1
      // Predicated region
      $region13: #{proposal_net.1} parent=11 // pred_check
        %p449 = pneg %p46
      $region14: #{proposal_net.1} parent=11 // pred_check_branch
        %451 = sbr.rel (%p449) target = $region16
      $region15: #{proposal_net.1} parent=11 // pred_region
        _
      $region16: #{proposal_net.1} parent=11 // pred_fallthru
        _
      // Predicated region
      $region17: #{proposal_net.1} parent=11 // pred_check
        %p452 = pneg %p119
      $region18: #{proposal_net.1} parent=11 // pred_check_branch
        %454 = sbr.rel (%p452) target = $region20
      $region19: #{proposal_net.1} parent=11 // pred_region
        _
      $region20: #{proposal_net.1} parent=11 // pred_fallthru
        _
      // Predicated region
      $region21: #{proposal_net.1} parent=11 // pred_check
        %p455 = pneg %p140
      $region22: #{proposal_net.1} parent=11 // pred_check_branch
        %457 = sbr.rel (%p455) target = $region24
      $region23: #{proposal_net.1} parent=11 // pred_region
        _
      $region24: #{proposal_net.1} parent=11 // pred_fallthru
        _
      // Predicated region
      $region25: #{proposal_net.1} parent=11 // pred_check
        %p458 = pneg %p161
      $region26: #{proposal_net.1} parent=11 // pred_check_branch
        %460 = sbr.rel (%p458) target = $region28
      $region27: #{proposal_net.1} parent=11 // pred_region
        _
      $region28: #{proposal_net.1} parent=11 // pred_fallthru
        _
      // Predicated region
      $region29: #{proposal_net.1} parent=11 // pred_check
        %p461 = pneg %p182
      $region30: #{proposal_net.1} parent=11 // pred_check_branch
        %463 = sbr.rel (%p461) target = $region32
      $region31: #{proposal_net.1} parent=11 // pred_region
        _
      $region32: #{proposal_net.1} parent=11 // pred_fallthru
        _
      // Predicated region
      $region33: #{proposal_net.1} parent=11 // pred_check
        %p464 = pneg %p203
      $region34: #{proposal_net.1} parent=11 // pred_check_branch
        %466 = sbr.rel (%p464) target = $region36
      $region35: #{proposal_net.1} parent=11 // pred_region
        _
      $region36: #{proposal_net.1} parent=11 // pred_fallthru
        _
      // Predicated region
      $region37: #{proposal_net.1} parent=11 // pred_check
        %p467 = pneg %p224
      $region38: #{proposal_net.1} parent=11 // pred_check_branch
        %469 = sbr.rel (%p467) target = $region40
      $region39: #{proposal_net.1} parent=11 // pred_region
        _
      $region40: #{proposal_net.1} parent=11 // pred_fallthru
        _
      // Predicated region
      $region41: #{proposal_net.1} parent=11 // pred_check
        %p470 = pneg %p245
      $region42: #{proposal_net.1} parent=11 // pred_check_branch
        %472 = sbr.rel (%p470) target = $region44
      $region43: #{proposal_net.1} parent=11 // pred_region
        _
      $region44: #{proposal_net.1} parent=11 // pred_fallthru
        _
      // Predicated region
      $region45: #{proposal_net.1} parent=11 // pred_check
        %p473 = pneg %p266
      $region46: #{proposal_net.1} parent=11 // pred_check_branch
        %475 = sbr.rel (%p473) target = $region48
      $region47: #{proposal_net.1} parent=11 // pred_region
        _
      $region48: #{proposal_net.1} parent=11 // pred_fallthru
        _
      // Predicated region
      $region49: #{proposal_net.1} parent=11 // pred_check
        %p476 = pneg %p287
      $region50: #{proposal_net.1} parent=11 // pred_check_branch
        %478 = sbr.rel (%p476) target = $region52
      $region51: #{proposal_net.1} parent=11 // pred_region
        _
      $region52: #{proposal_net.1} parent=11 // pred_fallthru
        _
      // Predicated region
      $region53: #{proposal_net.1} parent=11 // pred_check
        %p479 = pneg %p308
      $region54: #{proposal_net.1} parent=11 // pred_check_branch
        %481 = sbr.rel (%p479) target = $region56
      $region55: #{proposal_net.1} parent=11 // pred_region
        _
      $region56: #{proposal_net.1} parent=11 // pred_fallthru
        _
      // Predicated region
      $region57: #{proposal_net.1} parent=11 // pred_check
        %p482 = pneg %p329
      $region58: #{proposal_net.1} parent=11 // pred_check_branch
        %484 = sbr.rel (%p482) target = $region60
      $region59: #{proposal_net.1} parent=11 // pred_region
        _
      $region60: #{proposal_net.1} parent=11 // pred_fallthru
        _
      // Predicated region
      $region61: #{proposal_net.1} parent=11 // pred_check
        %p485 = pneg %p350
      $region62: #{proposal_net.1} parent=11 // pred_check_branch
        %487 = sbr.rel (%p485) target = $region64
      $region63: #{proposal_net.1} parent=11 // pred_region
        _
      $region64: #{proposal_net.1} parent=11 // pred_fallthru
        _
      // Predicated region
      $region65: #{proposal_net.1} parent=11 // pred_check
        %p488 = pneg %p371
      $region66: #{proposal_net.1} parent=11 // pred_check_branch
        %490 = sbr.rel (%p488) target = $region68
      $region67: #{proposal_net.1} parent=11 // pred_region
        _
      $region68: #{proposal_net.1} parent=11 // pred_fallthru
        _
    $region12: #{proposal_net.1} parent=5 // pred_fallthru
      _
    %p491 = scmp.lt.s32.totalorder %s25, 3
    // Predicated region
    $region69: #{proposal_net.1} parent=5 // pred_check
      %p492 = pneg %p491
    $region70: #{proposal_net.1} parent=5 // pred_check_branch
      %494 = sbr.rel (%p492) target = $region72
    $region71: #{proposal_net.1} parent=5 // pred_region
      // Predicated region
      $region73: #{proposal_net.1} parent=71 // pred_check
        %p495 = pneg %p66
      $region74: #{proposal_net.1} parent=71 // pred_check_branch
        %497 = sbr.rel (%p495) target = $region76
      $region75: #{proposal_net.1} parent=71 // pred_region
        %s498 = smul.u32 3, %s25
        %p499 = scmp.lt.s32.totalorder %s498, 8
        %s500 = scalar_select %p499, %s498, 8
        %s501 = smul.addr %s500, 256
        %s502 = smul.addr %s501, 4
        %s503 = scalar_lea.vmem %s1, %s502
        %s504 = smul.u32 3, %s25
      $region76: #{proposal_net.1} parent=71 // pred_fallthru
        _
      // Predicated region
      $region77: #{proposal_net.1} parent=71 // pred_check
        %p505 = pneg %p92
      $region78: #{proposal_net.1} parent=71 // pred_check_branch
        %507 = sbr.rel (%p505) target = $region80
      $region79: #{proposal_net.1} parent=71 // pred_region
        %p508 = scmp.lt.s32.totalorder %s25, 2
        %s509 = scalar_select %p508, %s25, 2
        %s510 = smul.addr %s509, 48
        %s511 = smul.addr %s510, 8
        %s512 = scalar_lea.vmem %s2, %s511
      $region80: #{proposal_net.1} parent=71 // pred_fallthru
        _
    $region72: #{proposal_net.1} parent=5 // pred_fallthru
      _
    %p513 = scmp.le.s32.totalorder 1, %s25
    %p514 = scmp.lt.s32.totalorder %s25, 4
    %p515 = pnand %p513, %p514
    %p516 = pneg %p515
    // Predicated region
    $region81: #{proposal_net.1} parent=5 // pred_check
      _
    $region82: #{proposal_net.1} parent=5 // pred_check_branch
      %518 = sbr.rel (%p515) target = $region84
    $region83: #{proposal_net.1} parent=5 // pred_region
      %s519 = ssub.s32 %s25, 1
      %p520 = pneg %p46
      %p521 = pneg %p43
      %s522 = smul.u32 3, %s30
      %p523 = scmp.lt.s32.totalorder %s522, 8
      %s524 = scalar_select %p523, %s522, 8
      %s525 = smul.addr %s524, 256
      %s526 = smul.addr %s525, 4
      %s527 = scalar_lea.vmem %s1, %s526
      %p528 = pneg %p72
      %p529 = pneg %p69
      %p530 = scmp.lt.s32.totalorder %s30, 2
      %s531 = scalar_select %p530, %s30, 2
      %s532 = smul.addr %s531, 48
      %s533 = smul.addr %s532, 8
      %s534 = scalar_lea.vmem %s2, %s533
      %p535 = pneg %p98
      %p536 = pneg %p95
      %p537 = pneg %p119
      %p538 = pneg %p116
      %p539 = pneg %p140
      %p540 = pneg %p137
      %p541 = pneg %p161
      %p542 = pneg %p158
      %p543 = pneg %p182
      %p544 = pneg %p179
      %p545 = pneg %p203
      %p546 = pneg %p200
      %p547 = pneg %p224
      %p548 = pneg %p221
      %p549 = pneg %p245
      %p550 = pneg %p242
      %p551 = pneg %p266
      %p552 = pneg %p263
      %p553 = pneg %p287
      %p554 = pneg %p284
      %p555 = pneg %p308
      %p556 = pneg %p305
      %p557 = pneg %p329
      %p558 = pneg %p326
      %p559 = pneg %p350
      %p560 = pneg %p347
      %p561 = pneg %p371
      %p562 = pneg %p368
      %p563 = pneg %p392
      %p564 = pneg %p389
      %p565 = pneg %p413
      %p566 = pneg %p410
      %p567 = pneg %p434
      %p568 = pneg %p431
      %s569 = smul.u32 3, %s30
      %p570 = scmp.lt.s32.totalorder %s569, 8
      %s571 = scalar_select %p570, %s569, 8
      %s572 = smul.addr %s571, 256
      %s573 = smul.addr %s572, 4
      %s574 = scalar_lea.vmem %s1, %s573
      %s575 = smul.u32 3, %s30
      %p576 = scmp.lt.s32.totalorder %s30, 2
      %s577 = scalar_select %p576, %s30, 2
      %s578 = smul.addr %s577, 48
      %s579 = smul.addr %s578, 8
      %s580 = scalar_lea.vmem %s2, %s579
      %p582 = scmp.eq.s32.totalorder %s30, 0
      // Predicated region
      $region85: #{proposal_net.1} parent=83 // pred_check
        %p583 = pneg %p582
      $region86: #{proposal_net.1} parent=83 // pred_check_branch
        %585 = sbr.rel (%p583) target = $region88
      $region87: #{proposal_net.1} parent=83 // pred_region
        %586 = vst [vmem:[#allocation2] sm:$0xff] 0.0
        %587 = vst [vmem:[#allocation2 + $0x8] sm:$0xff] 0.0
        %588 = vst [vmem:[#allocation2 + $0x10] sm:$0xff] 0.0
        %589 = vst [vmem:[#allocation2 + $0x18] sm:$0xff] 0.0
        %590 = vst [vmem:[#allocation2 + $0x20] sm:$0xff] 0.0
        %591 = vst [vmem:[#allocation2 + $0x28] sm:$0xff] 0.0
        %592 = vst [vmem:[#allocation2 + $0x30] sm:$0xff] 0.0
        %593 = vst [vmem:[#allocation2 + $0x38] sm:$0xff] 0.0
        %594 = vst [vmem:[#allocation2 + $0x40] sm:$0xff] 0.0
        %595 = vst [vmem:[#allocation2 + $0x48] sm:$0xff] 0.0
        %596 = vst [vmem:[#allocation2 + $0x50] sm:$0xff] 0.0
        %597 = vst [vmem:[#allocation2 + $0x58] sm:$0xff] 0.0
        %598 = vst [vmem:[#allocation2 + $0x60] sm:$0xff] 0.0
        %599 = vst [vmem:[#allocation2 + $0x68] sm:$0xff] 0.0
        %600 = vst [vmem:[#allocation2 + $0x70] sm:$0xff] 0.0
        %601 = vst [vmem:[#allocation2 + $0x78] sm:$0xff] 0.0
      $region88: #{proposal_net.1} parent=83 // pred_fallthru
        _
      %s602 = smul.u32 %s30, 8
      %s603 = sshra.s32 %s602, 3
      %s604 = sand.u32 %s602, 7
      %s605 = smul.u32 %s603, 16
      %s606 = smul.addr %s605, 4
      %s607 = scalar_lea.vmem %s0, %s606
      %v608 = vld [vmem:[%s607] sm:$0xff]
      %v609 = vld [vmem:[%s607 + $0x8] sm:$0xff]
      %v610 = vld [vmem:[%s607 + $0x10] sm:$0xff]
      %v611 = vld [vmem:[%s607 + $0x18] sm:$0xff]
      %v612 = vld [vmem:[%s607 + $0x20] sm:$0xff]
      %v613 = vld [vmem:[%s607 + $0x28] sm:$0xff]
      %v614 = vld [vmem:[%s607 + $0x30] sm:$0xff]
      %v615 = vld [vmem:[%s607 + $0x38] sm:$0xff]
      %v616 = vld [vmem:[%s607 + $0x40] sm:$0xff]
      %v617 = vld [vmem:[%s607 + $0x48] sm:$0xff]
      %v618 = vld [vmem:[%s607 + $0x50] sm:$0xff]
      %v619 = vld [vmem:[%s607 + $0x58] sm:$0xff]
      %v620 = vld [vmem:[%s607 + $0x60] sm:$0xff]
      %v621 = vld [vmem:[%s607 + $0x68] sm:$0xff]
      %v622 = vld [vmem:[%s607 + $0x70] sm:$0xff]
      %v623 = vld [vmem:[%s607 + $0x78] sm:$0xff]
      %v624 = vld [vmem:[%s607 + $0x80] sm:$0xff]
      %v625 = vld [vmem:[%s607 + $0x88] sm:$0xff]
      %v626 = vld [vmem:[%s607 + $0x90] sm:$0xff]
      %v627 = vld [vmem:[%s607 + $0x98] sm:$0xff]
      %v628 = vld [vmem:[%s607 + $0xa0] sm:$0xff]
      %v629 = vld [vmem:[%s607 + $0xa8] sm:$0xff]
      %v630 = vld [vmem:[%s607 + $0xb0] sm:$0xff]
      %v631 = vld [vmem:[%s607 + $0xb8] sm:$0xff]
      %v632 = vld [vmem:[%s607 + $0xc0] sm:$0xff]
      %v633 = vld [vmem:[%s607 + $0xc8] sm:$0xff]
      %v634 = vld [vmem:[%s607 + $0xd0] sm:$0xff]
      %v635 = vld [vmem:[%s607 + $0xd8] sm:$0xff]
      %v636 = vld [vmem:[%s607 + $0xe0] sm:$0xff]
      %v637 = vld [vmem:[%s607 + $0xe8] sm:$0xff]
      %v638 = vld [vmem:[%s607 + $0xf0] sm:$0xff]
      %v639 = vld [vmem:[%s607 + $0xf8] sm:$0xff]
      %v640 = vld [vmem:[%s607 + $0x100] sm:$0xff]
      %v641 = vld [vmem:[%s607 + $0x108] sm:$0xff]
      %v642 = vld [vmem:[%s607 + $0x110] sm:$0xff]
      %v643 = vld [vmem:[%s607 + $0x118] sm:$0xff]
      %v644 = vld [vmem:[%s607 + $0x120] sm:$0xff]
      %v645 = vld [vmem:[%s607 + $0x128] sm:$0xff]
      %v646 = vld [vmem:[%s607 + $0x130] sm:$0xff]
      %v647 = vld [vmem:[%s607 + $0x138] sm:$0xff]
      %v648 = vld [vmem:[%s607 + $0x140] sm:$0xff]
      %v649 = vld [vmem:[%s607 + $0x148] sm:$0xff]
      %v650 = vld [vmem:[%s607 + $0x150] sm:$0xff]
      %v651 = vld [vmem:[%s607 + $0x158] sm:$0xff]
      %v652 = vld [vmem:[%s607 + $0x160] sm:$0xff]
      %v653 = vld [vmem:[%s607 + $0x168] sm:$0xff]
      %v654 = vld [vmem:[%s607 + $0x170] sm:$0xff]
      %v655 = vld [vmem:[%s607 + $0x178] sm:$0xff]
      %v656 = vld [vmem:[%s607 + $0x180] sm:$0xff]
      %v657 = vld [vmem:[%s607 + $0x188] sm:$0xff]
      %v658 = vld [vmem:[%s607 + $0x190] sm:$0xff]
      %v659 = vld [vmem:[%s607 + $0x198] sm:$0xff]
      %v660 = vld [vmem:[%s607 + $0x1a0] sm:$0xff]
      %v661 = vld [vmem:[%s607 + $0x1a8] sm:$0xff]
      %v662 = vld [vmem:[%s607 + $0x1b0] sm:$0xff]
      %v663 = vld [vmem:[%s607 + $0x1b8] sm:$0xff]
      %v664 = vld [vmem:[%s607 + $0x1c0] sm:$0xff]
      %v665 = vld [vmem:[%s607 + $0x1c8] sm:$0xff]
      %v666 = vld [vmem:[%s607 + $0x1d0] sm:$0xff]
      %v667 = vld [vmem:[%s607 + $0x1d8] sm:$0xff]
      %v668 = vld [vmem:[%s607 + $0x1e0] sm:$0xff]
      %v669 = vld [vmem:[%s607 + $0x1e8] sm:$0xff]
      %v670 = vld [vmem:[%s607 + $0x1f0] sm:$0xff]
      %v671 = vld [vmem:[%s607 + $0x1f8] sm:$0xff]
      %v672 = vld [vmem:[%s607 + $0x200] sm:$0xff]
      %v673 = vld [vmem:[%s607 + $0x208] sm:$0xff]
      %v674 = vld [vmem:[%s607 + $0x210] sm:$0xff]
      %v675 = vld [vmem:[%s607 + $0x218] sm:$0xff]
      %v676 = vld [vmem:[%s607 + $0x220] sm:$0xff]
      %v677 = vld [vmem:[%s607 + $0x228] sm:$0xff]
      %v678 = vld [vmem:[%s607 + $0x230] sm:$0xff]
      %v679 = vld [vmem:[%s607 + $0x238] sm:$0xff]
      %v680 = vld [vmem:[%s607 + $0x240] sm:$0xff]
      %v681 = vld [vmem:[%s607 + $0x248] sm:$0xff]
      %v682 = vld [vmem:[%s607 + $0x250] sm:$0xff]
      %v683 = vld [vmem:[%s607 + $0x258] sm:$0xff]
      %v684 = vld [vmem:[%s607 + $0x260] sm:$0xff]
      %v685 = vld [vmem:[%s607 + $0x268] sm:$0xff]
      %v686 = vld [vmem:[%s607 + $0x270] sm:$0xff]
      %v687 = vld [vmem:[%s607 + $0x278] sm:$0xff]
      %v688 = vld [vmem:[%s607 + $0x280] sm:$0xff]
      %v689 = vld [vmem:[%s607 + $0x288] sm:$0xff]
      %v690 = vld [vmem:[%s607 + $0x290] sm:$0xff]
      %v691 = vld [vmem:[%s607 + $0x298] sm:$0xff]
      %v692 = vld [vmem:[%s607 + $0x2a0] sm:$0xff]
      %v693 = vld [vmem:[%s607 + $0x2a8] sm:$0xff]
      %v694 = vld [vmem:[%s607 + $0x2b0] sm:$0xff]
      %v695 = vld [vmem:[%s607 + $0x2b8] sm:$0xff]
      %v696 = vld [vmem:[%s607 + $0x2c0] sm:$0xff]
      %v697 = vld [vmem:[%s607 + $0x2c8] sm:$0xff]
      %v698 = vld [vmem:[%s607 + $0x2d0] sm:$0xff]
      %v699 = vld [vmem:[%s607 + $0x2d8] sm:$0xff]
      %v700 = vld [vmem:[%s607 + $0x2e0] sm:$0xff]
      %v701 = vld [vmem:[%s607 + $0x2e8] sm:$0xff]
      %v702 = vld [vmem:[%s607 + $0x2f0] sm:$0xff]
      %v703 = vld [vmem:[%s607 + $0x2f8] sm:$0xff]
      %v704 = vld [vmem:[%s607 + $0x300] sm:$0xff]
      %v705 = vld [vmem:[%s607 + $0x308] sm:$0xff]
      %v706 = vld [vmem:[%s607 + $0x310] sm:$0xff]
      %v707 = vld [vmem:[%s607 + $0x318] sm:$0xff]
      %v708 = vld [vmem:[%s607 + $0x320] sm:$0xff]
      %v709 = vld [vmem:[%s607 + $0x328] sm:$0xff]
      %v710 = vld [vmem:[%s607 + $0x330] sm:$0xff]
      %v711 = vld [vmem:[%s607 + $0x338] sm:$0xff]
      %v712 = vld [vmem:[%s607 + $0x340] sm:$0xff]
      %v713 = vld [vmem:[%s607 + $0x348] sm:$0xff]
      %v714 = vld [vmem:[%s607 + $0x350] sm:$0xff]
      %v715 = vld [vmem:[%s607 + $0x358] sm:$0xff]
      %v716 = vld [vmem:[%s607 + $0x360] sm:$0xff]
      %v717 = vld [vmem:[%s607 + $0x368] sm:$0xff]
      %v718 = vld [vmem:[%s607 + $0x370] sm:$0xff]
      %v719 = vld [vmem:[%s607 + $0x378] sm:$0xff]
      %v720 = vld [vmem:[%s607 + $0x380] sm:$0xff]
      %v721 = vld [vmem:[%s607 + $0x388] sm:$0xff]
      %v722 = vld [vmem:[%s607 + $0x390] sm:$0xff]
      %v723 = vld [vmem:[%s607 + $0x398] sm:$0xff]
      %v724 = vld [vmem:[%s607 + $0x3a0] sm:$0xff]
      %v725 = vld [vmem:[%s607 + $0x3a8] sm:$0xff]
      %v726 = vld [vmem:[%s607 + $0x3b0] sm:$0xff]
      %v727 = vld [vmem:[%s607 + $0x3b8] sm:$0xff]
      %v728 = vld [vmem:[%s607 + $0x3c0] sm:$0xff]
      %v729 = vld [vmem:[%s607 + $0x3c8] sm:$0xff]
      %v730 = vld [vmem:[%s607 + $0x3d0] sm:$0xff]
      %v731 = vld [vmem:[%s607 + $0x3d8] sm:$0xff]
      %v732 = vld [vmem:[%s607 + $0x3e0] sm:$0xff]
      %v733 = vld [vmem:[%s607 + $0x3e8] sm:$0xff]
      %v734 = vld [vmem:[%s607 + $0x3f0] sm:$0xff]
      %v735 = vld [vmem:[%s607 + $0x3f8] sm:$0xff]
      %v736 = vld [vmem:[%s574] sm:$0xf]
      %v737 = vld [vmem:[%s574 + $0x4] sm:$0xf]
      %v738 = vld [vmem:[%s574 + $0x8] sm:$0xf]
      %v739 = vld [vmem:[%s574 + $0xc] sm:$0xf]
      %v740 = vld [vmem:[%s574 + $0x10] sm:$0xf]
      %v741 = vld [vmem:[%s574 + $0x14] sm:$0xf]
      %v742 = vld [vmem:[%s574 + $0x18] sm:$0xf]
      %v743 = vld [vmem:[%s574 + $0x1c] sm:$0xf]
      %v744 = vld [vmem:[%s574 + $0x20] sm:$0xf]
      %v745 = vld [vmem:[%s574 + $0x24] sm:$0xf]
      %v746 = vld [vmem:[%s574 + $0x28] sm:$0xf]
      %v747 = vld [vmem:[%s574 + $0x2c] sm:$0xf]
      %v748 = vld [vmem:[%s574 + $0x30] sm:$0xf]
      %v749 = vld [vmem:[%s574 + $0x34] sm:$0xf]
      %v750 = vld [vmem:[%s574 + $0x38] sm:$0xf]
      %v751 = vld [vmem:[%s574 + $0x3c] sm:$0xf]
      %v752 = vld [vmem:[%s574 + $0x40] sm:$0xf]
      %v753 = vld [vmem:[%s574 + $0x44] sm:$0xf]
      %v754 = vld [vmem:[%s574 + $0x48] sm:$0xf]
      %v755 = vld [vmem:[%s574 + $0x4c] sm:$0xf]
      %v756 = vld [vmem:[%s574 + $0x50] sm:$0xf]
      %v757 = vld [vmem:[%s574 + $0x54] sm:$0xf]
      %v758 = vld [vmem:[%s574 + $0x58] sm:$0xf]
      %v759 = vld [vmem:[%s574 + $0x5c] sm:$0xf]
      %v760 = vld [vmem:[%s574 + $0x60] sm:$0xf]
      %v761 = vld [vmem:[%s574 + $0x64] sm:$0xf]
      %v762 = vld [vmem:[%s574 + $0x68] sm:$0xf]
      %v763 = vld [vmem:[%s574 + $0x6c] sm:$0xf]
      %v764 = vld [vmem:[%s574 + $0x70] sm:$0xf]
      %v765 = vld [vmem:[%s574 + $0x74] sm:$0xf]
      %v766 = vld [vmem:[%s574 + $0x78] sm:$0xf]
      %v767 = vld [vmem:[%s574 + $0x7c] sm:$0xf]
      %v768 = vld [vmem:[%s574 + $0x80] sm:$0xf]
      %v769 = vld [vmem:[%s574 + $0x84] sm:$0xf]
      %v770 = vld [vmem:[%s574 + $0x88] sm:$0xf]
      %v771 = vld [vmem:[%s574 + $0x8c] sm:$0xf]
      %v772 = vld [vmem:[%s574 + $0x90] sm:$0xf]
      %v773 = vld [vmem:[%s574 + $0x94] sm:$0xf]
      %v774 = vld [vmem:[%s574 + $0x98] sm:$0xf]
      %v775 = vld [vmem:[%s574 + $0x9c] sm:$0xf]
      %v776 = vld [vmem:[%s574 + $0xa0] sm:$0xf]
      %v777 = vld [vmem:[%s574 + $0xa4] sm:$0xf]
      %v778 = vld [vmem:[%s574 + $0xa8] sm:$0xf]
      %v779 = vld [vmem:[%s574 + $0xac] sm:$0xf]
      %v780 = vld [vmem:[%s574 + $0xb0] sm:$0xf]
      %v781 = vld [vmem:[%s574 + $0xb4] sm:$0xf]
      %v782 = vld [vmem:[%s574 + $0xb8] sm:$0xf]
      %v783 = vld [vmem:[%s574 + $0xbc] sm:$0xf]
      %v784 = vld [vmem:[%s574 + $0xc0] sm:$0xf]
      %v785 = vld [vmem:[%s574 + $0xc4] sm:$0xf]
      %v786 = vld [vmem:[%s574 + $0xc8] sm:$0xf]
      %v787 = vld [vmem:[%s574 + $0xcc] sm:$0xf]
      %v788 = vld [vmem:[%s574 + $0xd0] sm:$0xf]
      %v789 = vld [vmem:[%s574 + $0xd4] sm:$0xf]
      %v790 = vld [vmem:[%s574 + $0xd8] sm:$0xf]
      %v791 = vld [vmem:[%s574 + $0xdc] sm:$0xf]
      %v792 = vld [vmem:[%s574 + $0xe0] sm:$0xf]
      %v793 = vld [vmem:[%s574 + $0xe4] sm:$0xf]
      %v794 = vld [vmem:[%s574 + $0xe8] sm:$0xf]
      %v795 = vld [vmem:[%s574 + $0xec] sm:$0xf]
      %v796 = vld [vmem:[%s574 + $0xf0] sm:$0xf]
      %v797 = vld [vmem:[%s574 + $0xf4] sm:$0xf]
      %v798 = vld [vmem:[%s574 + $0xf8] sm:$0xf]
      %v799 = vld [vmem:[%s574 + $0xfc] sm:$0xf]
      %v800 = vld [vmem:[%s574 + $0x100] sm:$0xf]
      %v801 = vld [vmem:[%s574 + $0x104] sm:$0xf]
      %v802 = vld [vmem:[%s574 + $0x108] sm:$0xf]
      %v803 = vld [vmem:[%s574 + $0x10c] sm:$0xf]
      %v804 = vld [vmem:[%s574 + $0x110] sm:$0xf]
      %v805 = vld [vmem:[%s574 + $0x114] sm:$0xf]
      %v806 = vld [vmem:[%s574 + $0x118] sm:$0xf]
      %v807 = vld [vmem:[%s574 + $0x11c] sm:$0xf]
      %v808 = vld [vmem:[%s574 + $0x120] sm:$0xf]
      %v809 = vld [vmem:[%s574 + $0x124] sm:$0xf]
      %v810 = vld [vmem:[%s574 + $0x128] sm:$0xf]
      %v811 = vld [vmem:[%s574 + $0x12c] sm:$0xf]
      %v812 = vld [vmem:[%s574 + $0x130] sm:$0xf]
      %v813 = vld [vmem:[%s574 + $0x134] sm:$0xf]
      %v814 = vld [vmem:[%s574 + $0x138] sm:$0xf]
      %v815 = vld [vmem:[%s574 + $0x13c] sm:$0xf]
      %v816 = vld [vmem:[%s574 + $0x140] sm:$0xf]
      %v817 = vld [vmem:[%s574 + $0x144] sm:$0xf]
      %v818 = vld [vmem:[%s574 + $0x148] sm:$0xf]
      %v819 = vld [vmem:[%s574 + $0x14c] sm:$0xf]
      %v820 = vld [vmem:[%s574 + $0x150] sm:$0xf]
      %v821 = vld [vmem:[%s574 + $0x154] sm:$0xf]
      %v822 = vld [vmem:[%s574 + $0x158] sm:$0xf]
      %v823 = vld [vmem:[%s574 + $0x15c] sm:$0xf]
      %v824 = vld [vmem:[%s574 + $0x160] sm:$0xf]
      %v825 = vld [vmem:[%s574 + $0x164] sm:$0xf]
      %v826 = vld [vmem:[%s574 + $0x168] sm:$0xf]
      %v827 = vld [vmem:[%s574 + $0x16c] sm:$0xf]
      %v828 = vld [vmem:[%s574 + $0x170] sm:$0xf]
      %v829 = vld [vmem:[%s574 + $0x174] sm:$0xf]
      %v830 = vld [vmem:[%s574 + $0x178] sm:$0xf]
      %v831 = vld [vmem:[%s574 + $0x17c] sm:$0xf]
      %v832 = vld [vmem:[%s574 + $0x180] sm:$0xf]
      %v833 = vld [vmem:[%s574 + $0x184] sm:$0xf]
      %v834 = vld [vmem:[%s574 + $0x188] sm:$0xf]
      %v835 = vld [vmem:[%s574 + $0x18c] sm:$0xf]
      %v836 = vld [vmem:[%s574 + $0x190] sm:$0xf]
      %v837 = vld [vmem:[%s574 + $0x194] sm:$0xf]
      %v838 = vld [vmem:[%s574 + $0x198] sm:$0xf]
      %v839 = vld [vmem:[%s574 + $0x19c] sm:$0xf]
      %v840 = vld [vmem:[%s574 + $0x1a0] sm:$0xf]
      %v841 = vld [vmem:[%s574 + $0x1a4] sm:$0xf]
      %v842 = vld [vmem:[%s574 + $0x1a8] sm:$0xf]
      %v843 = vld [vmem:[%s574 + $0x1ac] sm:$0xf]
      %v844 = vld [vmem:[%s574 + $0x1b0] sm:$0xf]
      %v845 = vld [vmem:[%s574 + $0x1b4] sm:$0xf]
      %v846 = vld [vmem:[%s574 + $0x1b8] sm:$0xf]
      %v847 = vld [vmem:[%s574 + $0x1bc] sm:$0xf]
      %v848 = vld [vmem:[%s574 + $0x1c0] sm:$0xf]
      %v849 = vld [vmem:[%s574 + $0x1c4] sm:$0xf]
      %v850 = vld [vmem:[%s574 + $0x1c8] sm:$0xf]
      %v851 = vld [vmem:[%s574 + $0x1cc] sm:$0xf]
      %v852 = vld [vmem:[%s574 + $0x1d0] sm:$0xf]
      %v853 = vld [vmem:[%s574 + $0x1d4] sm:$0xf]
      %v854 = vld [vmem:[%s574 + $0x1d8] sm:$0xf]
      %v855 = vld [vmem:[%s574 + $0x1dc] sm:$0xf]
      %v856 = vld [vmem:[%s574 + $0x1e0] sm:$0xf]
      %v857 = vld [vmem:[%s574 + $0x1e4] sm:$0xf]
      %v858 = vld [vmem:[%s574 + $0x1e8] sm:$0xf]
      %v859 = vld [vmem:[%s574 + $0x1ec] sm:$0xf]
      %v860 = vld [vmem:[%s574 + $0x1f0] sm:$0xf]
      %v861 = vld [vmem:[%s574 + $0x1f4] sm:$0xf]
      %v862 = vld [vmem:[%s574 + $0x1f8] sm:$0xf]
      %v863 = vld [vmem:[%s574 + $0x1fc] sm:$0xf]
      %v864 = vld [vmem:[%s574 + $0x200] sm:$0xf]
      %v865 = vld [vmem:[%s574 + $0x204] sm:$0xf]
      %v866 = vld [vmem:[%s574 + $0x208] sm:$0xf]
      %v867 = vld [vmem:[%s574 + $0x20c] sm:$0xf]
      %v868 = vld [vmem:[%s574 + $0x210] sm:$0xf]
      %v869 = vld [vmem:[%s574 + $0x214] sm:$0xf]
      %v870 = vld [vmem:[%s574 + $0x218] sm:$0xf]
      %v871 = vld [vmem:[%s574 + $0x21c] sm:$0xf]
      %v872 = vld [vmem:[%s574 + $0x220] sm:$0xf]
      %v873 = vld [vmem:[%s574 + $0x224] sm:$0xf]
      %v874 = vld [vmem:[%s574 + $0x228] sm:$0xf]
      %v875 = vld [vmem:[%s574 + $0x22c] sm:$0xf]
      %v876 = vld [vmem:[%s574 + $0x230] sm:$0xf]
      %v877 = vld [vmem:[%s574 + $0x234] sm:$0xf]
      %v878 = vld [vmem:[%s574 + $0x238] sm:$0xf]
      %v879 = vld [vmem:[%s574 + $0x23c] sm:$0xf]
      %v880 = vld [vmem:[%s574 + $0x240] sm:$0xf]
      %v881 = vld [vmem:[%s574 + $0x244] sm:$0xf]
      %v882 = vld [vmem:[%s574 + $0x248] sm:$0xf]
      %v883 = vld [vmem:[%s574 + $0x24c] sm:$0xf]
      %v884 = vld [vmem:[%s574 + $0x250] sm:$0xf]
      %v885 = vld [vmem:[%s574 + $0x254] sm:$0xf]
      %v886 = vld [vmem:[%s574 + $0x258] sm:$0xf]
      %v887 = vld [vmem:[%s574 + $0x25c] sm:$0xf]
      %v888 = vld [vmem:[%s574 + $0x260] sm:$0xf]
      %v889 = vld [vmem:[%s574 + $0x264] sm:$0xf]
      %v890 = vld [vmem:[%s574 + $0x268] sm:$0xf]
      %v891 = vld [vmem:[%s574 + $0x26c] sm:$0xf]
      %v892 = vld [vmem:[%s574 + $0x270] sm:$0xf]
      %v893 = vld [vmem:[%s574 + $0x274] sm:$0xf]
      %v894 = vld [vmem:[%s574 + $0x278] sm:$0xf]
      %v895 = vld [vmem:[%s574 + $0x27c] sm:$0xf]
      %v896 = vld [vmem:[%s574 + $0x280] sm:$0xf]
      %v897 = vld [vmem:[%s574 + $0x284] sm:$0xf]
      %v898 = vld [vmem:[%s574 + $0x288] sm:$0xf]
      %v899 = vld [vmem:[%s574 + $0x28c] sm:$0xf]
      %v900 = vld [vmem:[%s574 + $0x290] sm:$0xf]
      %v901 = vld [vmem:[%s574 + $0x294] sm:$0xf]
      %v902 = vld [vmem:[%s574 + $0x298] sm:$0xf]
      %v903 = vld [vmem:[%s574 + $0x29c] sm:$0xf]
      %v904 = vld [vmem:[%s574 + $0x2a0] sm:$0xf]
      %v905 = vld [vmem:[%s574 + $0x2a4] sm:$0xf]
      %v906 = vld [vmem:[%s574 + $0x2a8] sm:$0xf]
      %v907 = vld [vmem:[%s574 + $0x2ac] sm:$0xf]
      %v908 = vld [vmem:[%s574 + $0x2b0] sm:$0xf]
      %v909 = vld [vmem:[%s574 + $0x2b4] sm:$0xf]
      %v910 = vld [vmem:[%s574 + $0x2b8] sm:$0xf]
      %v911 = vld [vmem:[%s574 + $0x2bc] sm:$0xf]
      %v912 = vld [vmem:[%s574 + $0x2c0] sm:$0xf]
      %v913 = vld [vmem:[%s574 + $0x2c4] sm:$0xf]
      %v914 = vld [vmem:[%s574 + $0x2c8] sm:$0xf]
      %v915 = vld [vmem:[%s574 + $0x2cc] sm:$0xf]
      %v916 = vld [vmem:[%s574 + $0x2d0] sm:$0xf]
      %v917 = vld [vmem:[%s574 + $0x2d4] sm:$0xf]
      %v918 = vld [vmem:[%s574 + $0x2d8] sm:$0xf]
      %v919 = vld [vmem:[%s574 + $0x2dc] sm:$0xf]
      %v920 = vld [vmem:[%s574 + $0x2e0] sm:$0xf]
      %v921 = vld [vmem:[%s574 + $0x2e4] sm:$0xf]
      %v922 = vld [vmem:[%s574 + $0x2e8] sm:$0xf]
      %v923 = vld [vmem:[%s574 + $0x2ec] sm:$0xf]
      %v924 = vld [vmem:[%s574 + $0x2f0] sm:$0xf]
      %v925 = vld [vmem:[%s574 + $0x2f4] sm:$0xf]
      %v926 = vld [vmem:[%s574 + $0x2f8] sm:$0xf]
      %v927 = vld [vmem:[%s574 + $0x2fc] sm:$0xf]
      %v928 = vld [vmem:[%s574 + $0x300] sm:$0xf]
      %v929 = vld [vmem:[%s574 + $0x304] sm:$0xf]
      %v930 = vld [vmem:[%s574 + $0x308] sm:$0xf]
      %v931 = vld [vmem:[%s574 + $0x30c] sm:$0xf]
      %v932 = vld [vmem:[%s574 + $0x310] sm:$0xf]
      %v933 = vld [vmem:[%s574 + $0x314] sm:$0xf]
      %v934 = vld [vmem:[%s574 + $0x318] sm:$0xf]
      %v935 = vld [vmem:[%s574 + $0x31c] sm:$0xf]
      %v936 = vld [vmem:[%s574 + $0x320] sm:$0xf]
      %v937 = vld [vmem:[%s574 + $0x324] sm:$0xf]
      %v938 = vld [vmem:[%s574 + $0x328] sm:$0xf]
      %v939 = vld [vmem:[%s574 + $0x32c] sm:$0xf]
      %v940 = vld [vmem:[%s574 + $0x330] sm:$0xf]
      %v941 = vld [vmem:[%s574 + $0x334] sm:$0xf]
      %v942 = vld [vmem:[%s574 + $0x338] sm:$0xf]
      %v943 = vld [vmem:[%s574 + $0x33c] sm:$0xf]
      %v944 = vld [vmem:[%s574 + $0x340] sm:$0xf]
      %v945 = vld [vmem:[%s574 + $0x344] sm:$0xf]
      %v946 = vld [vmem:[%s574 + $0x348] sm:$0xf]
      %v947 = vld [vmem:[%s574 + $0x34c] sm:$0xf]
      %v948 = vld [vmem:[%s574 + $0x350] sm:$0xf]
      %v949 = vld [vmem:[%s574 + $0x354] sm:$0xf]
      %v950 = vld [vmem:[%s574 + $0x358] sm:$0xf]
      %v951 = vld [vmem:[%s574 + $0x35c] sm:$0xf]
      %v952 = vld [vmem:[%s574 + $0x360] sm:$0xf]
      %v953 = vld [vmem:[%s574 + $0x364] sm:$0xf]
      %v954 = vld [vmem:[%s574 + $0x368] sm:$0xf]
      %v955 = vld [vmem:[%s574 + $0x36c] sm:$0xf]
      %v956 = vld [vmem:[%s574 + $0x370] sm:$0xf]
      %v957 = vld [vmem:[%s574 + $0x374] sm:$0xf]
      %v958 = vld [vmem:[%s574 + $0x378] sm:$0xf]
      %v959 = vld [vmem:[%s574 + $0x37c] sm:$0xf]
      %v960 = vld [vmem:[%s574 + $0x380] sm:$0xf]
      %v961 = vld [vmem:[%s574 + $0x384] sm:$0xf]
      %v962 = vld [vmem:[%s574 + $0x388] sm:$0xf]
      %v963 = vld [vmem:[%s574 + $0x38c] sm:$0xf]
      %v964 = vld [vmem:[%s574 + $0x390] sm:$0xf]
      %v965 = vld [vmem:[%s574 + $0x394] sm:$0xf]
      %v966 = vld [vmem:[%s574 + $0x398] sm:$0xf]
      %v967 = vld [vmem:[%s574 + $0x39c] sm:$0xf]
      %v968 = vld [vmem:[%s574 + $0x3a0] sm:$0xf]
      %v969 = vld [vmem:[%s574 + $0x3a4] sm:$0xf]
      %v970 = vld [vmem:[%s574 + $0x3a8] sm:$0xf]
      %v971 = vld [vmem:[%s574 + $0x3ac] sm:$0xf]
      %v972 = vld [vmem:[%s574 + $0x3b0] sm:$0xf]
      %v973 = vld [vmem:[%s574 + $0x3b4] sm:$0xf]
      %v974 = vld [vmem:[%s574 + $0x3b8] sm:$0xf]
      %v975 = vld [vmem:[%s574 + $0x3bc] sm:$0xf]
      %v976 = vld [vmem:[%s574 + $0x3c0] sm:$0xf]
      %v977 = vld [vmem:[%s574 + $0x3c4] sm:$0xf]
      %v978 = vld [vmem:[%s574 + $0x3c8] sm:$0xf]
      %v979 = vld [vmem:[%s574 + $0x3cc] sm:$0xf]
      %v980 = vld [vmem:[%s574 + $0x3d0] sm:$0xf]
      %v981 = vld [vmem:[%s574 + $0x3d4] sm:$0xf]
      %v982 = vld [vmem:[%s574 + $0x3d8] sm:$0xf]
      %v983 = vld [vmem:[%s574 + $0x3dc] sm:$0xf]
      %v984 = vld [vmem:[%s574 + $0x3e0] sm:$0xf]
      %v985 = vld [vmem:[%s574 + $0x3e4] sm:$0xf]
      %v986 = vld [vmem:[%s574 + $0x3e8] sm:$0xf]
      %v987 = vld [vmem:[%s574 + $0x3ec] sm:$0xf]
      %v988 = vld [vmem:[%s574 + $0x3f0] sm:$0xf]
      %v989 = vld [vmem:[%s574 + $0x3f4] sm:$0xf]
      %v990 = vld [vmem:[%s574 + $0x3f8] sm:$0xf]
      %v991 = vld [vmem:[%s574 + $0x3fc] sm:$0xf]
      %v1120 = vunpack.c.l.b16 %v608
      %v1121 = vunpack.c.h.b16 %v608
      %v1122 = vunpack.c.l.b16 %v609
      %v1123 = vunpack.c.h.b16 %v609
      %v1124 = vunpack.c.l.b16 %v610
      %v1125 = vunpack.c.h.b16 %v610
      %v1126 = vunpack.c.l.b16 %v611
      %v1127 = vunpack.c.h.b16 %v611
      %v1128 = vunpack.c.l.b16 %v612
      %v1129 = vunpack.c.h.b16 %v612
      %v1130 = vunpack.c.l.b16 %v613
      %v1131 = vunpack.c.h.b16 %v613
      %v1132 = vunpack.c.l.b16 %v614
      %v1133 = vunpack.c.h.b16 %v614
      %v1134 = vunpack.c.l.b16 %v615
      %v1135 = vunpack.c.h.b16 %v615
      %v1136 = vunpack.c.l.b16 %v616
      %v1137 = vunpack.c.h.b16 %v616
      %v1138 = vunpack.c.l.b16 %v617
      %v1139 = vunpack.c.h.b16 %v617
      %v1140 = vunpack.c.l.b16 %v618
      %v1141 = vunpack.c.h.b16 %v618
      %v1142 = vunpack.c.l.b16 %v619
      %v1143 = vunpack.c.h.b16 %v619
      %v1144 = vunpack.c.l.b16 %v620
      %v1145 = vunpack.c.h.b16 %v620
      %v1146 = vunpack.c.l.b16 %v621
      %v1147 = vunpack.c.h.b16 %v621
      %v1148 = vunpack.c.l.b16 %v622
      %v1149 = vunpack.c.h.b16 %v622
      %v1150 = vunpack.c.l.b16 %v623
      %v1151 = vunpack.c.h.b16 %v623
      %v1152 = vunpack.c.l.b16 %v624
      %v1153 = vunpack.c.h.b16 %v624
      %v1154 = vunpack.c.l.b16 %v625
      %v1155 = vunpack.c.h.b16 %v625
      %v1156 = vunpack.c.l.b16 %v626
      %v1157 = vunpack.c.h.b16 %v626
      %v1158 = vunpack.c.l.b16 %v627
      %v1159 = vunpack.c.h.b16 %v627
      %v1160 = vunpack.c.l.b16 %v628
      %v1161 = vunpack.c.h.b16 %v628
      %v1162 = vunpack.c.l.b16 %v629
      %v1163 = vunpack.c.h.b16 %v629
      %v1164 = vunpack.c.l.b16 %v630
      %v1165 = vunpack.c.h.b16 %v630
      %v1166 = vunpack.c.l.b16 %v631
      %v1167 = vunpack.c.h.b16 %v631
      %v1168 = vunpack.c.l.b16 %v632
      %v1169 = vunpack.c.h.b16 %v632
      %v1170 = vunpack.c.l.b16 %v633
      %v1171 = vunpack.c.h.b16 %v633
      %v1172 = vunpack.c.l.b16 %v634
      %v1173 = vunpack.c.h.b16 %v634
      %v1174 = vunpack.c.l.b16 %v635
      %v1175 = vunpack.c.h.b16 %v635
      %v1176 = vunpack.c.l.b16 %v636
      %v1177 = vunpack.c.h.b16 %v636
      %v1178 = vunpack.c.l.b16 %v637
      %v1179 = vunpack.c.h.b16 %v637
      %v1180 = vunpack.c.l.b16 %v638
      %v1181 = vunpack.c.h.b16 %v638
      %v1182 = vunpack.c.l.b16 %v639
      %v1183 = vunpack.c.h.b16 %v639
      %v1184 = vunpack.c.l.b16 %v640
      %v1185 = vunpack.c.h.b16 %v640
      %v1186 = vunpack.c.l.b16 %v641
      %v1187 = vunpack.c.h.b16 %v641
      %v1188 = vunpack.c.l.b16 %v642
      %v1189 = vunpack.c.h.b16 %v642
      %v1190 = vunpack.c.l.b16 %v643
      %v1191 = vunpack.c.h.b16 %v643
      %v1192 = vunpack.c.l.b16 %v644
      %v1193 = vunpack.c.h.b16 %v644
      %v1194 = vunpack.c.l.b16 %v645
      %v1195 = vunpack.c.h.b16 %v645
      %v1196 = vunpack.c.l.b16 %v646
      %v1197 = vunpack.c.h.b16 %v646
      %v1198 = vunpack.c.l.b16 %v647
      %v1199 = vunpack.c.h.b16 %v647
      %v1200 = vunpack.c.l.b16 %v648
      %v1201 = vunpack.c.h.b16 %v648
      %v1202 = vunpack.c.l.b16 %v649
      %v1203 = vunpack.c.h.b16 %v649
      %v1204 = vunpack.c.l.b16 %v650
      %v1205 = vunpack.c.h.b16 %v650
      %v1206 = vunpack.c.l.b16 %v651
      %v1207 = vunpack.c.h.b16 %v651
      %v1208 = vunpack.c.l.b16 %v652
      %v1209 = vunpack.c.h.b16 %v652
      %v1210 = vunpack.c.l.b16 %v653
      %v1211 = vunpack.c.h.b16 %v653
      %v1212 = vunpack.c.l.b16 %v654
      %v1213 = vunpack.c.h.b16 %v654
      %v1214 = vunpack.c.l.b16 %v655
      %v1215 = vunpack.c.h.b16 %v655
      %v1216 = vunpack.c.l.b16 %v656
      %v1217 = vunpack.c.h.b16 %v656
      %v1218 = vunpack.c.l.b16 %v657
      %v1219 = vunpack.c.h.b16 %v657
      %v1220 = vunpack.c.l.b16 %v658
      %v1221 = vunpack.c.h.b16 %v658
      %v1222 = vunpack.c.l.b16 %v659
      %v1223 = vunpack.c.h.b16 %v659
      %v1224 = vunpack.c.l.b16 %v660
      %v1225 = vunpack.c.h.b16 %v660
      %v1226 = vunpack.c.l.b16 %v661
      %v1227 = vunpack.c.h.b16 %v661
      %v1228 = vunpack.c.l.b16 %v662
      %v1229 = vunpack.c.h.b16 %v662
      %v1230 = vunpack.c.l.b16 %v663
      %v1231 = vunpack.c.h.b16 %v663
      %v1232 = vunpack.c.l.b16 %v664
      %v1233 = vunpack.c.h.b16 %v664
      %v1234 = vunpack.c.l.b16 %v665
      %v1235 = vunpack.c.h.b16 %v665
      %v1236 = vunpack.c.l.b16 %v666
      %v1237 = vunpack.c.h.b16 %v666
      %v1238 = vunpack.c.l.b16 %v667
      %v1239 = vunpack.c.h.b16 %v667
      %v1240 = vunpack.c.l.b16 %v668
      %v1241 = vunpack.c.h.b16 %v668
      %v1242 = vunpack.c.l.b16 %v669
      %v1243 = vunpack.c.h.b16 %v669
      %v1244 = vunpack.c.l.b16 %v670
      %v1245 = vunpack.c.h.b16 %v670
      %v1246 = vunpack.c.l.b16 %v671
      %v1247 = vunpack.c.h.b16 %v671
      %v1248 = vunpack.c.l.b16 %v672
      %v1249 = vunpack.c.h.b16 %v672
      %v1250 = vunpack.c.l.b16 %v673
      %v1251 = vunpack.c.h.b16 %v673
      %v1252 = vunpack.c.l.b16 %v674
      %v1253 = vunpack.c.h.b16 %v674
      %v1254 = vunpack.c.l.b16 %v675
      %v1255 = vunpack.c.h.b16 %v675
      %v1256 = vunpack.c.l.b16 %v676
      %v1257 = vunpack.c.h.b16 %v676
      %v1258 = vunpack.c.l.b16 %v677
      %v1259 = vunpack.c.h.b16 %v677
      %v1260 = vunpack.c.l.b16 %v678
      %v1261 = vunpack.c.h.b16 %v678
      %v1262 = vunpack.c.l.b16 %v679
      %v1263 = vunpack.c.h.b16 %v679
      %v1264 = vunpack.c.l.b16 %v680
      %v1265 = vunpack.c.h.b16 %v680
      %v1266 = vunpack.c.l.b16 %v681
      %v1267 = vunpack.c.h.b16 %v681
      %v1268 = vunpack.c.l.b16 %v682
      %v1269 = vunpack.c.h.b16 %v682
      %v1270 = vunpack.c.l.b16 %v683
      %v1271 = vunpack.c.h.b16 %v683
      %v1272 = vunpack.c.l.b16 %v684
      %v1273 = vunpack.c.h.b16 %v684
      %v1274 = vunpack.c.l.b16 %v685
      %v1275 = vunpack.c.h.b16 %v685
      %v1276 = vunpack.c.l.b16 %v686
      %v1277 = vunpack.c.h.b16 %v686
      %v1278 = vunpack.c.l.b16 %v687
      %v1279 = vunpack.c.h.b16 %v687
      %v1280 = vunpack.c.l.b16 %v688
      %v1281 = vunpack.c.h.b16 %v688
      %v1282 = vunpack.c.l.b16 %v689
      %v1283 = vunpack.c.h.b16 %v689
      %v1284 = vunpack.c.l.b16 %v690
      %v1285 = vunpack.c.h.b16 %v690
      %v1286 = vunpack.c.l.b16 %v691
      %v1287 = vunpack.c.h.b16 %v691
      %v1288 = vunpack.c.l.b16 %v692
      %v1289 = vunpack.c.h.b16 %v692
      %v1290 = vunpack.c.l.b16 %v693
      %v1291 = vunpack.c.h.b16 %v693
      %v1292 = vunpack.c.l.b16 %v694
      %v1293 = vunpack.c.h.b16 %v694
      %v1294 = vunpack.c.l.b16 %v695
      %v1295 = vunpack.c.h.b16 %v695
      %v1296 = vunpack.c.l.b16 %v696
      %v1297 = vunpack.c.h.b16 %v696
      %v1298 = vunpack.c.l.b16 %v697
      %v1299 = vunpack.c.h.b16 %v697
      %v1300 = vunpack.c.l.b16 %v698
      %v1301 = vunpack.c.h.b16 %v698
      %v1302 = vunpack.c.l.b16 %v699
      %v1303 = vunpack.c.h.b16 %v699
      %v1304 = vunpack.c.l.b16 %v700
      %v1305 = vunpack.c.h.b16 %v700
      %v1306 = vunpack.c.l.b16 %v701
      %v1307 = vunpack.c.h.b16 %v701
      %v1308 = vunpack.c.l.b16 %v702
      %v1309 = vunpack.c.h.b16 %v702
      %v1310 = vunpack.c.l.b16 %v703
      %v1311 = vunpack.c.h.b16 %v703
      %v1312 = vunpack.c.l.b16 %v704
      %v1313 = vunpack.c.h.b16 %v704
      %v1314 = vunpack.c.l.b16 %v705
      %v1315 = vunpack.c.h.b16 %v705
      %v1316 = vunpack.c.l.b16 %v706
      %v1317 = vunpack.c.h.b16 %v706
      %v1318 = vunpack.c.l.b16 %v707
      %v1319 = vunpack.c.h.b16 %v707
      %v1320 = vunpack.c.l.b16 %v708
      %v1321 = vunpack.c.h.b16 %v708
      %v1322 = vunpack.c.l.b16 %v709
      %v1323 = vunpack.c.h.b16 %v709
      %v1324 = vunpack.c.l.b16 %v710
      %v1325 = vunpack.c.h.b16 %v710
      %v1326 = vunpack.c.l.b16 %v711
      %v1327 = vunpack.c.h.b16 %v711
      %v1328 = vunpack.c.l.b16 %v712
      %v1329 = vunpack.c.h.b16 %v712
      %v1330 = vunpack.c.l.b16 %v713
      %v1331 = vunpack.c.h.b16 %v713
      %v1332 = vunpack.c.l.b16 %v714
      %v1333 = vunpack.c.h.b16 %v714
      %v1334 = vunpack.c.l.b16 %v715
      %v1335 = vunpack.c.h.b16 %v715
      %v1336 = vunpack.c.l.b16 %v716
      %v1337 = vunpack.c.h.b16 %v716
      %v1338 = vunpack.c.l.b16 %v717
      %v1339 = vunpack.c.h.b16 %v717
      %v1340 = vunpack.c.l.b16 %v718
      %v1341 = vunpack.c.h.b16 %v718
      %v1342 = vunpack.c.l.b16 %v719
      %v1343 = vunpack.c.h.b16 %v719
      %v1344 = vunpack.c.l.b16 %v720
      %v1345 = vunpack.c.h.b16 %v720
      %v1346 = vunpack.c.l.b16 %v721
      %v1347 = vunpack.c.h.b16 %v721
      %v1348 = vunpack.c.l.b16 %v722
      %v1349 = vunpack.c.h.b16 %v722
      %v1350 = vunpack.c.l.b16 %v723
      %v1351 = vunpack.c.h.b16 %v723
      %v1352 = vunpack.c.l.b16 %v724
      %v1353 = vunpack.c.h.b16 %v724
      %v1354 = vunpack.c.l.b16 %v725
      %v1355 = vunpack.c.h.b16 %v725
      %v1356 = vunpack.c.l.b16 %v726
      %v1357 = vunpack.c.h.b16 %v726
      %v1358 = vunpack.c.l.b16 %v727
      %v1359 = vunpack.c.h.b16 %v727
      %v1360 = vunpack.c.l.b16 %v728
      %v1361 = vunpack.c.h.b16 %v728
      %v1362 = vunpack.c.l.b16 %v729
      %v1363 = vunpack.c.h.b16 %v729
      %v1364 = vunpack.c.l.b16 %v730
      %v1365 = vunpack.c.h.b16 %v730
      %v1366 = vunpack.c.l.b16 %v731
      %v1367 = vunpack.c.h.b16 %v731
      %v1368 = vunpack.c.l.b16 %v732
      %v1369 = vunpack.c.h.b16 %v732
      %v1370 = vunpack.c.l.b16 %v733
      %v1371 = vunpack.c.h.b16 %v733
      %v1372 = vunpack.c.l.b16 %v734
      %v1373 = vunpack.c.h.b16 %v734
      %v1374 = vunpack.c.l.b16 %v735
      %v1375 = vunpack.c.h.b16 %v735
      %v1376 = vpack.c.b16 %v1136, %v1120
      %v1377 = vpack.c.b16 %v1137, %v1121
      %v1378 = vpack.c.b16 %v1138, %v1122
      %v1379 = vpack.c.b16 %v1139, %v1123
      %v1380 = vpack.c.b16 %v1140, %v1124
      %v1381 = vpack.c.b16 %v1141, %v1125
      %v1382 = vpack.c.b16 %v1142, %v1126
      %v1383 = vpack.c.b16 %v1143, %v1127
      %v1384 = vpack.c.b16 %v1144, %v1128
      %v1385 = vpack.c.b16 %v1145, %v1129
      %v1386 = vpack.c.b16 %v1146, %v1130
      %v1387 = vpack.c.b16 %v1147, %v1131
      %v1388 = vpack.c.b16 %v1148, %v1132
      %v1389 = vpack.c.b16 %v1149, %v1133
      %v1390 = vpack.c.b16 %v1150, %v1134
      %v1391 = vpack.c.b16 %v1151, %v1135
      %v1392 = vpack.c.b16 %v1168, %v1152
      %v1393 = vpack.c.b16 %v1169, %v1153
      %v1394 = vpack.c.b16 %v1170, %v1154
      %v1395 = vpack.c.b16 %v1171, %v1155
      %v1396 = vpack.c.b16 %v1172, %v1156
      %v1397 = vpack.c.b16 %v1173, %v1157
      %v1398 = vpack.c.b16 %v1174, %v1158
      %v1399 = vpack.c.b16 %v1175, %v1159
      %v1400 = vpack.c.b16 %v1176, %v1160
      %v1401 = vpack.c.b16 %v1177, %v1161
      %v1402 = vpack.c.b16 %v1178, %v1162
      %v1403 = vpack.c.b16 %v1179, %v1163
      %v1404 = vpack.c.b16 %v1180, %v1164
      %v1405 = vpack.c.b16 %v1181, %v1165
      %v1406 = vpack.c.b16 %v1182, %v1166
      %v1407 = vpack.c.b16 %v1183, %v1167
      %v1408 = vpack.c.b16 %v1200, %v1184
      %v1409 = vpack.c.b16 %v1201, %v1185
      %v1410 = vpack.c.b16 %v1202, %v1186
      %v1411 = vpack.c.b16 %v1203, %v1187
      %v1412 = vpack.c.b16 %v1204, %v1188
      %v1413 = vpack.c.b16 %v1205, %v1189
      %v1414 = vpack.c.b16 %v1206, %v1190
      %v1415 = vpack.c.b16 %v1207, %v1191
      %v1416 = vpack.c.b16 %v1208, %v1192
      %v1417 = vpack.c.b16 %v1209, %v1193
      %v1418 = vpack.c.b16 %v1210, %v1194
      %v1419 = vpack.c.b16 %v1211, %v1195
      %v1420 = vpack.c.b16 %v1212, %v1196
      %v1421 = vpack.c.b16 %v1213, %v1197
      %v1422 = vpack.c.b16 %v1214, %v1198
      %v1423 = vpack.c.b16 %v1215, %v1199
      %v1424 = vpack.c.b16 %v1232, %v1216
      %v1425 = vpack.c.b16 %v1233, %v1217
      %v1426 = vpack.c.b16 %v1234, %v1218
      %v1427 = vpack.c.b16 %v1235, %v1219
      %v1428 = vpack.c.b16 %v1236, %v1220
      %v1429 = vpack.c.b16 %v1237, %v1221
      %v1430 = vpack.c.b16 %v1238, %v1222
      %v1431 = vpack.c.b16 %v1239, %v1223
      %v1432 = vpack.c.b16 %v1240, %v1224
      %v1433 = vpack.c.b16 %v1241, %v1225
      %v1434 = vpack.c.b16 %v1242, %v1226
      %v1435 = vpack.c.b16 %v1243, %v1227
      %v1436 = vpack.c.b16 %v1244, %v1228
      %v1437 = vpack.c.b16 %v1245, %v1229
      %v1438 = vpack.c.b16 %v1246, %v1230
      %v1439 = vpack.c.b16 %v1247, %v1231
      %v1440 = vpack.c.b16 %v1264, %v1248
      %v1441 = vpack.c.b16 %v1265, %v1249
      %v1442 = vpack.c.b16 %v1266, %v1250
      %v1443 = vpack.c.b16 %v1267, %v1251
      %v1444 = vpack.c.b16 %v1268, %v1252
      %v1445 = vpack.c.b16 %v1269, %v1253
      %v1446 = vpack.c.b16 %v1270, %v1254
      %v1447 = vpack.c.b16 %v1271, %v1255
      %v1448 = vpack.c.b16 %v1272, %v1256
      %v1449 = vpack.c.b16 %v1273, %v1257
      %v1450 = vpack.c.b16 %v1274, %v1258
      %v1451 = vpack.c.b16 %v1275, %v1259
      %v1452 = vpack.c.b16 %v1276, %v1260
      %v1453 = vpack.c.b16 %v1277, %v1261
      %v1454 = vpack.c.b16 %v1278, %v1262
      %v1455 = vpack.c.b16 %v1279, %v1263
      %v1456 = vpack.c.b16 %v1296, %v1280
      %v1457 = vpack.c.b16 %v1297, %v1281
      %v1458 = vpack.c.b16 %v1298, %v1282
      %v1459 = vpack.c.b16 %v1299, %v1283
      %v1460 = vpack.c.b16 %v1300, %v1284
      %v1461 = vpack.c.b16 %v1301, %v1285
      %v1462 = vpack.c.b16 %v1302, %v1286
      %v1463 = vpack.c.b16 %v1303, %v1287
      %v1464 = vpack.c.b16 %v1304, %v1288
      %v1465 = vpack.c.b16 %v1305, %v1289
      %v1466 = vpack.c.b16 %v1306, %v1290
      %v1467 = vpack.c.b16 %v1307, %v1291
      %v1468 = vpack.c.b16 %v1308, %v1292
      %v1469 = vpack.c.b16 %v1309, %v1293
      %v1470 = vpack.c.b16 %v1310, %v1294
      %v1471 = vpack.c.b16 %v1311, %v1295
      %v1472 = vpack.c.b16 %v1328, %v1312
      %v1473 = vpack.c.b16 %v1329, %v1313
      %v1474 = vpack.c.b16 %v1330, %v1314
      %v1475 = vpack.c.b16 %v1331, %v1315
      %v1476 = vpack.c.b16 %v1332, %v1316
      %v1477 = vpack.c.b16 %v1333, %v1317
      %v1478 = vpack.c.b16 %v1334, %v1318
      %v1479 = vpack.c.b16 %v1335, %v1319
      %v1480 = vpack.c.b16 %v1336, %v1320
      %v1481 = vpack.c.b16 %v1337, %v1321
      %v1482 = vpack.c.b16 %v1338, %v1322
      %v1483 = vpack.c.b16 %v1339, %v1323
      %v1484 = vpack.c.b16 %v1340, %v1324
      %v1485 = vpack.c.b16 %v1341, %v1325
      %v1486 = vpack.c.b16 %v1342, %v1326
      %v1487 = vpack.c.b16 %v1343, %v1327
      %v1488 = vpack.c.b16 %v1360, %v1344
      %v1489 = vpack.c.b16 %v1361, %v1345
      %v1490 = vpack.c.b16 %v1362, %v1346
      %v1491 = vpack.c.b16 %v1363, %v1347
      %v1492 = vpack.c.b16 %v1364, %v1348
      %v1493 = vpack.c.b16 %v1365, %v1349
      %v1494 = vpack.c.b16 %v1366, %v1350
      %v1495 = vpack.c.b16 %v1367, %v1351
      %v1496 = vpack.c.b16 %v1368, %v1352
      %v1497 = vpack.c.b16 %v1369, %v1353
      %v1498 = vpack.c.b16 %v1370, %v1354
      %v1499 = vpack.c.b16 %v1371, %v1355
      %v1500 = vpack.c.b16 %v1372, %v1356
      %v1501 = vpack.c.b16 %v1373, %v1357
      %v1502 = vpack.c.b16 %v1374, %v1358
      %v1503 = vpack.c.b16 %v1375, %v1359
      %v1888 = vunpack.c.l.b16 %v736
      %v1889 = vunpack.c.l.b16 %v737
      %v1890 = vunpack.c.l.b16 %v738
      %v1891 = vunpack.c.l.b16 %v739
      %v1892 = vunpack.c.l.b16 %v740
      %v1893 = vunpack.c.l.b16 %v741
      %v1894 = vunpack.c.l.b16 %v742
      %v1895 = vunpack.c.l.b16 %v743
      %v1896 = vunpack.c.l.b16 %v744
      %v1897 = vunpack.c.l.b16 %v745
      %v1898 = vunpack.c.l.b16 %v746
      %v1899 = vunpack.c.l.b16 %v747
      %v1900 = vunpack.c.l.b16 %v748
      %v1901 = vunpack.c.l.b16 %v749
      %v1902 = vunpack.c.l.b16 %v750
      %v1903 = vunpack.c.l.b16 %v751
      %v1904 = vunpack.c.l.b16 %v752
      %v1905 = vunpack.c.l.b16 %v753
      %v1906 = vunpack.c.l.b16 %v754
      %v1907 = vunpack.c.l.b16 %v755
      %v1908 = vunpack.c.l.b16 %v756
      %v1909 = vunpack.c.l.b16 %v757
      %v1910 = vunpack.c.l.b16 %v758
      %v1911 = vunpack.c.l.b16 %v759
      %v1912 = vunpack.c.l.b16 %v760
      %v1913 = vunpack.c.l.b16 %v761
      %v1914 = vunpack.c.l.b16 %v762
      %v1915 = vunpack.c.l.b16 %v763
      %v1916 = vunpack.c.l.b16 %v764
      %v1917 = vunpack.c.l.b16 %v765
      %v1918 = vunpack.c.l.b16 %v766
      %v1919 = vunpack.c.l.b16 %v767
      %v1920 = vunpack.c.l.b16 %v768
      %v1921 = vunpack.c.l.b16 %v769
      %v1922 = vunpack.c.l.b16 %v770
      %v1923 = vunpack.c.l.b16 %v771
      %v1924 = vunpack.c.l.b16 %v772
      %v1925 = vunpack.c.l.b16 %v773
      %v1926 = vunpack.c.l.b16 %v774
      %v1927 = vunpack.c.l.b16 %v775
      %v1928 = vunpack.c.l.b16 %v776
      %v1929 = vunpack.c.l.b16 %v777
      %v1930 = vunpack.c.l.b16 %v778
      %v1931 = vunpack.c.l.b16 %v779
      %v1932 = vunpack.c.l.b16 %v780
      %v1933 = vunpack.c.l.b16 %v781
      %v1934 = vunpack.c.l.b16 %v782
      %v1935 = vunpack.c.l.b16 %v783
      %v1936 = vunpack.c.l.b16 %v784
      %v1937 = vunpack.c.l.b16 %v785
      %v1938 = vunpack.c.l.b16 %v786
      %v1939 = vunpack.c.l.b16 %v787
      %v1940 = vunpack.c.l.b16 %v788
      %v1941 = vunpack.c.l.b16 %v789
      %v1942 = vunpack.c.l.b16 %v790
      %v1943 = vunpack.c.l.b16 %v791
      %v1944 = vunpack.c.l.b16 %v792
      %v1945 = vunpack.c.l.b16 %v793
      %v1946 = vunpack.c.l.b16 %v794
      %v1947 = vunpack.c.l.b16 %v795
      %v1948 = vunpack.c.l.b16 %v796
      %v1949 = vunpack.c.l.b16 %v797
      %v1950 = vunpack.c.l.b16 %v798
      %v1951 = vunpack.c.l.b16 %v799
      %v1952 = vunpack.c.l.b16 %v800
      %v1953 = vunpack.c.l.b16 %v801
      %v1954 = vunpack.c.l.b16 %v802
      %v1955 = vunpack.c.l.b16 %v803
      %v1956 = vunpack.c.l.b16 %v804
      %v1957 = vunpack.c.l.b16 %v805
      %v1958 = vunpack.c.l.b16 %v806
      %v1959 = vunpack.c.l.b16 %v807
      %v1960 = vunpack.c.l.b16 %v808
      %v1961 = vunpack.c.l.b16 %v809
      %v1962 = vunpack.c.l.b16 %v810
      %v1963 = vunpack.c.l.b16 %v811
      %v1964 = vunpack.c.l.b16 %v812
      %v1965 = vunpack.c.l.b16 %v813
      %v1966 = vunpack.c.l.b16 %v814
      %v1967 = vunpack.c.l.b16 %v815
      %v1968 = vunpack.c.l.b16 %v816
      %v1969 = vunpack.c.l.b16 %v817
      %v1970 = vunpack.c.l.b16 %v818
      %v1971 = vunpack.c.l.b16 %v819
      %v1972 = vunpack.c.l.b16 %v820
      %v1973 = vunpack.c.l.b16 %v821
      %v1974 = vunpack.c.l.b16 %v822
      %v1975 = vunpack.c.l.b16 %v823
      %v1976 = vunpack.c.l.b16 %v824
      %v1977 = vunpack.c.l.b16 %v825
      %v1978 = vunpack.c.l.b16 %v826
      %v1979 = vunpack.c.l.b16 %v827
      %v1980 = vunpack.c.l.b16 %v828
      %v1981 = vunpack.c.l.b16 %v829
      %v1982 = vunpack.c.l.b16 %v830
      %v1983 = vunpack.c.l.b16 %v831
      %v1984 = vunpack.c.l.b16 %v832
      %v1985 = vunpack.c.l.b16 %v833
      %v1986 = vunpack.c.l.b16 %v834
      %v1987 = vunpack.c.l.b16 %v835
      %v1988 = vunpack.c.l.b16 %v836
      %v1989 = vunpack.c.l.b16 %v837
      %v1990 = vunpack.c.l.b16 %v838
      %v1991 = vunpack.c.l.b16 %v839
      %v1992 = vunpack.c.l.b16 %v840
      %v1993 = vunpack.c.l.b16 %v841
      %v1994 = vunpack.c.l.b16 %v842
      %v1995 = vunpack.c.l.b16 %v843
      %v1996 = vunpack.c.l.b16 %v844
      %v1997 = vunpack.c.l.b16 %v845
      %v1998 = vunpack.c.l.b16 %v846
      %v1999 = vunpack.c.l.b16 %v847
      %v2000 = vunpack.c.l.b16 %v848
      %v2001 = vunpack.c.l.b16 %v849
      %v2002 = vunpack.c.l.b16 %v850
      %v2003 = vunpack.c.l.b16 %v851
      %v2004 = vunpack.c.l.b16 %v852
      %v2005 = vunpack.c.l.b16 %v853
      %v2006 = vunpack.c.l.b16 %v854
      %v2007 = vunpack.c.l.b16 %v855
      %v2008 = vunpack.c.l.b16 %v856
      %v2009 = vunpack.c.l.b16 %v857
      %v2010 = vunpack.c.l.b16 %v858
      %v2011 = vunpack.c.l.b16 %v859
      %v2012 = vunpack.c.l.b16 %v860
      %v2013 = vunpack.c.l.b16 %v861
      %v2014 = vunpack.c.l.b16 %v862
      %v2015 = vunpack.c.l.b16 %v863
      %v2016 = vunpack.c.l.b16 %v864
      %v2017 = vunpack.c.l.b16 %v865
      %v2018 = vunpack.c.l.b16 %v866
      %v2019 = vunpack.c.l.b16 %v867
      %v2020 = vunpack.c.l.b16 %v868
      %v2021 = vunpack.c.l.b16 %v869
      %v2022 = vunpack.c.l.b16 %v870
      %v2023 = vunpack.c.l.b16 %v871
      %v2024 = vunpack.c.l.b16 %v872
      %v2025 = vunpack.c.l.b16 %v873
      %v2026 = vunpack.c.l.b16 %v874
      %v2027 = vunpack.c.l.b16 %v875
      %v2028 = vunpack.c.l.b16 %v876
      %v2029 = vunpack.c.l.b16 %v877
      %v2030 = vunpack.c.l.b16 %v878
      %v2031 = vunpack.c.l.b16 %v879
      %v2032 = vunpack.c.l.b16 %v880
      %v2033 = vunpack.c.l.b16 %v881
      %v2034 = vunpack.c.l.b16 %v882
      %v2035 = vunpack.c.l.b16 %v883
      %v2036 = vunpack.c.l.b16 %v884
      %v2037 = vunpack.c.l.b16 %v885
      %v2038 = vunpack.c.l.b16 %v886
      %v2039 = vunpack.c.l.b16 %v887
      %v2040 = vunpack.c.l.b16 %v888
      %v2041 = vunpack.c.l.b16 %v889
      %v2042 = vunpack.c.l.b16 %v890
      %v2043 = vunpack.c.l.b16 %v891
      %v2044 = vunpack.c.l.b16 %v892
      %v2045 = vunpack.c.l.b16 %v893
      %v2046 = vunpack.c.l.b16 %v894
      %v2047 = vunpack.c.l.b16 %v895
      %v2048 = vunpack.c.l.b16 %v896
      %v2049 = vunpack.c.l.b16 %v897
      %v2050 = vunpack.c.l.b16 %v898
      %v2051 = vunpack.c.l.b16 %v899
      %v2052 = vunpack.c.l.b16 %v900
      %v2053 = vunpack.c.l.b16 %v901
      %v2054 = vunpack.c.l.b16 %v902
      %v2055 = vunpack.c.l.b16 %v903
      %v2056 = vunpack.c.l.b16 %v904
      %v2057 = vunpack.c.l.b16 %v905
      %v2058 = vunpack.c.l.b16 %v906
      %v2059 = vunpack.c.l.b16 %v907
      %v2060 = vunpack.c.l.b16 %v908
      %v2061 = vunpack.c.l.b16 %v909
      %v2062 = vunpack.c.l.b16 %v910
      %v2063 = vunpack.c.l.b16 %v911
      %v2064 = vunpack.c.l.b16 %v912
      %v2065 = vunpack.c.l.b16 %v913
      %v2066 = vunpack.c.l.b16 %v914
      %v2067 = vunpack.c.l.b16 %v915
      %v2068 = vunpack.c.l.b16 %v916
      %v2069 = vunpack.c.l.b16 %v917
      %v2070 = vunpack.c.l.b16 %v918
      %v2071 = vunpack.c.l.b16 %v919
      %v2072 = vunpack.c.l.b16 %v920
      %v2073 = vunpack.c.l.b16 %v921
      %v2074 = vunpack.c.l.b16 %v922
      %v2075 = vunpack.c.l.b16 %v923
      %v2076 = vunpack.c.l.b16 %v924
      %v2077 = vunpack.c.l.b16 %v925
      %v2078 = vunpack.c.l.b16 %v926
      %v2079 = vunpack.c.l.b16 %v927
      %v2080 = vunpack.c.l.b16 %v928
      %v2081 = vunpack.c.l.b16 %v929
      %v2082 = vunpack.c.l.b16 %v930
      %v2083 = vunpack.c.l.b16 %v931
      %v2084 = vunpack.c.l.b16 %v932
      %v2085 = vunpack.c.l.b16 %v933
      %v2086 = vunpack.c.l.b16 %v934
      %v2087 = vunpack.c.l.b16 %v935
      %v2088 = vunpack.c.l.b16 %v936
      %v2089 = vunpack.c.l.b16 %v937
      %v2090 = vunpack.c.l.b16 %v938
      %v2091 = vunpack.c.l.b16 %v939
      %v2092 = vunpack.c.l.b16 %v940
      %v2093 = vunpack.c.l.b16 %v941
      %v2094 = vunpack.c.l.b16 %v942
      %v2095 = vunpack.c.l.b16 %v943
      %v2096 = vunpack.c.l.b16 %v944
      %v2097 = vunpack.c.l.b16 %v945
      %v2098 = vunpack.c.l.b16 %v946
      %v2099 = vunpack.c.l.b16 %v947
      %v2100 = vunpack.c.l.b16 %v948
      %v2101 = vunpack.c.l.b16 %v949
      %v2102 = vunpack.c.l.b16 %v950
      %v2103 = vunpack.c.l.b16 %v951
      %v2104 = vunpack.c.l.b16 %v952
      %v2105 = vunpack.c.l.b16 %v953
      %v2106 = vunpack.c.l.b16 %v954
      %v2107 = vunpack.c.l.b16 %v955
      %v2108 = vunpack.c.l.b16 %v956
      %v2109 = vunpack.c.l.b16 %v957
      %v2110 = vunpack.c.l.b16 %v958
      %v2111 = vunpack.c.l.b16 %v959
      %v2112 = vunpack.c.l.b16 %v960
      %v2113 = vunpack.c.l.b16 %v961
      %v2114 = vunpack.c.l.b16 %v962
      %v2115 = vunpack.c.l.b16 %v963
      %v2116 = vunpack.c.l.b16 %v964
      %v2117 = vunpack.c.l.b16 %v965
      %v2118 = vunpack.c.l.b16 %v966
      %v2119 = vunpack.c.l.b16 %v967
      %v2120 = vunpack.c.l.b16 %v968
      %v2121 = vunpack.c.l.b16 %v969
      %v2122 = vunpack.c.l.b16 %v970
      %v2123 = vunpack.c.l.b16 %v971
      %v2124 = vunpack.c.l.b16 %v972
      %v2125 = vunpack.c.l.b16 %v973
      %v2126 = vunpack.c.l.b16 %v974
      %v2127 = vunpack.c.l.b16 %v975
      %v2128 = vunpack.c.l.b16 %v976
      %v2129 = vunpack.c.l.b16 %v977
      %v2130 = vunpack.c.l.b16 %v978
      %v2131 = vunpack.c.l.b16 %v979
      %v2132 = vunpack.c.l.b16 %v980
      %v2133 = vunpack.c.l.b16 %v981
      %v2134 = vunpack.c.l.b16 %v982
      %v2135 = vunpack.c.l.b16 %v983
      %v2136 = vunpack.c.l.b16 %v984
      %v2137 = vunpack.c.l.b16 %v985
      %v2138 = vunpack.c.l.b16 %v986
      %v2139 = vunpack.c.l.b16 %v987
      %v2140 = vunpack.c.l.b16 %v988
      %v2141 = vunpack.c.l.b16 %v989
      %v2142 = vunpack.c.l.b16 %v990
      %v2143 = vunpack.c.l.b16 %v991
      %v2144 = vpack.c.b16 %v1889, %v1888
      %v2145 = vpack.c.b16 %v1891, %v1890
      %v2146 = vpack.c.b16 %v1893, %v1892
      %v2147 = vpack.c.b16 %v1895, %v1894
      %v2148 = vpack.c.b16 %v1897, %v1896
      %v2149 = vpack.c.b16 %v1899, %v1898
      %v2150 = vpack.c.b16 %v1901, %v1900
      %v2151 = vpack.c.b16 %v1903, %v1902
      %v2152 = vpack.c.b16 %v1905, %v1904
      %v2153 = vpack.c.b16 %v1907, %v1906
      %v2154 = vpack.c.b16 %v1909, %v1908
      %v2155 = vpack.c.b16 %v1911, %v1910
      %v2156 = vpack.c.b16 %v1913, %v1912
      %v2157 = vpack.c.b16 %v1915, %v1914
      %v2158 = vpack.c.b16 %v1917, %v1916
      %v2159 = vpack.c.b16 %v1919, %v1918
      %v2160 = vpack.c.b16 %v1921, %v1920
      %v2161 = vpack.c.b16 %v1923, %v1922
      %v2162 = vpack.c.b16 %v1925, %v1924
      %v2163 = vpack.c.b16 %v1927, %v1926
      %v2164 = vpack.c.b16 %v1929, %v1928
      %v2165 = vpack.c.b16 %v1931, %v1930
      %v2166 = vpack.c.b16 %v1933, %v1932
      %v2167 = vpack.c.b16 %v1935, %v1934
      %v2168 = vpack.c.b16 %v1937, %v1936
      %v2169 = vpack.c.b16 %v1939, %v1938
      %v2170 = vpack.c.b16 %v1941, %v1940
      %v2171 = vpack.c.b16 %v1943, %v1942
      %v2172 = vpack.c.b16 %v1945, %v1944
      %v2173 = vpack.c.b16 %v1947, %v1946
      %v2174 = vpack.c.b16 %v1949, %v1948
      %v2175 = vpack.c.b16 %v1951, %v1950
      %v2176 = vpack.c.b16 %v1953, %v1952
      %v2177 = vpack.c.b16 %v1955, %v1954
      %v2178 = vpack.c.b16 %v1957, %v1956
      %v2179 = vpack.c.b16 %v1959, %v1958
      %v2180 = vpack.c.b16 %v1961, %v1960
      %v2181 = vpack.c.b16 %v1963, %v1962
      %v2182 = vpack.c.b16 %v1965, %v1964
      %v2183 = vpack.c.b16 %v1967, %v1966
      %v2184 = vpack.c.b16 %v1969, %v1968
      %v2185 = vpack.c.b16 %v1971, %v1970
      %v2186 = vpack.c.b16 %v1973, %v1972
      %v2187 = vpack.c.b16 %v1975, %v1974
      %v2188 = vpack.c.b16 %v1977, %v1976
      %v2189 = vpack.c.b16 %v1979, %v1978
      %v2190 = vpack.c.b16 %v1981, %v1980
      %v2191 = vpack.c.b16 %v1983, %v1982
      %v2192 = vpack.c.b16 %v1985, %v1984
      %v2193 = vpack.c.b16 %v1987, %v1986
      %v2194 = vpack.c.b16 %v1989, %v1988
      %v2195 = vpack.c.b16 %v1991, %v1990
      %v2196 = vpack.c.b16 %v1993, %v1992
      %v2197 = vpack.c.b16 %v1995, %v1994
      %v2198 = vpack.c.b16 %v1997, %v1996
      %v2199 = vpack.c.b16 %v1999, %v1998
      %v2200 = vpack.c.b16 %v2001, %v2000
      %v2201 = vpack.c.b16 %v2003, %v2002
      %v2202 = vpack.c.b16 %v2005, %v2004
      %v2203 = vpack.c.b16 %v2007, %v2006
      %v2204 = vpack.c.b16 %v2009, %v2008
      %v2205 = vpack.c.b16 %v2011, %v2010
      %v2206 = vpack.c.b16 %v2013, %v2012
      %v2207 = vpack.c.b16 %v2015, %v2014
      %v2208 = vpack.c.b16 %v2017, %v2016
      %v2209 = vpack.c.b16 %v2019, %v2018
      %v2210 = vpack.c.b16 %v2021, %v2020
      %v2211 = vpack.c.b16 %v2023, %v2022
      %v2212 = vpack.c.b16 %v2025, %v2024
      %v2213 = vpack.c.b16 %v2027, %v2026
      %v2214 = vpack.c.b16 %v2029, %v2028
      %v2215 = vpack.c.b16 %v2031, %v2030
      %v2216 = vpack.c.b16 %v2033, %v2032
      %v2217 = vpack.c.b16 %v2035, %v2034
      %v2218 = vpack.c.b16 %v2037, %v2036
      %v2219 = vpack.c.b16 %v2039, %v2038
      %v2220 = vpack.c.b16 %v2041, %v2040
      %v2221 = vpack.c.b16 %v2043, %v2042
      %v2222 = vpack.c.b16 %v2045, %v2044
      %v2223 = vpack.c.b16 %v2047, %v2046
      %v2224 = vpack.c.b16 %v2049, %v2048
      %v2225 = vpack.c.b16 %v2051, %v2050
      %v2226 = vpack.c.b16 %v2053, %v2052
      %v2227 = vpack.c.b16 %v2055, %v2054
      %v2228 = vpack.c.b16 %v2057, %v2056
      %v2229 = vpack.c.b16 %v2059, %v2058
      %v2230 = vpack.c.b16 %v2061, %v2060
      %v2231 = vpack.c.b16 %v2063, %v2062
      %v2232 = vpack.c.b16 %v2065, %v2064
      %v2233 = vpack.c.b16 %v2067, %v2066
      %v2234 = vpack.c.b16 %v2069, %v2068
      %v2235 = vpack.c.b16 %v2071, %v2070
      %v2236 = vpack.c.b16 %v2073, %v2072
      %v2237 = vpack.c.b16 %v2075, %v2074
      %v2238 = vpack.c.b16 %v2077, %v2076
      %v2239 = vpack.c.b16 %v2079, %v2078
      %v2240 = vpack.c.b16 %v2081, %v2080
      %v2241 = vpack.c.b16 %v2083, %v2082
      %v2242 = vpack.c.b16 %v2085, %v2084
      %v2243 = vpack.c.b16 %v2087, %v2086
      %v2244 = vpack.c.b16 %v2089, %v2088
      %v2245 = vpack.c.b16 %v2091, %v2090
      %v2246 = vpack.c.b16 %v2093, %v2092
      %v2247 = vpack.c.b16 %v2095, %v2094
      %v2248 = vpack.c.b16 %v2097, %v2096
      %v2249 = vpack.c.b16 %v2099, %v2098
      %v2250 = vpack.c.b16 %v2101, %v2100
      %v2251 = vpack.c.b16 %v2103, %v2102
      %v2252 = vpack.c.b16 %v2105, %v2104
      %v2253 = vpack.c.b16 %v2107, %v2106
      %v2254 = vpack.c.b16 %v2109, %v2108
      %v2255 = vpack.c.b16 %v2111, %v2110
      %v2256 = vpack.c.b16 %v2113, %v2112
      %v2257 = vpack.c.b16 %v2115, %v2114
      %v2258 = vpack.c.b16 %v2117, %v2116
      %v2259 = vpack.c.b16 %v2119, %v2118
      %v2260 = vpack.c.b16 %v2121, %v2120
      %v2261 = vpack.c.b16 %v2123, %v2122
      %v2262 = vpack.c.b16 %v2125, %v2124
      %v2263 = vpack.c.b16 %v2127, %v2126
      %v2264 = vpack.c.b16 %v2129, %v2128
      %v2265 = vpack.c.b16 %v2131, %v2130
      %v2266 = vpack.c.b16 %v2133, %v2132
      %v2267 = vpack.c.b16 %v2135, %v2134
      %v2268 = vpack.c.b16 %v2137, %v2136
      %v2269 = vpack.c.b16 %v2139, %v2138
      %v2270 = vpack.c.b16 %v2141, %v2140
      %v2271 = vpack.c.b16 %v2143, %v2142
      %2400 = vmatprep.subr.bf16.mxu0 0
      %2401 = vmatpush1.bf16.msra.mxu0 %v2144
      %2402 = vmatprep.subr.bf16.mxu0 0
      %2403 = vmatpush1.bf16.msra.mxu0 %v2145
      %2404 = vmatprep.subr.bf16.mxu0 0
      %2405 = vmatpush1.bf16.msra.mxu0 %v2146
      %2406 = vmatprep.subr.bf16.mxu0 0
      %2407 = vmatpush1.bf16.msra.mxu0 %v2147
      %2408 = vmatprep.subr.bf16.mxu0 0
      %2409 = vmatpush1.bf16.msra.mxu0 %v2148
      %2410 = vmatprep.subr.bf16.mxu0 0
      %2411 = vmatpush1.bf16.msra.mxu0 %v2149
      %2412 = vmatprep.subr.bf16.mxu0 0
      %2413 = vmatpush1.bf16.msra.mxu0 %v2150
      %2414 = vmatprep.subr.bf16.mxu0 0
      %2415 = vmatpush1.bf16.msra.mxu0 %v2151
      %2416 = vmatprep.subr.bf16.mxu0 0
      %2417 = vmatpush1.bf16.msra.mxu0 %v2152
      %2418 = vmatprep.subr.bf16.mxu0 0
      %2419 = vmatpush1.bf16.msra.mxu0 %v2153
      %2420 = vmatprep.subr.bf16.mxu0 0
      %2421 = vmatpush1.bf16.msra.mxu0 %v2154
      %2422 = vmatprep.subr.bf16.mxu0 0
      %2423 = vmatpush1.bf16.msra.mxu0 %v2155
      %2424 = vmatprep.subr.bf16.mxu0 0
      %2425 = vmatpush1.bf16.msra.mxu0 %v2156
      %2426 = vmatprep.subr.bf16.mxu0 0
      %2427 = vmatpush1.bf16.msra.mxu0 %v2157
      %2428 = vmatprep.subr.bf16.mxu0 0
      %2429 = vmatpush1.bf16.msra.mxu0 %v2158
      %2430 = vmatprep.subr.bf16.mxu0 0
      %2431 = vmatpush1.bf16.msra.mxu0 %v2159
      %2432 = vmatprep.mubr.bf16.mxu0 %v1377
      %2433 = vmatmul.mubr.bf16.gmra.mrb[0].mxu0 %v1376
      %v2434 = vpop.f32.mrb[0].mxu0
      %v2435 = vadd.f32 0.0, %v2434
      %v2436 = vpop.f32.mrb[0].mxu0
      %v2437 = vpop.f32.mrb[0].mxu0
      %v2438 = vadd.f32 0.0, %v2437
      %v2439 = vpop.f32.mrb[0].mxu0
      %2440 = vmatprep.mubr.bf16.mxu0 %v1393
      %2441 = vmatmul.mubr.bf16.gmra.mrb[0].mxu0 %v1392
      %v2442 = vpop.f32.mrb[0].mxu0
      %v2443 = vadd.f32 0.0, %v2442
      %v2444 = vpop.f32.mrb[0].mxu0
      %v2445 = vpop.f32.mrb[0].mxu0
      %v2446 = vadd.f32 0.0, %v2445
      %v2447 = vpop.f32.mrb[0].mxu0
      %2448 = vmatprep.mubr.bf16.mxu0 %v1409
      %2449 = vmatmul.mubr.bf16.gmra.mrb[0].mxu0 %v1408
      %v2450 = vpop.f32.mrb[0].mxu0
      %v2451 = vadd.f32 0.0, %v2450
      %v2452 = vpop.f32.mrb[0].mxu0
      %v2453 = vpop.f32.mrb[0].mxu0
      %v2454 = vadd.f32 0.0, %v2453
      %v2455 = vpop.f32.mrb[0].mxu0
      %2456 = vmatprep.mubr.bf16.mxu0 %v1425
      %2457 = vmatmul.mubr.bf16.gmra.mrb[0].mxu0 %v1424
      %v2458 = vpop.f32.mrb[0].mxu0
      %v2459 = vadd.f32 0.0, %v2458
      %v2460 = vpop.f32.mrb[0].mxu0
      %v2461 = vpop.f32.mrb[0].mxu0
      %v2462 = vadd.f32 0.0, %v2461
      %v2463 = vpop.f32.mrb[0].mxu0
      %2464 = vmatprep.mubr.bf16.mxu0 %v1441
      %2465 = vmatmul.mubr.bf16.gmra.mrb[0].mxu0 %v1440
      %v2466 = vpop.f32.mrb[0].mxu0
      %v2467 = vadd.f32 0.0, %v2466
      %v2468 = vpop.f32.mrb[0].mxu0
      %v2469 = vpop.f32.mrb[0].mxu0
      %v2470 = vadd.f32 0.0, %v2469
      %v2471 = vpop.f32.mrb[0].mxu0
      %2472 = vmatprep.mubr.bf16.mxu0 %v1457
      %2473 = vmatmul.mubr.bf16.gmra.mrb[0].mxu0 %v1456
      %v2474 = vpop.f32.mrb[0].mxu0
      %v2475 = vadd.f32 0.0, %v2474
      %v2476 = vpop.f32.mrb[0].mxu0
      %v2477 = vpop.f32.mrb[0].mxu0
      %v2478 = vadd.f32 0.0, %v2477
      %v2479 = vpop.f32.mrb[0].mxu0
      %2480 = vmatprep.mubr.bf16.mxu0 %v1473
      %2481 = vmatmul.mubr.bf16.gmra.mrb[0].mxu0 %v1472
      %v2482 = vpop.f32.mrb[0].mxu0
      %v2483 = vadd.f32 0.0, %v2482
      %v2484 = vpop.f32.mrb[0].mxu0
      %v2485 = vpop.f32.mrb[0].mxu0
      %v2486 = vadd.f32 0.0, %v2485
      %v2487 = vpop.f32.mrb[0].mxu0
      %2488 = vmatprep.mubr.bf16.mxu0 %v1489
      %2489 = vmatmul.mubr.bf16.gmra.mrb[0].mxu0 %v1488
      %v2490 = vpop.f32.mrb[0].mxu0
      %v2491 = vadd.f32 0.0, %v2490
      %v2492 = vpop.f32.mrb[0].mxu0
      %v2493 = vpop.f32.mrb[0].mxu0
      %v2494 = vadd.f32 0.0, %v2493
      %v2495 = vpop.f32.mrb[0].mxu0
      %2496 = vdwg.mxu0
      %2497 = vmatprep.subr.bf16.mxu0 0
      %2498 = vmatpush1.bf16.msra.mxu0 %v2160
      %2499 = vmatprep.subr.bf16.mxu0 0
      %2500 = vmatpush1.bf16.msra.mxu0 %v2161
      %2501 = vmatprep.subr.bf16.mxu0 0
      %2502 = vmatpush1.bf16.msra.mxu0 %v2162
      %2503 = vmatprep.subr.bf16.mxu0 0
      %2504 = vmatpush1.bf16.msra.mxu0 %v2163
      %2505 = vmatprep.subr.bf16.mxu0 0
      %2506 = vmatpush1.bf16.msra.mxu0 %v2164
      %2507 = vmatprep.subr.bf16.mxu0 0
      %2508 = vmatpush1.bf16.msra.mxu0 %v2165
      %2509 = vmatprep.subr.bf16.mxu0 0
      %2510 = vmatpush1.bf16.msra.mxu0 %v2166
      %2511 = vmatprep.subr.bf16.mxu0 0
      %2512 = vmatpush1.bf16.msra.mxu0 %v2167
      %2513 = vmatprep.subr.bf16.mxu0 0
      %2514 = vmatpush1.bf16.msra.mxu0 %v2168
      %2515 = vmatprep.subr.bf16.mxu0 0
      %2516 = vmatpush1.bf16.msra.mxu0 %v2169
      %2517 = vmatprep.subr.bf16.mxu0 0
      %2518 = vmatpush1.bf16.msra.mxu0 %v2170
      %2519 = vmatprep.subr.bf16.mxu0 0
      %2520 = vmatpush1.bf16.msra.mxu0 %v2171
      %2521 = vmatprep.subr.bf16.mxu0 0
      %2522 = vmatpush1.bf16.msra.mxu0 %v2172
      %2523 = vmatprep.subr.bf16.mxu0 0
      %2524 = vmatpush1.bf16.msra.mxu0 %v2173
      %2525 = vmatprep.subr.bf16.mxu0 0
      %2526 = vmatpush1.bf16.msra.mxu0 %v2174
      %2527 = vmatprep.subr.bf16.mxu0 0
      %2528 = vmatpush1.bf16.msra.mxu0 %v2175
      %2529 = vmatprep.mubr.bf16.mxu0 %v1379
      %2530 = vmatmul.mubr.bf16.gmra.mrb[0].mxu0 %v1378
      %v2531 = vpop.f32.mrb[0].mxu0
      %v2532 = vadd.f32 %v2435, %v2531
      %v2533 = vpop.f32.mrb[0].mxu0
      %v2534 = vpop.f32.mrb[0].mxu0
      %v2535 = vadd.f32 %v2438, %v2534
      %v2536 = vpop.f32.mrb[0].mxu0
      %2537 = vmatprep.mubr.bf16.mxu0 %v1395
      %2538 = vmatmul.mubr.bf16.gmra.mrb[0].mxu0 %v1394
      %v2539 = vpop.f32.mrb[0].mxu0
      %v2540 = vadd.f32 %v2443, %v2539
      %v2541 = vpop.f32.mrb[0].mxu0
      %v2542 = vpop.f32.mrb[0].mxu0
      %v2543 = vadd.f32 %v2446, %v2542
      %v2544 = vpop.f32.mrb[0].mxu0
      %2545 = vmatprep.mubr.bf16.mxu0 %v1411
      %2546 = vmatmul.mubr.bf16.gmra.mrb[0].mxu0 %v1410
      %v2547 = vpop.f32.mrb[0].mxu0
      %v2548 = vadd.f32 %v2451, %v2547
      %v2549 = vpop.f32.mrb[0].mxu0
      %v2550 = vpop.f32.mrb[0].mxu0
      %v2551 = vadd.f32 %v2454, %v2550
      %v2552 = vpop.f32.mrb[0].mxu0
      %2553 = vmatprep.mubr.bf16.mxu0 %v1427
      %2554 = vmatmul.mubr.bf16.gmra.mrb[0].mxu0 %v1426
      %v2555 = vpop.f32.mrb[0].mxu0
      %v2556 = vadd.f32 %v2459, %v2555
      %v2557 = vpop.f32.mrb[0].mxu0
      %v2558 = vpop.f32.mrb[0].mxu0
      %v2559 = vadd.f32 %v2462, %v2558
      %v2560 = vpop.f32.mrb[0].mxu0
      %2561 = vmatprep.mubr.bf16.mxu0 %v1443
      %2562 = vmatmul.mubr.bf16.gmra.mrb[0].mxu0 %v1442
      %v2563 = vpop.f32.mrb[0].mxu0
      %v2564 = vadd.f32 %v2467, %v2563
      %v2565 = vpop.f32.mrb[0].mxu0
      %v2566 = vpop.f32.mrb[0].mxu0
      %v2567 = vadd.f32 %v2470, %v2566
      %v2568 = vpop.f32.mrb[0].mxu0
      %2569 = vmatprep.mubr.bf16.mxu0 %v1459
      %2570 = vmatmul.mubr.bf16.gmra.mrb[0].mxu0 %v1458
      %v2571 = vpop.f32.mrb[0].mxu0
      %v2572 = vadd.f32 %v2475, %v2571
      %v2573 = vpop.f32.mrb[0].mxu0
      %v2574 = vpop.f32.mrb[0].mxu0
      %v2575 = vadd.f32 %v2478, %v2574
      %v2576 = vpop.f32.mrb[0].mxu0
      %2577 = vmatprep.mubr.bf16.mxu0 %v1475
      %2578 = vmatmul.mubr.bf16.gmra.mrb[0].mxu0 %v1474
      %v2579 = vpop.f32.mrb[0].mxu0
      %v2580 = vadd.f32 %v2483, %v2579
      %v2581 = vpop.f32.mrb[0].mxu0
      %v2582 = vpop.f32.mrb[0].mxu0
      %v2583 = vadd.f32 %v2486, %v2582
      %v2584 = vpop.f32.mrb[0].mxu0
      %2585 = vmatprep.mubr.bf16.mxu0 %v1491
      %2586 = vmatmul.mubr.bf16.gmra.mrb[0].mxu0 %v1490
      %v2587 = vpop.f32.mrb[0].mxu0
      %v2588 = vadd.f32 %v2491, %v2587
      %v2589 = vpop.f32.mrb[0].mxu0
      %v2590 = vpop.f32.mrb[0].mxu0
      %v2591 = vadd.f32 %v2494, %v2590
      %v2592 = vpop.f32.mrb[0].mxu0
      %2593 = vdwg.mxu0
      %2594 = vmatprep.subr.bf16.mxu0 0
      %2595 = vmatpush1.bf16.msra.mxu0 %v2176
      %2596 = vmatprep.subr.bf16.mxu0 0
      %2597 = vmatpush1.bf16.msra.mxu0 %v2177
      %2598 = vmatprep.subr.bf16.mxu0 0
      %2599 = vmatpush1.bf16.msra.mxu0 %v2178
      %2600 = vmatprep.subr.bf16.mxu0 0
      %2601 = vmatpush1.bf16.msra.mxu0 %v2179
      %2602 = vmatprep.subr.bf16.mxu0 0
      %2603 = vmatpush1.bf16.msra.mxu0 %v2180
      %2604 = vmatprep.subr.bf16.mxu0 0
      %2605 = vmatpush1.bf16.msra.mxu0 %v2181
      %2606 = vmatprep.subr.bf16.mxu0 0
      %2607 = vmatpush1.bf16.msra.mxu0 %v2182
      %2608 = vmatprep.subr.bf16.mxu0 0
      %2609 = vmatpush1.bf16.msra.mxu0 %v2183
      %2610 = vmatprep.subr.bf16.mxu0 0
      %2611 = vmatpush1.bf16.msra.mxu0 %v2184
      %2612 = vmatprep.subr.bf16.mxu0 0
      %2613 = vmatpush1.bf16.msra.mxu0 %v2185
      %2614 = vmatprep.subr.bf16.mxu0 0
      %2615 = vmatpush1.bf16.msra.mxu0 %v2186
      %2616 = vmatprep.subr.bf16.mxu0 0
      %2617 = vmatpush1.bf16.msra.mxu0 %v2187
      %2618 = vmatprep.subr.bf16.mxu0 0
      %2619 = vmatpush1.bf16.msra.mxu0 %v2188
      %2620 = vmatprep.subr.bf16.mxu0 0
      %2621 = vmatpush1.bf16.msra.mxu0 %v2189
      %2622 = vmatprep.subr.bf16.mxu0 0
      %2623 = vmatpush1.bf16.msra.mxu0 %v2190
      %2624 = vmatprep.subr.bf16.mxu0 0
      %2625 = vmatpush1.bf16.msra.mxu0 %v2191
      %2626 = vmatprep.mubr.bf16.mxu0 %v1381
      %2627 = vmatmul.mubr.bf16.gmra.mrb[0].mxu0 %v1380
      %v2628 = vpop.f32.mrb[0].mxu0
      %v2629 = vadd.f32 %v2532, %v2628
      %v2630 = vpop.f32.mrb[0].mxu0
      %v2631 = vpop.f32.mrb[0].mxu0
      %v2632 = vadd.f32 %v2535, %v2631
      %v2633 = vpop.f32.mrb[0].mxu0
      %2634 = vmatprep.mubr.bf16.mxu0 %v1397
      %2635 = vmatmul.mubr.bf16.gmra.mrb[0].mxu0 %v1396
      %v2636 = vpop.f32.mrb[0].mxu0
      %v2637 = vadd.f32 %v2540, %v2636
      %v2638 = vpop.f32.mrb[0].mxu0
      %v2639 = vpop.f32.mrb[0].mxu0
      %v2640 = vadd.f32 %v2543, %v2639
      %v2641 = vpop.f32.mrb[0].mxu0
      %2642 = vmatprep.mubr.bf16.mxu0 %v1413
      %2643 = vmatmul.mubr.bf16.gmra.mrb[0].mxu0 %v1412
      %v2644 = vpop.f32.mrb[0].mxu0
      %v2645 = vadd.f32 %v2548, %v2644
      %v2646 = vpop.f32.mrb[0].mxu0
      %v2647 = vpop.f32.mrb[0].mxu0
      %v2648 = vadd.f32 %v2551, %v2647
      %v2649 = vpop.f32.mrb[0].mxu0
      %2650 = vmatprep.mubr.bf16.mxu0 %v1429
      %2651 = vmatmul.mubr.bf16.gmra.mrb[0].mxu0 %v1428
      %v2652 = vpop.f32.mrb[0].mxu0
      %v2653 = vadd.f32 %v2556, %v2652
      %v2654 = vpop.f32.mrb[0].mxu0
      %v2655 = vpop.f32.mrb[0].mxu0
      %v2656 = vadd.f32 %v2559, %v2655
      %v2657 = vpop.f32.mrb[0].mxu0
      %2658 = vmatprep.mubr.bf16.mxu0 %v1445
      %2659 = vmatmul.mubr.bf16.gmra.mrb[0].mxu0 %v1444
      %v2660 = vpop.f32.mrb[0].mxu0
      %v2661 = vadd.f32 %v2564, %v2660
      %v2662 = vpop.f32.mrb[0].mxu0
      %v2663 = vpop.f32.mrb[0].mxu0
      %v2664 = vadd.f32 %v2567, %v2663
      %v2665 = vpop.f32.mrb[0].mxu0
      %2666 = vmatprep.mubr.bf16.mxu0 %v1461
      %2667 = vmatmul.mubr.bf16.gmra.mrb[0].mxu0 %v1460
      %v2668 = vpop.f32.mrb[0].mxu0
      %v2669 = vadd.f32 %v2572, %v2668
      %v2670 = vpop.f32.mrb[0].mxu0
      %v2671 = vpop.f32.mrb[0].mxu0
      %v2672 = vadd.f32 %v2575, %v2671
      %v2673 = vpop.f32.mrb[0].mxu0
      %2674 = vmatprep.mubr.bf16.mxu0 %v1477
      %2675 = vmatmul.mubr.bf16.gmra.mrb[0].mxu0 %v1476
      %v2676 = vpop.f32.mrb[0].mxu0
      %v2677 = vadd.f32 %v2580, %v2676
      %v2678 = vpop.f32.mrb[0].mxu0
      %v2679 = vpop.f32.mrb[0].mxu0
      %v2680 = vadd.f32 %v2583, %v2679
      %v2681 = vpop.f32.mrb[0].mxu0
      %2682 = vmatprep.mubr.bf16.mxu0 %v1493
      %2683 = vmatmul.mubr.bf16.gmra.mrb[0].mxu0 %v1492
      %v2684 = vpop.f32.mrb[0].mxu0
      %v2685 = vadd.f32 %v2588, %v2684
      %v2686 = vpop.f32.mrb[0].mxu0
      %v2687 = vpop.f32.mrb[0].mxu0
      %v2688 = vadd.f32 %v2591, %v2687
      %v2689 = vpop.f32.mrb[0].mxu0
      %2690 = vdwg.mxu0
      %2691 = vmatprep.subr.bf16.mxu0 0
      %2692 = vmatpush1.bf16.msra.mxu0 %v2192
      %2693 = vmatprep.subr.bf16.mxu0 0
      %2694 = vmatpush1.bf16.msra.mxu0 %v2193
      %2695 = vmatprep.subr.bf16.mxu0 0
      %2696 = vmatpush1.bf16.msra.mxu0 %v2194
      %2697 = vmatprep.subr.bf16.mxu0 0
      %2698 = vmatpush1.bf16.msra.mxu0 %v2195
      %2699 = vmatprep.subr.bf16.mxu0 0
      %2700 = vmatpush1.bf16.msra.mxu0 %v2196
      %2701 = vmatprep.subr.bf16.mxu0 0
      %2702 = vmatpush1.bf16.msra.mxu0 %v2197
      %2703 = vmatprep.subr.bf16.mxu0 0
      %2704 = vmatpush1.bf16.msra.mxu0 %v2198
      %2705 = vmatprep.subr.bf16.mxu0 0
      %2706 = vmatpush1.bf16.msra.mxu0 %v2199
      %2707 = vmatprep.subr.bf16.mxu0 0
      %2708 = vmatpush1.bf16.msra.mxu0 %v2200
      %2709 = vmatprep.subr.bf16.mxu0 0
      %2710 = vmatpush1.bf16.msra.mxu0 %v2201
      %2711 = vmatprep.subr.bf16.mxu0 0
      %2712 = vmatpush1.bf16.msra.mxu0 %v2202
      %2713 = vmatprep.subr.bf16.mxu0 0
      %2714 = vmatpush1.bf16.msra.mxu0 %v2203
      %2715 = vmatprep.subr.bf16.mxu0 0
      %2716 = vmatpush1.bf16.msra.mxu0 %v2204
      %2717 = vmatprep.subr.bf16.mxu0 0
      %2718 = vmatpush1.bf16.msra.mxu0 %v2205
      %2719 = vmatprep.subr.bf16.mxu0 0
      %2720 = vmatpush1.bf16.msra.mxu0 %v2206
      %2721 = vmatprep.subr.bf16.mxu0 0
      %2722 = vmatpush1.bf16.msra.mxu0 %v2207
      %2723 = vmatprep.mubr.bf16.mxu0 %v1383
      %2724 = vmatmul.mubr.bf16.gmra.mrb[0].mxu0 %v1382
      %v2725 = vpop.f32.mrb[0].mxu0
      %v2726 = vadd.f32 %v2629, %v2725
      %v2727 = vpop.f32.mrb[0].mxu0
      %v2728 = vpop.f32.mrb[0].mxu0
      %v2729 = vadd.f32 %v2632, %v2728
      %v2730 = vpop.f32.mrb[0].mxu0
      %2731 = vmatprep.mubr.bf16.mxu0 %v1399
      %2732 = vmatmul.mubr.bf16.gmra.mrb[0].mxu0 %v1398
      %v2733 = vpop.f32.mrb[0].mxu0
      %v2734 = vadd.f32 %v2637, %v2733
      %v2735 = vpop.f32.mrb[0].mxu0
      %v2736 = vpop.f32.mrb[0].mxu0
      %v2737 = vadd.f32 %v2640, %v2736
      %v2738 = vpop.f32.mrb[0].mxu0
      %2739 = vmatprep.mubr.bf16.mxu0 %v1415
      %2740 = vmatmul.mubr.bf16.gmra.mrb[0].mxu0 %v1414
      %v2741 = vpop.f32.mrb[0].mxu0
      %v2742 = vadd.f32 %v2645, %v2741
      %v2743 = vpop.f32.mrb[0].mxu0
      %v2744 = vpop.f32.mrb[0].mxu0
      %v2745 = vadd.f32 %v2648, %v2744
      %v2746 = vpop.f32.mrb[0].mxu0
      %2747 = vmatprep.mubr.bf16.mxu0 %v1431
      %2748 = vmatmul.mubr.bf16.gmra.mrb[0].mxu0 %v1430
      %v2749 = vpop.f32.mrb[0].mxu0
      %v2750 = vadd.f32 %v2653, %v2749
      %v2751 = vpop.f32.mrb[0].mxu0
      %v2752 = vpop.f32.mrb[0].mxu0
      %v2753 = vadd.f32 %v2656, %v2752
      %v2754 = vpop.f32.mrb[0].mxu0
      %2755 = vmatprep.mubr.bf16.mxu0 %v1447
      %2756 = vmatmul.mubr.bf16.gmra.mrb[0].mxu0 %v1446
      %v2757 = vpop.f32.mrb[0].mxu0
      %v2758 = vadd.f32 %v2661, %v2757
      %v2759 = vpop.f32.mrb[0].mxu0
      %v2760 = vpop.f32.mrb[0].mxu0
      %v2761 = vadd.f32 %v2664, %v2760
      %v2762 = vpop.f32.mrb[0].mxu0
      %2763 = vmatprep.mubr.bf16.mxu0 %v1463
      %2764 = vmatmul.mubr.bf16.gmra.mrb[0].mxu0 %v1462
      %v2765 = vpop.f32.mrb[0].mxu0
      %v2766 = vadd.f32 %v2669, %v2765
      %v2767 = vpop.f32.mrb[0].mxu0
      %v2768 = vpop.f32.mrb[0].mxu0
      %v2769 = vadd.f32 %v2672, %v2768
      %v2770 = vpop.f32.mrb[0].mxu0
      %2771 = vmatprep.mubr.bf16.mxu0 %v1479
      %2772 = vmatmul.mubr.bf16.gmra.mrb[0].mxu0 %v1478
      %v2773 = vpop.f32.mrb[0].mxu0
      %v2774 = vadd.f32 %v2677, %v2773
      %v2775 = vpop.f32.mrb[0].mxu0
      %v2776 = vpop.f32.mrb[0].mxu0
      %v2777 = vadd.f32 %v2680, %v2776
      %v2778 = vpop.f32.mrb[0].mxu0
      %2779 = vmatprep.mubr.bf16.mxu0 %v1495
      %2780 = vmatmul.mubr.bf16.gmra.mrb[0].mxu0 %v1494
      %v2781 = vpop.f32.mrb[0].mxu0
      %v2782 = vadd.f32 %v2685, %v2781
      %v2783 = vpop.f32.mrb[0].mxu0
      %v2784 = vpop.f32.mrb[0].mxu0
      %v2785 = vadd.f32 %v2688, %v2784
      %v2786 = vpop.f32.mrb[0].mxu0
      %2787 = vdwg.mxu0
      %2788 = vmatprep.subr.bf16.mxu0 0
      %2789 = vmatpush1.bf16.msra.mxu0 %v2208
      %2790 = vmatprep.subr.bf16.mxu0 0
      %2791 = vmatpush1.bf16.msra.mxu0 %v2209
      %2792 = vmatprep.subr.bf16.mxu0 0
      %2793 = vmatpush1.bf16.msra.mxu0 %v2210
      %2794 = vmatprep.subr.bf16.mxu0 0
      %2795 = vmatpush1.bf16.msra.mxu0 %v2211
      %2796 = vmatprep.subr.bf16.mxu0 0
      %2797 = vmatpush1.bf16.msra.mxu0 %v2212
      %2798 = vmatprep.subr.bf16.mxu0 0
      %2799 = vmatpush1.bf16.msra.mxu0 %v2213
      %2800 = vmatprep.subr.bf16.mxu0 0
      %2801 = vmatpush1.bf16.msra.mxu0 %v2214
      %2802 = vmatprep.subr.bf16.mxu0 0
      %2803 = vmatpush1.bf16.msra.mxu0 %v2215
      %2804 = vmatprep.subr.bf16.mxu0 0
      %2805 = vmatpush1.bf16.msra.mxu0 %v2216
      %2806 = vmatprep.subr.bf16.mxu0 0
      %2807 = vmatpush1.bf16.msra.mxu0 %v2217
      %2808 = vmatprep.subr.bf16.mxu0 0
      %2809 = vmatpush1.bf16.msra.mxu0 %v2218
      %2810 = vmatprep.subr.bf16.mxu0 0
      %2811 = vmatpush1.bf16.msra.mxu0 %v2219
      %2812 = vmatprep.subr.bf16.mxu0 0
      %2813 = vmatpush1.bf16.msra.mxu0 %v2220
      %2814 = vmatprep.subr.bf16.mxu0 0
      %2815 = vmatpush1.bf16.msra.mxu0 %v2221
      %2816 = vmatprep.subr.bf16.mxu0 0
      %2817 = vmatpush1.bf16.msra.mxu0 %v2222
      %2818 = vmatprep.subr.bf16.mxu0 0
      %2819 = vmatpush1.bf16.msra.mxu0 %v2223
      %2820 = vmatprep.mubr.bf16.mxu0 %v1385
      %2821 = vmatmul.mubr.bf16.gmra.mrb[0].mxu0 %v1384
      %v2822 = vpop.f32.mrb[0].mxu0
      %v2823 = vadd.f32 %v2726, %v2822
      %v2824 = vpop.f32.mrb[0].mxu0
      %v2825 = vpop.f32.mrb[0].mxu0
      %v2826 = vadd.f32 %v2729, %v2825
      %v2827 = vpop.f32.mrb[0].mxu0
      %2828 = vmatprep.mubr.bf16.mxu0 %v1401
      %2829 = vmatmul.mubr.bf16.gmra.mrb[0].mxu0 %v1400
      %v2830 = vpop.f32.mrb[0].mxu0
      %v2831 = vadd.f32 %v2734, %v2830
      %v2832 = vpop.f32.mrb[0].mxu0
      %v2833 = vpop.f32.mrb[0].mxu0
      %v2834 = vadd.f32 %v2737, %v2833
      %v2835 = vpop.f32.mrb[0].mxu0
      %2836 = vmatprep.mubr.bf16.mxu0 %v1417
      %2837 = vmatmul.mubr.bf16.gmra.mrb[0].mxu0 %v1416
      %v2838 = vpop.f32.mrb[0].mxu0
      %v2839 = vadd.f32 %v2742, %v2838
      %v2840 = vpop.f32.mrb[0].mxu0
      %v2841 = vpop.f32.mrb[0].mxu0
      %v2842 = vadd.f32 %v2745, %v2841
      %v2843 = vpop.f32.mrb[0].mxu0
      %2844 = vmatprep.mubr.bf16.mxu0 %v1433
      %2845 = vmatmul.mubr.bf16.gmra.mrb[0].mxu0 %v1432
      %v2846 = vpop.f32.mrb[0].mxu0
      %v2847 = vadd.f32 %v2750, %v2846
      %v2848 = vpop.f32.mrb[0].mxu0
      %v2849 = vpop.f32.mrb[0].mxu0
      %v2850 = vadd.f32 %v2753, %v2849
      %v2851 = vpop.f32.mrb[0].mxu0
      %2852 = vmatprep.mubr.bf16.mxu0 %v1449
      %2853 = vmatmul.mubr.bf16.gmra.mrb[0].mxu0 %v1448
      %v2854 = vpop.f32.mrb[0].mxu0
      %v2855 = vadd.f32 %v2758, %v2854
      %v2856 = vpop.f32.mrb[0].mxu0
      %v2857 = vpop.f32.mrb[0].mxu0
      %v2858 = vadd.f32 %v2761, %v2857
      %v2859 = vpop.f32.mrb[0].mxu0
      %2860 = vmatprep.mubr.bf16.mxu0 %v1465
      %2861 = vmatmul.mubr.bf16.gmra.mrb[0].mxu0 %v1464
      %v2862 = vpop.f32.mrb[0].mxu0
      %v2863 = vadd.f32 %v2766, %v2862
      %v2864 = vpop.f32.mrb[0].mxu0
      %v2865 = vpop.f32.mrb[0].mxu0
      %v2866 = vadd.f32 %v2769, %v2865
      %v2867 = vpop.f32.mrb[0].mxu0
      %2868 = vmatprep.mubr.bf16.mxu0 %v1481
      %2869 = vmatmul.mubr.bf16.gmra.mrb[0].mxu0 %v1480
      %v2870 = vpop.f32.mrb[0].mxu0
      %v2871 = vadd.f32 %v2774, %v2870
      %v2872 = vpop.f32.mrb[0].mxu0
      %v2873 = vpop.f32.mrb[0].mxu0
      %v2874 = vadd.f32 %v2777, %v2873
      %v2875 = vpop.f32.mrb[0].mxu0
      %2876 = vmatprep.mubr.bf16.mxu0 %v1497
      %2877 = vmatmul.mubr.bf16.gmra.mrb[0].mxu0 %v1496
      %v2878 = vpop.f32.mrb[0].mxu0
      %v2879 = vadd.f32 %v2782, %v2878
      %v2880 = vpop.f32.mrb[0].mxu0
      %v2881 = vpop.f32.mrb[0].mxu0
      %v2882 = vadd.f32 %v2785, %v2881
      %v2883 = vpop.f32.mrb[0].mxu0
      %2884 = vdwg.mxu0
      %2885 = vmatprep.subr.bf16.mxu0 0
      %2886 = vmatpush1.bf16.msra.mxu0 %v2224
      %2887 = vmatprep.subr.bf16.mxu0 0
      %2888 = vmatpush1.bf16.msra.mxu0 %v2225
      %2889 = vmatprep.subr.bf16.mxu0 0
      %2890 = vmatpush1.bf16.msra.mxu0 %v2226
      %2891 = vmatprep.subr.bf16.mxu0 0
      %2892 = vmatpush1.bf16.msra.mxu0 %v2227
      %2893 = vmatprep.subr.bf16.mxu0 0
      %2894 = vmatpush1.bf16.msra.mxu0 %v2228
      %2895 = vmatprep.subr.bf16.mxu0 0
      %2896 = vmatpush1.bf16.msra.mxu0 %v2229
      %2897 = vmatprep.subr.bf16.mxu0 0
      %2898 = vmatpush1.bf16.msra.mxu0 %v2230
      %2899 = vmatprep.subr.bf16.mxu0 0
      %2900 = vmatpush1.bf16.msra.mxu0 %v2231
      %2901 = vmatprep.subr.bf16.mxu0 0
      %2902 = vmatpush1.bf16.msra.mxu0 %v2232
      %2903 = vmatprep.subr.bf16.mxu0 0
      %2904 = vmatpush1.bf16.msra.mxu0 %v2233
      %2905 = vmatprep.subr.bf16.mxu0 0
      %2906 = vmatpush1.bf16.msra.mxu0 %v2234
      %2907 = vmatprep.subr.bf16.mxu0 0
      %2908 = vmatpush1.bf16.msra.mxu0 %v2235
      %2909 = vmatprep.subr.bf16.mxu0 0
      %2910 = vmatpush1.bf16.msra.mxu0 %v2236
      %2911 = vmatprep.subr.bf16.mxu0 0
      %2912 = vmatpush1.bf16.msra.mxu0 %v2237
      %2913 = vmatprep.subr.bf16.mxu0 0
      %2914 = vmatpush1.bf16.msra.mxu0 %v2238
      %2915 = vmatprep.subr.bf16.mxu0 0
      %2916 = vmatpush1.bf16.msra.mxu0 %v2239
      %2917 = vmatprep.mubr.bf16.mxu0 %v1387
      %2918 = vmatmul.mubr.bf16.gmra.mrb[0].mxu0 %v1386
      %v2919 = vpop.f32.mrb[0].mxu0
      %v2920 = vadd.f32 %v2823, %v2919
      %v2921 = vpop.f32.mrb[0].mxu0
      %v2922 = vpop.f32.mrb[0].mxu0
      %v2923 = vadd.f32 %v2826, %v2922
      %v2924 = vpop.f32.mrb[0].mxu0
      %2925 = vmatprep.mubr.bf16.mxu0 %v1403
      %2926 = vmatmul.mubr.bf16.gmra.mrb[0].mxu0 %v1402
      %v2927 = vpop.f32.mrb[0].mxu0
      %v2928 = vadd.f32 %v2831, %v2927
      %v2929 = vpop.f32.mrb[0].mxu0
      %v2930 = vpop.f32.mrb[0].mxu0
      %v2931 = vadd.f32 %v2834, %v2930
      %v2932 = vpop.f32.mrb[0].mxu0
      %2933 = vmatprep.mubr.bf16.mxu0 %v1419
      %2934 = vmatmul.mubr.bf16.gmra.mrb[0].mxu0 %v1418
      %v2935 = vpop.f32.mrb[0].mxu0
      %v2936 = vadd.f32 %v2839, %v2935
      %v2937 = vpop.f32.mrb[0].mxu0
      %v2938 = vpop.f32.mrb[0].mxu0
      %v2939 = vadd.f32 %v2842, %v2938
      %v2940 = vpop.f32.mrb[0].mxu0
      %2941 = vmatprep.mubr.bf16.mxu0 %v1435
      %2942 = vmatmul.mubr.bf16.gmra.mrb[0].mxu0 %v1434
      %v2943 = vpop.f32.mrb[0].mxu0
      %v2944 = vadd.f32 %v2847, %v2943
      %v2945 = vpop.f32.mrb[0].mxu0
      %v2946 = vpop.f32.mrb[0].mxu0
      %v2947 = vadd.f32 %v2850, %v2946
      %v2948 = vpop.f32.mrb[0].mxu0
      %2949 = vmatprep.mubr.bf16.mxu0 %v1451
      %2950 = vmatmul.mubr.bf16.gmra.mrb[0].mxu0 %v1450
      %v2951 = vpop.f32.mrb[0].mxu0
      %v2952 = vadd.f32 %v2855, %v2951
      %v2953 = vpop.f32.mrb[0].mxu0
      %v2954 = vpop.f32.mrb[0].mxu0
      %v2955 = vadd.f32 %v2858, %v2954
      %v2956 = vpop.f32.mrb[0].mxu0
      %2957 = vmatprep.mubr.bf16.mxu0 %v1467
      %2958 = vmatmul.mubr.bf16.gmra.mrb[0].mxu0 %v1466
      %v2959 = vpop.f32.mrb[0].mxu0
      %v2960 = vadd.f32 %v2863, %v2959
      %v2961 = vpop.f32.mrb[0].mxu0
      %v2962 = vpop.f32.mrb[0].mxu0
      %v2963 = vadd.f32 %v2866, %v2962
      %v2964 = vpop.f32.mrb[0].mxu0
      %2965 = vmatprep.mubr.bf16.mxu0 %v1483
      %2966 = vmatmul.mubr.bf16.gmra.mrb[0].mxu0 %v1482
      %v2967 = vpop.f32.mrb[0].mxu0
      %v2968 = vadd.f32 %v2871, %v2967
      %v2969 = vpop.f32.mrb[0].mxu0
      %v2970 = vpop.f32.mrb[0].mxu0
      %v2971 = vadd.f32 %v2874, %v2970
      %v2972 = vpop.f32.mrb[0].mxu0
      %2973 = vmatprep.mubr.bf16.mxu0 %v1499
      %2974 = vmatmul.mubr.bf16.gmra.mrb[0].mxu0 %v1498
      %v2975 = vpop.f32.mrb[0].mxu0
      %v2976 = vadd.f32 %v2879, %v2975
      %v2977 = vpop.f32.mrb[0].mxu0
      %v2978 = vpop.f32.mrb[0].mxu0
      %v2979 = vadd.f32 %v2882, %v2978
      %v2980 = vpop.f32.mrb[0].mxu0
      %2981 = vdwg.mxu0
      %2982 = vmatprep.subr.bf16.mxu0 0
      %2983 = vmatpush1.bf16.msra.mxu0 %v2240
      %2984 = vmatprep.subr.bf16.mxu0 0
      %2985 = vmatpush1.bf16.msra.mxu0 %v2241
      %2986 = vmatprep.subr.bf16.mxu0 0
      %2987 = vmatpush1.bf16.msra.mxu0 %v2242
      %2988 = vmatprep.subr.bf16.mxu0 0
      %2989 = vmatpush1.bf16.msra.mxu0 %v2243
      %2990 = vmatprep.subr.bf16.mxu0 0
      %2991 = vmatpush1.bf16.msra.mxu0 %v2244
      %2992 = vmatprep.subr.bf16.mxu0 0
      %2993 = vmatpush1.bf16.msra.mxu0 %v2245
      %2994 = vmatprep.subr.bf16.mxu0 0
      %2995 = vmatpush1.bf16.msra.mxu0 %v2246
      %2996 = vmatprep.subr.bf16.mxu0 0
      %2997 = vmatpush1.bf16.msra.mxu0 %v2247
      %2998 = vmatprep.subr.bf16.mxu0 0
      %2999 = vmatpush1.bf16.msra.mxu0 %v2248
      %3000 = vmatprep.subr.bf16.mxu0 0
      %3001 = vmatpush1.bf16.msra.mxu0 %v2249
      %3002 = vmatprep.subr.bf16.mxu0 0
      %3003 = vmatpush1.bf16.msra.mxu0 %v2250
      %3004 = vmatprep.subr.bf16.mxu0 0
      %3005 = vmatpush1.bf16.msra.mxu0 %v2251
      %3006 = vmatprep.subr.bf16.mxu0 0
      %3007 = vmatpush1.bf16.msra.mxu0 %v2252
      %3008 = vmatprep.subr.bf16.mxu0 0
      %3009 = vmatpush1.bf16.msra.mxu0 %v2253
      %3010 = vmatprep.subr.bf16.mxu0 0
      %3011 = vmatpush1.bf16.msra.mxu0 %v2254
      %3012 = vmatprep.subr.bf16.mxu0 0
      %3013 = vmatpush1.bf16.msra.mxu0 %v2255
      %3014 = vmatprep.mubr.bf16.mxu0 %v1389
      %3015 = vmatmul.mubr.bf16.gmra.mrb[0].mxu0 %v1388
      %v3016 = vpop.f32.mrb[0].mxu0
      %v3017 = vadd.f32 %v2920, %v3016
      %v3018 = vpop.f32.mrb[0].mxu0
      %v3019 = vpop.f32.mrb[0].mxu0
      %v3020 = vadd.f32 %v2923, %v3019
      %v3021 = vpop.f32.mrb[0].mxu0
      %3022 = vmatprep.mubr.bf16.mxu0 %v1405
      %3023 = vmatmul.mubr.bf16.gmra.mrb[0].mxu0 %v1404
      %v3024 = vpop.f32.mrb[0].mxu0
      %v3025 = vadd.f32 %v2928, %v3024
      %v3026 = vpop.f32.mrb[0].mxu0
      %v3027 = vpop.f32.mrb[0].mxu0
      %v3028 = vadd.f32 %v2931, %v3027
      %v3029 = vpop.f32.mrb[0].mxu0
      %3030 = vmatprep.mubr.bf16.mxu0 %v1421
      %3031 = vmatmul.mubr.bf16.gmra.mrb[0].mxu0 %v1420
      %v3032 = vpop.f32.mrb[0].mxu0
      %v3033 = vadd.f32 %v2936, %v3032
      %v3034 = vpop.f32.mrb[0].mxu0
      %v3035 = vpop.f32.mrb[0].mxu0
      %v3036 = vadd.f32 %v2939, %v3035
      %v3037 = vpop.f32.mrb[0].mxu0
      %3038 = vmatprep.mubr.bf16.mxu0 %v1437
      %3039 = vmatmul.mubr.bf16.gmra.mrb[0].mxu0 %v1436
      %v3040 = vpop.f32.mrb[0].mxu0
      %v3041 = vadd.f32 %v2944, %v3040
      %v3042 = vpop.f32.mrb[0].mxu0
      %v3043 = vpop.f32.mrb[0].mxu0
      %v3044 = vadd.f32 %v2947, %v3043
      %v3045 = vpop.f32.mrb[0].mxu0
      %3046 = vmatprep.mubr.bf16.mxu0 %v1453
      %3047 = vmatmul.mubr.bf16.gmra.mrb[0].mxu0 %v1452
      %v3048 = vpop.f32.mrb[0].mxu0
      %v3049 = vadd.f32 %v2952, %v3048
      %v3050 = vpop.f32.mrb[0].mxu0
      %v3051 = vpop.f32.mrb[0].mxu0
      %v3052 = vadd.f32 %v2955, %v3051
      %v3053 = vpop.f32.mrb[0].mxu0
      %3054 = vmatprep.mubr.bf16.mxu0 %v1469
      %3055 = vmatmul.mubr.bf16.gmra.mrb[0].mxu0 %v1468
      %v3056 = vpop.f32.mrb[0].mxu0
      %v3057 = vadd.f32 %v2960, %v3056
      %v3058 = vpop.f32.mrb[0].mxu0
      %v3059 = vpop.f32.mrb[0].mxu0
      %v3060 = vadd.f32 %v2963, %v3059
      %v3061 = vpop.f32.mrb[0].mxu0
      %3062 = vmatprep.mubr.bf16.mxu0 %v1485
      %3063 = vmatmul.mubr.bf16.gmra.mrb[0].mxu0 %v1484
      %v3064 = vpop.f32.mrb[0].mxu0
      %v3065 = vadd.f32 %v2968, %v3064
      %v3066 = vpop.f32.mrb[0].mxu0
      %v3067 = vpop.f32.mrb[0].mxu0
      %v3068 = vadd.f32 %v2971, %v3067
      %v3069 = vpop.f32.mrb[0].mxu0
      %3070 = vmatprep.mubr.bf16.mxu0 %v1501
      %3071 = vmatmul.mubr.bf16.gmra.mrb[0].mxu0 %v1500
      %v3072 = vpop.f32.mrb[0].mxu0
      %v3073 = vadd.f32 %v2976, %v3072
      %v3074 = vpop.f32.mrb[0].mxu0
      %v3075 = vpop.f32.mrb[0].mxu0
      %v3076 = vadd.f32 %v2979, %v3075
      %v3077 = vpop.f32.mrb[0].mxu0
      %3078 = vdwg.mxu0
      %3079 = vmatprep.subr.bf16.mxu0 0
      %3080 = vmatpush1.bf16.msra.mxu0 %v2256
      %3081 = vmatprep.subr.bf16.mxu0 0
      %3082 = vmatpush1.bf16.msra.mxu0 %v2257
      %3083 = vmatprep.subr.bf16.mxu0 0
      %3084 = vmatpush1.bf16.msra.mxu0 %v2258
      %3085 = vmatprep.subr.bf16.mxu0 0
      %3086 = vmatpush1.bf16.msra.mxu0 %v2259
      %3087 = vmatprep.subr.bf16.mxu0 0
      %3088 = vmatpush1.bf16.msra.mxu0 %v2260
      %3089 = vmatprep.subr.bf16.mxu0 0
      %3090 = vmatpush1.bf16.msra.mxu0 %v2261
      %3091 = vmatprep.subr.bf16.mxu0 0
      %3092 = vmatpush1.bf16.msra.mxu0 %v2262
      %3093 = vmatprep.subr.bf16.mxu0 0
      %3094 = vmatpush1.bf16.msra.mxu0 %v2263
      %3095 = vmatprep.subr.bf16.mxu0 0
      %3096 = vmatpush1.bf16.msra.mxu0 %v2264
      %3097 = vmatprep.subr.bf16.mxu0 0
      %3098 = vmatpush1.bf16.msra.mxu0 %v2265
      %3099 = vmatprep.subr.bf16.mxu0 0
      %3100 = vmatpush1.bf16.msra.mxu0 %v2266
      %3101 = vmatprep.subr.bf16.mxu0 0
      %3102 = vmatpush1.bf16.msra.mxu0 %v2267
      %3103 = vmatprep.subr.bf16.mxu0 0
      %3104 = vmatpush1.bf16.msra.mxu0 %v2268
      %3105 = vmatprep.subr.bf16.mxu0 0
      %3106 = vmatpush1.bf16.msra.mxu0 %v2269
      %3107 = vmatprep.subr.bf16.mxu0 0
      %3108 = vmatpush1.bf16.msra.mxu0 %v2270
      %3109 = vmatprep.subr.bf16.mxu0 0
      %3110 = vmatpush1.bf16.msra.mxu0 %v2271
      %3111 = vmatprep.mubr.bf16.mxu0 %v1391
      %3112 = vmatmul.mubr.bf16.gmra.mrb[0].mxu0 %v1390
      %v3113 = vpop.f32.mrb[0].mxu0
      %v3114 = vadd.f32 %v3017, %v3113
      %v3115 = vpop.f32.mrb[0].mxu0
      %v3116 = vpop.f32.mrb[0].mxu0
      %v3117 = vadd.f32 %v3020, %v3116
      %v3118 = vpop.f32.mrb[0].mxu0
      %3119 = vmatprep.mubr.bf16.mxu0 %v1407
      %3120 = vmatmul.mubr.bf16.gmra.mrb[0].mxu0 %v1406
      %v3121 = vpop.f32.mrb[0].mxu0
      %v3122 = vadd.f32 %v3025, %v3121
      %v3123 = vpop.f32.mrb[0].mxu0
      %v3124 = vpop.f32.mrb[0].mxu0
      %v3125 = vadd.f32 %v3028, %v3124
      %v3126 = vpop.f32.mrb[0].mxu0
      %3127 = vmatprep.mubr.bf16.mxu0 %v1423
      %3128 = vmatmul.mubr.bf16.gmra.mrb[0].mxu0 %v1422
      %v3129 = vpop.f32.mrb[0].mxu0
      %v3130 = vadd.f32 %v3033, %v3129
      %v3131 = vpop.f32.mrb[0].mxu0
      %v3132 = vpop.f32.mrb[0].mxu0
      %v3133 = vadd.f32 %v3036, %v3132
      %v3134 = vpop.f32.mrb[0].mxu0
      %3135 = vmatprep.mubr.bf16.mxu0 %v1439
      %3136 = vmatmul.mubr.bf16.gmra.mrb[0].mxu0 %v1438
      %v3137 = vpop.f32.mrb[0].mxu0
      %v3138 = vadd.f32 %v3041, %v3137
      %v3139 = vpop.f32.mrb[0].mxu0
      %v3140 = vpop.f32.mrb[0].mxu0
      %v3141 = vadd.f32 %v3044, %v3140
      %v3142 = vpop.f32.mrb[0].mxu0
      %3143 = vmatprep.mubr.bf16.mxu0 %v1455
      %3144 = vmatmul.mubr.bf16.gmra.mrb[0].mxu0 %v1454
      %v3145 = vpop.f32.mrb[0].mxu0
      %v3146 = vadd.f32 %v3049, %v3145
      %v3147 = vpop.f32.mrb[0].mxu0
      %v3148 = vpop.f32.mrb[0].mxu0
      %v3149 = vadd.f32 %v3052, %v3148
      %v3150 = vpop.f32.mrb[0].mxu0
      %3151 = vmatprep.mubr.bf16.mxu0 %v1471
      %3152 = vmatmul.mubr.bf16.gmra.mrb[0].mxu0 %v1470
      %v3153 = vpop.f32.mrb[0].mxu0
      %v3154 = vadd.f32 %v3057, %v3153
      %v3155 = vpop.f32.mrb[0].mxu0
      %v3156 = vpop.f32.mrb[0].mxu0
      %v3157 = vadd.f32 %v3060, %v3156
      %v3158 = vpop.f32.mrb[0].mxu0
      %3159 = vmatprep.mubr.bf16.mxu0 %v1487
      %3160 = vmatmul.mubr.bf16.gmra.mrb[0].mxu0 %v1486
      %v3161 = vpop.f32.mrb[0].mxu0
      %v3162 = vadd.f32 %v3065, %v3161
      %v3163 = vpop.f32.mrb[0].mxu0
      %v3164 = vpop.f32.mrb[0].mxu0
      %v3165 = vadd.f32 %v3068, %v3164
      %v3166 = vpop.f32.mrb[0].mxu0
      %3167 = vmatprep.mubr.bf16.mxu0 %v1503
      %3168 = vmatmul.mubr.bf16.gmra.mrb[0].mxu0 %v1502
      %v3169 = vpop.f32.mrb[0].mxu0
      %v3170 = vadd.f32 %v3073, %v3169
      %v3171 = vpop.f32.mrb[0].mxu0
      %v3172 = vpop.f32.mrb[0].mxu0
      %v3173 = vadd.f32 %v3076, %v3172
      %v3174 = vpop.f32.mrb[0].mxu0
      %3175 = vdwg.mxu0
      %v3176 = vld [vmem:[#allocation2] sm:$0xff]
      %v3177 = vld [vmem:[#allocation2 + $0x8] sm:$0xff]
      %v3178 = vld [vmem:[#allocation2 + $0x10] sm:$0xff]
      %v3179 = vld [vmem:[#allocation2 + $0x18] sm:$0xff]
      %v3180 = vld [vmem:[#allocation2 + $0x20] sm:$0xff]
      %v3181 = vld [vmem:[#allocation2 + $0x28] sm:$0xff]
      %v3182 = vld [vmem:[#allocation2 + $0x30] sm:$0xff]
      %v3183 = vld [vmem:[#allocation2 + $0x38] sm:$0xff]
      %v3184 = vld [vmem:[#allocation2 + $0x40] sm:$0xff]
      %v3185 = vld [vmem:[#allocation2 + $0x48] sm:$0xff]
      %v3186 = vld [vmem:[#allocation2 + $0x50] sm:$0xff]
      %v3187 = vld [vmem:[#allocation2 + $0x58] sm:$0xff]
      %v3188 = vld [vmem:[#allocation2 + $0x60] sm:$0xff]
      %v3189 = vld [vmem:[#allocation2 + $0x68] sm:$0xff]
      %v3190 = vld [vmem:[#allocation2 + $0x70] sm:$0xff]
      %v3191 = vld [vmem:[#allocation2 + $0x78] sm:$0xff]
      %vm3208 = vcmask 1040384
      %v3209 = vrot.slane %v3114, 7
      %v3210 = vrot.slane %v3117, 7
      %v3211 = vsel %vm3208, %v3209, %v3210
      %v3212 = vrot.slane %v3122, 7
      %v3213 = vsel %vm3208, %v3210, %v3212
      %v3214 = vrot.slane %v3125, 7
      %v3215 = vsel %vm3208, %v3212, %v3214
      %v3216 = vrot.slane %v3130, 7
      %v3217 = vsel %vm3208, %v3214, %v3216
      %v3218 = vrot.slane %v3133, 7
      %v3219 = vsel %vm3208, %v3216, %v3218
      %v3220 = vrot.slane %v3138, 7
      %v3221 = vsel %vm3208, %v3218, %v3220
      %v3222 = vrot.slane %v3141, 7
      %v3223 = vsel %vm3208, %v3220, %v3222
      %v3224 = vrot.slane %v3146, 7
      %v3225 = vsel %vm3208, %v3222, %v3224
      %v3226 = vrot.slane %v3149, 7
      %v3227 = vsel %vm3208, %v3224, %v3226
      %v3228 = vrot.slane %v3154, 7
      %v3229 = vsel %vm3208, %v3226, %v3228
      %v3230 = vrot.slane %v3157, 7
      %v3231 = vsel %vm3208, %v3228, %v3230
      %v3232 = vrot.slane %v3162, 7
      %v3233 = vsel %vm3208, %v3230, %v3232
      %v3234 = vrot.slane %v3165, 7
      %v3235 = vsel %vm3208, %v3232, %v3234
      %v3236 = vrot.slane %v3170, 7
      %v3237 = vsel %vm3208, %v3234, %v3236
      %v3238 = vrot.slane %v3173, 7
      %v3239 = vsel %vm3208, %v3236, %v3238
      %v3256 = vsel %vm3208, 0.0, %v3209
      %v3257 = vld [vmem:[%s580] sm:$0xff]
      %v3258 = vld [vmem:[%s580 + $0x8] sm:$0xff]
      %v3259 = vld [vmem:[%s580 + $0x10] sm:$0xff]
      %v3260 = vld [vmem:[%s580 + $0x18] sm:$0xff]
      %v3261 = vld [vmem:[%s580 + $0x20] sm:$0xff]
      %v3262 = vld [vmem:[%s580 + $0x28] sm:$0xff]
      %v3263 = vld [vmem:[%s580 + $0x30] sm:$0xff]
      %v3264 = vld [vmem:[%s580 + $0x38] sm:$0xff]
      %v3265 = vld [vmem:[%s580 + $0x40] sm:$0xff]
      %v3266 = vld [vmem:[%s580 + $0x48] sm:$0xff]
      %v3267 = vld [vmem:[%s580 + $0x50] sm:$0xff]
      %v3268 = vld [vmem:[%s580 + $0x58] sm:$0xff]
      %v3269 = vld [vmem:[%s580 + $0x60] sm:$0xff]
      %v3270 = vld [vmem:[%s580 + $0x68] sm:$0xff]
      %v3271 = vld [vmem:[%s580 + $0x70] sm:$0xff]
      %v3272 = vld [vmem:[%s580 + $0x78] sm:$0xff]
      %3274 = vset.pattern.permute.xlu0 0
      %3275 = vperm.xlu0 %3274, %v3257
      %v3276 = vpop.permute.xlu0 %3275
      %3279 = vset.pattern.permute.xlu0 0
      %3280 = vperm.xlu0 %3279, %v3258
      %v3281 = vpop.permute.xlu0 %3280
      %3284 = vset.pattern.permute.xlu0 0
      %3285 = vperm.xlu0 %3284, %v3259
      %v3286 = vpop.permute.xlu0 %3285
      %3289 = vset.pattern.permute.xlu0 0
      %3290 = vperm.xlu0 %3289, %v3260
      %v3291 = vpop.permute.xlu0 %3290
      %3294 = vset.pattern.permute.xlu0 0
      %3295 = vperm.xlu0 %3294, %v3261
      %v3296 = vpop.permute.xlu0 %3295
      %3299 = vset.pattern.permute.xlu0 0
      %3300 = vperm.xlu0 %3299, %v3262
      %v3301 = vpop.permute.xlu0 %3300
      %3304 = vset.pattern.permute.xlu0 0
      %3305 = vperm.xlu0 %3304, %v3263
      %v3306 = vpop.permute.xlu0 %3305
      %3309 = vset.pattern.permute.xlu0 0
      %3310 = vperm.xlu0 %3309, %v3264
      %v3311 = vpop.permute.xlu0 %3310
      %3314 = vset.pattern.permute.xlu0 0
      %3315 = vperm.xlu0 %3314, %v3265
      %v3316 = vpop.permute.xlu0 %3315
      %3319 = vset.pattern.permute.xlu0 0
      %3320 = vperm.xlu0 %3319, %v3266
      %v3321 = vpop.permute.xlu0 %3320
      %3324 = vset.pattern.permute.xlu0 0
      %3325 = vperm.xlu0 %3324, %v3267
      %v3326 = vpop.permute.xlu0 %3325
      %3329 = vset.pattern.permute.xlu0 0
      %3330 = vperm.xlu0 %3329, %v3268
      %v3331 = vpop.permute.xlu0 %3330
      %3334 = vset.pattern.permute.xlu0 0
      %3335 = vperm.xlu0 %3334, %v3269
      %v3336 = vpop.permute.xlu0 %3335
      %3339 = vset.pattern.permute.xlu0 0
      %3340 = vperm.xlu0 %3339, %v3270
      %v3341 = vpop.permute.xlu0 %3340
      %3344 = vset.pattern.permute.xlu0 0
      %3345 = vperm.xlu0 %3344, %v3271
      %v3346 = vpop.permute.xlu0 %3345
      %3349 = vset.pattern.permute.xlu0 0
      %3350 = vperm.xlu0 %3349, %v3272
      %v3351 = vpop.permute.xlu0 %3350
      %v3353 = vmul.f32 %v3256, %v3276
      %v3354 = vmul.f32 %v3211, %v3281
      %v3355 = vmul.f32 %v3213, %v3286
      %v3356 = vmul.f32 %v3215, %v3291
      %v3357 = vmul.f32 %v3217, %v3296
      %v3358 = vmul.f32 %v3219, %v3301
      %v3359 = vmul.f32 %v3221, %v3306
      %v3360 = vmul.f32 %v3223, %v3311
      %v3361 = vmul.f32 %v3225, %v3316
      %v3362 = vmul.f32 %v3227, %v3321
      %v3363 = vmul.f32 %v3229, %v3326
      %v3364 = vmul.f32 %v3231, %v3331
      %v3365 = vmul.f32 %v3233, %v3336
      %v3366 = vmul.f32 %v3235, %v3341
      %v3367 = vmul.f32 %v3237, %v3346
      %v3368 = vmul.f32 %v3239, %v3351
      %v3369 = vadd.f32 %v3176, %v3353
      %v3370 = vadd.f32 %v3177, %v3354
      %v3371 = vadd.f32 %v3178, %v3355
      %v3372 = vadd.f32 %v3179, %v3356
      %v3373 = vadd.f32 %v3180, %v3357
      %v3374 = vadd.f32 %v3181, %v3358
      %v3375 = vadd.f32 %v3182, %v3359
      %v3376 = vadd.f32 %v3183, %v3360
      %v3377 = vadd.f32 %v3184, %v3361
      %v3378 = vadd.f32 %v3185, %v3362
      %v3379 = vadd.f32 %v3186, %v3363
      %v3380 = vadd.f32 %v3187, %v3364
      %v3381 = vadd.f32 %v3188, %v3365
      %v3382 = vadd.f32 %v3189, %v3366
      %v3383 = vadd.f32 %v3190, %v3367
      %v3384 = vadd.f32 %v3191, %v3368
      %3385 = vst [vmem:[#allocation2] sm:$0xff] %v3369
      %3386 = vst [vmem:[#allocation2 + $0x8] sm:$0xff] %v3370
      %3387 = vst [vmem:[#allocation2 + $0x10] sm:$0xff] %v3371
      %3388 = vst [vmem:[#allocation2 + $0x18] sm:$0xff] %v3372
      %3389 = vst [vmem:[#allocation2 + $0x20] sm:$0xff] %v3373
      %3390 = vst [vmem:[#allocation2 + $0x28] sm:$0xff] %v3374
      %3391 = vst [vmem:[#allocation2 + $0x30] sm:$0xff] %v3375
      %3392 = vst [vmem:[#allocation2 + $0x38] sm:$0xff] %v3376
      %3393 = vst [vmem:[#allocation2 + $0x40] sm:$0xff] %v3377
      %3394 = vst [vmem:[#allocation2 + $0x48] sm:$0xff] %v3378
      %3395 = vst [vmem:[#allocation2 + $0x50] sm:$0xff] %v3379
      %3396 = vst [vmem:[#allocation2 + $0x58] sm:$0xff] %v3380
      %3397 = vst [vmem:[#allocation2 + $0x60] sm:$0xff] %v3381
      %3398 = vst [vmem:[#allocation2 + $0x68] sm:$0xff] %v3382
      %3399 = vst [vmem:[#allocation2 + $0x70] sm:$0xff] %v3383
      %3400 = vst [vmem:[#allocation2 + $0x78] sm:$0xff] %v3384
      %s3401 = scalar_lea.vmem %s574, 1024
      %v3402 = vld [vmem:[%s3401] sm:$0xf]
      %v3403 = vld [vmem:[%s3401 + $0x4] sm:$0xf]
      %v3404 = vld [vmem:[%s3401 + $0x8] sm:$0xf]
      %v3405 = vld [vmem:[%s3401 + $0xc] sm:$0xf]
      %v3406 = vld [vmem:[%s3401 + $0x10] sm:$0xf]
      %v3407 = vld [vmem:[%s3401 + $0x14] sm:$0xf]
      %v3408 = vld [vmem:[%s3401 + $0x18] sm:$0xf]
      %v3409 = vld [vmem:[%s3401 + $0x1c] sm:$0xf]
      %v3410 = vld [vmem:[%s3401 + $0x20] sm:$0xf]
      %v3411 = vld [vmem:[%s3401 + $0x24] sm:$0xf]
      %v3412 = vld [vmem:[%s3401 + $0x28] sm:$0xf]
      %v3413 = vld [vmem:[%s3401 + $0x2c] sm:$0xf]
      %v3414 = vld [vmem:[%s3401 + $0x30] sm:$0xf]
      %v3415 = vld [vmem:[%s3401 + $0x34] sm:$0xf]
      %v3416 = vld [vmem:[%s3401 + $0x38] sm:$0xf]
      %v3417 = vld [vmem:[%s3401 + $0x3c] sm:$0xf]
      %v3418 = vld [vmem:[%s3401 + $0x40] sm:$0xf]
      %v3419 = vld [vmem:[%s3401 + $0x44] sm:$0xf]
      %v3420 = vld [vmem:[%s3401 + $0x48] sm:$0xf]
      %v3421 = vld [vmem:[%s3401 + $0x4c] sm:$0xf]
      %v3422 = vld [vmem:[%s3401 + $0x50] sm:$0xf]
      %v3423 = vld [vmem:[%s3401 + $0x54] sm:$0xf]
      %v3424 = vld [vmem:[%s3401 + $0x58] sm:$0xf]
      %v3425 = vld [vmem:[%s3401 + $0x5c] sm:$0xf]
      %v3426 = vld [vmem:[%s3401 + $0x60] sm:$0xf]
      %v3427 = vld [vmem:[%s3401 + $0x64] sm:$0xf]
      %v3428 = vld [vmem:[%s3401 + $0x68] sm:$0xf]
      %v3429 = vld [vmem:[%s3401 + $0x6c] sm:$0xf]
      %v3430 = vld [vmem:[%s3401 + $0x70] sm:$0xf]
      %v3431 = vld [vmem:[%s3401 + $0x74] sm:$0xf]
      %v3432 = vld [vmem:[%s3401 + $0x78] sm:$0xf]
      %v3433 = vld [vmem:[%s3401 + $0x7c] sm:$0xf]
      %v3434 = vld [vmem:[%s3401 + $0x80] sm:$0xf]
      %v3435 = vld [vmem:[%s3401 + $0x84] sm:$0xf]
      %v3436 = vld [vmem:[%s3401 + $0x88] sm:$0xf]
      %v3437 = vld [vmem:[%s3401 + $0x8c] sm:$0xf]
      %v3438 = vld [vmem:[%s3401 + $0x90] sm:$0xf]
      %v3439 = vld [vmem:[%s3401 + $0x94] sm:$0xf]
      %v3440 = vld [vmem:[%s3401 + $0x98] sm:$0xf]
      %v3441 = vld [vmem:[%s3401 + $0x9c] sm:$0xf]
      %v3442 = vld [vmem:[%s3401 + $0xa0] sm:$0xf]
      %v3443 = vld [vmem:[%s3401 + $0xa4] sm:$0xf]
      %v3444 = vld [vmem:[%s3401 + $0xa8] sm:$0xf]
      %v3445 = vld [vmem:[%s3401 + $0xac] sm:$0xf]
      %v3446 = vld [vmem:[%s3401 + $0xb0] sm:$0xf]
      %v3447 = vld [vmem:[%s3401 + $0xb4] sm:$0xf]
      %v3448 = vld [vmem:[%s3401 + $0xb8] sm:$0xf]
      %v3449 = vld [vmem:[%s3401 + $0xbc] sm:$0xf]
      %v3450 = vld [vmem:[%s3401 + $0xc0] sm:$0xf]
      %v3451 = vld [vmem:[%s3401 + $0xc4] sm:$0xf]
      %v3452 = vld [vmem:[%s3401 + $0xc8] sm:$0xf]
      %v3453 = vld [vmem:[%s3401 + $0xcc] sm:$0xf]
      %v3454 = vld [vmem:[%s3401 + $0xd0] sm:$0xf]
      %v3455 = vld [vmem:[%s3401 + $0xd4] sm:$0xf]
      %v3456 = vld [vmem:[%s3401 + $0xd8] sm:$0xf]
      %v3457 = vld [vmem:[%s3401 + $0xdc] sm:$0xf]
      %v3458 = vld [vmem:[%s3401 + $0xe0] sm:$0xf]
      %v3459 = vld [vmem:[%s3401 + $0xe4] sm:$0xf]
      %v3460 = vld [vmem:[%s3401 + $0xe8] sm:$0xf]
      %v3461 = vld [vmem:[%s3401 + $0xec] sm:$0xf]
      %v3462 = vld [vmem:[%s3401 + $0xf0] sm:$0xf]
      %v3463 = vld [vmem:[%s3401 + $0xf4] sm:$0xf]
      %v3464 = vld [vmem:[%s3401 + $0xf8] sm:$0xf]
      %v3465 = vld [vmem:[%s3401 + $0xfc] sm:$0xf]
      %v3466 = vld [vmem:[%s3401 + $0x100] sm:$0xf]
      %v3467 = vld [vmem:[%s3401 + $0x104] sm:$0xf]
      %v3468 = vld [vmem:[%s3401 + $0x108] sm:$0xf]
      %v3469 = vld [vmem:[%s3401 + $0x10c] sm:$0xf]
      %v3470 = vld [vmem:[%s3401 + $0x110] sm:$0xf]
      %v3471 = vld [vmem:[%s3401 + $0x114] sm:$0xf]
      %v3472 = vld [vmem:[%s3401 + $0x118] sm:$0xf]
      %v3473 = vld [vmem:[%s3401 + $0x11c] sm:$0xf]
      %v3474 = vld [vmem:[%s3401 + $0x120] sm:$0xf]
      %v3475 = vld [vmem:[%s3401 + $0x124] sm:$0xf]
      %v3476 = vld [vmem:[%s3401 + $0x128] sm:$0xf]
      %v3477 = vld [vmem:[%s3401 + $0x12c] sm:$0xf]
      %v3478 = vld [vmem:[%s3401 + $0x130] sm:$0xf]
      %v3479 = vld [vmem:[%s3401 + $0x134] sm:$0xf]
      %v3480 = vld [vmem:[%s3401 + $0x138] sm:$0xf]
      %v3481 = vld [vmem:[%s3401 + $0x13c] sm:$0xf]
      %v3482 = vld [vmem:[%s3401 + $0x140] sm:$0xf]
      %v3483 = vld [vmem:[%s3401 + $0x144] sm:$0xf]
      %v3484 = vld [vmem:[%s3401 + $0x148] sm:$0xf]
      %v3485 = vld [vmem:[%s3401 + $0x14c] sm:$0xf]
      %v3486 = vld [vmem:[%s3401 + $0x150] sm:$0xf]
      %v3487 = vld [vmem:[%s3401 + $0x154] sm:$0xf]
      %v3488 = vld [vmem:[%s3401 + $0x158] sm:$0xf]
      %v3489 = vld [vmem:[%s3401 + $0x15c] sm:$0xf]
      %v3490 = vld [vmem:[%s3401 + $0x160] sm:$0xf]
      %v3491 = vld [vmem:[%s3401 + $0x164] sm:$0xf]
      %v3492 = vld [vmem:[%s3401 + $0x168] sm:$0xf]
      %v3493 = vld [vmem:[%s3401 + $0x16c] sm:$0xf]
      %v3494 = vld [vmem:[%s3401 + $0x170] sm:$0xf]
      %v3495 = vld [vmem:[%s3401 + $0x174] sm:$0xf]
      %v3496 = vld [vmem:[%s3401 + $0x178] sm:$0xf]
      %v3497 = vld [vmem:[%s3401 + $0x17c] sm:$0xf]
      %v3498 = vld [vmem:[%s3401 + $0x180] sm:$0xf]
      %v3499 = vld [vmem:[%s3401 + $0x184] sm:$0xf]
      %v3500 = vld [vmem:[%s3401 + $0x188] sm:$0xf]
      %v3501 = vld [vmem:[%s3401 + $0x18c] sm:$0xf]
      %v3502 = vld [vmem:[%s3401 + $0x190] sm:$0xf]
      %v3503 = vld [vmem:[%s3401 + $0x194] sm:$0xf]
      %v3504 = vld [vmem:[%s3401 + $0x198] sm:$0xf]
      %v3505 = vld [vmem:[%s3401 + $0x19c] sm:$0xf]
      %v3506 = vld [vmem:[%s3401 + $0x1a0] sm:$0xf]
      %v3507 = vld [vmem:[%s3401 + $0x1a4] sm:$0xf]
      %v3508 = vld [vmem:[%s3401 + $0x1a8] sm:$0xf]
      %v3509 = vld [vmem:[%s3401 + $0x1ac] sm:$0xf]
      %v3510 = vld [vmem:[%s3401 + $0x1b0] sm:$0xf]
      %v3511 = vld [vmem:[%s3401 + $0x1b4] sm:$0xf]
      %v3512 = vld [vmem:[%s3401 + $0x1b8] sm:$0xf]
      %v3513 = vld [vmem:[%s3401 + $0x1bc] sm:$0xf]
      %v3514 = vld [vmem:[%s3401 + $0x1c0] sm:$0xf]
      %v3515 = vld [vmem:[%s3401 + $0x1c4] sm:$0xf]
      %v3516 = vld [vmem:[%s3401 + $0x1c8] sm:$0xf]
      %v3517 = vld [vmem:[%s3401 + $0x1cc] sm:$0xf]
      %v3518 = vld [vmem:[%s3401 + $0x1d0] sm:$0xf]
      %v3519 = vld [vmem:[%s3401 + $0x1d4] sm:$0xf]
      %v3520 = vld [vmem:[%s3401 + $0x1d8] sm:$0xf]
      %v3521 = vld [vmem:[%s3401 + $0x1dc] sm:$0xf]
      %v3522 = vld [vmem:[%s3401 + $0x1e0] sm:$0xf]
      %v3523 = vld [vmem:[%s3401 + $0x1e4] sm:$0xf]
      %v3524 = vld [vmem:[%s3401 + $0x1e8] sm:$0xf]
      %v3525 = vld [vmem:[%s3401 + $0x1ec] sm:$0xf]
      %v3526 = vld [vmem:[%s3401 + $0x1f0] sm:$0xf]
      %v3527 = vld [vmem:[%s3401 + $0x1f4] sm:$0xf]
      %v3528 = vld [vmem:[%s3401 + $0x1f8] sm:$0xf]
      %v3529 = vld [vmem:[%s3401 + $0x1fc] sm:$0xf]
      %v3530 = vld [vmem:[%s3401 + $0x200] sm:$0xf]
      %v3531 = vld [vmem:[%s3401 + $0x204] sm:$0xf]
      %v3532 = vld [vmem:[%s3401 + $0x208] sm:$0xf]
      %v3533 = vld [vmem:[%s3401 + $0x20c] sm:$0xf]
      %v3534 = vld [vmem:[%s3401 + $0x210] sm:$0xf]
      %v3535 = vld [vmem:[%s3401 + $0x214] sm:$0xf]
      %v3536 = vld [vmem:[%s3401 + $0x218] sm:$0xf]
      %v3537 = vld [vmem:[%s3401 + $0x21c] sm:$0xf]
      %v3538 = vld [vmem:[%s3401 + $0x220] sm:$0xf]
      %v3539 = vld [vmem:[%s3401 + $0x224] sm:$0xf]
      %v3540 = vld [vmem:[%s3401 + $0x228] sm:$0xf]
      %v3541 = vld [vmem:[%s3401 + $0x22c] sm:$0xf]
      %v3542 = vld [vmem:[%s3401 + $0x230] sm:$0xf]
      %v3543 = vld [vmem:[%s3401 + $0x234] sm:$0xf]
      %v3544 = vld [vmem:[%s3401 + $0x238] sm:$0xf]
      %v3545 = vld [vmem:[%s3401 + $0x23c] sm:$0xf]
      %v3546 = vld [vmem:[%s3401 + $0x240] sm:$0xf]
      %v3547 = vld [vmem:[%s3401 + $0x244] sm:$0xf]
      %v3548 = vld [vmem:[%s3401 + $0x248] sm:$0xf]
      %v3549 = vld [vmem:[%s3401 + $0x24c] sm:$0xf]
      %v3550 = vld [vmem:[%s3401 + $0x250] sm:$0xf]
      %v3551 = vld [vmem:[%s3401 + $0x254] sm:$0xf]
      %v3552 = vld [vmem:[%s3401 + $0x258] sm:$0xf]
      %v3553 = vld [vmem:[%s3401 + $0x25c] sm:$0xf]
      %v3554 = vld [vmem:[%s3401 + $0x260] sm:$0xf]
      %v3555 = vld [vmem:[%s3401 + $0x264] sm:$0xf]
      %v3556 = vld [vmem:[%s3401 + $0x268] sm:$0xf]
      %v3557 = vld [vmem:[%s3401 + $0x26c] sm:$0xf]
      %v3558 = vld [vmem:[%s3401 + $0x270] sm:$0xf]
      %v3559 = vld [vmem:[%s3401 + $0x274] sm:$0xf]
      %v3560 = vld [vmem:[%s3401 + $0x278] sm:$0xf]
      %v3561 = vld [vmem:[%s3401 + $0x27c] sm:$0xf]
      %v3562 = vld [vmem:[%s3401 + $0x280] sm:$0xf]
      %v3563 = vld [vmem:[%s3401 + $0x284] sm:$0xf]
      %v3564 = vld [vmem:[%s3401 + $0x288] sm:$0xf]
      %v3565 = vld [vmem:[%s3401 + $0x28c] sm:$0xf]
      %v3566 = vld [vmem:[%s3401 + $0x290] sm:$0xf]
      %v3567 = vld [vmem:[%s3401 + $0x294] sm:$0xf]
      %v3568 = vld [vmem:[%s3401 + $0x298] sm:$0xf]
      %v3569 = vld [vmem:[%s3401 + $0x29c] sm:$0xf]
      %v3570 = vld [vmem:[%s3401 + $0x2a0] sm:$0xf]
      %v3571 = vld [vmem:[%s3401 + $0x2a4] sm:$0xf]
      %v3572 = vld [vmem:[%s3401 + $0x2a8] sm:$0xf]
      %v3573 = vld [vmem:[%s3401 + $0x2ac] sm:$0xf]
      %v3574 = vld [vmem:[%s3401 + $0x2b0] sm:$0xf]
      %v3575 = vld [vmem:[%s3401 + $0x2b4] sm:$0xf]
      %v3576 = vld [vmem:[%s3401 + $0x2b8] sm:$0xf]
      %v3577 = vld [vmem:[%s3401 + $0x2bc] sm:$0xf]
      %v3578 = vld [vmem:[%s3401 + $0x2c0] sm:$0xf]
      %v3579 = vld [vmem:[%s3401 + $0x2c4] sm:$0xf]
      %v3580 = vld [vmem:[%s3401 + $0x2c8] sm:$0xf]
      %v3581 = vld [vmem:[%s3401 + $0x2cc] sm:$0xf]
      %v3582 = vld [vmem:[%s3401 + $0x2d0] sm:$0xf]
      %v3583 = vld [vmem:[%s3401 + $0x2d4] sm:$0xf]
      %v3584 = vld [vmem:[%s3401 + $0x2d8] sm:$0xf]
      %v3585 = vld [vmem:[%s3401 + $0x2dc] sm:$0xf]
      %v3586 = vld [vmem:[%s3401 + $0x2e0] sm:$0xf]
      %v3587 = vld [vmem:[%s3401 + $0x2e4] sm:$0xf]
      %v3588 = vld [vmem:[%s3401 + $0x2e8] sm:$0xf]
      %v3589 = vld [vmem:[%s3401 + $0x2ec] sm:$0xf]
      %v3590 = vld [vmem:[%s3401 + $0x2f0] sm:$0xf]
      %v3591 = vld [vmem:[%s3401 + $0x2f4] sm:$0xf]
      %v3592 = vld [vmem:[%s3401 + $0x2f8] sm:$0xf]
      %v3593 = vld [vmem:[%s3401 + $0x2fc] sm:$0xf]
      %v3594 = vld [vmem:[%s3401 + $0x300] sm:$0xf]
      %v3595 = vld [vmem:[%s3401 + $0x304] sm:$0xf]
      %v3596 = vld [vmem:[%s3401 + $0x308] sm:$0xf]
      %v3597 = vld [vmem:[%s3401 + $0x30c] sm:$0xf]
      %v3598 = vld [vmem:[%s3401 + $0x310] sm:$0xf]
      %v3599 = vld [vmem:[%s3401 + $0x314] sm:$0xf]
      %v3600 = vld [vmem:[%s3401 + $0x318] sm:$0xf]
      %v3601 = vld [vmem:[%s3401 + $0x31c] sm:$0xf]
      %v3602 = vld [vmem:[%s3401 + $0x320] sm:$0xf]
      %v3603 = vld [vmem:[%s3401 + $0x324] sm:$0xf]
      %v3604 = vld [vmem:[%s3401 + $0x328] sm:$0xf]
      %v3605 = vld [vmem:[%s3401 + $0x32c] sm:$0xf]
      %v3606 = vld [vmem:[%s3401 + $0x330] sm:$0xf]
      %v3607 = vld [vmem:[%s3401 + $0x334] sm:$0xf]
      %v3608 = vld [vmem:[%s3401 + $0x338] sm:$0xf]
      %v3609 = vld [vmem:[%s3401 + $0x33c] sm:$0xf]
      %v3610 = vld [vmem:[%s3401 + $0x340] sm:$0xf]
      %v3611 = vld [vmem:[%s3401 + $0x344] sm:$0xf]
      %v3612 = vld [vmem:[%s3401 + $0x348] sm:$0xf]
      %v3613 = vld [vmem:[%s3401 + $0x34c] sm:$0xf]
      %v3614 = vld [vmem:[%s3401 + $0x350] sm:$0xf]
      %v3615 = vld [vmem:[%s3401 + $0x354] sm:$0xf]
      %v3616 = vld [vmem:[%s3401 + $0x358] sm:$0xf]
      %v3617 = vld [vmem:[%s3401 + $0x35c] sm:$0xf]
      %v3618 = vld [vmem:[%s3401 + $0x360] sm:$0xf]
      %v3619 = vld [vmem:[%s3401 + $0x364] sm:$0xf]
      %v3620 = vld [vmem:[%s3401 + $0x368] sm:$0xf]
      %v3621 = vld [vmem:[%s3401 + $0x36c] sm:$0xf]
      %v3622 = vld [vmem:[%s3401 + $0x370] sm:$0xf]
      %v3623 = vld [vmem:[%s3401 + $0x374] sm:$0xf]
      %v3624 = vld [vmem:[%s3401 + $0x378] sm:$0xf]
      %v3625 = vld [vmem:[%s3401 + $0x37c] sm:$0xf]
      %v3626 = vld [vmem:[%s3401 + $0x380] sm:$0xf]
      %v3627 = vld [vmem:[%s3401 + $0x384] sm:$0xf]
      %v3628 = vld [vmem:[%s3401 + $0x388] sm:$0xf]
      %v3629 = vld [vmem:[%s3401 + $0x38c] sm:$0xf]
      %v3630 = vld [vmem:[%s3401 + $0x390] sm:$0xf]
      %v3631 = vld [vmem:[%s3401 + $0x394] sm:$0xf]
      %v3632 = vld [vmem:[%s3401 + $0x398] sm:$0xf]
      %v3633 = vld [vmem:[%s3401 + $0x39c] sm:$0xf]
      %v3634 = vld [vmem:[%s3401 + $0x3a0] sm:$0xf]
      %v3635 = vld [vmem:[%s3401 + $0x3a4] sm:$0xf]
      %v3636 = vld [vmem:[%s3401 + $0x3a8] sm:$0xf]
      %v3637 = vld [vmem:[%s3401 + $0x3ac] sm:$0xf]
      %v3638 = vld [vmem:[%s3401 + $0x3b0] sm:$0xf]
      %v3639 = vld [vmem:[%s3401 + $0x3b4] sm:$0xf]
      %v3640 = vld [vmem:[%s3401 + $0x3b8] sm:$0xf]
      %v3641 = vld [vmem:[%s3401 + $0x3bc] sm:$0xf]
      %v3642 = vld [vmem:[%s3401 + $0x3c0] sm:$0xf]
      %v3643 = vld [vmem:[%s3401 + $0x3c4] sm:$0xf]
      %v3644 = vld [vmem:[%s3401 + $0x3c8] sm:$0xf]
      %v3645 = vld [vmem:[%s3401 + $0x3cc] sm:$0xf]
      %v3646 = vld [vmem:[%s3401 + $0x3d0] sm:$0xf]
      %v3647 = vld [vmem:[%s3401 + $0x3d4] sm:$0xf]
      %v3648 = vld [vmem:[%s3401 + $0x3d8] sm:$0xf]
      %v3649 = vld [vmem:[%s3401 + $0x3dc] sm:$0xf]
      %v3650 = vld [vmem:[%s3401 + $0x3e0] sm:$0xf]
      %v3651 = vld [vmem:[%s3401 + $0x3e4] sm:$0xf]
      %v3652 = vld [vmem:[%s3401 + $0x3e8] sm:$0xf]
      %v3653 = vld [vmem:[%s3401 + $0x3ec] sm:$0xf]
      %v3654 = vld [vmem:[%s3401 + $0x3f0] sm:$0xf]
      %v3655 = vld [vmem:[%s3401 + $0x3f4] sm:$0xf]
      %v3656 = vld [vmem:[%s3401 + $0x3f8] sm:$0xf]
      %v3657 = vld [vmem:[%s3401 + $0x3fc] sm:$0xf]
      %v3914 = vunpack.c.l.b16 %v3402
      %v3915 = vunpack.c.l.b16 %v3403
      %v3916 = vunpack.c.l.b16 %v3404
      %v3917 = vunpack.c.l.b16 %v3405
      %v3918 = vunpack.c.l.b16 %v3406
      %v3919 = vunpack.c.l.b16 %v3407
      %v3920 = vunpack.c.l.b16 %v3408
      %v3921 = vunpack.c.l.b16 %v3409
      %v3922 = vunpack.c.l.b16 %v3410
      %v3923 = vunpack.c.l.b16 %v3411
      %v3924 = vunpack.c.l.b16 %v3412
      %v3925 = vunpack.c.l.b16 %v3413
      %v3926 = vunpack.c.l.b16 %v3414
      %v3927 = vunpack.c.l.b16 %v3415
      %v3928 = vunpack.c.l.b16 %v3416
      %v3929 = vunpack.c.l.b16 %v3417
      %v3930 = vunpack.c.l.b16 %v3418
      %v3931 = vunpack.c.l.b16 %v3419
      %v3932 = vunpack.c.l.b16 %v3420
      %v3933 = vunpack.c.l.b16 %v3421
      %v3934 = vunpack.c.l.b16 %v3422
      %v3935 = vunpack.c.l.b16 %v3423
      %v3936 = vunpack.c.l.b16 %v3424
      %v3937 = vunpack.c.l.b16 %v3425
      %v3938 = vunpack.c.l.b16 %v3426
      %v3939 = vunpack.c.l.b16 %v3427
      %v3940 = vunpack.c.l.b16 %v3428
      %v3941 = vunpack.c.l.b16 %v3429
      %v3942 = vunpack.c.l.b16 %v3430
      %v3943 = vunpack.c.l.b16 %v3431
      %v3944 = vunpack.c.l.b16 %v3432
      %v3945 = vunpack.c.l.b16 %v3433
      %v3946 = vunpack.c.l.b16 %v3434
      %v3947 = vunpack.c.l.b16 %v3435
      %v3948 = vunpack.c.l.b16 %v3436
      %v3949 = vunpack.c.l.b16 %v3437
      %v3950 = vunpack.c.l.b16 %v3438
      %v3951 = vunpack.c.l.b16 %v3439
      %v3952 = vunpack.c.l.b16 %v3440
      %v3953 = vunpack.c.l.b16 %v3441
      %v3954 = vunpack.c.l.b16 %v3442
      %v3955 = vunpack.c.l.b16 %v3443
      %v3956 = vunpack.c.l.b16 %v3444
      %v3957 = vunpack.c.l.b16 %v3445
      %v3958 = vunpack.c.l.b16 %v3446
      %v3959 = vunpack.c.l.b16 %v3447
      %v3960 = vunpack.c.l.b16 %v3448
      %v3961 = vunpack.c.l.b16 %v3449
      %v3962 = vunpack.c.l.b16 %v3450
      %v3963 = vunpack.c.l.b16 %v3451
      %v3964 = vunpack.c.l.b16 %v3452
      %v3965 = vunpack.c.l.b16 %v3453
      %v3966 = vunpack.c.l.b16 %v3454
      %v3967 = vunpack.c.l.b16 %v3455
      %v3968 = vunpack.c.l.b16 %v3456
      %v3969 = vunpack.c.l.b16 %v3457
      %v3970 = vunpack.c.l.b16 %v3458
      %v3971 = vunpack.c.l.b16 %v3459
      %v3972 = vunpack.c.l.b16 %v3460
      %v3973 = vunpack.c.l.b16 %v3461
      %v3974 = vunpack.c.l.b16 %v3462
      %v3975 = vunpack.c.l.b16 %v3463
      %v3976 = vunpack.c.l.b16 %v3464
      %v3977 = vunpack.c.l.b16 %v3465
      %v3978 = vunpack.c.l.b16 %v3466
      %v3979 = vunpack.c.l.b16 %v3467
      %v3980 = vunpack.c.l.b16 %v3468
      %v3981 = vunpack.c.l.b16 %v3469
      %v3982 = vunpack.c.l.b16 %v3470
      %v3983 = vunpack.c.l.b16 %v3471
      %v3984 = vunpack.c.l.b16 %v3472
      %v3985 = vunpack.c.l.b16 %v3473
      %v3986 = vunpack.c.l.b16 %v3474
      %v3987 = vunpack.c.l.b16 %v3475
      %v3988 = vunpack.c.l.b16 %v3476
      %v3989 = vunpack.c.l.b16 %v3477
      %v3990 = vunpack.c.l.b16 %v3478
      %v3991 = vunpack.c.l.b16 %v3479
      %v3992 = vunpack.c.l.b16 %v3480
      %v3993 = vunpack.c.l.b16 %v3481
      %v3994 = vunpack.c.l.b16 %v3482
      %v3995 = vunpack.c.l.b16 %v3483
      %v3996 = vunpack.c.l.b16 %v3484
      %v3997 = vunpack.c.l.b16 %v3485
      %v3998 = vunpack.c.l.b16 %v3486
      %v3999 = vunpack.c.l.b16 %v3487
      %v4000 = vunpack.c.l.b16 %v3488
      %v4001 = vunpack.c.l.b16 %v3489
      %v4002 = vunpack.c.l.b16 %v3490
      %v4003 = vunpack.c.l.b16 %v3491
      %v4004 = vunpack.c.l.b16 %v3492
      %v4005 = vunpack.c.l.b16 %v3493
      %v4006 = vunpack.c.l.b16 %v3494
      %v4007 = vunpack.c.l.b16 %v3495
      %v4008 = vunpack.c.l.b16 %v3496
      %v4009 = vunpack.c.l.b16 %v3497
      %v4010 = vunpack.c.l.b16 %v3498
      %v4011 = vunpack.c.l.b16 %v3499
      %v4012 = vunpack.c.l.b16 %v3500
      %v4013 = vunpack.c.l.b16 %v3501
      %v4014 = vunpack.c.l.b16 %v3502
      %v4015 = vunpack.c.l.b16 %v3503
      %v4016 = vunpack.c.l.b16 %v3504
      %v4017 = vunpack.c.l.b16 %v3505
      %v4018 = vunpack.c.l.b16 %v3506
      %v4019 = vunpack.c.l.b16 %v3507
      %v4020 = vunpack.c.l.b16 %v3508
      %v4021 = vunpack.c.l.b16 %v3509
      %v4022 = vunpack.c.l.b16 %v3510
      %v4023 = vunpack.c.l.b16 %v3511
      %v4024 = vunpack.c.l.b16 %v3512
      %v4025 = vunpack.c.l.b16 %v3513
      %v4026 = vunpack.c.l.b16 %v3514
      %v4027 = vunpack.c.l.b16 %v3515
      %v4028 = vunpack.c.l.b16 %v3516
      %v4029 = vunpack.c.l.b16 %v3517
      %v4030 = vunpack.c.l.b16 %v3518
      %v4031 = vunpack.c.l.b16 %v3519
      %v4032 = vunpack.c.l.b16 %v3520
      %v4033 = vunpack.c.l.b16 %v3521
      %v4034 = vunpack.c.l.b16 %v3522
      %v4035 = vunpack.c.l.b16 %v3523
      %v4036 = vunpack.c.l.b16 %v3524
      %v4037 = vunpack.c.l.b16 %v3525
      %v4038 = vunpack.c.l.b16 %v3526
      %v4039 = vunpack.c.l.b16 %v3527
      %v4040 = vunpack.c.l.b16 %v3528
      %v4041 = vunpack.c.l.b16 %v3529
      %v4042 = vunpack.c.l.b16 %v3530
      %v4043 = vunpack.c.l.b16 %v3531
      %v4044 = vunpack.c.l.b16 %v3532
      %v4045 = vunpack.c.l.b16 %v3533
      %v4046 = vunpack.c.l.b16 %v3534
      %v4047 = vunpack.c.l.b16 %v3535
      %v4048 = vunpack.c.l.b16 %v3536
      %v4049 = vunpack.c.l.b16 %v3537
      %v4050 = vunpack.c.l.b16 %v3538
      %v4051 = vunpack.c.l.b16 %v3539
      %v4052 = vunpack.c.l.b16 %v3540
      %v4053 = vunpack.c.l.b16 %v3541
      %v4054 = vunpack.c.l.b16 %v3542
      %v4055 = vunpack.c.l.b16 %v3543
      %v4056 = vunpack.c.l.b16 %v3544
      %v4057 = vunpack.c.l.b16 %v3545
      %v4058 = vunpack.c.l.b16 %v3546
      %v4059 = vunpack.c.l.b16 %v3547
      %v4060 = vunpack.c.l.b16 %v3548
      %v4061 = vunpack.c.l.b16 %v3549
      %v4062 = vunpack.c.l.b16 %v3550
      %v4063 = vunpack.c.l.b16 %v3551
      %v4064 = vunpack.c.l.b16 %v3552
      %v4065 = vunpack.c.l.b16 %v3553
      %v4066 = vunpack.c.l.b16 %v3554
      %v4067 = vunpack.c.l.b16 %v3555
      %v4068 = vunpack.c.l.b16 %v3556
      %v4069 = vunpack.c.l.b16 %v3557
      %v4070 = vunpack.c.l.b16 %v3558
      %v4071 = vunpack.c.l.b16 %v3559
      %v4072 = vunpack.c.l.b16 %v3560
      %v4073 = vunpack.c.l.b16 %v3561
      %v4074 = vunpack.c.l.b16 %v3562
      %v4075 = vunpack.c.l.b16 %v3563
      %v4076 = vunpack.c.l.b16 %v3564
      %v4077 = vunpack.c.l.b16 %v3565
      %v4078 = vunpack.c.l.b16 %v3566
      %v4079 = vunpack.c.l.b16 %v3567
      %v4080 = vunpack.c.l.b16 %v3568
      %v4081 = vunpack.c.l.b16 %v3569
      %v4082 = vunpack.c.l.b16 %v3570
      %v4083 = vunpack.c.l.b16 %v3571
      %v4084 = vunpack.c.l.b16 %v3572
      %v4085 = vunpack.c.l.b16 %v3573
      %v4086 = vunpack.c.l.b16 %v3574
      %v4087 = vunpack.c.l.b16 %v3575
      %v4088 = vunpack.c.l.b16 %v3576
      %v4089 = vunpack.c.l.b16 %v3577
      %v4090 = vunpack.c.l.b16 %v3578
      %v4091 = vunpack.c.l.b16 %v3579
      %v4092 = vunpack.c.l.b16 %v3580
      %v4093 = vunpack.c.l.b16 %v3581
      %v4094 = vunpack.c.l.b16 %v3582
      %v4095 = vunpack.c.l.b16 %v3583
      %v4096 = vunpack.c.l.b16 %v3584
      %v4097 = vunpack.c.l.b16 %v3585
      %v4098 = vunpack.c.l.b16 %v3586
      %v4099 = vunpack.c.l.b16 %v3587
      %v4100 = vunpack.c.l.b16 %v3588
      %v4101 = vunpack.c.l.b16 %v3589
      %v4102 = vunpack.c.l.b16 %v3590
      %v4103 = vunpack.c.l.b16 %v3591
      %v4104 = vunpack.c.l.b16 %v3592
      %v4105 = vunpack.c.l.b16 %v3593
      %v4106 = vunpack.c.l.b16 %v3594
      %v4107 = vunpack.c.l.b16 %v3595
      %v4108 = vunpack.c.l.b16 %v3596
      %v4109 = vunpack.c.l.b16 %v3597
      %v4110 = vunpack.c.l.b16 %v3598
      %v4111 = vunpack.c.l.b16 %v3599
      %v4112 = vunpack.c.l.b16 %v3600
      %v4113 = vunpack.c.l.b16 %v3601
      %v4114 = vunpack.c.l.b16 %v3602
      %v4115 = vunpack.c.l.b16 %v3603
      %v4116 = vunpack.c.l.b16 %v3604
      %v4117 = vunpack.c.l.b16 %v3605
      %v4118 = vunpack.c.l.b16 %v3606
      %v4119 = vunpack.c.l.b16 %v3607
      %v4120 = vunpack.c.l.b16 %v3608
      %v4121 = vunpack.c.l.b16 %v3609
      %v4122 = vunpack.c.l.b16 %v3610
      %v4123 = vunpack.c.l.b16 %v3611
      %v4124 = vunpack.c.l.b16 %v3612
      %v4125 = vunpack.c.l.b16 %v3613
      %v4126 = vunpack.c.l.b16 %v3614
      %v4127 = vunpack.c.l.b16 %v3615
      %v4128 = vunpack.c.l.b16 %v3616
      %v4129 = vunpack.c.l.b16 %v3617
      %v4130 = vunpack.c.l.b16 %v3618
      %v4131 = vunpack.c.l.b16 %v3619
      %v4132 = vunpack.c.l.b16 %v3620
      %v4133 = vunpack.c.l.b16 %v3621
      %v4134 = vunpack.c.l.b16 %v3622
      %v4135 = vunpack.c.l.b16 %v3623
      %v4136 = vunpack.c.l.b16 %v3624
      %v4137 = vunpack.c.l.b16 %v3625
      %v4138 = vunpack.c.l.b16 %v3626
      %v4139 = vunpack.c.l.b16 %v3627
      %v4140 = vunpack.c.l.b16 %v3628
      %v4141 = vunpack.c.l.b16 %v3629
      %v4142 = vunpack.c.l.b16 %v3630
      %v4143 = vunpack.c.l.b16 %v3631
      %v4144 = vunpack.c.l.b16 %v3632
      %v4145 = vunpack.c.l.b16 %v3633
      %v4146 = vunpack.c.l.b16 %v3634
      %v4147 = vunpack.c.l.b16 %v3635
      %v4148 = vunpack.c.l.b16 %v3636
      %v4149 = vunpack.c.l.b16 %v3637
      %v4150 = vunpack.c.l.b16 %v3638
      %v4151 = vunpack.c.l.b16 %v3639
      %v4152 = vunpack.c.l.b16 %v3640
      %v4153 = vunpack.c.l.b16 %v3641
      %v4154 = vunpack.c.l.b16 %v3642
      %v4155 = vunpack.c.l.b16 %v3643
      %v4156 = vunpack.c.l.b16 %v3644
      %v4157 = vunpack.c.l.b16 %v3645
      %v4158 = vunpack.c.l.b16 %v3646
      %v4159 = vunpack.c.l.b16 %v3647
      %v4160 = vunpack.c.l.b16 %v3648
      %v4161 = vunpack.c.l.b16 %v3649
      %v4162 = vunpack.c.l.b16 %v3650
      %v4163 = vunpack.c.l.b16 %v3651
      %v4164 = vunpack.c.l.b16 %v3652
      %v4165 = vunpack.c.l.b16 %v3653
      %v4166 = vunpack.c.l.b16 %v3654
      %v4167 = vunpack.c.l.b16 %v3655
      %v4168 = vunpack.c.l.b16 %v3656
      %v4169 = vunpack.c.l.b16 %v3657
      %v4170 = vpack.c.b16 %v3915, %v3914
      %v4171 = vpack.c.b16 %v3917, %v3916
      %v4172 = vpack.c.b16 %v3919, %v3918
      %v4173 = vpack.c.b16 %v3921, %v3920
      %v4174 = vpack.c.b16 %v3923, %v3922
      %v4175 = vpack.c.b16 %v3925, %v3924
      %v4176 = vpack.c.b16 %v3927, %v3926
      %v4177 = vpack.c.b16 %v3929, %v3928
      %v4178 = vpack.c.b16 %v3931, %v3930
      %v4179 = vpack.c.b16 %v3933, %v3932
      %v4180 = vpack.c.b16 %v3935, %v3934
      %v4181 = vpack.c.b16 %v3937, %v3936
      %v4182 = vpack.c.b16 %v3939, %v3938
      %v4183 = vpack.c.b16 %v3941, %v3940
      %v4184 = vpack.c.b16 %v3943, %v3942
      %v4185 = vpack.c.b16 %v3945, %v3944
      %v4186 = vpack.c.b16 %v3947, %v3946
      %v4187 = vpack.c.b16 %v3949, %v3948
      %v4188 = vpack.c.b16 %v3951, %v3950
      %v4189 = vpack.c.b16 %v3953, %v3952
      %v4190 = vpack.c.b16 %v3955, %v3954
      %v4191 = vpack.c.b16 %v3957, %v3956
      %v4192 = vpack.c.b16 %v3959, %v3958
      %v4193 = vpack.c.b16 %v3961, %v3960
      %v4194 = vpack.c.b16 %v3963, %v3962
      %v4195 = vpack.c.b16 %v3965, %v3964
      %v4196 = vpack.c.b16 %v3967, %v3966
      %v4197 = vpack.c.b16 %v3969, %v3968
      %v4198 = vpack.c.b16 %v3971, %v3970
      %v4199 = vpack.c.b16 %v3973, %v3972
      %v4200 = vpack.c.b16 %v3975, %v3974
      %v4201 = vpack.c.b16 %v3977, %v3976
      %v4202 = vpack.c.b16 %v3979, %v3978
      %v4203 = vpack.c.b16 %v3981, %v3980
      %v4204 = vpack.c.b16 %v3983, %v3982
      %v4205 = vpack.c.b16 %v3985, %v3984
      %v4206 = vpack.c.b16 %v3987, %v3986
      %v4207 = vpack.c.b16 %v3989, %v3988
      %v4208 = vpack.c.b16 %v3991, %v3990
      %v4209 = vpack.c.b16 %v3993, %v3992
      %v4210 = vpack.c.b16 %v3995, %v3994
      %v4211 = vpack.c.b16 %v3997, %v3996
      %v4212 = vpack.c.b16 %v3999, %v3998
      %v4213 = vpack.c.b16 %v4001, %v4000
      %v4214 = vpack.c.b16 %v4003, %v4002
      %v4215 = vpack.c.b16 %v4005, %v4004
      %v4216 = vpack.c.b16 %v4007, %v4006
      %v4217 = vpack.c.b16 %v4009, %v4008
      %v4218 = vpack.c.b16 %v4011, %v4010
      %v4219 = vpack.c.b16 %v4013, %v4012
      %v4220 = vpack.c.b16 %v4015, %v4014
      %v4221 = vpack.c.b16 %v4017, %v4016
      %v4222 = vpack.c.b16 %v4019, %v4018
      %v4223 = vpack.c.b16 %v4021, %v4020
      %v4224 = vpack.c.b16 %v4023, %v4022
      %v4225 = vpack.c.b16 %v4025, %v4024
      %v4226 = vpack.c.b16 %v4027, %v4026
      %v4227 = vpack.c.b16 %v4029, %v4028
      %v4228 = vpack.c.b16 %v4031, %v4030
      %v4229 = vpack.c.b16 %v4033, %v4032
      %v4230 = vpack.c.b16 %v4035, %v4034
      %v4231 = vpack.c.b16 %v4037, %v4036
      %v4232 = vpack.c.b16 %v4039, %v4038
      %v4233 = vpack.c.b16 %v4041, %v4040
      %v4234 = vpack.c.b16 %v4043, %v4042
      %v4235 = vpack.c.b16 %v4045, %v4044
      %v4236 = vpack.c.b16 %v4047, %v4046
      %v4237 = vpack.c.b16 %v4049, %v4048
      %v4238 = vpack.c.b16 %v4051, %v4050
      %v4239 = vpack.c.b16 %v4053, %v4052
      %v4240 = vpack.c.b16 %v4055, %v4054
      %v4241 = vpack.c.b16 %v4057, %v4056
      %v4242 = vpack.c.b16 %v4059, %v4058
      %v4243 = vpack.c.b16 %v4061, %v4060
      %v4244 = vpack.c.b16 %v4063, %v4062
      %v4245 = vpack.c.b16 %v4065, %v4064
      %v4246 = vpack.c.b16 %v4067, %v4066
      %v4247 = vpack.c.b16 %v4069, %v4068
      %v4248 = vpack.c.b16 %v4071, %v4070
      %v4249 = vpack.c.b16 %v4073, %v4072
      %v4250 = vpack.c.b16 %v4075, %v4074
      %v4251 = vpack.c.b16 %v4077, %v4076
      %v4252 = vpack.c.b16 %v4079, %v4078
      %v4253 = vpack.c.b16 %v4081, %v4080
      %v4254 = vpack.c.b16 %v4083, %v4082
      %v4255 = vpack.c.b16 %v4085, %v4084
      %v4256 = vpack.c.b16 %v4087, %v4086
      %v4257 = vpack.c.b16 %v4089, %v4088
      %v4258 = vpack.c.b16 %v4091, %v4090
      %v4259 = vpack.c.b16 %v4093, %v4092
      %v4260 = vpack.c.b16 %v4095, %v4094
      %v4261 = vpack.c.b16 %v4097, %v4096
      %v4262 = vpack.c.b16 %v4099, %v4098
      %v4263 = vpack.c.b16 %v4101, %v4100
      %v4264 = vpack.c.b16 %v4103, %v4102
      %v4265 = vpack.c.b16 %v4105, %v4104
      %v4266 = vpack.c.b16 %v4107, %v4106
      %v4267 = vpack.c.b16 %v4109, %v4108
      %v4268 = vpack.c.b16 %v4111, %v4110
      %v4269 = vpack.c.b16 %v4113, %v4112
      %v4270 = vpack.c.b16 %v4115, %v4114
      %v4271 = vpack.c.b16 %v4117, %v4116
      %v4272 = vpack.c.b16 %v4119, %v4118
      %v4273 = vpack.c.b16 %v4121, %v4120
      %v4274 = vpack.c.b16 %v4123, %v4122
      %v4275 = vpack.c.b16 %v4125, %v4124
      %v4276 = vpack.c.b16 %v4127, %v4126
      %v4277 = vpack.c.b16 %v4129, %v4128
      %v4278 = vpack.c.b16 %v4131, %v4130
      %v4279 = vpack.c.b16 %v4133, %v4132
      %v4280 = vpack.c.b16 %v4135, %v4134
      %v4281 = vpack.c.b16 %v4137, %v4136
      %v4282 = vpack.c.b16 %v4139, %v4138
      %v4283 = vpack.c.b16 %v4141, %v4140
      %v4284 = vpack.c.b16 %v4143, %v4142
      %v4285 = vpack.c.b16 %v4145, %v4144
      %v4286 = vpack.c.b16 %v4147, %v4146
      %v4287 = vpack.c.b16 %v4149, %v4148
      %v4288 = vpack.c.b16 %v4151, %v4150
      %v4289 = vpack.c.b16 %v4153, %v4152
      %v4290 = vpack.c.b16 %v4155, %v4154
      %v4291 = vpack.c.b16 %v4157, %v4156
      %v4292 = vpack.c.b16 %v4159, %v4158
      %v4293 = vpack.c.b16 %v4161, %v4160
      %v4294 = vpack.c.b16 %v4163, %v4162
      %v4295 = vpack.c.b16 %v4165, %v4164
      %v4296 = vpack.c.b16 %v4167, %v4166
      %v4297 = vpack.c.b16 %v4169, %v4168
      %4426 = vmatprep.subr.bf16.mxu0 0
      %4427 = vmatpush1.bf16.msra.mxu0 %v4170
      %4428 = vmatprep.subr.bf16.mxu0 0
      %4429 = vmatpush1.bf16.msra.mxu0 %v4171
      %4430 = vmatprep.subr.bf16.mxu0 0
      %4431 = vmatpush1.bf16.msra.mxu0 %v4172
      %4432 = vmatprep.subr.bf16.mxu0 0
      %4433 = vmatpush1.bf16.msra.mxu0 %v4173
      %4434 = vmatprep.subr.bf16.mxu0 0
      %4435 = vmatpush1.bf16.msra.mxu0 %v4174
      %4436 = vmatprep.subr.bf16.mxu0 0
      %4437 = vmatpush1.bf16.msra.mxu0 %v4175
      %4438 = vmatprep.subr.bf16.mxu0 0
      %4439 = vmatpush1.bf16.msra.mxu0 %v4176
      %4440 = vmatprep.subr.bf16.mxu0 0
      %4441 = vmatpush1.bf16.msra.mxu0 %v4177
      %4442 = vmatprep.subr.bf16.mxu0 0
      %4443 = vmatpush1.bf16.msra.mxu0 %v4178
      %4444 = vmatprep.subr.bf16.mxu0 0
      %4445 = vmatpush1.bf16.msra.mxu0 %v4179
      %4446 = vmatprep.subr.bf16.mxu0 0
      %4447 = vmatpush1.bf16.msra.mxu0 %v4180
      %4448 = vmatprep.subr.bf16.mxu0 0
      %4449 = vmatpush1.bf16.msra.mxu0 %v4181
      %4450 = vmatprep.subr.bf16.mxu0 0
      %4451 = vmatpush1.bf16.msra.mxu0 %v4182
      %4452 = vmatprep.subr.bf16.mxu0 0
      %4453 = vmatpush1.bf16.msra.mxu0 %v4183
      %4454 = vmatprep.subr.bf16.mxu0 0
      %4455 = vmatpush1.bf16.msra.mxu0 %v4184
      %4456 = vmatprep.subr.bf16.mxu0 0
      %4457 = vmatpush1.bf16.msra.mxu0 %v4185
      %4458 = vmatprep.mubr.bf16.mxu0 %v1377
      %4459 = vmatmul.mubr.bf16.gmra.mrb[0].mxu0 %v1376
      %v4460 = vpop.f32.mrb[0].mxu0
      %v4461 = vadd.f32 0.0, %v4460
      %v4462 = vpop.f32.mrb[0].mxu0
      %v4463 = vpop.f32.mrb[0].mxu0
      %v4464 = vadd.f32 0.0, %v4463
      %v4465 = vpop.f32.mrb[0].mxu0
      %4466 = vmatprep.mubr.bf16.mxu0 %v1393
      %4467 = vmatmul.mubr.bf16.gmra.mrb[0].mxu0 %v1392
      %v4468 = vpop.f32.mrb[0].mxu0
      %v4469 = vadd.f32 0.0, %v4468
      %v4470 = vpop.f32.mrb[0].mxu0
      %v4471 = vpop.f32.mrb[0].mxu0
      %v4472 = vadd.f32 0.0, %v4471
      %v4473 = vpop.f32.mrb[0].mxu0
      %4474 = vmatprep.mubr.bf16.mxu0 %v1409
      %4475 = vmatmul.mubr.bf16.gmra.mrb[0].mxu0 %v1408
      %v4476 = vpop.f32.mrb[0].mxu0
      %v4477 = vadd.f32 0.0, %v4476
      %v4478 = vpop.f32.mrb[0].mxu0
      %v4479 = vpop.f32.mrb[0].mxu0
      %v4480 = vadd.f32 0.0, %v4479
      %v4481 = vpop.f32.mrb[0].mxu0
      %4482 = vmatprep.mubr.bf16.mxu0 %v1425
      %4483 = vmatmul.mubr.bf16.gmra.mrb[0].mxu0 %v1424
      %v4484 = vpop.f32.mrb[0].mxu0
      %v4485 = vadd.f32 0.0, %v4484
      %v4486 = vpop.f32.mrb[0].mxu0
      %v4487 = vpop.f32.mrb[0].mxu0
      %v4488 = vadd.f32 0.0, %v4487
      %v4489 = vpop.f32.mrb[0].mxu0
      %4490 = vmatprep.mubr.bf16.mxu0 %v1441
      %4491 = vmatmul.mubr.bf16.gmra.mrb[0].mxu0 %v1440
      %v4492 = vpop.f32.mrb[0].mxu0
      %v4493 = vadd.f32 0.0, %v4492
      %v4494 = vpop.f32.mrb[0].mxu0
      %v4495 = vpop.f32.mrb[0].mxu0
      %v4496 = vadd.f32 0.0, %v4495
      %v4497 = vpop.f32.mrb[0].mxu0
      %4498 = vmatprep.mubr.bf16.mxu0 %v1457
      %4499 = vmatmul.mubr.bf16.gmra.mrb[0].mxu0 %v1456
      %v4500 = vpop.f32.mrb[0].mxu0
      %v4501 = vadd.f32 0.0, %v4500
      %v4502 = vpop.f32.mrb[0].mxu0
      %v4503 = vpop.f32.mrb[0].mxu0
      %v4504 = vadd.f32 0.0, %v4503
      %v4505 = vpop.f32.mrb[0].mxu0
      %4506 = vmatprep.mubr.bf16.mxu0 %v1473
      %4507 = vmatmul.mubr.bf16.gmra.mrb[0].mxu0 %v1472
      %v4508 = vpop.f32.mrb[0].mxu0
      %v4509 = vadd.f32 0.0, %v4508
      %v4510 = vpop.f32.mrb[0].mxu0
      %v4511 = vpop.f32.mrb[0].mxu0
      %v4512 = vadd.f32 0.0, %v4511
      %v4513 = vpop.f32.mrb[0].mxu0
      %4514 = vmatprep.mubr.bf16.mxu0 %v1489
      %4515 = vmatmul.mubr.bf16.gmra.mrb[0].mxu0 %v1488
      %v4516 = vpop.f32.mrb[0].mxu0
      %v4517 = vadd.f32 0.0, %v4516
      %v4518 = vpop.f32.mrb[0].mxu0
      %v4519 = vpop.f32.mrb[0].mxu0
      %v4520 = vadd.f32 0.0, %v4519
      %v4521 = vpop.f32.mrb[0].mxu0
      %4522 = vdwg.mxu0
      %4523 = vmatprep.subr.bf16.mxu0 0
      %4524 = vmatpush1.bf16.msra.mxu0 %v4186
      %4525 = vmatprep.subr.bf16.mxu0 0
      %4526 = vmatpush1.bf16.msra.mxu0 %v4187
      %4527 = vmatprep.subr.bf16.mxu0 0
      %4528 = vmatpush1.bf16.msra.mxu0 %v4188
      %4529 = vmatprep.subr.bf16.mxu0 0
      %4530 = vmatpush1.bf16.msra.mxu0 %v4189
      %4531 = vmatprep.subr.bf16.mxu0 0
      %4532 = vmatpush1.bf16.msra.mxu0 %v4190
      %4533 = vmatprep.subr.bf16.mxu0 0
      %4534 = vmatpush1.bf16.msra.mxu0 %v4191
      %4535 = vmatprep.subr.bf16.mxu0 0
      %4536 = vmatpush1.bf16.msra.mxu0 %v4192
      %4537 = vmatprep.subr.bf16.mxu0 0
      %4538 = vmatpush1.bf16.msra.mxu0 %v4193
      %4539 = vmatprep.subr.bf16.mxu0 0
      %4540 = vmatpush1.bf16.msra.mxu0 %v4194
      %4541 = vmatprep.subr.bf16.mxu0 0
      %4542 = vmatpush1.bf16.msra.mxu0 %v4195
      %4543 = vmatprep.subr.bf16.mxu0 0
      %4544 = vmatpush1.bf16.msra.mxu0 %v4196
      %4545 = vmatprep.subr.bf16.mxu0 0
      %4546 = vmatpush1.bf16.msra.mxu0 %v4197
      %4547 = vmatprep.subr.bf16.mxu0 0
      %4548 = vmatpush1.bf16.msra.mxu0 %v4198
      %4549 = vmatprep.subr.bf16.mxu0 0
      %4550 = vmatpush1.bf16.msra.mxu0 %v4199
      %4551 = vmatprep.subr.bf16.mxu0 0
      %4552 = vmatpush1.bf16.msra.mxu0 %v4200
      %4553 = vmatprep.subr.bf16.mxu0 0
      %4554 = vmatpush1.bf16.msra.mxu0 %v4201
      %4555 = vmatprep.mubr.bf16.mxu0 %v1379
      %4556 = vmatmul.mubr.bf16.gmra.mrb[0].mxu0 %v1378
      %v4557 = vpop.f32.mrb[0].mxu0
      %v4558 = vadd.f32 %v4461, %v4557
      %v4559 = vpop.f32.mrb[0].mxu0
      %v4560 = vpop.f32.mrb[0].mxu0
      %v4561 = vadd.f32 %v4464, %v4560
      %v4562 = vpop.f32.mrb[0].mxu0
      %4563 = vmatprep.mubr.bf16.mxu0 %v1395
      %4564 = vmatmul.mubr.bf16.gmra.mrb[0].mxu0 %v1394
      %v4565 = vpop.f32.mrb[0].mxu0
      %v4566 = vadd.f32 %v4469, %v4565
      %v4567 = vpop.f32.mrb[0].mxu0
      %v4568 = vpop.f32.mrb[0].mxu0
      %v4569 = vadd.f32 %v4472, %v4568
      %v4570 = vpop.f32.mrb[0].mxu0
      %4571 = vmatprep.mubr.bf16.mxu0 %v1411
      %4572 = vmatmul.mubr.bf16.gmra.mrb[0].mxu0 %v1410
      %v4573 = vpop.f32.mrb[0].mxu0
      %v4574 = vadd.f32 %v4477, %v4573
      %v4575 = vpop.f32.mrb[0].mxu0
      %v4576 = vpop.f32.mrb[0].mxu0
      %v4577 = vadd.f32 %v4480, %v4576
      %v4578 = vpop.f32.mrb[0].mxu0
      %4579 = vmatprep.mubr.bf16.mxu0 %v1427
      %4580 = vmatmul.mubr.bf16.gmra.mrb[0].mxu0 %v1426
      %v4581 = vpop.f32.mrb[0].mxu0
      %v4582 = vadd.f32 %v4485, %v4581
      %v4583 = vpop.f32.mrb[0].mxu0
      %v4584 = vpop.f32.mrb[0].mxu0
      %v4585 = vadd.f32 %v4488, %v4584
      %v4586 = vpop.f32.mrb[0].mxu0
      %4587 = vmatprep.mubr.bf16.mxu0 %v1443
      %4588 = vmatmul.mubr.bf16.gmra.mrb[0].mxu0 %v1442
      %v4589 = vpop.f32.mrb[0].mxu0
      %v4590 = vadd.f32 %v4493, %v4589
      %v4591 = vpop.f32.mrb[0].mxu0
      %v4592 = vpop.f32.mrb[0].mxu0
      %v4593 = vadd.f32 %v4496, %v4592
      %v4594 = vpop.f32.mrb[0].mxu0
      %4595 = vmatprep.mubr.bf16.mxu0 %v1459
      %4596 = vmatmul.mubr.bf16.gmra.mrb[0].mxu0 %v1458
      %v4597 = vpop.f32.mrb[0].mxu0
      %v4598 = vadd.f32 %v4501, %v4597
      %v4599 = vpop.f32.mrb[0].mxu0
      %v4600 = vpop.f32.mrb[0].mxu0
      %v4601 = vadd.f32 %v4504, %v4600
      %v4602 = vpop.f32.mrb[0].mxu0
      %4603 = vmatprep.mubr.bf16.mxu0 %v1475
      %4604 = vmatmul.mubr.bf16.gmra.mrb[0].mxu0 %v1474
      %v4605 = vpop.f32.mrb[0].mxu0
      %v4606 = vadd.f32 %v4509, %v4605
      %v4607 = vpop.f32.mrb[0].mxu0
      %v4608 = vpop.f32.mrb[0].mxu0
      %v4609 = vadd.f32 %v4512, %v4608
      %v4610 = vpop.f32.mrb[0].mxu0
      %4611 = vmatprep.mubr.bf16.mxu0 %v1491
      %4612 = vmatmul.mubr.bf16.gmra.mrb[0].mxu0 %v1490
      %v4613 = vpop.f32.mrb[0].mxu0
      %v4614 = vadd.f32 %v4517, %v4613
      %v4615 = vpop.f32.mrb[0].mxu0
      %v4616 = vpop.f32.mrb[0].mxu0
      %v4617 = vadd.f32 %v4520, %v4616
      %v4618 = vpop.f32.mrb[0].mxu0
      %4619 = vdwg.mxu0
      %4620 = vmatprep.subr.bf16.mxu0 0
      %4621 = vmatpush1.bf16.msra.mxu0 %v4202
      %4622 = vmatprep.subr.bf16.mxu0 0
      %4623 = vmatpush1.bf16.msra.mxu0 %v4203
      %4624 = vmatprep.subr.bf16.mxu0 0
      %4625 = vmatpush1.bf16.msra.mxu0 %v4204
      %4626 = vmatprep.subr.bf16.mxu0 0
      %4627 = vmatpush1.bf16.msra.mxu0 %v4205
      %4628 = vmatprep.subr.bf16.mxu0 0
      %4629 = vmatpush1.bf16.msra.mxu0 %v4206
      %4630 = vmatprep.subr.bf16.mxu0 0
      %4631 = vmatpush1.bf16.msra.mxu0 %v4207
      %4632 = vmatprep.subr.bf16.mxu0 0
      %4633 = vmatpush1.bf16.msra.mxu0 %v4208
      %4634 = vmatprep.subr.bf16.mxu0 0
      %4635 = vmatpush1.bf16.msra.mxu0 %v4209
      %4636 = vmatprep.subr.bf16.mxu0 0
      %4637 = vmatpush1.bf16.msra.mxu0 %v4210
      %4638 = vmatprep.subr.bf16.mxu0 0
      %4639 = vmatpush1.bf16.msra.mxu0 %v4211
      %4640 = vmatprep.subr.bf16.mxu0 0
      %4641 = vmatpush1.bf16.msra.mxu0 %v4212
      %4642 = vmatprep.subr.bf16.mxu0 0
      %4643 = vmatpush1.bf16.msra.mxu0 %v4213
      %4644 = vmatprep.subr.bf16.mxu0 0
      %4645 = vmatpush1.bf16.msra.mxu0 %v4214
      %4646 = vmatprep.subr.bf16.mxu0 0
      %4647 = vmatpush1.bf16.msra.mxu0 %v4215
      %4648 = vmatprep.subr.bf16.mxu0 0
      %4649 = vmatpush1.bf16.msra.mxu0 %v4216
      %4650 = vmatprep.subr.bf16.mxu0 0
      %4651 = vmatpush1.bf16.msra.mxu0 %v4217
      %4652 = vmatprep.mubr.bf16.mxu0 %v1381
      %4653 = vmatmul.mubr.bf16.gmra.mrb[0].mxu0 %v1380
      %v4654 = vpop.f32.mrb[0].mxu0
      %v4655 = vadd.f32 %v4558, %v4654
      %v4656 = vpop.f32.mrb[0].mxu0
      %v4657 = vpop.f32.mrb[0].mxu0
      %v4658 = vadd.f32 %v4561, %v4657
      %v4659 = vpop.f32.mrb[0].mxu0
      %4660 = vmatprep.mubr.bf16.mxu0 %v1397
      %4661 = vmatmul.mubr.bf16.gmra.mrb[0].mxu0 %v1396
      %v4662 = vpop.f32.mrb[0].mxu0
      %v4663 = vadd.f32 %v4566, %v4662
      %v4664 = vpop.f32.mrb[0].mxu0
      %v4665 = vpop.f32.mrb[0].mxu0
      %v4666 = vadd.f32 %v4569, %v4665
      %v4667 = vpop.f32.mrb[0].mxu0
      %4668 = vmatprep.mubr.bf16.mxu0 %v1413
      %4669 = vmatmul.mubr.bf16.gmra.mrb[0].mxu0 %v1412
      %v4670 = vpop.f32.mrb[0].mxu0
      %v4671 = vadd.f32 %v4574, %v4670
      %v4672 = vpop.f32.mrb[0].mxu0
      %v4673 = vpop.f32.mrb[0].mxu0
      %v4674 = vadd.f32 %v4577, %v4673
      %v4675 = vpop.f32.mrb[0].mxu0
      %4676 = vmatprep.mubr.bf16.mxu0 %v1429
      %4677 = vmatmul.mubr.bf16.gmra.mrb[0].mxu0 %v1428
      %v4678 = vpop.f32.mrb[0].mxu0
      %v4679 = vadd.f32 %v4582, %v4678
      %v4680 = vpop.f32.mrb[0].mxu0
      %v4681 = vpop.f32.mrb[0].mxu0
      %v4682 = vadd.f32 %v4585, %v4681
      %v4683 = vpop.f32.mrb[0].mxu0
      %4684 = vmatprep.mubr.bf16.mxu0 %v1445
      %4685 = vmatmul.mubr.bf16.gmra.mrb[0].mxu0 %v1444
      %v4686 = vpop.f32.mrb[0].mxu0
      %v4687 = vadd.f32 %v4590, %v4686
      %v4688 = vpop.f32.mrb[0].mxu0
      %v4689 = vpop.f32.mrb[0].mxu0
      %v4690 = vadd.f32 %v4593, %v4689
      %v4691 = vpop.f32.mrb[0].mxu0
      %4692 = vmatprep.mubr.bf16.mxu0 %v1461
      %4693 = vmatmul.mubr.bf16.gmra.mrb[0].mxu0 %v1460
      %v4694 = vpop.f32.mrb[0].mxu0
      %v4695 = vadd.f32 %v4598, %v4694
      %v4696 = vpop.f32.mrb[0].mxu0
      %v4697 = vpop.f32.mrb[0].mxu0
      %v4698 = vadd.f32 %v4601, %v4697
      %v4699 = vpop.f32.mrb[0].mxu0
      %4700 = vmatprep.mubr.bf16.mxu0 %v1477
      %4701 = vmatmul.mubr.bf16.gmra.mrb[0].mxu0 %v1476
      %v4702 = vpop.f32.mrb[0].mxu0
      %v4703 = vadd.f32 %v4606, %v4702
      %v4704 = vpop.f32.mrb[0].mxu0
      %v4705 = vpop.f32.mrb[0].mxu0
      %v4706 = vadd.f32 %v4609, %v4705
      %v4707 = vpop.f32.mrb[0].mxu0
      %4708 = vmatprep.mubr.bf16.mxu0 %v1493
      %4709 = vmatmul.mubr.bf16.gmra.mrb[0].mxu0 %v1492
      %v4710 = vpop.f32.mrb[0].mxu0
      %v4711 = vadd.f32 %v4614, %v4710
      %v4712 = vpop.f32.mrb[0].mxu0
      %v4713 = vpop.f32.mrb[0].mxu0
      %v4714 = vadd.f32 %v4617, %v4713
      %v4715 = vpop.f32.mrb[0].mxu0
      %4716 = vdwg.mxu0
      %4717 = vmatprep.subr.bf16.mxu0 0
      %4718 = vmatpush1.bf16.msra.mxu0 %v4218
      %4719 = vmatprep.subr.bf16.mxu0 0
      %4720 = vmatpush1.bf16.msra.mxu0 %v4219
      %4721 = vmatprep.subr.bf16.mxu0 0
      %4722 = vmatpush1.bf16.msra.mxu0 %v4220
      %4723 = vmatprep.subr.bf16.mxu0 0
      %4724 = vmatpush1.bf16.msra.mxu0 %v4221
      %4725 = vmatprep.subr.bf16.mxu0 0
      %4726 = vmatpush1.bf16.msra.mxu0 %v4222
      %4727 = vmatprep.subr.bf16.mxu0 0
      %4728 = vmatpush1.bf16.msra.mxu0 %v4223
      %4729 = vmatprep.subr.bf16.mxu0 0
      %4730 = vmatpush1.bf16.msra.mxu0 %v4224
      %4731 = vmatprep.subr.bf16.mxu0 0
      %4732 = vmatpush1.bf16.msra.mxu0 %v4225
      %4733 = vmatprep.subr.bf16.mxu0 0
      %4734 = vmatpush1.bf16.msra.mxu0 %v4226
      %4735 = vmatprep.subr.bf16.mxu0 0
      %4736 = vmatpush1.bf16.msra.mxu0 %v4227
      %4737 = vmatprep.subr.bf16.mxu0 0
      %4738 = vmatpush1.bf16.msra.mxu0 %v4228
      %4739 = vmatprep.subr.bf16.mxu0 0
      %4740 = vmatpush1.bf16.msra.mxu0 %v4229
      %4741 = vmatprep.subr.bf16.mxu0 0
      %4742 = vmatpush1.bf16.msra.mxu0 %v4230
      %4743 = vmatprep.subr.bf16.mxu0 0
      %4744 = vmatpush1.bf16.msra.mxu0 %v4231
      %4745 = vmatprep.subr.bf16.mxu0 0
      %4746 = vmatpush1.bf16.msra.mxu0 %v4232
      %4747 = vmatprep.subr.bf16.mxu0 0
      %4748 = vmatpush1.bf16.msra.mxu0 %v4233
      %4749 = vmatprep.mubr.bf16.mxu0 %v1383
      %4750 = vmatmul.mubr.bf16.gmra.mrb[0].mxu0 %v1382
      %v4751 = vpop.f32.mrb[0].mxu0
      %v4752 = vadd.f32 %v4655, %v4751
      %v4753 = vpop.f32.mrb[0].mxu0
      %v4754 = vpop.f32.mrb[0].mxu0
      %v4755 = vadd.f32 %v4658, %v4754
      %v4756 = vpop.f32.mrb[0].mxu0
      %4757 = vmatprep.mubr.bf16.mxu0 %v1399
      %4758 = vmatmul.mubr.bf16.gmra.mrb[0].mxu0 %v1398
      %v4759 = vpop.f32.mrb[0].mxu0
      %v4760 = vadd.f32 %v4663, %v4759
      %v4761 = vpop.f32.mrb[0].mxu0
      %v4762 = vpop.f32.mrb[0].mxu0
      %v4763 = vadd.f32 %v4666, %v4762
      %v4764 = vpop.f32.mrb[0].mxu0
      %4765 = vmatprep.mubr.bf16.mxu0 %v1415
      %4766 = vmatmul.mubr.bf16.gmra.mrb[0].mxu0 %v1414
      %v4767 = vpop.f32.mrb[0].mxu0
      %v4768 = vadd.f32 %v4671, %v4767
      %v4769 = vpop.f32.mrb[0].mxu0
      %v4770 = vpop.f32.mrb[0].mxu0
      %v4771 = vadd.f32 %v4674, %v4770
      %v4772 = vpop.f32.mrb[0].mxu0
      %4773 = vmatprep.mubr.bf16.mxu0 %v1431
      %4774 = vmatmul.mubr.bf16.gmra.mrb[0].mxu0 %v1430
      %v4775 = vpop.f32.mrb[0].mxu0
      %v4776 = vadd.f32 %v4679, %v4775
      %v4777 = vpop.f32.mrb[0].mxu0
      %v4778 = vpop.f32.mrb[0].mxu0
      %v4779 = vadd.f32 %v4682, %v4778
      %v4780 = vpop.f32.mrb[0].mxu0
      %4781 = vmatprep.mubr.bf16.mxu0 %v1447
      %4782 = vmatmul.mubr.bf16.gmra.mrb[0].mxu0 %v1446
      %v4783 = vpop.f32.mrb[0].mxu0
      %v4784 = vadd.f32 %v4687, %v4783
      %v4785 = vpop.f32.mrb[0].mxu0
      %v4786 = vpop.f32.mrb[0].mxu0
      %v4787 = vadd.f32 %v4690, %v4786
      %v4788 = vpop.f32.mrb[0].mxu0
      %4789 = vmatprep.mubr.bf16.mxu0 %v1463
      %4790 = vmatmul.mubr.bf16.gmra.mrb[0].mxu0 %v1462
      %v4791 = vpop.f32.mrb[0].mxu0
      %v4792 = vadd.f32 %v4695, %v4791
      %v4793 = vpop.f32.mrb[0].mxu0
      %v4794 = vpop.f32.mrb[0].mxu0
      %v4795 = vadd.f32 %v4698, %v4794
      %v4796 = vpop.f32.mrb[0].mxu0
      %4797 = vmatprep.mubr.bf16.mxu0 %v1479
      %4798 = vmatmul.mubr.bf16.gmra.mrb[0].mxu0 %v1478
      %v4799 = vpop.f32.mrb[0].mxu0
      %v4800 = vadd.f32 %v4703, %v4799
      %v4801 = vpop.f32.mrb[0].mxu0
      %v4802 = vpop.f32.mrb[0].mxu0
      %v4803 = vadd.f32 %v4706, %v4802
      %v4804 = vpop.f32.mrb[0].mxu0
      %4805 = vmatprep.mubr.bf16.mxu0 %v1495
      %4806 = vmatmul.mubr.bf16.gmra.mrb[0].mxu0 %v1494
      %v4807 = vpop.f32.mrb[0].mxu0
      %v4808 = vadd.f32 %v4711, %v4807
      %v4809 = vpop.f32.mrb[0].mxu0
      %v4810 = vpop.f32.mrb[0].mxu0
      %v4811 = vadd.f32 %v4714, %v4810
      %v4812 = vpop.f32.mrb[0].mxu0
      %4813 = vdwg.mxu0
      %4814 = vmatprep.subr.bf16.mxu0 0
      %4815 = vmatpush1.bf16.msra.mxu0 %v4234
      %4816 = vmatprep.subr.bf16.mxu0 0
      %4817 = vmatpush1.bf16.msra.mxu0 %v4235
      %4818 = vmatprep.subr.bf16.mxu0 0
      %4819 = vmatpush1.bf16.msra.mxu0 %v4236
      %4820 = vmatprep.subr.bf16.mxu0 0
      %4821 = vmatpush1.bf16.msra.mxu0 %v4237
      %4822 = vmatprep.subr.bf16.mxu0 0
      %4823 = vmatpush1.bf16.msra.mxu0 %v4238
      %4824 = vmatprep.subr.bf16.mxu0 0
      %4825 = vmatpush1.bf16.msra.mxu0 %v4239
      %4826 = vmatprep.subr.bf16.mxu0 0
      %4827 = vmatpush1.bf16.msra.mxu0 %v4240
      %4828 = vmatprep.subr.bf16.mxu0 0
      %4829 = vmatpush1.bf16.msra.mxu0 %v4241
      %4830 = vmatprep.subr.bf16.mxu0 0
      %4831 = vmatpush1.bf16.msra.mxu0 %v4242
      %4832 = vmatprep.subr.bf16.mxu0 0
      %4833 = vmatpush1.bf16.msra.mxu0 %v4243
      %4834 = vmatprep.subr.bf16.mxu0 0
      %4835 = vmatpush1.bf16.msra.mxu0 %v4244
      %4836 = vmatprep.subr.bf16.mxu0 0
      %4837 = vmatpush1.bf16.msra.mxu0 %v4245
      %4838 = vmatprep.subr.bf16.mxu0 0
      %4839 = vmatpush1.bf16.msra.mxu0 %v4246
      %4840 = vmatprep.subr.bf16.mxu0 0
      %4841 = vmatpush1.bf16.msra.mxu0 %v4247
      %4842 = vmatprep.subr.bf16.mxu0 0
      %4843 = vmatpush1.bf16.msra.mxu0 %v4248
      %4844 = vmatprep.subr.bf16.mxu0 0
      %4845 = vmatpush1.bf16.msra.mxu0 %v4249
      %4846 = vmatprep.mubr.bf16.mxu0 %v1385
      %4847 = vmatmul.mubr.bf16.gmra.mrb[0].mxu0 %v1384
      %v4848 = vpop.f32.mrb[0].mxu0
      %v4849 = vadd.f32 %v4752, %v4848
      %v4850 = vpop.f32.mrb[0].mxu0
      %v4851 = vpop.f32.mrb[0].mxu0
      %v4852 = vadd.f32 %v4755, %v4851
      %v4853 = vpop.f32.mrb[0].mxu0
      %4854 = vmatprep.mubr.bf16.mxu0 %v1401
      %4855 = vmatmul.mubr.bf16.gmra.mrb[0].mxu0 %v1400
      %v4856 = vpop.f32.mrb[0].mxu0
      %v4857 = vadd.f32 %v4760, %v4856
      %v4858 = vpop.f32.mrb[0].mxu0
      %v4859 = vpop.f32.mrb[0].mxu0
      %v4860 = vadd.f32 %v4763, %v4859
      %v4861 = vpop.f32.mrb[0].mxu0
      %4862 = vmatprep.mubr.bf16.mxu0 %v1417
      %4863 = vmatmul.mubr.bf16.gmra.mrb[0].mxu0 %v1416
      %v4864 = vpop.f32.mrb[0].mxu0
      %v4865 = vadd.f32 %v4768, %v4864
      %v4866 = vpop.f32.mrb[0].mxu0
      %v4867 = vpop.f32.mrb[0].mxu0
      %v4868 = vadd.f32 %v4771, %v4867
      %v4869 = vpop.f32.mrb[0].mxu0
      %4870 = vmatprep.mubr.bf16.mxu0 %v1433
      %4871 = vmatmul.mubr.bf16.gmra.mrb[0].mxu0 %v1432
      %v4872 = vpop.f32.mrb[0].mxu0
      %v4873 = vadd.f32 %v4776, %v4872
      %v4874 = vpop.f32.mrb[0].mxu0
      %v4875 = vpop.f32.mrb[0].mxu0
      %v4876 = vadd.f32 %v4779, %v4875
      %v4877 = vpop.f32.mrb[0].mxu0
      %4878 = vmatprep.mubr.bf16.mxu0 %v1449
      %4879 = vmatmul.mubr.bf16.gmra.mrb[0].mxu0 %v1448
      %v4880 = vpop.f32.mrb[0].mxu0
      %v4881 = vadd.f32 %v4784, %v4880
      %v4882 = vpop.f32.mrb[0].mxu0
      %v4883 = vpop.f32.mrb[0].mxu0
      %v4884 = vadd.f32 %v4787, %v4883
      %v4885 = vpop.f32.mrb[0].mxu0
      %4886 = vmatprep.mubr.bf16.mxu0 %v1465
      %4887 = vmatmul.mubr.bf16.gmra.mrb[0].mxu0 %v1464
      %v4888 = vpop.f32.mrb[0].mxu0
      %v4889 = vadd.f32 %v4792, %v4888
      %v4890 = vpop.f32.mrb[0].mxu0
      %v4891 = vpop.f32.mrb[0].mxu0
      %v4892 = vadd.f32 %v4795, %v4891
      %v4893 = vpop.f32.mrb[0].mxu0
      %4894 = vmatprep.mubr.bf16.mxu0 %v1481
      %4895 = vmatmul.mubr.bf16.gmra.mrb[0].mxu0 %v1480
      %v4896 = vpop.f32.mrb[0].mxu0
      %v4897 = vadd.f32 %v4800, %v4896
      %v4898 = vpop.f32.mrb[0].mxu0
      %v4899 = vpop.f32.mrb[0].mxu0
      %v4900 = vadd.f32 %v4803, %v4899
      %v4901 = vpop.f32.mrb[0].mxu0
      %4902 = vmatprep.mubr.bf16.mxu0 %v1497
      %4903 = vmatmul.mubr.bf16.gmra.mrb[0].mxu0 %v1496
      %v4904 = vpop.f32.mrb[0].mxu0
      %v4905 = vadd.f32 %v4808, %v4904
      %v4906 = vpop.f32.mrb[0].mxu0
      %v4907 = vpop.f32.mrb[0].mxu0
      %v4908 = vadd.f32 %v4811, %v4907
      %v4909 = vpop.f32.mrb[0].mxu0
      %4910 = vdwg.mxu0
      %4911 = vmatprep.subr.bf16.mxu0 0
      %4912 = vmatpush1.bf16.msra.mxu0 %v4250
      %4913 = vmatprep.subr.bf16.mxu0 0
      %4914 = vmatpush1.bf16.msra.mxu0 %v4251
      %4915 = vmatprep.subr.bf16.mxu0 0
      %4916 = vmatpush1.bf16.msra.mxu0 %v4252
      %4917 = vmatprep.subr.bf16.mxu0 0
      %4918 = vmatpush1.bf16.msra.mxu0 %v4253
      %4919 = vmatprep.subr.bf16.mxu0 0
      %4920 = vmatpush1.bf16.msra.mxu0 %v4254
      %4921 = vmatprep.subr.bf16.mxu0 0
      %4922 = vmatpush1.bf16.msra.mxu0 %v4255
      %4923 = vmatprep.subr.bf16.mxu0 0
      %4924 = vmatpush1.bf16.msra.mxu0 %v4256
      %4925 = vmatprep.subr.bf16.mxu0 0
      %4926 = vmatpush1.bf16.msra.mxu0 %v4257
      %4927 = vmatprep.subr.bf16.mxu0 0
      %4928 = vmatpush1.bf16.msra.mxu0 %v4258
      %4929 = vmatprep.subr.bf16.mxu0 0
      %4930 = vmatpush1.bf16.msra.mxu0 %v4259
      %4931 = vmatprep.subr.bf16.mxu0 0
      %4932 = vmatpush1.bf16.msra.mxu0 %v4260
      %4933 = vmatprep.subr.bf16.mxu0 0
      %4934 = vmatpush1.bf16.msra.mxu0 %v4261
      %4935 = vmatprep.subr.bf16.mxu0 0
      %4936 = vmatpush1.bf16.msra.mxu0 %v4262
      %4937 = vmatprep.subr.bf16.mxu0 0
      %4938 = vmatpush1.bf16.msra.mxu0 %v4263
      %4939 = vmatprep.subr.bf16.mxu0 0
      %4940 = vmatpush1.bf16.msra.mxu0 %v4264
      %4941 = vmatprep.subr.bf16.mxu0 0
      %4942 = vmatpush1.bf16.msra.mxu0 %v4265
      %4943 = vmatprep.mubr.bf16.mxu0 %v1387
      %4944 = vmatmul.mubr.bf16.gmra.mrb[0].mxu0 %v1386
      %v4945 = vpop.f32.mrb[0].mxu0
      %v4946 = vadd.f32 %v4849, %v4945
      %v4947 = vpop.f32.mrb[0].mxu0
      %v4948 = vpop.f32.mrb[0].mxu0
      %v4949 = vadd.f32 %v4852, %v4948
      %v4950 = vpop.f32.mrb[0].mxu0
      %4951 = vmatprep.mubr.bf16.mxu0 %v1403
      %4952 = vmatmul.mubr.bf16.gmra.mrb[0].mxu0 %v1402
      %v4953 = vpop.f32.mrb[0].mxu0
      %v4954 = vadd.f32 %v4857, %v4953
      %v4955 = vpop.f32.mrb[0].mxu0
      %v4956 = vpop.f32.mrb[0].mxu0
      %v4957 = vadd.f32 %v4860, %v4956
      %v4958 = vpop.f32.mrb[0].mxu0
      %4959 = vmatprep.mubr.bf16.mxu0 %v1419
      %4960 = vmatmul.mubr.bf16.gmra.mrb[0].mxu0 %v1418
      %v4961 = vpop.f32.mrb[0].mxu0
      %v4962 = vadd.f32 %v4865, %v4961
      %v4963 = vpop.f32.mrb[0].mxu0
      %v4964 = vpop.f32.mrb[0].mxu0
      %v4965 = vadd.f32 %v4868, %v4964
      %v4966 = vpop.f32.mrb[0].mxu0
      %4967 = vmatprep.mubr.bf16.mxu0 %v1435
      %4968 = vmatmul.mubr.bf16.gmra.mrb[0].mxu0 %v1434
      %v4969 = vpop.f32.mrb[0].mxu0
      %v4970 = vadd.f32 %v4873, %v4969
      %v4971 = vpop.f32.mrb[0].mxu0
      %v4972 = vpop.f32.mrb[0].mxu0
      %v4973 = vadd.f32 %v4876, %v4972
      %v4974 = vpop.f32.mrb[0].mxu0
      %4975 = vmatprep.mubr.bf16.mxu0 %v1451
      %4976 = vmatmul.mubr.bf16.gmra.mrb[0].mxu0 %v1450
      %v4977 = vpop.f32.mrb[0].mxu0
      %v4978 = vadd.f32 %v4881, %v4977
      %v4979 = vpop.f32.mrb[0].mxu0
      %v4980 = vpop.f32.mrb[0].mxu0
      %v4981 = vadd.f32 %v4884, %v4980
      %v4982 = vpop.f32.mrb[0].mxu0
      %4983 = vmatprep.mubr.bf16.mxu0 %v1467
      %4984 = vmatmul.mubr.bf16.gmra.mrb[0].mxu0 %v1466
      %v4985 = vpop.f32.mrb[0].mxu0
      %v4986 = vadd.f32 %v4889, %v4985
      %v4987 = vpop.f32.mrb[0].mxu0
      %v4988 = vpop.f32.mrb[0].mxu0
      %v4989 = vadd.f32 %v4892, %v4988
      %v4990 = vpop.f32.mrb[0].mxu0
      %4991 = vmatprep.mubr.bf16.mxu0 %v1483
      %4992 = vmatmul.mubr.bf16.gmra.mrb[0].mxu0 %v1482
      %v4993 = vpop.f32.mrb[0].mxu0
      %v4994 = vadd.f32 %v4897, %v4993
      %v4995 = vpop.f32.mrb[0].mxu0
      %v4996 = vpop.f32.mrb[0].mxu0
      %v4997 = vadd.f32 %v4900, %v4996
      %v4998 = vpop.f32.mrb[0].mxu0
      %4999 = vmatprep.mubr.bf16.mxu0 %v1499
      %5000 = vmatmul.mubr.bf16.gmra.mrb[0].mxu0 %v1498
      %v5001 = vpop.f32.mrb[0].mxu0
      %v5002 = vadd.f32 %v4905, %v5001
      %v5003 = vpop.f32.mrb[0].mxu0
      %v5004 = vpop.f32.mrb[0].mxu0
      %v5005 = vadd.f32 %v4908, %v5004
      %v5006 = vpop.f32.mrb[0].mxu0
      %5007 = vdwg.mxu0
      %5008 = vmatprep.subr.bf16.mxu0 0
      %5009 = vmatpush1.bf16.msra.mxu0 %v4266
      %5010 = vmatprep.subr.bf16.mxu0 0
      %5011 = vmatpush1.bf16.msra.mxu0 %v4267
      %5012 = vmatprep.subr.bf16.mxu0 0
      %5013 = vmatpush1.bf16.msra.mxu0 %v4268
      %5014 = vmatprep.subr.bf16.mxu0 0
      %5015 = vmatpush1.bf16.msra.mxu0 %v4269
      %5016 = vmatprep.subr.bf16.mxu0 0
      %5017 = vmatpush1.bf16.msra.mxu0 %v4270
      %5018 = vmatprep.subr.bf16.mxu0 0
      %5019 = vmatpush1.bf16.msra.mxu0 %v4271
      %5020 = vmatprep.subr.bf16.mxu0 0
      %5021 = vmatpush1.bf16.msra.mxu0 %v4272
      %5022 = vmatprep.subr.bf16.mxu0 0
      %5023 = vmatpush1.bf16.msra.mxu0 %v4273
      %5024 = vmatprep.subr.bf16.mxu0 0
      %5025 = vmatpush1.bf16.msra.mxu0 %v4274
      %5026 = vmatprep.subr.bf16.mxu0 0
      %5027 = vmatpush1.bf16.msra.mxu0 %v4275
      %5028 = vmatprep.subr.bf16.mxu0 0
      %5029 = vmatpush1.bf16.msra.mxu0 %v4276
      %5030 = vmatprep.subr.bf16.mxu0 0
      %5031 = vmatpush1.bf16.msra.mxu0 %v4277
      %5032 = vmatprep.subr.bf16.mxu0 0
      %5033 = vmatpush1.bf16.msra.mxu0 %v4278
      %5034 = vmatprep.subr.bf16.mxu0 0
      %5035 = vmatpush1.bf16.msra.mxu0 %v4279
      %5036 = vmatprep.subr.bf16.mxu0 0
      %5037 = vmatpush1.bf16.msra.mxu0 %v4280
      %5038 = vmatprep.subr.bf16.mxu0 0
      %5039 = vmatpush1.bf16.msra.mxu0 %v4281
      %5040 = vmatprep.mubr.bf16.mxu0 %v1389
      %5041 = vmatmul.mubr.bf16.gmra.mrb[0].mxu0 %v1388
      %v5042 = vpop.f32.mrb[0].mxu0
      %v5043 = vadd.f32 %v4946, %v5042
      %v5044 = vpop.f32.mrb[0].mxu0
      %v5045 = vpop.f32.mrb[0].mxu0
      %v5046 = vadd.f32 %v4949, %v5045
      %v5047 = vpop.f32.mrb[0].mxu0
      %5048 = vmatprep.mubr.bf16.mxu0 %v1405
      %5049 = vmatmul.mubr.bf16.gmra.mrb[0].mxu0 %v1404
      %v5050 = vpop.f32.mrb[0].mxu0
      %v5051 = vadd.f32 %v4954, %v5050
      %v5052 = vpop.f32.mrb[0].mxu0
      %v5053 = vpop.f32.mrb[0].mxu0
      %v5054 = vadd.f32 %v4957, %v5053
      %v5055 = vpop.f32.mrb[0].mxu0
      %5056 = vmatprep.mubr.bf16.mxu0 %v1421
      %5057 = vmatmul.mubr.bf16.gmra.mrb[0].mxu0 %v1420
      %v5058 = vpop.f32.mrb[0].mxu0
      %v5059 = vadd.f32 %v4962, %v5058
      %v5060 = vpop.f32.mrb[0].mxu0
      %v5061 = vpop.f32.mrb[0].mxu0
      %v5062 = vadd.f32 %v4965, %v5061
      %v5063 = vpop.f32.mrb[0].mxu0
      %5064 = vmatprep.mubr.bf16.mxu0 %v1437
      %5065 = vmatmul.mubr.bf16.gmra.mrb[0].mxu0 %v1436
      %v5066 = vpop.f32.mrb[0].mxu0
      %v5067 = vadd.f32 %v4970, %v5066
      %v5068 = vpop.f32.mrb[0].mxu0
      %v5069 = vpop.f32.mrb[0].mxu0
      %v5070 = vadd.f32 %v4973, %v5069
      %v5071 = vpop.f32.mrb[0].mxu0
      %5072 = vmatprep.mubr.bf16.mxu0 %v1453
      %5073 = vmatmul.mubr.bf16.gmra.mrb[0].mxu0 %v1452
      %v5074 = vpop.f32.mrb[0].mxu0
      %v5075 = vadd.f32 %v4978, %v5074
      %v5076 = vpop.f32.mrb[0].mxu0
      %v5077 = vpop.f32.mrb[0].mxu0
      %v5078 = vadd.f32 %v4981, %v5077
      %v5079 = vpop.f32.mrb[0].mxu0
      %5080 = vmatprep.mubr.bf16.mxu0 %v1469
      %5081 = vmatmul.mubr.bf16.gmra.mrb[0].mxu0 %v1468
      %v5082 = vpop.f32.mrb[0].mxu0
      %v5083 = vadd.f32 %v4986, %v5082
      %v5084 = vpop.f32.mrb[0].mxu0
      %v5085 = vpop.f32.mrb[0].mxu0
      %v5086 = vadd.f32 %v4989, %v5085
      %v5087 = vpop.f32.mrb[0].mxu0
      %5088 = vmatprep.mubr.bf16.mxu0 %v1485
      %5089 = vmatmul.mubr.bf16.gmra.mrb[0].mxu0 %v1484
      %v5090 = vpop.f32.mrb[0].mxu0
      %v5091 = vadd.f32 %v4994, %v5090
      %v5092 = vpop.f32.mrb[0].mxu0
      %v5093 = vpop.f32.mrb[0].mxu0
      %v5094 = vadd.f32 %v4997, %v5093
      %v5095 = vpop.f32.mrb[0].mxu0
      %5096 = vmatprep.mubr.bf16.mxu0 %v1501
      %5097 = vmatmul.mubr.bf16.gmra.mrb[0].mxu0 %v1500
      %v5098 = vpop.f32.mrb[0].mxu0
      %v5099 = vadd.f32 %v5002, %v5098
      %v5100 = vpop.f32.mrb[0].mxu0
      %v5101 = vpop.f32.mrb[0].mxu0
      %v5102 = vadd.f32 %v5005, %v5101
      %v5103 = vpop.f32.mrb[0].mxu0
      %5104 = vdwg.mxu0
      %5105 = vmatprep.subr.bf16.mxu0 0
      %5106 = vmatpush1.bf16.msra.mxu0 %v4282
      %5107 = vmatprep.subr.bf16.mxu0 0
      %5108 = vmatpush1.bf16.msra.mxu0 %v4283
      %5109 = vmatprep.subr.bf16.mxu0 0
      %5110 = vmatpush1.bf16.msra.mxu0 %v4284
      %5111 = vmatprep.subr.bf16.mxu0 0
      %5112 = vmatpush1.bf16.msra.mxu0 %v4285
      %5113 = vmatprep.subr.bf16.mxu0 0
      %5114 = vmatpush1.bf16.msra.mxu0 %v4286
      %5115 = vmatprep.subr.bf16.mxu0 0
      %5116 = vmatpush1.bf16.msra.mxu0 %v4287
      %5117 = vmatprep.subr.bf16.mxu0 0
      %5118 = vmatpush1.bf16.msra.mxu0 %v4288
      %5119 = vmatprep.subr.bf16.mxu0 0
      %5120 = vmatpush1.bf16.msra.mxu0 %v4289
      %5121 = vmatprep.subr.bf16.mxu0 0
      %5122 = vmatpush1.bf16.msra.mxu0 %v4290
      %5123 = vmatprep.subr.bf16.mxu0 0
      %5124 = vmatpush1.bf16.msra.mxu0 %v4291
      %5125 = vmatprep.subr.bf16.mxu0 0
      %5126 = vmatpush1.bf16.msra.mxu0 %v4292
      %5127 = vmatprep.subr.bf16.mxu0 0
      %5128 = vmatpush1.bf16.msra.mxu0 %v4293
      %5129 = vmatprep.subr.bf16.mxu0 0
      %5130 = vmatpush1.bf16.msra.mxu0 %v4294
      %5131 = vmatprep.subr.bf16.mxu0 0
      %5132 = vmatpush1.bf16.msra.mxu0 %v4295
      %5133 = vmatprep.subr.bf16.mxu0 0
      %5134 = vmatpush1.bf16.msra.mxu0 %v4296
      %5135 = vmatprep.subr.bf16.mxu0 0
      %5136 = vmatpush1.bf16.msra.mxu0 %v4297
      %5137 = vmatprep.mubr.bf16.mxu0 %v1391
      %5138 = vmatmul.mubr.bf16.gmra.mrb[0].mxu0 %v1390
      %v5139 = vpop.f32.mrb[0].mxu0
      %v5140 = vadd.f32 %v5043, %v5139
      %v5141 = vpop.f32.mrb[0].mxu0
      %v5142 = vpop.f32.mrb[0].mxu0
      %v5143 = vadd.f32 %v5046, %v5142
      %v5144 = vpop.f32.mrb[0].mxu0
      %5145 = vmatprep.mubr.bf16.mxu0 %v1407
      %5146 = vmatmul.mubr.bf16.gmra.mrb[0].mxu0 %v1406
      %v5147 = vpop.f32.mrb[0].mxu0
      %v5148 = vadd.f32 %v5051, %v5147
      %v5149 = vpop.f32.mrb[0].mxu0
      %v5150 = vpop.f32.mrb[0].mxu0
      %v5151 = vadd.f32 %v5054, %v5150
      %v5152 = vpop.f32.mrb[0].mxu0
      %5153 = vmatprep.mubr.bf16.mxu0 %v1423
      %5154 = vmatmul.mubr.bf16.gmra.mrb[0].mxu0 %v1422
      %v5155 = vpop.f32.mrb[0].mxu0
      %v5156 = vadd.f32 %v5059, %v5155
      %v5157 = vpop.f32.mrb[0].mxu0
      %v5158 = vpop.f32.mrb[0].mxu0
      %v5159 = vadd.f32 %v5062, %v5158
      %v5160 = vpop.f32.mrb[0].mxu0
      %5161 = vmatprep.mubr.bf16.mxu0 %v1439
      %5162 = vmatmul.mubr.bf16.gmra.mrb[0].mxu0 %v1438
      %v5163 = vpop.f32.mrb[0].mxu0
      %v5164 = vadd.f32 %v5067, %v5163
      %v5165 = vpop.f32.mrb[0].mxu0
      %v5166 = vpop.f32.mrb[0].mxu0
      %v5167 = vadd.f32 %v5070, %v5166
      %v5168 = vpop.f32.mrb[0].mxu0
      %5169 = vmatprep.mubr.bf16.mxu0 %v1455
      %5170 = vmatmul.mubr.bf16.gmra.mrb[0].mxu0 %v1454
      %v5171 = vpop.f32.mrb[0].mxu0
      %v5172 = vadd.f32 %v5075, %v5171
      %v5173 = vpop.f32.mrb[0].mxu0
      %v5174 = vpop.f32.mrb[0].mxu0
      %v5175 = vadd.f32 %v5078, %v5174
      %v5176 = vpop.f32.mrb[0].mxu0
      %5177 = vmatprep.mubr.bf16.mxu0 %v1471
      %5178 = vmatmul.mubr.bf16.gmra.mrb[0].mxu0 %v1470
      %v5179 = vpop.f32.mrb[0].mxu0
      %v5180 = vadd.f32 %v5083, %v5179
      %v5181 = vpop.f32.mrb[0].mxu0
      %v5182 = vpop.f32.mrb[0].mxu0
      %v5183 = vadd.f32 %v5086, %v5182
      %v5184 = vpop.f32.mrb[0].mxu0
      %5185 = vmatprep.mubr.bf16.mxu0 %v1487
      %5186 = vmatmul.mubr.bf16.gmra.mrb[0].mxu0 %v1486
      %v5187 = vpop.f32.mrb[0].mxu0
      %v5188 = vadd.f32 %v5091, %v5187
      %v5189 = vpop.f32.mrb[0].mxu0
      %v5190 = vpop.f32.mrb[0].mxu0
      %v5191 = vadd.f32 %v5094, %v5190
      %v5192 = vpop.f32.mrb[0].mxu0
      %5193 = vmatprep.mubr.bf16.mxu0 %v1503
      %5194 = vmatmul.mubr.bf16.gmra.mrb[0].mxu0 %v1502
      %v5195 = vpop.f32.mrb[0].mxu0
      %v5196 = vadd.f32 %v5099, %v5195
      %v5197 = vpop.f32.mrb[0].mxu0
      %v5198 = vpop.f32.mrb[0].mxu0
      %v5199 = vadd.f32 %v5102, %v5198
      %v5200 = vpop.f32.mrb[0].mxu0
      %5201 = vdwg.mxu0
      %v5202 = vld [vmem:[#allocation2] sm:$0xff]
      %v5203 = vld [vmem:[#allocation2 + $0x8] sm:$0xff]
      %v5204 = vld [vmem:[#allocation2 + $0x10] sm:$0xff]
      %v5205 = vld [vmem:[#allocation2 + $0x18] sm:$0xff]
      %v5206 = vld [vmem:[#allocation2 + $0x20] sm:$0xff]
      %v5207 = vld [vmem:[#allocation2 + $0x28] sm:$0xff]
      %v5208 = vld [vmem:[#allocation2 + $0x30] sm:$0xff]
      %v5209 = vld [vmem:[#allocation2 + $0x38] sm:$0xff]
      %v5210 = vld [vmem:[#allocation2 + $0x40] sm:$0xff]
      %v5211 = vld [vmem:[#allocation2 + $0x48] sm:$0xff]
      %v5212 = vld [vmem:[#allocation2 + $0x50] sm:$0xff]
      %v5213 = vld [vmem:[#allocation2 + $0x58] sm:$0xff]
      %v5214 = vld [vmem:[#allocation2 + $0x60] sm:$0xff]
      %v5215 = vld [vmem:[#allocation2 + $0x68] sm:$0xff]
      %v5216 = vld [vmem:[#allocation2 + $0x70] sm:$0xff]
      %v5217 = vld [vmem:[#allocation2 + $0x78] sm:$0xff]
      %s5218 = scalar_lea.vmem %s580, 128
      %v5219 = vld [vmem:[%s5218] sm:$0xff]
      %v5220 = vld [vmem:[%s5218 + $0x8] sm:$0xff]
      %v5221 = vld [vmem:[%s5218 + $0x10] sm:$0xff]
      %v5222 = vld [vmem:[%s5218 + $0x18] sm:$0xff]
      %v5223 = vld [vmem:[%s5218 + $0x20] sm:$0xff]
      %v5224 = vld [vmem:[%s5218 + $0x28] sm:$0xff]
      %v5225 = vld [vmem:[%s5218 + $0x30] sm:$0xff]
      %v5226 = vld [vmem:[%s5218 + $0x38] sm:$0xff]
      %v5227 = vld [vmem:[%s5218 + $0x40] sm:$0xff]
      %v5228 = vld [vmem:[%s5218 + $0x48] sm:$0xff]
      %v5229 = vld [vmem:[%s5218 + $0x50] sm:$0xff]
      %v5230 = vld [vmem:[%s5218 + $0x58] sm:$0xff]
      %v5231 = vld [vmem:[%s5218 + $0x60] sm:$0xff]
      %v5232 = vld [vmem:[%s5218 + $0x68] sm:$0xff]
      %v5233 = vld [vmem:[%s5218 + $0x70] sm:$0xff]
      %v5234 = vld [vmem:[%s5218 + $0x78] sm:$0xff]
      %5236 = vset.pattern.permute.xlu0 0
      %5237 = vperm.xlu0 %5236, %v5219
      %v5238 = vpop.permute.xlu0 %5237
      %5241 = vset.pattern.permute.xlu0 0
      %5242 = vperm.xlu0 %5241, %v5220
      %v5243 = vpop.permute.xlu0 %5242
      %5246 = vset.pattern.permute.xlu0 0
      %5247 = vperm.xlu0 %5246, %v5221
      %v5248 = vpop.permute.xlu0 %5247
      %5251 = vset.pattern.permute.xlu0 0
      %5252 = vperm.xlu0 %5251, %v5222
      %v5253 = vpop.permute.xlu0 %5252
      %5256 = vset.pattern.permute.xlu0 0
      %5257 = vperm.xlu0 %5256, %v5223
      %v5258 = vpop.permute.xlu0 %5257
      %5261 = vset.pattern.permute.xlu0 0
      %5262 = vperm.xlu0 %5261, %v5224
      %v5263 = vpop.permute.xlu0 %5262
      %5266 = vset.pattern.permute.xlu0 0
      %5267 = vperm.xlu0 %5266, %v5225
      %v5268 = vpop.permute.xlu0 %5267
      %5271 = vset.pattern.permute.xlu0 0
      %5272 = vperm.xlu0 %5271, %v5226
      %v5273 = vpop.permute.xlu0 %5272
      %5276 = vset.pattern.permute.xlu0 0
      %5277 = vperm.xlu0 %5276, %v5227
      %v5278 = vpop.permute.xlu0 %5277
      %5281 = vset.pattern.permute.xlu0 0
      %5282 = vperm.xlu0 %5281, %v5228
      %v5283 = vpop.permute.xlu0 %5282
      %5286 = vset.pattern.permute.xlu0 0
      %5287 = vperm.xlu0 %5286, %v5229
      %v5288 = vpop.permute.xlu0 %5287
      %5291 = vset.pattern.permute.xlu0 0
      %5292 = vperm.xlu0 %5291, %v5230
      %v5293 = vpop.permute.xlu0 %5292
      %5296 = vset.pattern.permute.xlu0 0
      %5297 = vperm.xlu0 %5296, %v5231
      %v5298 = vpop.permute.xlu0 %5297
      %5301 = vset.pattern.permute.xlu0 0
      %5302 = vperm.xlu0 %5301, %v5232
      %v5303 = vpop.permute.xlu0 %5302
      %5306 = vset.pattern.permute.xlu0 0
      %5307 = vperm.xlu0 %5306, %v5233
      %v5308 = vpop.permute.xlu0 %5307
      %5311 = vset.pattern.permute.xlu0 0
      %5312 = vperm.xlu0 %5311, %v5234
      %v5313 = vpop.permute.xlu0 %5312
      %v5315 = vmul.f32 %v5140, %v5238
      %v5316 = vmul.f32 %v5143, %v5243
      %v5317 = vmul.f32 %v5148, %v5248
      %v5318 = vmul.f32 %v5151, %v5253
      %v5319 = vmul.f32 %v5156, %v5258
      %v5320 = vmul.f32 %v5159, %v5263
      %v5321 = vmul.f32 %v5164, %v5268
      %v5322 = vmul.f32 %v5167, %v5273
      %v5323 = vmul.f32 %v5172, %v5278
      %v5324 = vmul.f32 %v5175, %v5283
      %v5325 = vmul.f32 %v5180, %v5288
      %v5326 = vmul.f32 %v5183, %v5293
      %v5327 = vmul.f32 %v5188, %v5298
      %v5328 = vmul.f32 %v5191, %v5303
      %v5329 = vmul.f32 %v5196, %v5308
      %v5330 = vmul.f32 %v5199, %v5313
      %v5331 = vadd.f32 %v5202, %v5315
      %v5332 = vadd.f32 %v5203, %v5316
      %v5333 = vadd.f32 %v5204, %v5317
      %v5334 = vadd.f32 %v5205, %v5318
      %v5335 = vadd.f32 %v5206, %v5319
      %v5336 = vadd.f32 %v5207, %v5320
      %v5337 = vadd.f32 %v5208, %v5321
      %v5338 = vadd.f32 %v5209, %v5322
      %v5339 = vadd.f32 %v5210, %v5323
      %v5340 = vadd.f32 %v5211, %v5324
      %v5341 = vadd.f32 %v5212, %v5325
      %v5342 = vadd.f32 %v5213, %v5326
      %v5343 = vadd.f32 %v5214, %v5327
      %v5344 = vadd.f32 %v5215, %v5328
      %v5345 = vadd.f32 %v5216, %v5329
      %v5346 = vadd.f32 %v5217, %v5330
      %5347 = vst [vmem:[#allocation2] sm:$0xff] %v5331
      %5348 = vst [vmem:[#allocation2 + $0x8] sm:$0xff] %v5332
      %5349 = vst [vmem:[#allocation2 + $0x10] sm:$0xff] %v5333
      %5350 = vst [vmem:[#allocation2 + $0x18] sm:$0xff] %v5334
      %5351 = vst [vmem:[#allocation2 + $0x20] sm:$0xff] %v5335
      %5352 = vst [vmem:[#allocation2 + $0x28] sm:$0xff] %v5336
      %5353 = vst [vmem:[#allocation2 + $0x30] sm:$0xff] %v5337
      %5354 = vst [vmem:[#allocation2 + $0x38] sm:$0xff] %v5338
      %5355 = vst [vmem:[#allocation2 + $0x40] sm:$0xff] %v5339
      %5356 = vst [vmem:[#allocation2 + $0x48] sm:$0xff] %v5340
      %5357 = vst [vmem:[#allocation2 + $0x50] sm:$0xff] %v5341
      %5358 = vst [vmem:[#allocation2 + $0x58] sm:$0xff] %v5342
      %5359 = vst [vmem:[#allocation2 + $0x60] sm:$0xff] %v5343
      %5360 = vst [vmem:[#allocation2 + $0x68] sm:$0xff] %v5344
      %5361 = vst [vmem:[#allocation2 + $0x70] sm:$0xff] %v5345
      %5362 = vst [vmem:[#allocation2 + $0x78] sm:$0xff] %v5346
      %s5363 = scalar_lea.vmem %s574, 2048
      %v5364 = vld [vmem:[%s5363] sm:$0xf]
      %v5365 = vld [vmem:[%s5363 + $0x4] sm:$0xf]
      %v5366 = vld [vmem:[%s5363 + $0x8] sm:$0xf]
      %v5367 = vld [vmem:[%s5363 + $0xc] sm:$0xf]
      %v5368 = vld [vmem:[%s5363 + $0x10] sm:$0xf]
      %v5369 = vld [vmem:[%s5363 + $0x14] sm:$0xf]
      %v5370 = vld [vmem:[%s5363 + $0x18] sm:$0xf]
      %v5371 = vld [vmem:[%s5363 + $0x1c] sm:$0xf]
      %v5372 = vld [vmem:[%s5363 + $0x20] sm:$0xf]
      %v5373 = vld [vmem:[%s5363 + $0x24] sm:$0xf]
      %v5374 = vld [vmem:[%s5363 + $0x28] sm:$0xf]
      %v5375 = vld [vmem:[%s5363 + $0x2c] sm:$0xf]
      %v5376 = vld [vmem:[%s5363 + $0x30] sm:$0xf]
      %v5377 = vld [vmem:[%s5363 + $0x34] sm:$0xf]
      %v5378 = vld [vmem:[%s5363 + $0x38] sm:$0xf]
      %v5379 = vld [vmem:[%s5363 + $0x3c] sm:$0xf]
      %v5380 = vld [vmem:[%s5363 + $0x40] sm:$0xf]
      %v5381 = vld [vmem:[%s5363 + $0x44] sm:$0xf]
      %v5382 = vld [vmem:[%s5363 + $0x48] sm:$0xf]
      %v5383 = vld [vmem:[%s5363 + $0x4c] sm:$0xf]
      %v5384 = vld [vmem:[%s5363 + $0x50] sm:$0xf]
      %v5385 = vld [vmem:[%s5363 + $0x54] sm:$0xf]
      %v5386 = vld [vmem:[%s5363 + $0x58] sm:$0xf]
      %v5387 = vld [vmem:[%s5363 + $0x5c] sm:$0xf]
      %v5388 = vld [vmem:[%s5363 + $0x60] sm:$0xf]
      %v5389 = vld [vmem:[%s5363 + $0x64] sm:$0xf]
      %v5390 = vld [vmem:[%s5363 + $0x68] sm:$0xf]
      %v5391 = vld [vmem:[%s5363 + $0x6c] sm:$0xf]
      %v5392 = vld [vmem:[%s5363 + $0x70] sm:$0xf]
      %v5393 = vld [vmem:[%s5363 + $0x74] sm:$0xf]
      %v5394 = vld [vmem:[%s5363 + $0x78] sm:$0xf]
      %v5395 = vld [vmem:[%s5363 + $0x7c] sm:$0xf]
      %v5396 = vld [vmem:[%s5363 + $0x80] sm:$0xf]
      %v5397 = vld [vmem:[%s5363 + $0x84] sm:$0xf]
      %v5398 = vld [vmem:[%s5363 + $0x88] sm:$0xf]
      %v5399 = vld [vmem:[%s5363 + $0x8c] sm:$0xf]
      %v5400 = vld [vmem:[%s5363 + $0x90] sm:$0xf]
      %v5401 = vld [vmem:[%s5363 + $0x94] sm:$0xf]
      %v5402 = vld [vmem:[%s5363 + $0x98] sm:$0xf]
      %v5403 = vld [vmem:[%s5363 + $0x9c] sm:$0xf]
      %v5404 = vld [vmem:[%s5363 + $0xa0] sm:$0xf]
      %v5405 = vld [vmem:[%s5363 + $0xa4] sm:$0xf]
      %v5406 = vld [vmem:[%s5363 + $0xa8] sm:$0xf]
      %v5407 = vld [vmem:[%s5363 + $0xac] sm:$0xf]
      %v5408 = vld [vmem:[%s5363 + $0xb0] sm:$0xf]
      %v5409 = vld [vmem:[%s5363 + $0xb4] sm:$0xf]
      %v5410 = vld [vmem:[%s5363 + $0xb8] sm:$0xf]
      %v5411 = vld [vmem:[%s5363 + $0xbc] sm:$0xf]
      %v5412 = vld [vmem:[%s5363 + $0xc0] sm:$0xf]
      %v5413 = vld [vmem:[%s5363 + $0xc4] sm:$0xf]
      %v5414 = vld [vmem:[%s5363 + $0xc8] sm:$0xf]
      %v5415 = vld [vmem:[%s5363 + $0xcc] sm:$0xf]
      %v5416 = vld [vmem:[%s5363 + $0xd0] sm:$0xf]
      %v5417 = vld [vmem:[%s5363 + $0xd4] sm:$0xf]
      %v5418 = vld [vmem:[%s5363 + $0xd8] sm:$0xf]
      %v5419 = vld [vmem:[%s5363 + $0xdc] sm:$0xf]
      %v5420 = vld [vmem:[%s5363 + $0xe0] sm:$0xf]
      %v5421 = vld [vmem:[%s5363 + $0xe4] sm:$0xf]
      %v5422 = vld [vmem:[%s5363 + $0xe8] sm:$0xf]
      %v5423 = vld [vmem:[%s5363 + $0xec] sm:$0xf]
      %v5424 = vld [vmem:[%s5363 + $0xf0] sm:$0xf]
      %v5425 = vld [vmem:[%s5363 + $0xf4] sm:$0xf]
      %v5426 = vld [vmem:[%s5363 + $0xf8] sm:$0xf]
      %v5427 = vld [vmem:[%s5363 + $0xfc] sm:$0xf]
      %v5428 = vld [vmem:[%s5363 + $0x100] sm:$0xf]
      %v5429 = vld [vmem:[%s5363 + $0x104] sm:$0xf]
      %v5430 = vld [vmem:[%s5363 + $0x108] sm:$0xf]
      %v5431 = vld [vmem:[%s5363 + $0x10c] sm:$0xf]
      %v5432 = vld [vmem:[%s5363 + $0x110] sm:$0xf]
      %v5433 = vld [vmem:[%s5363 + $0x114] sm:$0xf]
      %v5434 = vld [vmem:[%s5363 + $0x118] sm:$0xf]
      %v5435 = vld [vmem:[%s5363 + $0x11c] sm:$0xf]
      %v5436 = vld [vmem:[%s5363 + $0x120] sm:$0xf]
      %v5437 = vld [vmem:[%s5363 + $0x124] sm:$0xf]
      %v5438 = vld [vmem:[%s5363 + $0x128] sm:$0xf]
      %v5439 = vld [vmem:[%s5363 + $0x12c] sm:$0xf]
      %v5440 = vld [vmem:[%s5363 + $0x130] sm:$0xf]
      %v5441 = vld [vmem:[%s5363 + $0x134] sm:$0xf]
      %v5442 = vld [vmem:[%s5363 + $0x138] sm:$0xf]
      %v5443 = vld [vmem:[%s5363 + $0x13c] sm:$0xf]
      %v5444 = vld [vmem:[%s5363 + $0x140] sm:$0xf]
      %v5445 = vld [vmem:[%s5363 + $0x144] sm:$0xf]
      %v5446 = vld [vmem:[%s5363 + $0x148] sm:$0xf]
      %v5447 = vld [vmem:[%s5363 + $0x14c] sm:$0xf]
      %v5448 = vld [vmem:[%s5363 + $0x150] sm:$0xf]
      %v5449 = vld [vmem:[%s5363 + $0x154] sm:$0xf]
      %v5450 = vld [vmem:[%s5363 + $0x158] sm:$0xf]
      %v5451 = vld [vmem:[%s5363 + $0x15c] sm:$0xf]
      %v5452 = vld [vmem:[%s5363 + $0x160] sm:$0xf]
      %v5453 = vld [vmem:[%s5363 + $0x164] sm:$0xf]
      %v5454 = vld [vmem:[%s5363 + $0x168] sm:$0xf]
      %v5455 = vld [vmem:[%s5363 + $0x16c] sm:$0xf]
      %v5456 = vld [vmem:[%s5363 + $0x170] sm:$0xf]
      %v5457 = vld [vmem:[%s5363 + $0x174] sm:$0xf]
      %v5458 = vld [vmem:[%s5363 + $0x178] sm:$0xf]
      %v5459 = vld [vmem:[%s5363 + $0x17c] sm:$0xf]
      %v5460 = vld [vmem:[%s5363 + $0x180] sm:$0xf]
      %v5461 = vld [vmem:[%s5363 + $0x184] sm:$0xf]
      %v5462 = vld [vmem:[%s5363 + $0x188] sm:$0xf]
      %v5463 = vld [vmem:[%s5363 + $0x18c] sm:$0xf]
      %v5464 = vld [vmem:[%s5363 + $0x190] sm:$0xf]
      %v5465 = vld [vmem:[%s5363 + $0x194] sm:$0xf]
      %v5466 = vld [vmem:[%s5363 + $0x198] sm:$0xf]
      %v5467 = vld [vmem:[%s5363 + $0x19c] sm:$0xf]
      %v5468 = vld [vmem:[%s5363 + $0x1a0] sm:$0xf]
      %v5469 = vld [vmem:[%s5363 + $0x1a4] sm:$0xf]
      %v5470 = vld [vmem:[%s5363 + $0x1a8] sm:$0xf]
      %v5471 = vld [vmem:[%s5363 + $0x1ac] sm:$0xf]
      %v5472 = vld [vmem:[%s5363 + $0x1b0] sm:$0xf]
      %v5473 = vld [vmem:[%s5363 + $0x1b4] sm:$0xf]
      %v5474 = vld [vmem:[%s5363 + $0x1b8] sm:$0xf]
      %v5475 = vld [vmem:[%s5363 + $0x1bc] sm:$0xf]
      %v5476 = vld [vmem:[%s5363 + $0x1c0] sm:$0xf]
      %v5477 = vld [vmem:[%s5363 + $0x1c4] sm:$0xf]
      %v5478 = vld [vmem:[%s5363 + $0x1c8] sm:$0xf]
      %v5479 = vld [vmem:[%s5363 + $0x1cc] sm:$0xf]
      %v5480 = vld [vmem:[%s5363 + $0x1d0] sm:$0xf]
      %v5481 = vld [vmem:[%s5363 + $0x1d4] sm:$0xf]
      %v5482 = vld [vmem:[%s5363 + $0x1d8] sm:$0xf]
      %v5483 = vld [vmem:[%s5363 + $0x1dc] sm:$0xf]
      %v5484 = vld [vmem:[%s5363 + $0x1e0] sm:$0xf]
      %v5485 = vld [vmem:[%s5363 + $0x1e4] sm:$0xf]
      %v5486 = vld [vmem:[%s5363 + $0x1e8] sm:$0xf]
      %v5487 = vld [vmem:[%s5363 + $0x1ec] sm:$0xf]
      %v5488 = vld [vmem:[%s5363 + $0x1f0] sm:$0xf]
      %v5489 = vld [vmem:[%s5363 + $0x1f4] sm:$0xf]
      %v5490 = vld [vmem:[%s5363 + $0x1f8] sm:$0xf]
      %v5491 = vld [vmem:[%s5363 + $0x1fc] sm:$0xf]
      %v5492 = vld [vmem:[%s5363 + $0x200] sm:$0xf]
      %v5493 = vld [vmem:[%s5363 + $0x204] sm:$0xf]
      %v5494 = vld [vmem:[%s5363 + $0x208] sm:$0xf]
      %v5495 = vld [vmem:[%s5363 + $0x20c] sm:$0xf]
      %v5496 = vld [vmem:[%s5363 + $0x210] sm:$0xf]
      %v5497 = vld [vmem:[%s5363 + $0x214] sm:$0xf]
      %v5498 = vld [vmem:[%s5363 + $0x218] sm:$0xf]
      %v5499 = vld [vmem:[%s5363 + $0x21c] sm:$0xf]
      %v5500 = vld [vmem:[%s5363 + $0x220] sm:$0xf]
      %v5501 = vld [vmem:[%s5363 + $0x224] sm:$0xf]
      %v5502 = vld [vmem:[%s5363 + $0x228] sm:$0xf]
      %v5503 = vld [vmem:[%s5363 + $0x22c] sm:$0xf]
      %v5504 = vld [vmem:[%s5363 + $0x230] sm:$0xf]
      %v5505 = vld [vmem:[%s5363 + $0x234] sm:$0xf]
      %v5506 = vld [vmem:[%s5363 + $0x238] sm:$0xf]
      %v5507 = vld [vmem:[%s5363 + $0x23c] sm:$0xf]
      %v5508 = vld [vmem:[%s5363 + $0x240] sm:$0xf]
      %v5509 = vld [vmem:[%s5363 + $0x244] sm:$0xf]
      %v5510 = vld [vmem:[%s5363 + $0x248] sm:$0xf]
      %v5511 = vld [vmem:[%s5363 + $0x24c] sm:$0xf]
      %v5512 = vld [vmem:[%s5363 + $0x250] sm:$0xf]
      %v5513 = vld [vmem:[%s5363 + $0x254] sm:$0xf]
      %v5514 = vld [vmem:[%s5363 + $0x258] sm:$0xf]
      %v5515 = vld [vmem:[%s5363 + $0x25c] sm:$0xf]
      %v5516 = vld [vmem:[%s5363 + $0x260] sm:$0xf]
      %v5517 = vld [vmem:[%s5363 + $0x264] sm:$0xf]
      %v5518 = vld [vmem:[%s5363 + $0x268] sm:$0xf]
      %v5519 = vld [vmem:[%s5363 + $0x26c] sm:$0xf]
      %v5520 = vld [vmem:[%s5363 + $0x270] sm:$0xf]
      %v5521 = vld [vmem:[%s5363 + $0x274] sm:$0xf]
      %v5522 = vld [vmem:[%s5363 + $0x278] sm:$0xf]
      %v5523 = vld [vmem:[%s5363 + $0x27c] sm:$0xf]
      %v5524 = vld [vmem:[%s5363 + $0x280] sm:$0xf]
      %v5525 = vld [vmem:[%s5363 + $0x284] sm:$0xf]
      %v5526 = vld [vmem:[%s5363 + $0x288] sm:$0xf]
      %v5527 = vld [vmem:[%s5363 + $0x28c] sm:$0xf]
      %v5528 = vld [vmem:[%s5363 + $0x290] sm:$0xf]
      %v5529 = vld [vmem:[%s5363 + $0x294] sm:$0xf]
      %v5530 = vld [vmem:[%s5363 + $0x298] sm:$0xf]
      %v5531 = vld [vmem:[%s5363 + $0x29c] sm:$0xf]
      %v5532 = vld [vmem:[%s5363 + $0x2a0] sm:$0xf]
      %v5533 = vld [vmem:[%s5363 + $0x2a4] sm:$0xf]
      %v5534 = vld [vmem:[%s5363 + $0x2a8] sm:$0xf]
      %v5535 = vld [vmem:[%s5363 + $0x2ac] sm:$0xf]
      %v5536 = vld [vmem:[%s5363 + $0x2b0] sm:$0xf]
      %v5537 = vld [vmem:[%s5363 + $0x2b4] sm:$0xf]
      %v5538 = vld [vmem:[%s5363 + $0x2b8] sm:$0xf]
      %v5539 = vld [vmem:[%s5363 + $0x2bc] sm:$0xf]
      %v5540 = vld [vmem:[%s5363 + $0x2c0] sm:$0xf]
      %v5541 = vld [vmem:[%s5363 + $0x2c4] sm:$0xf]
      %v5542 = vld [vmem:[%s5363 + $0x2c8] sm:$0xf]
      %v5543 = vld [vmem:[%s5363 + $0x2cc] sm:$0xf]
      %v5544 = vld [vmem:[%s5363 + $0x2d0] sm:$0xf]
      %v5545 = vld [vmem:[%s5363 + $0x2d4] sm:$0xf]
      %v5546 = vld [vmem:[%s5363 + $0x2d8] sm:$0xf]
      %v5547 = vld [vmem:[%s5363 + $0x2dc] sm:$0xf]
      %v5548 = vld [vmem:[%s5363 + $0x2e0] sm:$0xf]
      %v5549 = vld [vmem:[%s5363 + $0x2e4] sm:$0xf]
      %v5550 = vld [vmem:[%s5363 + $0x2e8] sm:$0xf]
      %v5551 = vld [vmem:[%s5363 + $0x2ec] sm:$0xf]
      %v5552 = vld [vmem:[%s5363 + $0x2f0] sm:$0xf]
      %v5553 = vld [vmem:[%s5363 + $0x2f4] sm:$0xf]
      %v5554 = vld [vmem:[%s5363 + $0x2f8] sm:$0xf]
      %v5555 = vld [vmem:[%s5363 + $0x2fc] sm:$0xf]
      %v5556 = vld [vmem:[%s5363 + $0x300] sm:$0xf]
      %v5557 = vld [vmem:[%s5363 + $0x304] sm:$0xf]
      %v5558 = vld [vmem:[%s5363 + $0x308] sm:$0xf]
      %v5559 = vld [vmem:[%s5363 + $0x30c] sm:$0xf]
      %v5560 = vld [vmem:[%s5363 + $0x310] sm:$0xf]
      %v5561 = vld [vmem:[%s5363 + $0x314] sm:$0xf]
      %v5562 = vld [vmem:[%s5363 + $0x318] sm:$0xf]
      %v5563 = vld [vmem:[%s5363 + $0x31c] sm:$0xf]
      %v5564 = vld [vmem:[%s5363 + $0x320] sm:$0xf]
      %v5565 = vld [vmem:[%s5363 + $0x324] sm:$0xf]
      %v5566 = vld [vmem:[%s5363 + $0x328] sm:$0xf]
      %v5567 = vld [vmem:[%s5363 + $0x32c] sm:$0xf]
      %v5568 = vld [vmem:[%s5363 + $0x330] sm:$0xf]
      %v5569 = vld [vmem:[%s5363 + $0x334] sm:$0xf]
      %v5570 = vld [vmem:[%s5363 + $0x338] sm:$0xf]
      %v5571 = vld [vmem:[%s5363 + $0x33c] sm:$0xf]
      %v5572 = vld [vmem:[%s5363 + $0x340] sm:$0xf]
      %v5573 = vld [vmem:[%s5363 + $0x344] sm:$0xf]
      %v5574 = vld [vmem:[%s5363 + $0x348] sm:$0xf]
      %v5575 = vld [vmem:[%s5363 + $0x34c] sm:$0xf]
      %v5576 = vld [vmem:[%s5363 + $0x350] sm:$0xf]
      %v5577 = vld [vmem:[%s5363 + $0x354] sm:$0xf]
      %v5578 = vld [vmem:[%s5363 + $0x358] sm:$0xf]
      %v5579 = vld [vmem:[%s5363 + $0x35c] sm:$0xf]
      %v5580 = vld [vmem:[%s5363 + $0x360] sm:$0xf]
      %v5581 = vld [vmem:[%s5363 + $0x364] sm:$0xf]
      %v5582 = vld [vmem:[%s5363 + $0x368] sm:$0xf]
      %v5583 = vld [vmem:[%s5363 + $0x36c] sm:$0xf]
      %v5584 = vld [vmem:[%s5363 + $0x370] sm:$0xf]
      %v5585 = vld [vmem:[%s5363 + $0x374] sm:$0xf]
      %v5586 = vld [vmem:[%s5363 + $0x378] sm:$0xf]
      %v5587 = vld [vmem:[%s5363 + $0x37c] sm:$0xf]
      %v5588 = vld [vmem:[%s5363 + $0x380] sm:$0xf]
      %v5589 = vld [vmem:[%s5363 + $0x384] sm:$0xf]
      %v5590 = vld [vmem:[%s5363 + $0x388] sm:$0xf]
      %v5591 = vld [vmem:[%s5363 + $0x38c] sm:$0xf]
      %v5592 = vld [vmem:[%s5363 + $0x390] sm:$0xf]
      %v5593 = vld [vmem:[%s5363 + $0x394] sm:$0xf]
      %v5594 = vld [vmem:[%s5363 + $0x398] sm:$0xf]
      %v5595 = vld [vmem:[%s5363 + $0x39c] sm:$0xf]
      %v5596 = vld [vmem:[%s5363 + $0x3a0] sm:$0xf]
      %v5597 = vld [vmem:[%s5363 + $0x3a4] sm:$0xf]
      %v5598 = vld [vmem:[%s5363 + $0x3a8] sm:$0xf]
      %v5599 = vld [vmem:[%s5363 + $0x3ac] sm:$0xf]
      %v5600 = vld [vmem:[%s5363 + $0x3b0] sm:$0xf]
      %v5601 = vld [vmem:[%s5363 + $0x3b4] sm:$0xf]
      %v5602 = vld [vmem:[%s5363 + $0x3b8] sm:$0xf]
      %v5603 = vld [vmem:[%s5363 + $0x3bc] sm:$0xf]
      %v5604 = vld [vmem:[%s5363 + $0x3c0] sm:$0xf]
      %v5605 = vld [vmem:[%s5363 + $0x3c4] sm:$0xf]
      %v5606 = vld [vmem:[%s5363 + $0x3c8] sm:$0xf]
      %v5607 = vld [vmem:[%s5363 + $0x3cc] sm:$0xf]
      %v5608 = vld [vmem:[%s5363 + $0x3d0] sm:$0xf]
      %v5609 = vld [vmem:[%s5363 + $0x3d4] sm:$0xf]
      %v5610 = vld [vmem:[%s5363 + $0x3d8] sm:$0xf]
      %v5611 = vld [vmem:[%s5363 + $0x3dc] sm:$0xf]
      %v5612 = vld [vmem:[%s5363 + $0x3e0] sm:$0xf]
      %v5613 = vld [vmem:[%s5363 + $0x3e4] sm:$0xf]
      %v5614 = vld [vmem:[%s5363 + $0x3e8] sm:$0xf]
      %v5615 = vld [vmem:[%s5363 + $0x3ec] sm:$0xf]
      %v5616 = vld [vmem:[%s5363 + $0x3f0] sm:$0xf]
      %v5617 = vld [vmem:[%s5363 + $0x3f4] sm:$0xf]
      %v5618 = vld [vmem:[%s5363 + $0x3f8] sm:$0xf]
      %v5619 = vld [vmem:[%s5363 + $0x3fc] sm:$0xf]
      %v5876 = vunpack.c.l.b16 %v5364
      %v5877 = vunpack.c.l.b16 %v5365
      %v5878 = vunpack.c.l.b16 %v5366
      %v5879 = vunpack.c.l.b16 %v5367
      %v5880 = vunpack.c.l.b16 %v5368
      %v5881 = vunpack.c.l.b16 %v5369
      %v5882 = vunpack.c.l.b16 %v5370
      %v5883 = vunpack.c.l.b16 %v5371
      %v5884 = vunpack.c.l.b16 %v5372
      %v5885 = vunpack.c.l.b16 %v5373
      %v5886 = vunpack.c.l.b16 %v5374
      %v5887 = vunpack.c.l.b16 %v5375
      %v5888 = vunpack.c.l.b16 %v5376
      %v5889 = vunpack.c.l.b16 %v5377
      %v5890 = vunpack.c.l.b16 %v5378
      %v5891 = vunpack.c.l.b16 %v5379
      %v5892 = vunpack.c.l.b16 %v5380
      %v5893 = vunpack.c.l.b16 %v5381
      %v5894 = vunpack.c.l.b16 %v5382
      %v5895 = vunpack.c.l.b16 %v5383
      %v5896 = vunpack.c.l.b16 %v5384
      %v5897 = vunpack.c.l.b16 %v5385
      %v5898 = vunpack.c.l.b16 %v5386
      %v5899 = vunpack.c.l.b16 %v5387
      %v5900 = vunpack.c.l.b16 %v5388
      %v5901 = vunpack.c.l.b16 %v5389
      %v5902 = vunpack.c.l.b16 %v5390
      %v5903 = vunpack.c.l.b16 %v5391
      %v5904 = vunpack.c.l.b16 %v5392
      %v5905 = vunpack.c.l.b16 %v5393
      %v5906 = vunpack.c.l.b16 %v5394
      %v5907 = vunpack.c.l.b16 %v5395
      %v5908 = vunpack.c.l.b16 %v5396
      %v5909 = vunpack.c.l.b16 %v5397
      %v5910 = vunpack.c.l.b16 %v5398
      %v5911 = vunpack.c.l.b16 %v5399
      %v5912 = vunpack.c.l.b16 %v5400
      %v5913 = vunpack.c.l.b16 %v5401
      %v5914 = vunpack.c.l.b16 %v5402
      %v5915 = vunpack.c.l.b16 %v5403
      %v5916 = vunpack.c.l.b16 %v5404
      %v5917 = vunpack.c.l.b16 %v5405
      %v5918 = vunpack.c.l.b16 %v5406
      %v5919 = vunpack.c.l.b16 %v5407
      %v5920 = vunpack.c.l.b16 %v5408
      %v5921 = vunpack.c.l.b16 %v5409
      %v5922 = vunpack.c.l.b16 %v5410
      %v5923 = vunpack.c.l.b16 %v5411
      %v5924 = vunpack.c.l.b16 %v5412
      %v5925 = vunpack.c.l.b16 %v5413
      %v5926 = vunpack.c.l.b16 %v5414
      %v5927 = vunpack.c.l.b16 %v5415
      %v5928 = vunpack.c.l.b16 %v5416
      %v5929 = vunpack.c.l.b16 %v5417
      %v5930 = vunpack.c.l.b16 %v5418
      %v5931 = vunpack.c.l.b16 %v5419
      %v5932 = vunpack.c.l.b16 %v5420
      %v5933 = vunpack.c.l.b16 %v5421
      %v5934 = vunpack.c.l.b16 %v5422
      %v5935 = vunpack.c.l.b16 %v5423
      %v5936 = vunpack.c.l.b16 %v5424
      %v5937 = vunpack.c.l.b16 %v5425
      %v5938 = vunpack.c.l.b16 %v5426
      %v5939 = vunpack.c.l.b16 %v5427
      %v5940 = vunpack.c.l.b16 %v5428
      %v5941 = vunpack.c.l.b16 %v5429
      %v5942 = vunpack.c.l.b16 %v5430
      %v5943 = vunpack.c.l.b16 %v5431
      %v5944 = vunpack.c.l.b16 %v5432
      %v5945 = vunpack.c.l.b16 %v5433
      %v5946 = vunpack.c.l.b16 %v5434
      %v5947 = vunpack.c.l.b16 %v5435
      %v5948 = vunpack.c.l.b16 %v5436
      %v5949 = vunpack.c.l.b16 %v5437
      %v5950 = vunpack.c.l.b16 %v5438
      %v5951 = vunpack.c.l.b16 %v5439
      %v5952 = vunpack.c.l.b16 %v5440
      %v5953 = vunpack.c.l.b16 %v5441
      %v5954 = vunpack.c.l.b16 %v5442
      %v5955 = vunpack.c.l.b16 %v5443
      %v5956 = vunpack.c.l.b16 %v5444
      %v5957 = vunpack.c.l.b16 %v5445
      %v5958 = vunpack.c.l.b16 %v5446
      %v5959 = vunpack.c.l.b16 %v5447
      %v5960 = vunpack.c.l.b16 %v5448
      %v5961 = vunpack.c.l.b16 %v5449
      %v5962 = vunpack.c.l.b16 %v5450
      %v5963 = vunpack.c.l.b16 %v5451
      %v5964 = vunpack.c.l.b16 %v5452
      %v5965 = vunpack.c.l.b16 %v5453
      %v5966 = vunpack.c.l.b16 %v5454
      %v5967 = vunpack.c.l.b16 %v5455
      %v5968 = vunpack.c.l.b16 %v5456
      %v5969 = vunpack.c.l.b16 %v5457
      %v5970 = vunpack.c.l.b16 %v5458
      %v5971 = vunpack.c.l.b16 %v5459
      %v5972 = vunpack.c.l.b16 %v5460
      %v5973 = vunpack.c.l.b16 %v5461
      %v5974 = vunpack.c.l.b16 %v5462
      %v5975 = vunpack.c.l.b16 %v5463
      %v5976 = vunpack.c.l.b16 %v5464
      %v5977 = vunpack.c.l.b16 %v5465
      %v5978 = vunpack.c.l.b16 %v5466
      %v5979 = vunpack.c.l.b16 %v5467
      %v5980 = vunpack.c.l.b16 %v5468
      %v5981 = vunpack.c.l.b16 %v5469
      %v5982 = vunpack.c.l.b16 %v5470
      %v5983 = vunpack.c.l.b16 %v5471
      %v5984 = vunpack.c.l.b16 %v5472
      %v5985 = vunpack.c.l.b16 %v5473
      %v5986 = vunpack.c.l.b16 %v5474
      %v5987 = vunpack.c.l.b16 %v5475
      %v5988 = vunpack.c.l.b16 %v5476
      %v5989 = vunpack.c.l.b16 %v5477
      %v5990 = vunpack.c.l.b16 %v5478
      %v5991 = vunpack.c.l.b16 %v5479
      %v5992 = vunpack.c.l.b16 %v5480
      %v5993 = vunpack.c.l.b16 %v5481
      %v5994 = vunpack.c.l.b16 %v5482
      %v5995 = vunpack.c.l.b16 %v5483
      %v5996 = vunpack.c.l.b16 %v5484
      %v5997 = vunpack.c.l.b16 %v5485
      %v5998 = vunpack.c.l.b16 %v5486
      %v5999 = vunpack.c.l.b16 %v5487
      %v6000 = vunpack.c.l.b16 %v5488
      %v6001 = vunpack.c.l.b16 %v5489
      %v6002 = vunpack.c.l.b16 %v5490
      %v6003 = vunpack.c.l.b16 %v5491
      %v6004 = vunpack.c.l.b16 %v5492
      %v6005 = vunpack.c.l.b16 %v5493
      %v6006 = vunpack.c.l.b16 %v5494
      %v6007 = vunpack.c.l.b16 %v5495
      %v6008 = vunpack.c.l.b16 %v5496
      %v6009 = vunpack.c.l.b16 %v5497
      %v6010 = vunpack.c.l.b16 %v5498
      %v6011 = vunpack.c.l.b16 %v5499
      %v6012 = vunpack.c.l.b16 %v5500
      %v6013 = vunpack.c.l.b16 %v5501
      %v6014 = vunpack.c.l.b16 %v5502
      %v6015 = vunpack.c.l.b16 %v5503
      %v6016 = vunpack.c.l.b16 %v5504
      %v6017 = vunpack.c.l.b16 %v5505
      %v6018 = vunpack.c.l.b16 %v5506
      %v6019 = vunpack.c.l.b16 %v5507
      %v6020 = vunpack.c.l.b16 %v5508
      %v6021 = vunpack.c.l.b16 %v5509
      %v6022 = vunpack.c.l.b16 %v5510
      %v6023 = vunpack.c.l.b16 %v5511
      %v6024 = vunpack.c.l.b16 %v5512
      %v6025 = vunpack.c.l.b16 %v5513
      %v6026 = vunpack.c.l.b16 %v5514
      %v6027 = vunpack.c.l.b16 %v5515
      %v6028 = vunpack.c.l.b16 %v5516
      %v6029 = vunpack.c.l.b16 %v5517
      %v6030 = vunpack.c.l.b16 %v5518
      %v6031 = vunpack.c.l.b16 %v5519
      %v6032 = vunpack.c.l.b16 %v5520
      %v6033 = vunpack.c.l.b16 %v5521
      %v6034 = vunpack.c.l.b16 %v5522
      %v6035 = vunpack.c.l.b16 %v5523
      %v6036 = vunpack.c.l.b16 %v5524
      %v6037 = vunpack.c.l.b16 %v5525
      %v6038 = vunpack.c.l.b16 %v5526
      %v6039 = vunpack.c.l.b16 %v5527
      %v6040 = vunpack.c.l.b16 %v5528
      %v6041 = vunpack.c.l.b16 %v5529
      %v6042 = vunpack.c.l.b16 %v5530
      %v6043 = vunpack.c.l.b16 %v5531
      %v6044 = vunpack.c.l.b16 %v5532
      %v6045 = vunpack.c.l.b16 %v5533
      %v6046 = vunpack.c.l.b16 %v5534
      %v6047 = vunpack.c.l.b16 %v5535
      %v6048 = vunpack.c.l.b16 %v5536
      %v6049 = vunpack.c.l.b16 %v5537
      %v6050 = vunpack.c.l.b16 %v5538
      %v6051 = vunpack.c.l.b16 %v5539
      %v6052 = vunpack.c.l.b16 %v5540
      %v6053 = vunpack.c.l.b16 %v5541
      %v6054 = vunpack.c.l.b16 %v5542
      %v6055 = vunpack.c.l.b16 %v5543
      %v6056 = vunpack.c.l.b16 %v5544
      %v6057 = vunpack.c.l.b16 %v5545
      %v6058 = vunpack.c.l.b16 %v5546
      %v6059 = vunpack.c.l.b16 %v5547
      %v6060 = vunpack.c.l.b16 %v5548
      %v6061 = vunpack.c.l.b16 %v5549
      %v6062 = vunpack.c.l.b16 %v5550
      %v6063 = vunpack.c.l.b16 %v5551
      %v6064 = vunpack.c.l.b16 %v5552
      %v6065 = vunpack.c.l.b16 %v5553
      %v6066 = vunpack.c.l.b16 %v5554
      %v6067 = vunpack.c.l.b16 %v5555
      %v6068 = vunpack.c.l.b16 %v5556
      %v6069 = vunpack.c.l.b16 %v5557
      %v6070 = vunpack.c.l.b16 %v5558
      %v6071 = vunpack.c.l.b16 %v5559
      %v6072 = vunpack.c.l.b16 %v5560
      %v6073 = vunpack.c.l.b16 %v5561
      %v6074 = vunpack.c.l.b16 %v5562
      %v6075 = vunpack.c.l.b16 %v5563
      %v6076 = vunpack.c.l.b16 %v5564
      %v6077 = vunpack.c.l.b16 %v5565
      %v6078 = vunpack.c.l.b16 %v5566
      %v6079 = vunpack.c.l.b16 %v5567
      %v6080 = vunpack.c.l.b16 %v5568
      %v6081 = vunpack.c.l.b16 %v5569
      %v6082 = vunpack.c.l.b16 %v5570
      %v6083 = vunpack.c.l.b16 %v5571
      %v6084 = vunpack.c.l.b16 %v5572
      %v6085 = vunpack.c.l.b16 %v5573
      %v6086 = vunpack.c.l.b16 %v5574
      %v6087 = vunpack.c.l.b16 %v5575
      %v6088 = vunpack.c.l.b16 %v5576
      %v6089 = vunpack.c.l.b16 %v5577
      %v6090 = vunpack.c.l.b16 %v5578
      %v6091 = vunpack.c.l.b16 %v5579
      %v6092 = vunpack.c.l.b16 %v5580
      %v6093 = vunpack.c.l.b16 %v5581
      %v6094 = vunpack.c.l.b16 %v5582
      %v6095 = vunpack.c.l.b16 %v5583
      %v6096 = vunpack.c.l.b16 %v5584
      %v6097 = vunpack.c.l.b16 %v5585
      %v6098 = vunpack.c.l.b16 %v5586
      %v6099 = vunpack.c.l.b16 %v5587
      %v6100 = vunpack.c.l.b16 %v5588
      %v6101 = vunpack.c.l.b16 %v5589
      %v6102 = vunpack.c.l.b16 %v5590
      %v6103 = vunpack.c.l.b16 %v5591
      %v6104 = vunpack.c.l.b16 %v5592
      %v6105 = vunpack.c.l.b16 %v5593
      %v6106 = vunpack.c.l.b16 %v5594
      %v6107 = vunpack.c.l.b16 %v5595
      %v6108 = vunpack.c.l.b16 %v5596
      %v6109 = vunpack.c.l.b16 %v5597
      %v6110 = vunpack.c.l.b16 %v5598
      %v6111 = vunpack.c.l.b16 %v5599
      %v6112 = vunpack.c.l.b16 %v5600
      %v6113 = vunpack.c.l.b16 %v5601
      %v6114 = vunpack.c.l.b16 %v5602
      %v6115 = vunpack.c.l.b16 %v5603
      %v6116 = vunpack.c.l.b16 %v5604
      %v6117 = vunpack.c.l.b16 %v5605
      %v6118 = vunpack.c.l.b16 %v5606
      %v6119 = vunpack.c.l.b16 %v5607
      %v6120 = vunpack.c.l.b16 %v5608
      %v6121 = vunpack.c.l.b16 %v5609
      %v6122 = vunpack.c.l.b16 %v5610
      %v6123 = vunpack.c.l.b16 %v5611
      %v6124 = vunpack.c.l.b16 %v5612
      %v6125 = vunpack.c.l.b16 %v5613
      %v6126 = vunpack.c.l.b16 %v5614
      %v6127 = vunpack.c.l.b16 %v5615
      %v6128 = vunpack.c.l.b16 %v5616
      %v6129 = vunpack.c.l.b16 %v5617
      %v6130 = vunpack.c.l.b16 %v5618
      %v6131 = vunpack.c.l.b16 %v5619
      %v6132 = vpack.c.b16 %v5877, %v5876
      %v6133 = vpack.c.b16 %v5879, %v5878
      %v6134 = vpack.c.b16 %v5881, %v5880
      %v6135 = vpack.c.b16 %v5883, %v5882
      %v6136 = vpack.c.b16 %v5885, %v5884
      %v6137 = vpack.c.b16 %v5887, %v5886
      %v6138 = vpack.c.b16 %v5889, %v5888
      %v6139 = vpack.c.b16 %v5891, %v5890
      %v6140 = vpack.c.b16 %v5893, %v5892
      %v6141 = vpack.c.b16 %v5895, %v5894
      %v6142 = vpack.c.b16 %v5897, %v5896
      %v6143 = vpack.c.b16 %v5899, %v5898
      %v6144 = vpack.c.b16 %v5901, %v5900
      %v6145 = vpack.c.b16 %v5903, %v5902
      %v6146 = vpack.c.b16 %v5905, %v5904
      %v6147 = vpack.c.b16 %v5907, %v5906
      %v6148 = vpack.c.b16 %v5909, %v5908
      %v6149 = vpack.c.b16 %v5911, %v5910
      %v6150 = vpack.c.b16 %v5913, %v5912
      %v6151 = vpack.c.b16 %v5915, %v5914
      %v6152 = vpack.c.b16 %v5917, %v5916
      %v6153 = vpack.c.b16 %v5919, %v5918
      %v6154 = vpack.c.b16 %v5921, %v5920
      %v6155 = vpack.c.b16 %v5923, %v5922
      %v6156 = vpack.c.b16 %v5925, %v5924
      %v6157 = vpack.c.b16 %v5927, %v5926
      %v6158 = vpack.c.b16 %v5929, %v5928
      %v6159 = vpack.c.b16 %v5931, %v5930
      %v6160 = vpack.c.b16 %v5933, %v5932
      %v6161 = vpack.c.b16 %v5935, %v5934
      %v6162 = vpack.c.b16 %v5937, %v5936
      %v6163 = vpack.c.b16 %v5939, %v5938
      %v6164 = vpack.c.b16 %v5941, %v5940
      %v6165 = vpack.c.b16 %v5943, %v5942
      %v6166 = vpack.c.b16 %v5945, %v5944
      %v6167 = vpack.c.b16 %v5947, %v5946
      %v6168 = vpack.c.b16 %v5949, %v5948
      %v6169 = vpack.c.b16 %v5951, %v5950
      %v6170 = vpack.c.b16 %v5953, %v5952
      %v6171 = vpack.c.b16 %v5955, %v5954
      %v6172 = vpack.c.b16 %v5957, %v5956
      %v6173 = vpack.c.b16 %v5959, %v5958
      %v6174 = vpack.c.b16 %v5961, %v5960
      %v6175 = vpack.c.b16 %v5963, %v5962
      %v6176 = vpack.c.b16 %v5965, %v5964
      %v6177 = vpack.c.b16 %v5967, %v5966
      %v6178 = vpack.c.b16 %v5969, %v5968
      %v6179 = vpack.c.b16 %v5971, %v5970
      %v6180 = vpack.c.b16 %v5973, %v5972
      %v6181 = vpack.c.b16 %v5975, %v5974
      %v6182 = vpack.c.b16 %v5977, %v5976
      %v6183 = vpack.c.b16 %v5979, %v5978
      %v6184 = vpack.c.b16 %v5981, %v5980
      %v6185 = vpack.c.b16 %v5983, %v5982
      %v6186 = vpack.c.b16 %v5985, %v5984
      %v6187 = vpack.c.b16 %v5987, %v5986
      %v6188 = vpack.c.b16 %v5989, %v5988
      %v6189 = vpack.c.b16 %v5991, %v5990
      %v6190 = vpack.c.b16 %v5993, %v5992
      %v6191 = vpack.c.b16 %v5995, %v5994
      %v6192 = vpack.c.b16 %v5997, %v5996
      %v6193 = vpack.c.b16 %v5999, %v5998
      %v6194 = vpack.c.b16 %v6001, %v6000
      %v6195 = vpack.c.b16 %v6003, %v6002
      %v6196 = vpack.c.b16 %v6005, %v6004
      %v6197 = vpack.c.b16 %v6007, %v6006
      %v6198 = vpack.c.b16 %v6009, %v6008
      %v6199 = vpack.c.b16 %v6011, %v6010
      %v6200 = vpack.c.b16 %v6013, %v6012
      %v6201 = vpack.c.b16 %v6015, %v6014
      %v6202 = vpack.c.b16 %v6017, %v6016
      %v6203 = vpack.c.b16 %v6019, %v6018
      %v6204 = vpack.c.b16 %v6021, %v6020
      %v6205 = vpack.c.b16 %v6023, %v6022
      %v6206 = vpack.c.b16 %v6025, %v6024
      %v6207 = vpack.c.b16 %v6027, %v6026
      %v6208 = vpack.c.b16 %v6029, %v6028
      %v6209 = vpack.c.b16 %v6031, %v6030
      %v6210 = vpack.c.b16 %v6033, %v6032
      %v6211 = vpack.c.b16 %v6035, %v6034
      %v6212 = vpack.c.b16 %v6037, %v6036
      %v6213 = vpack.c.b16 %v6039, %v6038
      %v6214 = vpack.c.b16 %v6041, %v6040
      %v6215 = vpack.c.b16 %v6043, %v6042
      %v6216 = vpack.c.b16 %v6045, %v6044
      %v6217 = vpack.c.b16 %v6047, %v6046
      %v6218 = vpack.c.b16 %v6049, %v6048
      %v6219 = vpack.c.b16 %v6051, %v6050
      %v6220 = vpack.c.b16 %v6053, %v6052
      %v6221 = vpack.c.b16 %v6055, %v6054
      %v6222 = vpack.c.b16 %v6057, %v6056
      %v6223 = vpack.c.b16 %v6059, %v6058
      %v6224 = vpack.c.b16 %v6061, %v6060
      %v6225 = vpack.c.b16 %v6063, %v6062
      %v6226 = vpack.c.b16 %v6065, %v6064
      %v6227 = vpack.c.b16 %v6067, %v6066
      %v6228 = vpack.c.b16 %v6069, %v6068
      %v6229 = vpack.c.b16 %v6071, %v6070
      %v6230 = vpack.c.b16 %v6073, %v6072
      %v6231 = vpack.c.b16 %v6075, %v6074
      %v6232 = vpack.c.b16 %v6077, %v6076
      %v6233 = vpack.c.b16 %v6079, %v6078
      %v6234 = vpack.c.b16 %v6081, %v6080
      %v6235 = vpack.c.b16 %v6083, %v6082
      %v6236 = vpack.c.b16 %v6085, %v6084
      %v6237 = vpack.c.b16 %v6087, %v6086
      %v6238 = vpack.c.b16 %v6089, %v6088
      %v6239 = vpack.c.b16 %v6091, %v6090
      %v6240 = vpack.c.b16 %v6093, %v6092
      %v6241 = vpack.c.b16 %v6095, %v6094
      %v6242 = vpack.c.b16 %v6097, %v6096
      %v6243 = vpack.c.b16 %v6099, %v6098
      %v6244 = vpack.c.b16 %v6101, %v6100
      %v6245 = vpack.c.b16 %v6103, %v6102
      %v6246 = vpack.c.b16 %v6105, %v6104
      %v6247 = vpack.c.b16 %v6107, %v6106
      %v6248 = vpack.c.b16 %v6109, %v6108
      %v6249 = vpack.c.b16 %v6111, %v6110
      %v6250 = vpack.c.b16 %v6113, %v6112
      %v6251 = vpack.c.b16 %v6115, %v6114
      %v6252 = vpack.c.b16 %v6117, %v6116
      %v6253 = vpack.c.b16 %v6119, %v6118
      %v6254 = vpack.c.b16 %v6121, %v6120
      %v6255 = vpack.c.b16 %v6123, %v6122
      %v6256 = vpack.c.b16 %v6125, %v6124
      %v6257 = vpack.c.b16 %v6127, %v6126
      %v6258 = vpack.c.b16 %v6129, %v6128
      %v6259 = vpack.c.b16 %v6131, %v6130
      %6388 = vmatprep.subr.bf16.mxu0 0
      %6389 = vmatpush1.bf16.msra.mxu0 %v6132
      %6390 = vmatprep.subr.bf16.mxu0 0
      %6391 = vmatpush1.bf16.msra.mxu0 %v6133
      %6392 = vmatprep.subr.bf16.mxu0 0
      %6393 = vmatpush1.bf16.msra.mxu0 %v6134
      %6394 = vmatprep.subr.bf16.mxu0 0
      %6395 = vmatpush1.bf16.msra.mxu0 %v6135
      %6396 = vmatprep.subr.bf16.mxu0 0
      %6397 = vmatpush1.bf16.msra.mxu0 %v6136
      %6398 = vmatprep.subr.bf16.mxu0 0
      %6399 = vmatpush1.bf16.msra.mxu0 %v6137
      %6400 = vmatprep.subr.bf16.mxu0 0
      %6401 = vmatpush1.bf16.msra.mxu0 %v6138
      %6402 = vmatprep.subr.bf16.mxu0 0
      %6403 = vmatpush1.bf16.msra.mxu0 %v6139
      %6404 = vmatprep.subr.bf16.mxu0 0
      %6405 = vmatpush1.bf16.msra.mxu0 %v6140
      %6406 = vmatprep.subr.bf16.mxu0 0
      %6407 = vmatpush1.bf16.msra.mxu0 %v6141
      %6408 = vmatprep.subr.bf16.mxu0 0
      %6409 = vmatpush1.bf16.msra.mxu0 %v6142
      %6410 = vmatprep.subr.bf16.mxu0 0
      %6411 = vmatpush1.bf16.msra.mxu0 %v6143
      %6412 = vmatprep.subr.bf16.mxu0 0
      %6413 = vmatpush1.bf16.msra.mxu0 %v6144
      %6414 = vmatprep.subr.bf16.mxu0 0
      %6415 = vmatpush1.bf16.msra.mxu0 %v6145
      %6416 = vmatprep.subr.bf16.mxu0 0
      %6417 = vmatpush1.bf16.msra.mxu0 %v6146
      %6418 = vmatprep.subr.bf16.mxu0 0
      %6419 = vmatpush1.bf16.msra.mxu0 %v6147
      %6420 = vmatprep.mubr.bf16.mxu0 %v1377
      %6421 = vmatmul.mubr.bf16.gmra.mrb[0].mxu0 %v1376
      %v6422 = vpop.f32.mrb[0].mxu0
      %v6423 = vadd.f32 0.0, %v6422
      %v6424 = vpop.f32.mrb[0].mxu0
      %v6425 = vpop.f32.mrb[0].mxu0
      %v6426 = vadd.f32 0.0, %v6425
      %v6427 = vpop.f32.mrb[0].mxu0
      %6428 = vmatprep.mubr.bf16.mxu0 %v1393
      %6429 = vmatmul.mubr.bf16.gmra.mrb[0].mxu0 %v1392
      %v6430 = vpop.f32.mrb[0].mxu0
      %v6431 = vadd.f32 0.0, %v6430
      %v6432 = vpop.f32.mrb[0].mxu0
      %v6433 = vpop.f32.mrb[0].mxu0
      %v6434 = vadd.f32 0.0, %v6433
      %v6435 = vpop.f32.mrb[0].mxu0
      %6436 = vmatprep.mubr.bf16.mxu0 %v1409
      %6437 = vmatmul.mubr.bf16.gmra.mrb[0].mxu0 %v1408
      %v6438 = vpop.f32.mrb[0].mxu0
      %v6439 = vadd.f32 0.0, %v6438
      %v6440 = vpop.f32.mrb[0].mxu0
      %v6441 = vpop.f32.mrb[0].mxu0
      %v6442 = vadd.f32 0.0, %v6441
      %v6443 = vpop.f32.mrb[0].mxu0
      %6444 = vmatprep.mubr.bf16.mxu0 %v1425
      %6445 = vmatmul.mubr.bf16.gmra.mrb[0].mxu0 %v1424
      %v6446 = vpop.f32.mrb[0].mxu0
      %v6447 = vadd.f32 0.0, %v6446
      %v6448 = vpop.f32.mrb[0].mxu0
      %v6449 = vpop.f32.mrb[0].mxu0
      %v6450 = vadd.f32 0.0, %v6449
      %v6451 = vpop.f32.mrb[0].mxu0
      %6452 = vmatprep.mubr.bf16.mxu0 %v1441
      %6453 = vmatmul.mubr.bf16.gmra.mrb[0].mxu0 %v1440
      %v6454 = vpop.f32.mrb[0].mxu0
      %v6455 = vadd.f32 0.0, %v6454
      %v6456 = vpop.f32.mrb[0].mxu0
      %v6457 = vpop.f32.mrb[0].mxu0
      %v6458 = vadd.f32 0.0, %v6457
      %v6459 = vpop.f32.mrb[0].mxu0
      %6460 = vmatprep.mubr.bf16.mxu0 %v1457
      %6461 = vmatmul.mubr.bf16.gmra.mrb[0].mxu0 %v1456
      %v6462 = vpop.f32.mrb[0].mxu0
      %v6463 = vadd.f32 0.0, %v6462
      %v6464 = vpop.f32.mrb[0].mxu0
      %v6465 = vpop.f32.mrb[0].mxu0
      %v6466 = vadd.f32 0.0, %v6465
      %v6467 = vpop.f32.mrb[0].mxu0
      %6468 = vmatprep.mubr.bf16.mxu0 %v1473
      %6469 = vmatmul.mubr.bf16.gmra.mrb[0].mxu0 %v1472
      %v6470 = vpop.f32.mrb[0].mxu0
      %v6471 = vadd.f32 0.0, %v6470
      %v6472 = vpop.f32.mrb[0].mxu0
      %v6473 = vpop.f32.mrb[0].mxu0
      %v6474 = vadd.f32 0.0, %v6473
      %v6475 = vpop.f32.mrb[0].mxu0
      %6476 = vmatprep.mubr.bf16.mxu0 %v1489
      %6477 = vmatmul.mubr.bf16.gmra.mrb[0].mxu0 %v1488
      %v6478 = vpop.f32.mrb[0].mxu0
      %v6479 = vadd.f32 0.0, %v6478
      %v6480 = vpop.f32.mrb[0].mxu0
      %v6481 = vpop.f32.mrb[0].mxu0
      %v6482 = vadd.f32 0.0, %v6481
      %v6483 = vpop.f32.mrb[0].mxu0
      %6484 = vdwg.mxu0
      %6485 = vmatprep.subr.bf16.mxu0 0
      %6486 = vmatpush1.bf16.msra.mxu0 %v6148
      %6487 = vmatprep.subr.bf16.mxu0 0
      %6488 = vmatpush1.bf16.msra.mxu0 %v6149
      %6489 = vmatprep.subr.bf16.mxu0 0
      %6490 = vmatpush1.bf16.msra.mxu0 %v6150
      %6491 = vmatprep.subr.bf16.mxu0 0
      %6492 = vmatpush1.bf16.msra.mxu0 %v6151
      %6493 = vmatprep.subr.bf16.mxu0 0
      %6494 = vmatpush1.bf16.msra.mxu0 %v6152
      %6495 = vmatprep.subr.bf16.mxu0 0
      %6496 = vmatpush1.bf16.msra.mxu0 %v6153
      %6497 = vmatprep.subr.bf16.mxu0 0
      %6498 = vmatpush1.bf16.msra.mxu0 %v6154
      %6499 = vmatprep.subr.bf16.mxu0 0
      %6500 = vmatpush1.bf16.msra.mxu0 %v6155
      %6501 = vmatprep.subr.bf16.mxu0 0
      %6502 = vmatpush1.bf16.msra.mxu0 %v6156
      %6503 = vmatprep.subr.bf16.mxu0 0
      %6504 = vmatpush1.bf16.msra.mxu0 %v6157
      %6505 = vmatprep.subr.bf16.mxu0 0
      %6506 = vmatpush1.bf16.msra.mxu0 %v6158
      %6507 = vmatprep.subr.bf16.mxu0 0
      %6508 = vmatpush1.bf16.msra.mxu0 %v6159
      %6509 = vmatprep.subr.bf16.mxu0 0
      %6510 = vmatpush1.bf16.msra.mxu0 %v6160
      %6511 = vmatprep.subr.bf16.mxu0 0
      %6512 = vmatpush1.bf16.msra.mxu0 %v6161
      %6513 = vmatprep.subr.bf16.mxu0 0
      %6514 = vmatpush1.bf16.msra.mxu0 %v6162
      %6515 = vmatprep.subr.bf16.mxu0 0
      %6516 = vmatpush1.bf16.msra.mxu0 %v6163
      %6517 = vmatprep.mubr.bf16.mxu0 %v1379
      %6518 = vmatmul.mubr.bf16.gmra.mrb[0].mxu0 %v1378
      %v6519 = vpop.f32.mrb[0].mxu0
      %v6520 = vadd.f32 %v6423, %v6519
      %v6521 = vpop.f32.mrb[0].mxu0
      %v6522 = vpop.f32.mrb[0].mxu0
      %v6523 = vadd.f32 %v6426, %v6522
      %v6524 = vpop.f32.mrb[0].mxu0
      %6525 = vmatprep.mubr.bf16.mxu0 %v1395
      %6526 = vmatmul.mubr.bf16.gmra.mrb[0].mxu0 %v1394
      %v6527 = vpop.f32.mrb[0].mxu0
      %v6528 = vadd.f32 %v6431, %v6527
      %v6529 = vpop.f32.mrb[0].mxu0
      %v6530 = vpop.f32.mrb[0].mxu0
      %v6531 = vadd.f32 %v6434, %v6530
      %v6532 = vpop.f32.mrb[0].mxu0
      %6533 = vmatprep.mubr.bf16.mxu0 %v1411
      %6534 = vmatmul.mubr.bf16.gmra.mrb[0].mxu0 %v1410
      %v6535 = vpop.f32.mrb[0].mxu0
      %v6536 = vadd.f32 %v6439, %v6535
      %v6537 = vpop.f32.mrb[0].mxu0
      %v6538 = vpop.f32.mrb[0].mxu0
      %v6539 = vadd.f32 %v6442, %v6538
      %v6540 = vpop.f32.mrb[0].mxu0
      %6541 = vmatprep.mubr.bf16.mxu0 %v1427
      %6542 = vmatmul.mubr.bf16.gmra.mrb[0].mxu0 %v1426
      %v6543 = vpop.f32.mrb[0].mxu0
      %v6544 = vadd.f32 %v6447, %v6543
      %v6545 = vpop.f32.mrb[0].mxu0
      %v6546 = vpop.f32.mrb[0].mxu0
      %v6547 = vadd.f32 %v6450, %v6546
      %v6548 = vpop.f32.mrb[0].mxu0
      %6549 = vmatprep.mubr.bf16.mxu0 %v1443
      %6550 = vmatmul.mubr.bf16.gmra.mrb[0].mxu0 %v1442
      %v6551 = vpop.f32.mrb[0].mxu0
      %v6552 = vadd.f32 %v6455, %v6551
      %v6553 = vpop.f32.mrb[0].mxu0
      %v6554 = vpop.f32.mrb[0].mxu0
      %v6555 = vadd.f32 %v6458, %v6554
      %v6556 = vpop.f32.mrb[0].mxu0
      %6557 = vmatprep.mubr.bf16.mxu0 %v1459
      %6558 = vmatmul.mubr.bf16.gmra.mrb[0].mxu0 %v1458
      %v6559 = vpop.f32.mrb[0].mxu0
      %v6560 = vadd.f32 %v6463, %v6559
      %v6561 = vpop.f32.mrb[0].mxu0
      %v6562 = vpop.f32.mrb[0].mxu0
      %v6563 = vadd.f32 %v6466, %v6562
      %v6564 = vpop.f32.mrb[0].mxu0
      %6565 = vmatprep.mubr.bf16.mxu0 %v1475
      %6566 = vmatmul.mubr.bf16.gmra.mrb[0].mxu0 %v1474
      %v6567 = vpop.f32.mrb[0].mxu0
      %v6568 = vadd.f32 %v6471, %v6567
      %v6569 = vpop.f32.mrb[0].mxu0
      %v6570 = vpop.f32.mrb[0].mxu0
      %v6571 = vadd.f32 %v6474, %v6570
      %v6572 = vpop.f32.mrb[0].mxu0
      %6573 = vmatprep.mubr.bf16.mxu0 %v1491
      %6574 = vmatmul.mubr.bf16.gmra.mrb[0].mxu0 %v1490
      %v6575 = vpop.f32.mrb[0].mxu0
      %v6576 = vadd.f32 %v6479, %v6575
      %v6577 = vpop.f32.mrb[0].mxu0
      %v6578 = vpop.f32.mrb[0].mxu0
      %v6579 = vadd.f32 %v6482, %v6578
      %v6580 = vpop.f32.mrb[0].mxu0
      %6581 = vdwg.mxu0
      %6582 = vmatprep.subr.bf16.mxu0 0
      %6583 = vmatpush1.bf16.msra.mxu0 %v6164
      %6584 = vmatprep.subr.bf16.mxu0 0
      %6585 = vmatpush1.bf16.msra.mxu0 %v6165
      %6586 = vmatprep.subr.bf16.mxu0 0
      %6587 = vmatpush1.bf16.msra.mxu0 %v6166
      %6588 = vmatprep.subr.bf16.mxu0 0
      %6589 = vmatpush1.bf16.msra.mxu0 %v6167
      %6590 = vmatprep.subr.bf16.mxu0 0
      %6591 = vmatpush1.bf16.msra.mxu0 %v6168
      %6592 = vmatprep.subr.bf16.mxu0 0
      %6593 = vmatpush1.bf16.msra.mxu0 %v6169
      %6594 = vmatprep.subr.bf16.mxu0 0
      %6595 = vmatpush1.bf16.msra.mxu0 %v6170
      %6596 = vmatprep.subr.bf16.mxu0 0
      %6597 = vmatpush1.bf16.msra.mxu0 %v6171
      %6598 = vmatprep.subr.bf16.mxu0 0
      %6599 = vmatpush1.bf16.msra.mxu0 %v6172
      %6600 = vmatprep.subr.bf16.mxu0 0
      %6601 = vmatpush1.bf16.msra.mxu0 %v6173
      %6602 = vmatprep.subr.bf16.mxu0 0
      %6603 = vmatpush1.bf16.msra.mxu0 %v6174
      %6604 = vmatprep.subr.bf16.mxu0 0
      %6605 = vmatpush1.bf16.msra.mxu0 %v6175
      %6606 = vmatprep.subr.bf16.mxu0 0
      %6607 = vmatpush1.bf16.msra.mxu0 %v6176
      %6608 = vmatprep.subr.bf16.mxu0 0
      %6609 = vmatpush1.bf16.msra.mxu0 %v6177
      %6610 = vmatprep.subr.bf16.mxu0 0
      %6611 = vmatpush1.bf16.msra.mxu0 %v6178
      %6612 = vmatprep.subr.bf16.mxu0 0
      %6613 = vmatpush1.bf16.msra.mxu0 %v6179
      %6614 = vmatprep.mubr.bf16.mxu0 %v1381
      %6615 = vmatmul.mubr.bf16.gmra.mrb[0].mxu0 %v1380
      %v6616 = vpop.f32.mrb[0].mxu0
      %v6617 = vadd.f32 %v6520, %v6616
      %v6618 = vpop.f32.mrb[0].mxu0
      %v6619 = vpop.f32.mrb[0].mxu0
      %v6620 = vadd.f32 %v6523, %v6619
      %v6621 = vpop.f32.mrb[0].mxu0
      %6622 = vmatprep.mubr.bf16.mxu0 %v1397
      %6623 = vmatmul.mubr.bf16.gmra.mrb[0].mxu0 %v1396
      %v6624 = vpop.f32.mrb[0].mxu0
      %v6625 = vadd.f32 %v6528, %v6624
      %v6626 = vpop.f32.mrb[0].mxu0
      %v6627 = vpop.f32.mrb[0].mxu0
      %v6628 = vadd.f32 %v6531, %v6627
      %v6629 = vpop.f32.mrb[0].mxu0
      %6630 = vmatprep.mubr.bf16.mxu0 %v1413
      %6631 = vmatmul.mubr.bf16.gmra.mrb[0].mxu0 %v1412
      %v6632 = vpop.f32.mrb[0].mxu0
      %v6633 = vadd.f32 %v6536, %v6632
      %v6634 = vpop.f32.mrb[0].mxu0
      %v6635 = vpop.f32.mrb[0].mxu0
      %v6636 = vadd.f32 %v6539, %v6635
      %v6637 = vpop.f32.mrb[0].mxu0
      %6638 = vmatprep.mubr.bf16.mxu0 %v1429
      %6639 = vmatmul.mubr.bf16.gmra.mrb[0].mxu0 %v1428
      %v6640 = vpop.f32.mrb[0].mxu0
      %v6641 = vadd.f32 %v6544, %v6640
      %v6642 = vpop.f32.mrb[0].mxu0
      %v6643 = vpop.f32.mrb[0].mxu0
      %v6644 = vadd.f32 %v6547, %v6643
      %v6645 = vpop.f32.mrb[0].mxu0
      %6646 = vmatprep.mubr.bf16.mxu0 %v1445
      %6647 = vmatmul.mubr.bf16.gmra.mrb[0].mxu0 %v1444
      %v6648 = vpop.f32.mrb[0].mxu0
      %v6649 = vadd.f32 %v6552, %v6648
      %v6650 = vpop.f32.mrb[0].mxu0
      %v6651 = vpop.f32.mrb[0].mxu0
      %v6652 = vadd.f32 %v6555, %v6651
      %v6653 = vpop.f32.mrb[0].mxu0
      %6654 = vmatprep.mubr.bf16.mxu0 %v1461
      %6655 = vmatmul.mubr.bf16.gmra.mrb[0].mxu0 %v1460
      %v6656 = vpop.f32.mrb[0].mxu0
      %v6657 = vadd.f32 %v6560, %v6656
      %v6658 = vpop.f32.mrb[0].mxu0
      %v6659 = vpop.f32.mrb[0].mxu0
      %v6660 = vadd.f32 %v6563, %v6659
      %v6661 = vpop.f32.mrb[0].mxu0
      %6662 = vmatprep.mubr.bf16.mxu0 %v1477
      %6663 = vmatmul.mubr.bf16.gmra.mrb[0].mxu0 %v1476
      %v6664 = vpop.f32.mrb[0].mxu0
      %v6665 = vadd.f32 %v6568, %v6664
      %v6666 = vpop.f32.mrb[0].mxu0
      %v6667 = vpop.f32.mrb[0].mxu0
      %v6668 = vadd.f32 %v6571, %v6667
      %v6669 = vpop.f32.mrb[0].mxu0
      %6670 = vmatprep.mubr.bf16.mxu0 %v1493
      %6671 = vmatmul.mubr.bf16.gmra.mrb[0].mxu0 %v1492
      %v6672 = vpop.f32.mrb[0].mxu0
      %v6673 = vadd.f32 %v6576, %v6672
      %v6674 = vpop.f32.mrb[0].mxu0
      %v6675 = vpop.f32.mrb[0].mxu0
      %v6676 = vadd.f32 %v6579, %v6675
      %v6677 = vpop.f32.mrb[0].mxu0
      %6678 = vdwg.mxu0
      %6679 = vmatprep.subr.bf16.mxu0 0
      %6680 = vmatpush1.bf16.msra.mxu0 %v6180
      %6681 = vmatprep.subr.bf16.mxu0 0
      %6682 = vmatpush1.bf16.msra.mxu0 %v6181
      %6683 = vmatprep.subr.bf16.mxu0 0
      %6684 = vmatpush1.bf16.msra.mxu0 %v6182
      %6685 = vmatprep.subr.bf16.mxu0 0
      %6686 = vmatpush1.bf16.msra.mxu0 %v6183
      %6687 = vmatprep.subr.bf16.mxu0 0
      %6688 = vmatpush1.bf16.msra.mxu0 %v6184
      %6689 = vmatprep.subr.bf16.mxu0 0
      %6690 = vmatpush1.bf16.msra.mxu0 %v6185
      %6691 = vmatprep.subr.bf16.mxu0 0
      %6692 = vmatpush1.bf16.msra.mxu0 %v6186
      %6693 = vmatprep.subr.bf16.mxu0 0
      %6694 = vmatpush1.bf16.msra.mxu0 %v6187
      %6695 = vmatprep.subr.bf16.mxu0 0
      %6696 = vmatpush1.bf16.msra.mxu0 %v6188
      %6697 = vmatprep.subr.bf16.mxu0 0
      %6698 = vmatpush1.bf16.msra.mxu0 %v6189
      %6699 = vmatprep.subr.bf16.mxu0 0
      %6700 = vmatpush1.bf16.msra.mxu0 %v6190
      %6701 = vmatprep.subr.bf16.mxu0 0
      %6702 = vmatpush1.bf16.msra.mxu0 %v6191
      %6703 = vmatprep.subr.bf16.mxu0 0
      %6704 = vmatpush1.bf16.msra.mxu0 %v6192
      %6705 = vmatprep.subr.bf16.mxu0 0
      %6706 = vmatpush1.bf16.msra.mxu0 %v6193
      %6707 = vmatprep.subr.bf16.mxu0 0
      %6708 = vmatpush1.bf16.msra.mxu0 %v6194
      %6709 = vmatprep.subr.bf16.mxu0 0
      %6710 = vmatpush1.bf16.msra.mxu0 %v6195
      %6711 = vmatprep.mubr.bf16.mxu0 %v1383
      %6712 = vmatmul.mubr.bf16.gmra.mrb[0].mxu0 %v1382
      %v6713 = vpop.f32.mrb[0].mxu0
      %v6714 = vadd.f32 %v6617, %v6713
      %v6715 = vpop.f32.mrb[0].mxu0
      %v6716 = vpop.f32.mrb[0].mxu0
      %v6717 = vadd.f32 %v6620, %v6716
      %v6718 = vpop.f32.mrb[0].mxu0
      %6719 = vmatprep.mubr.bf16.mxu0 %v1399
      %6720 = vmatmul.mubr.bf16.gmra.mrb[0].mxu0 %v1398
      %v6721 = vpop.f32.mrb[0].mxu0
      %v6722 = vadd.f32 %v6625, %v6721
      %v6723 = vpop.f32.mrb[0].mxu0
      %v6724 = vpop.f32.mrb[0].mxu0
      %v6725 = vadd.f32 %v6628, %v6724
      %v6726 = vpop.f32.mrb[0].mxu0
      %6727 = vmatprep.mubr.bf16.mxu0 %v1415
      %6728 = vmatmul.mubr.bf16.gmra.mrb[0].mxu0 %v1414
      %v6729 = vpop.f32.mrb[0].mxu0
      %v6730 = vadd.f32 %v6633, %v6729
      %v6731 = vpop.f32.mrb[0].mxu0
      %v6732 = vpop.f32.mrb[0].mxu0
      %v6733 = vadd.f32 %v6636, %v6732
      %v6734 = vpop.f32.mrb[0].mxu0
      %6735 = vmatprep.mubr.bf16.mxu0 %v1431
      %6736 = vmatmul.mubr.bf16.gmra.mrb[0].mxu0 %v1430
      %v6737 = vpop.f32.mrb[0].mxu0
      %v6738 = vadd.f32 %v6641, %v6737
      %v6739 = vpop.f32.mrb[0].mxu0
      %v6740 = vpop.f32.mrb[0].mxu0
      %v6741 = vadd.f32 %v6644, %v6740
      %v6742 = vpop.f32.mrb[0].mxu0
      %6743 = vmatprep.mubr.bf16.mxu0 %v1447
      %6744 = vmatmul.mubr.bf16.gmra.mrb[0].mxu0 %v1446
      %v6745 = vpop.f32.mrb[0].mxu0
      %v6746 = vadd.f32 %v6649, %v6745
      %v6747 = vpop.f32.mrb[0].mxu0
      %v6748 = vpop.f32.mrb[0].mxu0
      %v6749 = vadd.f32 %v6652, %v6748
      %v6750 = vpop.f32.mrb[0].mxu0
      %6751 = vmatprep.mubr.bf16.mxu0 %v1463
      %6752 = vmatmul.mubr.bf16.gmra.mrb[0].mxu0 %v1462
      %v6753 = vpop.f32.mrb[0].mxu0
      %v6754 = vadd.f32 %v6657, %v6753
      %v6755 = vpop.f32.mrb[0].mxu0
      %v6756 = vpop.f32.mrb[0].mxu0
      %v6757 = vadd.f32 %v6660, %v6756
      %v6758 = vpop.f32.mrb[0].mxu0
      %6759 = vmatprep.mubr.bf16.mxu0 %v1479
      %6760 = vmatmul.mubr.bf16.gmra.mrb[0].mxu0 %v1478
      %v6761 = vpop.f32.mrb[0].mxu0
      %v6762 = vadd.f32 %v6665, %v6761
      %v6763 = vpop.f32.mrb[0].mxu0
      %v6764 = vpop.f32.mrb[0].mxu0
      %v6765 = vadd.f32 %v6668, %v6764
      %v6766 = vpop.f32.mrb[0].mxu0
      %6767 = vmatprep.mubr.bf16.mxu0 %v1495
      %6768 = vmatmul.mubr.bf16.gmra.mrb[0].mxu0 %v1494
      %v6769 = vpop.f32.mrb[0].mxu0
      %v6770 = vadd.f32 %v6673, %v6769
      %v6771 = vpop.f32.mrb[0].mxu0
      %v6772 = vpop.f32.mrb[0].mxu0
      %v6773 = vadd.f32 %v6676, %v6772
      %v6774 = vpop.f32.mrb[0].mxu0
      %6775 = vdwg.mxu0
      %6776 = vmatprep.subr.bf16.mxu0 0
      %6777 = vmatpush1.bf16.msra.mxu0 %v6196
      %6778 = vmatprep.subr.bf16.mxu0 0
      %6779 = vmatpush1.bf16.msra.mxu0 %v6197
      %6780 = vmatprep.subr.bf16.mxu0 0
      %6781 = vmatpush1.bf16.msra.mxu0 %v6198
      %6782 = vmatprep.subr.bf16.mxu0 0
      %6783 = vmatpush1.bf16.msra.mxu0 %v6199
      %6784 = vmatprep.subr.bf16.mxu0 0
      %6785 = vmatpush1.bf16.msra.mxu0 %v6200
      %6786 = vmatprep.subr.bf16.mxu0 0
      %6787 = vmatpush1.bf16.msra.mxu0 %v6201
      %6788 = vmatprep.subr.bf16.mxu0 0
      %6789 = vmatpush1.bf16.msra.mxu0 %v6202
      %6790 = vmatprep.subr.bf16.mxu0 0
      %6791 = vmatpush1.bf16.msra.mxu0 %v6203
      %6792 = vmatprep.subr.bf16.mxu0 0
      %6793 = vmatpush1.bf16.msra.mxu0 %v6204
      %6794 = vmatprep.subr.bf16.mxu0 0
      %6795 = vmatpush1.bf16.msra.mxu0 %v6205
      %6796 = vmatprep.subr.bf16.mxu0 0
      %6797 = vmatpush1.bf16.msra.mxu0 %v6206
      %6798 = vmatprep.subr.bf16.mxu0 0
      %6799 = vmatpush1.bf16.msra.mxu0 %v6207
      %6800 = vmatprep.subr.bf16.mxu0 0
      %6801 = vmatpush1.bf16.msra.mxu0 %v6208
      %6802 = vmatprep.subr.bf16.mxu0 0
      %6803 = vmatpush1.bf16.msra.mxu0 %v6209
      %6804 = vmatprep.subr.bf16.mxu0 0
      %6805 = vmatpush1.bf16.msra.mxu0 %v6210
      %6806 = vmatprep.subr.bf16.mxu0 0
      %6807 = vmatpush1.bf16.msra.mxu0 %v6211
      %6808 = vmatprep.mubr.bf16.mxu0 %v1385
      %6809 = vmatmul.mubr.bf16.gmra.mrb[0].mxu0 %v1384
      %v6810 = vpop.f32.mrb[0].mxu0
      %v6811 = vadd.f32 %v6714, %v6810
      %v6812 = vpop.f32.mrb[0].mxu0
      %v6813 = vpop.f32.mrb[0].mxu0
      %v6814 = vadd.f32 %v6717, %v6813
      %v6815 = vpop.f32.mrb[0].mxu0
      %6816 = vmatprep.mubr.bf16.mxu0 %v1401
      %6817 = vmatmul.mubr.bf16.gmra.mrb[0].mxu0 %v1400
      %v6818 = vpop.f32.mrb[0].mxu0
      %v6819 = vadd.f32 %v6722, %v6818
      %v6820 = vpop.f32.mrb[0].mxu0
      %v6821 = vpop.f32.mrb[0].mxu0
      %v6822 = vadd.f32 %v6725, %v6821
      %v6823 = vpop.f32.mrb[0].mxu0
      %6824 = vmatprep.mubr.bf16.mxu0 %v1417
      %6825 = vmatmul.mubr.bf16.gmra.mrb[0].mxu0 %v1416
      %v6826 = vpop.f32.mrb[0].mxu0
      %v6827 = vadd.f32 %v6730, %v6826
      %v6828 = vpop.f32.mrb[0].mxu0
      %v6829 = vpop.f32.mrb[0].mxu0
      %v6830 = vadd.f32 %v6733, %v6829
      %v6831 = vpop.f32.mrb[0].mxu0
      %6832 = vmatprep.mubr.bf16.mxu0 %v1433
      %6833 = vmatmul.mubr.bf16.gmra.mrb[0].mxu0 %v1432
      %v6834 = vpop.f32.mrb[0].mxu0
      %v6835 = vadd.f32 %v6738, %v6834
      %v6836 = vpop.f32.mrb[0].mxu0
      %v6837 = vpop.f32.mrb[0].mxu0
      %v6838 = vadd.f32 %v6741, %v6837
      %v6839 = vpop.f32.mrb[0].mxu0
      %6840 = vmatprep.mubr.bf16.mxu0 %v1449
      %6841 = vmatmul.mubr.bf16.gmra.mrb[0].mxu0 %v1448
      %v6842 = vpop.f32.mrb[0].mxu0
      %v6843 = vadd.f32 %v6746, %v6842
      %v6844 = vpop.f32.mrb[0].mxu0
      %v6845 = vpop.f32.mrb[0].mxu0
      %v6846 = vadd.f32 %v6749, %v6845
      %v6847 = vpop.f32.mrb[0].mxu0
      %6848 = vmatprep.mubr.bf16.mxu0 %v1465
      %6849 = vmatmul.mubr.bf16.gmra.mrb[0].mxu0 %v1464
      %v6850 = vpop.f32.mrb[0].mxu0
      %v6851 = vadd.f32 %v6754, %v6850
      %v6852 = vpop.f32.mrb[0].mxu0
      %v6853 = vpop.f32.mrb[0].mxu0
      %v6854 = vadd.f32 %v6757, %v6853
      %v6855 = vpop.f32.mrb[0].mxu0
      %6856 = vmatprep.mubr.bf16.mxu0 %v1481
      %6857 = vmatmul.mubr.bf16.gmra.mrb[0].mxu0 %v1480
      %v6858 = vpop.f32.mrb[0].mxu0
      %v6859 = vadd.f32 %v6762, %v6858
      %v6860 = vpop.f32.mrb[0].mxu0
      %v6861 = vpop.f32.mrb[0].mxu0
      %v6862 = vadd.f32 %v6765, %v6861
      %v6863 = vpop.f32.mrb[0].mxu0
      %6864 = vmatprep.mubr.bf16.mxu0 %v1497
      %6865 = vmatmul.mubr.bf16.gmra.mrb[0].mxu0 %v1496
      %v6866 = vpop.f32.mrb[0].mxu0
      %v6867 = vadd.f32 %v6770, %v6866
      %v6868 = vpop.f32.mrb[0].mxu0
      %v6869 = vpop.f32.mrb[0].mxu0
      %v6870 = vadd.f32 %v6773, %v6869
      %v6871 = vpop.f32.mrb[0].mxu0
      %6872 = vdwg.mxu0
      %6873 = vmatprep.subr.bf16.mxu0 0
      %6874 = vmatpush1.bf16.msra.mxu0 %v6212
      %6875 = vmatprep.subr.bf16.mxu0 0
      %6876 = vmatpush1.bf16.msra.mxu0 %v6213
      %6877 = vmatprep.subr.bf16.mxu0 0
      %6878 = vmatpush1.bf16.msra.mxu0 %v6214
      %6879 = vmatprep.subr.bf16.mxu0 0
      %6880 = vmatpush1.bf16.msra.mxu0 %v6215
      %6881 = vmatprep.subr.bf16.mxu0 0
      %6882 = vmatpush1.bf16.msra.mxu0 %v6216
      %6883 = vmatprep.subr.bf16.mxu0 0
      %6884 = vmatpush1.bf16.msra.mxu0 %v6217
      %6885 = vmatprep.subr.bf16.mxu0 0
      %6886 = vmatpush1.bf16.msra.mxu0 %v6218
      %6887 = vmatprep.subr.bf16.mxu0 0
      %6888 = vmatpush1.bf16.msra.mxu0 %v6219
      %6889 = vmatprep.subr.bf16.mxu0 0
      %6890 = vmatpush1.bf16.msra.mxu0 %v6220
      %6891 = vmatprep.subr.bf16.mxu0 0
      %6892 = vmatpush1.bf16.msra.mxu0 %v6221
      %6893 = vmatprep.subr.bf16.mxu0 0
      %6894 = vmatpush1.bf16.msra.mxu0 %v6222
      %6895 = vmatprep.subr.bf16.mxu0 0
      %6896 = vmatpush1.bf16.msra.mxu0 %v6223
      %6897 = vmatprep.subr.bf16.mxu0 0
      %6898 = vmatpush1.bf16.msra.mxu0 %v6224
      %6899 = vmatprep.subr.bf16.mxu0 0
      %6900 = vmatpush1.bf16.msra.mxu0 %v6225
      %6901 = vmatprep.subr.bf16.mxu0 0
      %6902 = vmatpush1.bf16.msra.mxu0 %v6226
      %6903 = vmatprep.subr.bf16.mxu0 0
      %6904 = vmatpush1.bf16.msra.mxu0 %v6227
      %6905 = vmatprep.mubr.bf16.mxu0 %v1387
      %6906 = vmatmul.mubr.bf16.gmra.mrb[0].mxu0 %v1386
      %v6907 = vpop.f32.mrb[0].mxu0
      %v6908 = vadd.f32 %v6811, %v6907
      %v6909 = vpop.f32.mrb[0].mxu0
      %v6910 = vpop.f32.mrb[0].mxu0
      %v6911 = vadd.f32 %v6814, %v6910
      %v6912 = vpop.f32.mrb[0].mxu0
      %6913 = vmatprep.mubr.bf16.mxu0 %v1403
      %6914 = vmatmul.mubr.bf16.gmra.mrb[0].mxu0 %v1402
      %v6915 = vpop.f32.mrb[0].mxu0
      %v6916 = vadd.f32 %v6819, %v6915
      %v6917 = vpop.f32.mrb[0].mxu0
      %v6918 = vpop.f32.mrb[0].mxu0
      %v6919 = vadd.f32 %v6822, %v6918
      %v6920 = vpop.f32.mrb[0].mxu0
      %6921 = vmatprep.mubr.bf16.mxu0 %v1419
      %6922 = vmatmul.mubr.bf16.gmra.mrb[0].mxu0 %v1418
      %v6923 = vpop.f32.mrb[0].mxu0
      %v6924 = vadd.f32 %v6827, %v6923
      %v6925 = vpop.f32.mrb[0].mxu0
      %v6926 = vpop.f32.mrb[0].mxu0
      %v6927 = vadd.f32 %v6830, %v6926
      %v6928 = vpop.f32.mrb[0].mxu0
      %6929 = vmatprep.mubr.bf16.mxu0 %v1435
      %6930 = vmatmul.mubr.bf16.gmra.mrb[0].mxu0 %v1434
      %v6931 = vpop.f32.mrb[0].mxu0
      %v6932 = vadd.f32 %v6835, %v6931
      %v6933 = vpop.f32.mrb[0].mxu0
      %v6934 = vpop.f32.mrb[0].mxu0
      %v6935 = vadd.f32 %v6838, %v6934
      %v6936 = vpop.f32.mrb[0].mxu0
      %6937 = vmatprep.mubr.bf16.mxu0 %v1451
      %6938 = vmatmul.mubr.bf16.gmra.mrb[0].mxu0 %v1450
      %v6939 = vpop.f32.mrb[0].mxu0
      %v6940 = vadd.f32 %v6843, %v6939
      %v6941 = vpop.f32.mrb[0].mxu0
      %v6942 = vpop.f32.mrb[0].mxu0
      %v6943 = vadd.f32 %v6846, %v6942
      %v6944 = vpop.f32.mrb[0].mxu0
      %6945 = vmatprep.mubr.bf16.mxu0 %v1467
      %6946 = vmatmul.mubr.bf16.gmra.mrb[0].mxu0 %v1466
      %v6947 = vpop.f32.mrb[0].mxu0
      %v6948 = vadd.f32 %v6851, %v6947
      %v6949 = vpop.f32.mrb[0].mxu0
      %v6950 = vpop.f32.mrb[0].mxu0
      %v6951 = vadd.f32 %v6854, %v6950
      %v6952 = vpop.f32.mrb[0].mxu0
      %6953 = vmatprep.mubr.bf16.mxu0 %v1483
      %6954 = vmatmul.mubr.bf16.gmra.mrb[0].mxu0 %v1482
      %v6955 = vpop.f32.mrb[0].mxu0
      %v6956 = vadd.f32 %v6859, %v6955
      %v6957 = vpop.f32.mrb[0].mxu0
      %v6958 = vpop.f32.mrb[0].mxu0
      %v6959 = vadd.f32 %v6862, %v6958
      %v6960 = vpop.f32.mrb[0].mxu0
      %6961 = vmatprep.mubr.bf16.mxu0 %v1499
      %6962 = vmatmul.mubr.bf16.gmra.mrb[0].mxu0 %v1498
      %v6963 = vpop.f32.mrb[0].mxu0
      %v6964 = vadd.f32 %v6867, %v6963
      %v6965 = vpop.f32.mrb[0].mxu0
      %v6966 = vpop.f32.mrb[0].mxu0
      %v6967 = vadd.f32 %v6870, %v6966
      %v6968 = vpop.f32.mrb[0].mxu0
      %6969 = vdwg.mxu0
      %6970 = vmatprep.subr.bf16.mxu0 0
      %6971 = vmatpush1.bf16.msra.mxu0 %v6228
      %6972 = vmatprep.subr.bf16.mxu0 0
      %6973 = vmatpush1.bf16.msra.mxu0 %v6229
      %6974 = vmatprep.subr.bf16.mxu0 0
      %6975 = vmatpush1.bf16.msra.mxu0 %v6230
      %6976 = vmatprep.subr.bf16.mxu0 0
      %6977 = vmatpush1.bf16.msra.mxu0 %v6231
      %6978 = vmatprep.subr.bf16.mxu0 0
      %6979 = vmatpush1.bf16.msra.mxu0 %v6232
      %6980 = vmatprep.subr.bf16.mxu0 0
      %6981 = vmatpush1.bf16.msra.mxu0 %v6233
      %6982 = vmatprep.subr.bf16.mxu0 0
      %6983 = vmatpush1.bf16.msra.mxu0 %v6234
      %6984 = vmatprep.subr.bf16.mxu0 0
      %6985 = vmatpush1.bf16.msra.mxu0 %v6235
      %6986 = vmatprep.subr.bf16.mxu0 0
      %6987 = vmatpush1.bf16.msra.mxu0 %v6236
      %6988 = vmatprep.subr.bf16.mxu0 0
      %6989 = vmatpush1.bf16.msra.mxu0 %v6237
      %6990 = vmatprep.subr.bf16.mxu0 0
      %6991 = vmatpush1.bf16.msra.mxu0 %v6238
      %6992 = vmatprep.subr.bf16.mxu0 0
      %6993 = vmatpush1.bf16.msra.mxu0 %v6239
      %6994 = vmatprep.subr.bf16.mxu0 0
      %6995 = vmatpush1.bf16.msra.mxu0 %v6240
      %6996 = vmatprep.subr.bf16.mxu0 0
      %6997 = vmatpush1.bf16.msra.mxu0 %v6241
      %6998 = vmatprep.subr.bf16.mxu0 0
      %6999 = vmatpush1.bf16.msra.mxu0 %v6242
      %7000 = vmatprep.subr.bf16.mxu0 0
      %7001 = vmatpush1.bf16.msra.mxu0 %v6243
      %7002 = vmatprep.mubr.bf16.mxu0 %v1389
      %7003 = vmatmul.mubr.bf16.gmra.mrb[0].mxu0 %v1388
      %v7004 = vpop.f32.mrb[0].mxu0
      %v7005 = vadd.f32 %v6908, %v7004
      %v7006 = vpop.f32.mrb[0].mxu0
      %v7007 = vpop.f32.mrb[0].mxu0
      %v7008 = vadd.f32 %v6911, %v7007
      %v7009 = vpop.f32.mrb[0].mxu0
      %7010 = vmatprep.mubr.bf16.mxu0 %v1405
      %7011 = vmatmul.mubr.bf16.gmra.mrb[0].mxu0 %v1404
      %v7012 = vpop.f32.mrb[0].mxu0
      %v7013 = vadd.f32 %v6916, %v7012
      %v7014 = vpop.f32.mrb[0].mxu0
      %v7015 = vpop.f32.mrb[0].mxu0
      %v7016 = vadd.f32 %v6919, %v7015
      %v7017 = vpop.f32.mrb[0].mxu0
      %7018 = vmatprep.mubr.bf16.mxu0 %v1421
      %7019 = vmatmul.mubr.bf16.gmra.mrb[0].mxu0 %v1420
      %v7020 = vpop.f32.mrb[0].mxu0
      %v7021 = vadd.f32 %v6924, %v7020
      %v7022 = vpop.f32.mrb[0].mxu0
      %v7023 = vpop.f32.mrb[0].mxu0
      %v7024 = vadd.f32 %v6927, %v7023
      %v7025 = vpop.f32.mrb[0].mxu0
      %7026 = vmatprep.mubr.bf16.mxu0 %v1437
      %7027 = vmatmul.mubr.bf16.gmra.mrb[0].mxu0 %v1436
      %v7028 = vpop.f32.mrb[0].mxu0
      %v7029 = vadd.f32 %v6932, %v7028
      %v7030 = vpop.f32.mrb[0].mxu0
      %v7031 = vpop.f32.mrb[0].mxu0
      %v7032 = vadd.f32 %v6935, %v7031
      %v7033 = vpop.f32.mrb[0].mxu0
      %7034 = vmatprep.mubr.bf16.mxu0 %v1453
      %7035 = vmatmul.mubr.bf16.gmra.mrb[0].mxu0 %v1452
      %v7036 = vpop.f32.mrb[0].mxu0
      %v7037 = vadd.f32 %v6940, %v7036
      %v7038 = vpop.f32.mrb[0].mxu0
      %v7039 = vpop.f32.mrb[0].mxu0
      %v7040 = vadd.f32 %v6943, %v7039
      %v7041 = vpop.f32.mrb[0].mxu0
      %7042 = vmatprep.mubr.bf16.mxu0 %v1469
      %7043 = vmatmul.mubr.bf16.gmra.mrb[0].mxu0 %v1468
      %v7044 = vpop.f32.mrb[0].mxu0
      %v7045 = vadd.f32 %v6948, %v7044
      %v7046 = vpop.f32.mrb[0].mxu0
      %v7047 = vpop.f32.mrb[0].mxu0
      %v7048 = vadd.f32 %v6951, %v7047
      %v7049 = vpop.f32.mrb[0].mxu0
      %7050 = vmatprep.mubr.bf16.mxu0 %v1485
      %7051 = vmatmul.mubr.bf16.gmra.mrb[0].mxu0 %v1484
      %v7052 = vpop.f32.mrb[0].mxu0
      %v7053 = vadd.f32 %v6956, %v7052
      %v7054 = vpop.f32.mrb[0].mxu0
      %v7055 = vpop.f32.mrb[0].mxu0
      %v7056 = vadd.f32 %v6959, %v7055
      %v7057 = vpop.f32.mrb[0].mxu0
      %7058 = vmatprep.mubr.bf16.mxu0 %v1501
      %7059 = vmatmul.mubr.bf16.gmra.mrb[0].mxu0 %v1500
      %v7060 = vpop.f32.mrb[0].mxu0
      %v7061 = vadd.f32 %v6964, %v7060
      %v7062 = vpop.f32.mrb[0].mxu0
      %v7063 = vpop.f32.mrb[0].mxu0
      %v7064 = vadd.f32 %v6967, %v7063
      %v7065 = vpop.f32.mrb[0].mxu0
      %7066 = vdwg.mxu0
      %7067 = vmatprep.subr.bf16.mxu0 0
      %7068 = vmatpush1.bf16.msra.mxu0 %v6244
      %7069 = vmatprep.subr.bf16.mxu0 0
      %7070 = vmatpush1.bf16.msra.mxu0 %v6245
      %7071 = vmatprep.subr.bf16.mxu0 0
      %7072 = vmatpush1.bf16.msra.mxu0 %v6246
      %7073 = vmatprep.subr.bf16.mxu0 0
      %7074 = vmatpush1.bf16.msra.mxu0 %v6247
      %7075 = vmatprep.subr.bf16.mxu0 0
      %7076 = vmatpush1.bf16.msra.mxu0 %v6248
      %7077 = vmatprep.subr.bf16.mxu0 0
      %7078 = vmatpush1.bf16.msra.mxu0 %v6249
      %7079 = vmatprep.subr.bf16.mxu0 0
      %7080 = vmatpush1.bf16.msra.mxu0 %v6250
      %7081 = vmatprep.subr.bf16.mxu0 0
      %7082 = vmatpush1.bf16.msra.mxu0 %v6251
      %7083 = vmatprep.subr.bf16.mxu0 0
      %7084 = vmatpush1.bf16.msra.mxu0 %v6252
      %7085 = vmatprep.subr.bf16.mxu0 0
      %7086 = vmatpush1.bf16.msra.mxu0 %v6253
      %7087 = vmatprep.subr.bf16.mxu0 0
      %7088 = vmatpush1.bf16.msra.mxu0 %v6254
      %7089 = vmatprep.subr.bf16.mxu0 0
      %7090 = vmatpush1.bf16.msra.mxu0 %v6255
      %7091 = vmatprep.subr.bf16.mxu0 0
      %7092 = vmatpush1.bf16.msra.mxu0 %v6256
      %7093 = vmatprep.subr.bf16.mxu0 0
      %7094 = vmatpush1.bf16.msra.mxu0 %v6257
      %7095 = vmatprep.subr.bf16.mxu0 0
      %7096 = vmatpush1.bf16.msra.mxu0 %v6258
      %7097 = vmatprep.subr.bf16.mxu0 0
      %7098 = vmatpush1.bf16.msra.mxu0 %v6259
      %7099 = vmatprep.mubr.bf16.mxu0 %v1391
      %7100 = vmatmul.mubr.bf16.gmra.mrb[0].mxu0 %v1390
      %v7101 = vpop.f32.mrb[0].mxu0
      %v7102 = vadd.f32 %v7005, %v7101
      %v7103 = vpop.f32.mrb[0].mxu0
      %v7104 = vpop.f32.mrb[0].mxu0
      %v7105 = vadd.f32 %v7008, %v7104
      %v7106 = vpop.f32.mrb[0].mxu0
      %7107 = vmatprep.mubr.bf16.mxu0 %v1407
      %7108 = vmatmul.mubr.bf16.gmra.mrb[0].mxu0 %v1406
      %v7109 = vpop.f32.mrb[0].mxu0
      %v7110 = vadd.f32 %v7013, %v7109
      %v7111 = vpop.f32.mrb[0].mxu0
      %v7112 = vpop.f32.mrb[0].mxu0
      %v7113 = vadd.f32 %v7016, %v7112
      %v7114 = vpop.f32.mrb[0].mxu0
      %7115 = vmatprep.mubr.bf16.mxu0 %v1423
      %7116 = vmatmul.mubr.bf16.gmra.mrb[0].mxu0 %v1422
      %v7117 = vpop.f32.mrb[0].mxu0
      %v7118 = vadd.f32 %v7021, %v7117
      %v7119 = vpop.f32.mrb[0].mxu0
      %v7120 = vpop.f32.mrb[0].mxu0
      %v7121 = vadd.f32 %v7024, %v7120
      %v7122 = vpop.f32.mrb[0].mxu0
      %7123 = vmatprep.mubr.bf16.mxu0 %v1439
      %7124 = vmatmul.mubr.bf16.gmra.mrb[0].mxu0 %v1438
      %v7125 = vpop.f32.mrb[0].mxu0
      %v7126 = vadd.f32 %v7029, %v7125
      %v7127 = vpop.f32.mrb[0].mxu0
      %v7128 = vpop.f32.mrb[0].mxu0
      %v7129 = vadd.f32 %v7032, %v7128
      %v7130 = vpop.f32.mrb[0].mxu0
      %7131 = vmatprep.mubr.bf16.mxu0 %v1455
      %7132 = vmatmul.mubr.bf16.gmra.mrb[0].mxu0 %v1454
      %v7133 = vpop.f32.mrb[0].mxu0
      %v7134 = vadd.f32 %v7037, %v7133
      %v7135 = vpop.f32.mrb[0].mxu0
      %v7136 = vpop.f32.mrb[0].mxu0
      %v7137 = vadd.f32 %v7040, %v7136
      %v7138 = vpop.f32.mrb[0].mxu0
      %7139 = vmatprep.mubr.bf16.mxu0 %v1471
      %7140 = vmatmul.mubr.bf16.gmra.mrb[0].mxu0 %v1470
      %v7141 = vpop.f32.mrb[0].mxu0
      %v7142 = vadd.f32 %v7045, %v7141
      %v7143 = vpop.f32.mrb[0].mxu0
      %v7144 = vpop.f32.mrb[0].mxu0
      %v7145 = vadd.f32 %v7048, %v7144
      %v7146 = vpop.f32.mrb[0].mxu0
      %7147 = vmatprep.mubr.bf16.mxu0 %v1487
      %7148 = vmatmul.mubr.bf16.gmra.mrb[0].mxu0 %v1486
      %v7149 = vpop.f32.mrb[0].mxu0
      %v7150 = vadd.f32 %v7053, %v7149
      %v7151 = vpop.f32.mrb[0].mxu0
      %v7152 = vpop.f32.mrb[0].mxu0
      %v7153 = vadd.f32 %v7056, %v7152
      %v7154 = vpop.f32.mrb[0].mxu0
      %7155 = vmatprep.mubr.bf16.mxu0 %v1503
      %7156 = vmatmul.mubr.bf16.gmra.mrb[0].mxu0 %v1502
      %v7157 = vpop.f32.mrb[0].mxu0
      %v7158 = vadd.f32 %v7061, %v7157
      %v7159 = vpop.f32.mrb[0].mxu0
      %v7160 = vpop.f32.mrb[0].mxu0
      %v7161 = vadd.f32 %v7064, %v7160
      %v7162 = vpop.f32.mrb[0].mxu0
      %7163 = vdwg.mxu0
      %v7164 = vld [vmem:[#allocation2] sm:$0xff]
      %v7165 = vld [vmem:[#allocation2 + $0x8] sm:$0xff]
      %v7166 = vld [vmem:[#allocation2 + $0x10] sm:$0xff]
      %v7167 = vld [vmem:[#allocation2 + $0x18] sm:$0xff]
      %v7168 = vld [vmem:[#allocation2 + $0x20] sm:$0xff]
      %v7169 = vld [vmem:[#allocation2 + $0x28] sm:$0xff]
      %v7170 = vld [vmem:[#allocation2 + $0x30] sm:$0xff]
      %v7171 = vld [vmem:[#allocation2 + $0x38] sm:$0xff]
      %v7172 = vld [vmem:[#allocation2 + $0x40] sm:$0xff]
      %v7173 = vld [vmem:[#allocation2 + $0x48] sm:$0xff]
      %v7174 = vld [vmem:[#allocation2 + $0x50] sm:$0xff]
      %v7175 = vld [vmem:[#allocation2 + $0x58] sm:$0xff]
      %v7176 = vld [vmem:[#allocation2 + $0x60] sm:$0xff]
      %v7177 = vld [vmem:[#allocation2 + $0x68] sm:$0xff]
      %v7178 = vld [vmem:[#allocation2 + $0x70] sm:$0xff]
      %v7179 = vld [vmem:[#allocation2 + $0x78] sm:$0xff]
      %vm7196 = vcmask 1046528
      %v7197 = vrot.slane %v7102, 1
      %v7198 = vrot.slane %v7105, 1
      %v7199 = vsel %vm7196, %v7197, %v7198
      %v7200 = vrot.slane %v7110, 1
      %v7201 = vsel %vm7196, %v7198, %v7200
      %v7202 = vrot.slane %v7113, 1
      %v7203 = vsel %vm7196, %v7200, %v7202
      %v7204 = vrot.slane %v7118, 1
      %v7205 = vsel %vm7196, %v7202, %v7204
      %v7206 = vrot.slane %v7121, 1
      %v7207 = vsel %vm7196, %v7204, %v7206
      %v7208 = vrot.slane %v7126, 1
      %v7209 = vsel %vm7196, %v7206, %v7208
      %v7210 = vrot.slane %v7129, 1
      %v7211 = vsel %vm7196, %v7208, %v7210
      %v7212 = vrot.slane %v7134, 1
      %v7213 = vsel %vm7196, %v7210, %v7212
      %v7214 = vrot.slane %v7137, 1
      %v7215 = vsel %vm7196, %v7212, %v7214
      %v7216 = vrot.slane %v7142, 1
      %v7217 = vsel %vm7196, %v7214, %v7216
      %v7218 = vrot.slane %v7145, 1
      %v7219 = vsel %vm7196, %v7216, %v7218
      %v7220 = vrot.slane %v7150, 1
      %v7221 = vsel %vm7196, %v7218, %v7220
      %v7222 = vrot.slane %v7153, 1
      %v7223 = vsel %vm7196, %v7220, %v7222
      %v7224 = vrot.slane %v7158, 1
      %v7225 = vsel %vm7196, %v7222, %v7224
      %v7226 = vrot.slane %v7161, 1
      %v7227 = vsel %vm7196, %v7224, %v7226
      %v7244 = vsel %vm7196, %v7226, 0.0
      %s7245 = scalar_lea.vmem %s580, 256
      %v7246 = vld [vmem:[%s7245] sm:$0xff]
      %v7247 = vld [vmem:[%s7245 + $0x8] sm:$0xff]
      %v7248 = vld [vmem:[%s7245 + $0x10] sm:$0xff]
      %v7249 = vld [vmem:[%s7245 + $0x18] sm:$0xff]
      %v7250 = vld [vmem:[%s7245 + $0x20] sm:$0xff]
      %v7251 = vld [vmem:[%s7245 + $0x28] sm:$0xff]
      %v7252 = vld [vmem:[%s7245 + $0x30] sm:$0xff]
      %v7253 = vld [vmem:[%s7245 + $0x38] sm:$0xff]
      %v7254 = vld [vmem:[%s7245 + $0x40] sm:$0xff]
      %v7255 = vld [vmem:[%s7245 + $0x48] sm:$0xff]
      %v7256 = vld [vmem:[%s7245 + $0x50] sm:$0xff]
      %v7257 = vld [vmem:[%s7245 + $0x58] sm:$0xff]
      %v7258 = vld [vmem:[%s7245 + $0x60] sm:$0xff]
      %v7259 = vld [vmem:[%s7245 + $0x68] sm:$0xff]
      %v7260 = vld [vmem:[%s7245 + $0x70] sm:$0xff]
      %v7261 = vld [vmem:[%s7245 + $0x78] sm:$0xff]
      %7263 = vset.pattern.permute.xlu0 0
      %7264 = vperm.xlu0 %7263, %v7246
      %v7265 = vpop.permute.xlu0 %7264
      %7268 = vset.pattern.permute.xlu0 0
      %7269 = vperm.xlu0 %7268, %v7247
      %v7270 = vpop.permute.xlu0 %7269
      %7273 = vset.pattern.permute.xlu0 0
      %7274 = vperm.xlu0 %7273, %v7248
      %v7275 = vpop.permute.xlu0 %7274
      %7278 = vset.pattern.permute.xlu0 0
      %7279 = vperm.xlu0 %7278, %v7249
      %v7280 = vpop.permute.xlu0 %7279
      %7283 = vset.pattern.permute.xlu0 0
      %7284 = vperm.xlu0 %7283, %v7250
      %v7285 = vpop.permute.xlu0 %7284
      %7288 = vset.pattern.permute.xlu0 0
      %7289 = vperm.xlu0 %7288, %v7251
      %v7290 = vpop.permute.xlu0 %7289
      %7293 = vset.pattern.permute.xlu0 0
      %7294 = vperm.xlu0 %7293, %v7252
      %v7295 = vpop.permute.xlu0 %7294
      %7298 = vset.pattern.permute.xlu0 0
      %7299 = vperm.xlu0 %7298, %v7253
      %v7300 = vpop.permute.xlu0 %7299
      %7303 = vset.pattern.permute.xlu0 0
      %7304 = vperm.xlu0 %7303, %v7254
      %v7305 = vpop.permute.xlu0 %7304
      %7308 = vset.pattern.permute.xlu0 0
      %7309 = vperm.xlu0 %7308, %v7255
      %v7310 = vpop.permute.xlu0 %7309
      %7313 = vset.pattern.permute.xlu0 0
      %7314 = vperm.xlu0 %7313, %v7256
      %v7315 = vpop.permute.xlu0 %7314
      %7318 = vset.pattern.permute.xlu0 0
      %7319 = vperm.xlu0 %7318, %v7257
      %v7320 = vpop.permute.xlu0 %7319
      %7323 = vset.pattern.permute.xlu0 0
      %7324 = vperm.xlu0 %7323, %v7258
      %v7325 = vpop.permute.xlu0 %7324
      %7328 = vset.pattern.permute.xlu0 0
      %7329 = vperm.xlu0 %7328, %v7259
      %v7330 = vpop.permute.xlu0 %7329
      %7333 = vset.pattern.permute.xlu0 0
      %7334 = vperm.xlu0 %7333, %v7260
      %v7335 = vpop.permute.xlu0 %7334
      %7338 = vset.pattern.permute.xlu0 0
      %7339 = vperm.xlu0 %7338, %v7261
      %v7340 = vpop.permute.xlu0 %7339
      %v7342 = vmul.f32 %v7199, %v7265
      %v7343 = vmul.f32 %v7201, %v7270
      %v7344 = vmul.f32 %v7203, %v7275
      %v7345 = vmul.f32 %v7205, %v7280
      %v7346 = vmul.f32 %v7207, %v7285
      %v7347 = vmul.f32 %v7209, %v7290
      %v7348 = vmul.f32 %v7211, %v7295
      %v7349 = vmul.f32 %v7213, %v7300
      %v7350 = vmul.f32 %v7215, %v7305
      %v7351 = vmul.f32 %v7217, %v7310
      %v7352 = vmul.f32 %v7219, %v7315
      %v7353 = vmul.f32 %v7221, %v7320
      %v7354 = vmul.f32 %v7223, %v7325
      %v7355 = vmul.f32 %v7225, %v7330
      %v7356 = vmul.f32 %v7227, %v7335
      %v7357 = vmul.f32 %v7244, %v7340
      %v7358 = vadd.f32 %v7164, %v7342
      %v7359 = vadd.f32 %v7165, %v7343
      %v7360 = vadd.f32 %v7166, %v7344
      %v7361 = vadd.f32 %v7167, %v7345
      %v7362 = vadd.f32 %v7168, %v7346
      %v7363 = vadd.f32 %v7169, %v7347
      %v7364 = vadd.f32 %v7170, %v7348
      %v7365 = vadd.f32 %v7171, %v7349
      %v7366 = vadd.f32 %v7172, %v7350
      %v7367 = vadd.f32 %v7173, %v7351
      %v7368 = vadd.f32 %v7174, %v7352
      %v7369 = vadd.f32 %v7175, %v7353
      %v7370 = vadd.f32 %v7176, %v7354
      %v7371 = vadd.f32 %v7177, %v7355
      %v7372 = vadd.f32 %v7178, %v7356
      %v7373 = vadd.f32 %v7179, %v7357
      %7374 = vst [vmem:[#allocation2] sm:$0xff] %v7358
      %7375 = vst [vmem:[#allocation2 + $0x8] sm:$0xff] %v7359
      %7376 = vst [vmem:[#allocation2 + $0x10] sm:$0xff] %v7360
      %7377 = vst [vmem:[#allocation2 + $0x18] sm:$0xff] %v7361
      %7378 = vst [vmem:[#allocation2 + $0x20] sm:$0xff] %v7362
      %7379 = vst [vmem:[#allocation2 + $0x28] sm:$0xff] %v7363
      %7380 = vst [vmem:[#allocation2 + $0x30] sm:$0xff] %v7364
      %7381 = vst [vmem:[#allocation2 + $0x38] sm:$0xff] %v7365
      %7382 = vst [vmem:[#allocation2 + $0x40] sm:$0xff] %v7366
      %7383 = vst [vmem:[#allocation2 + $0x48] sm:$0xff] %v7367
      %7384 = vst [vmem:[#allocation2 + $0x50] sm:$0xff] %v7368
      %7385 = vst [vmem:[#allocation2 + $0x58] sm:$0xff] %v7369
      %7386 = vst [vmem:[#allocation2 + $0x60] sm:$0xff] %v7370
      %7387 = vst [vmem:[#allocation2 + $0x68] sm:$0xff] %v7371
      %7388 = vst [vmem:[#allocation2 + $0x70] sm:$0xff] %v7372
      %7389 = vst [vmem:[#allocation2 + $0x78] sm:$0xff] %v7373
      %p7390 = scmp.eq.s32.totalorder %s30, 2
      // Predicated region
      $region89: #{proposal_net.1} parent=83 // pred_check
        %p7391 = pneg %p7390
      $region90: #{proposal_net.1} parent=83 // pred_check_branch
        %7393 = sbr.rel (%p7391) target = $region92
      $region91: #{proposal_net.1} parent=83 // pred_region
        %v7394 = vld [vmem:[#allocation2] sm:$0xff]
        %v7395 = vld [vmem:[#allocation2 + $0x8] sm:$0xff]
        %v7396 = vld [vmem:[#allocation2 + $0x10] sm:$0xff]
        %v7397 = vld [vmem:[#allocation2 + $0x18] sm:$0xff]
        %v7398 = vld [vmem:[#allocation2 + $0x20] sm:$0xff]
        %v7399 = vld [vmem:[#allocation2 + $0x28] sm:$0xff]
        %v7400 = vld [vmem:[#allocation2 + $0x30] sm:$0xff]
        %v7401 = vld [vmem:[#allocation2 + $0x38] sm:$0xff]
        %v7402 = vld [vmem:[#allocation2 + $0x40] sm:$0xff]
        %v7403 = vld [vmem:[#allocation2 + $0x48] sm:$0xff]
        %v7404 = vld [vmem:[#allocation2 + $0x50] sm:$0xff]
        %v7405 = vld [vmem:[#allocation2 + $0x58] sm:$0xff]
        %v7406 = vld [vmem:[#allocation2 + $0x60] sm:$0xff]
        %v7407 = vld [vmem:[#allocation2 + $0x68] sm:$0xff]
        %v7408 = vld [vmem:[#allocation2 + $0x70] sm:$0xff]
        %v7409 = vld [vmem:[#allocation2 + $0x78] sm:$0xff]
        %v7410 = vld [vmem:[%s3] sm:$0x1]
        %v7412 = vlaneseq
        %v7413 = vshrl.u32 %v7412, 7
        %v7414 = vsub.s32 0, %v7413
        %v7415 = vrot.slane %v7410, %v7414
        %v7417 = vadd.f32 %v7394, %v7415
        %v7418 = vadd.f32 %v7395, %v7415
        %v7419 = vadd.f32 %v7396, %v7415
        %v7420 = vadd.f32 %v7397, %v7415
        %v7421 = vadd.f32 %v7398, %v7415
        %v7422 = vadd.f32 %v7399, %v7415
        %v7423 = vadd.f32 %v7400, %v7415
        %v7424 = vadd.f32 %v7401, %v7415
        %v7425 = vadd.f32 %v7402, %v7415
        %v7426 = vadd.f32 %v7403, %v7415
        %v7427 = vadd.f32 %v7404, %v7415
        %v7428 = vadd.f32 %v7405, %v7415
        %v7429 = vadd.f32 %v7406, %v7415
        %v7430 = vadd.f32 %v7407, %v7415
        %v7431 = vadd.f32 %v7408, %v7415
        %v7432 = vadd.f32 %v7409, %v7415
        %v7433 = vmax.f32 %v7417, 0.0
        %v7434 = vmax.f32 %v7418, 0.0
        %v7435 = vmax.f32 %v7419, 0.0
        %v7436 = vmax.f32 %v7420, 0.0
        %v7437 = vmax.f32 %v7421, 0.0
        %v7438 = vmax.f32 %v7422, 0.0
        %v7439 = vmax.f32 %v7423, 0.0
        %v7440 = vmax.f32 %v7424, 0.0
        %v7441 = vmax.f32 %v7425, 0.0
        %v7442 = vmax.f32 %v7426, 0.0
        %v7443 = vmax.f32 %v7427, 0.0
        %v7444 = vmax.f32 %v7428, 0.0
        %v7445 = vmax.f32 %v7429, 0.0
        %v7446 = vmax.f32 %v7430, 0.0
        %v7447 = vmax.f32 %v7431, 0.0
        %v7448 = vmax.f32 %v7432, 0.0
        %v7449 = vld [vmem:[%s4] sm:$0xff]
        %v7450 = vld [vmem:[%s4 + $0x8] sm:$0xff]
        %v7451 = vld [vmem:[%s4 + $0x10] sm:$0xff]
        %v7452 = vld [vmem:[%s4 + $0x18] sm:$0xff]
        %v7453 = vld [vmem:[%s4 + $0x20] sm:$0xff]
        %v7454 = vld [vmem:[%s4 + $0x28] sm:$0xff]
        %v7455 = vld [vmem:[%s4 + $0x30] sm:$0xff]
        %v7456 = vld [vmem:[%s4 + $0x38] sm:$0xff]
        %v7457 = vld [vmem:[%s4 + $0x40] sm:$0xff]
        %v7458 = vld [vmem:[%s4 + $0x48] sm:$0xff]
        %v7459 = vld [vmem:[%s4 + $0x50] sm:$0xff]
        %v7460 = vld [vmem:[%s4 + $0x58] sm:$0xff]
        %v7461 = vld [vmem:[%s4 + $0x60] sm:$0xff]
        %v7462 = vld [vmem:[%s4 + $0x68] sm:$0xff]
        %v7463 = vld [vmem:[%s4 + $0x70] sm:$0xff]
        %v7464 = vld [vmem:[%s4 + $0x78] sm:$0xff]
        %v7465 = vld [vmem:[%s5] sm:$0x1]
        %v7467 = vlaneseq
        %v7468 = vshrl.u32 %v7467, 7
        %v7469 = vsub.s32 0, %v7468
        %v7470 = vrot.slane %v7465, %v7469
        %7472 = vmatprep.subr.mxu0 0.0
        %7473 = vmatpush1.msra.mxu0 %v7449
        %7474 = vmatprep.subr.mxu0 0.0
        %7475 = vmatpush1.msra.mxu0 %v7450
        %7476 = vmatprep.subr.mxu0 0.0
        %7477 = vmatpush1.msra.mxu0 %v7451
        %7478 = vmatprep.subr.mxu0 0.0
        %7479 = vmatpush1.msra.mxu0 %v7452
        %7480 = vmatprep.subr.mxu0 0.0
        %7481 = vmatpush1.msra.mxu0 %v7453
        %7482 = vmatprep.subr.mxu0 0.0
        %7483 = vmatpush1.msra.mxu0 %v7454
        %7484 = vmatprep.subr.mxu0 0.0
        %7485 = vmatpush1.msra.mxu0 %v7455
        %7486 = vmatprep.subr.mxu0 0.0
        %7487 = vmatpush1.msra.mxu0 %v7456
        %7488 = vmatprep.subr.mxu0 0.0
        %7489 = vmatpush1.msra.mxu0 %v7457
        %7490 = vmatprep.subr.mxu0 0.0
        %7491 = vmatpush1.msra.mxu0 %v7458
        %7492 = vmatprep.subr.mxu0 0.0
        %7493 = vmatpush1.msra.mxu0 %v7459
        %7494 = vmatprep.subr.mxu0 0.0
        %7495 = vmatpush1.msra.mxu0 %v7460
        %7496 = vmatprep.subr.mxu0 0.0
        %7497 = vmatpush1.msra.mxu0 %v7461
        %7498 = vmatprep.subr.mxu0 0.0
        %7499 = vmatpush1.msra.mxu0 %v7462
        %7500 = vmatprep.subr.mxu0 0.0
        %7501 = vmatpush1.msra.mxu0 %v7463
        %7502 = vmatprep.subr.mxu0 0.0
        %7503 = vmatpush1.msra.mxu0 %v7464
        %7504 = vmatprep.subr.mxu0 0.0
        %7505 = vmatpush1.msra.mxu0 0.0
        %7506 = vmatprep.subr.mxu0 0.0
        %7507 = vmatpush1.msra.mxu0 0.0
        %7508 = vmatprep.subr.mxu0 0.0
        %7509 = vmatpush1.msra.mxu0 0.0
        %7510 = vmatprep.subr.mxu0 0.0
        %7511 = vmatpush1.msra.mxu0 0.0
        %7512 = vmatprep.subr.mxu0 0.0
        %7513 = vmatpush1.msra.mxu0 0.0
        %7514 = vmatprep.subr.mxu0 0.0
        %7515 = vmatpush1.msra.mxu0 0.0
        %7516 = vmatprep.subr.mxu0 0.0
        %7517 = vmatpush1.msra.mxu0 0.0
        %7518 = vmatprep.subr.mxu0 0.0
        %7519 = vmatpush1.msra.mxu0 0.0
        %7520 = vmatprep.subr.mxu0 0.0
        %7521 = vmatpush1.msra.mxu0 0.0
        %7522 = vmatprep.subr.mxu0 0.0
        %7523 = vmatpush1.msra.mxu0 0.0
        %7524 = vmatprep.subr.mxu0 0.0
        %7525 = vmatpush1.msra.mxu0 0.0
        %7526 = vmatprep.subr.mxu0 0.0
        %7527 = vmatpush1.msra.mxu0 0.0
        %7528 = vmatprep.subr.mxu0 0.0
        %7529 = vmatpush1.msra.mxu0 0.0
        %7530 = vmatprep.subr.mxu0 0.0
        %7531 = vmatpush1.msra.mxu0 0.0
        %7532 = vmatprep.subr.mxu0 0.0
        %7533 = vmatpush1.msra.mxu0 0.0
        %7534 = vmatprep.subr.mxu0 0.0
        %7535 = vmatpush1.msra.mxu0 0.0
        %7536 = vmatprep.mubr.f32.mxu0 0.0
        %7537 = vmatmul.mubr.f32.gmra.mrb[0].mxu0 %v7433
        %v7538 = vpop.f32.mrb[0].mxu0
        %v7539 = vadd.f32 %v7470, %v7538
        %v7540 = vpop.f32.mrb[0].mxu0
        %7541 = vmatprep.mubr.f32.mxu0 0.0
        %7542 = vmatmul.mubr.f32.gmra.mrb[0].mxu0 %v7434
        %v7543 = vpop.f32.mrb[0].mxu0
        %v7544 = vadd.f32 %v7470, %v7543
        %v7545 = vpop.f32.mrb[0].mxu0
        %7546 = vmatprep.mubr.f32.mxu0 0.0
        %7547 = vmatmul.mubr.f32.gmra.mrb[0].mxu0 %v7435
        %v7548 = vpop.f32.mrb[0].mxu0
        %v7549 = vadd.f32 %v7470, %v7548
        %v7550 = vpop.f32.mrb[0].mxu0
        %7551 = vmatprep.mubr.f32.mxu0 0.0
        %7552 = vmatmul.mubr.f32.gmra.mrb[0].mxu0 %v7436
        %v7553 = vpop.f32.mrb[0].mxu0
        %v7554 = vadd.f32 %v7470, %v7553
        %v7555 = vpop.f32.mrb[0].mxu0
        %7556 = vmatprep.mubr.f32.mxu0 0.0
        %7557 = vmatmul.mubr.f32.gmra.mrb[0].mxu0 %v7437
        %v7558 = vpop.f32.mrb[0].mxu0
        %v7559 = vadd.f32 %v7470, %v7558
        %v7560 = vpop.f32.mrb[0].mxu0
        %7561 = vmatprep.mubr.f32.mxu0 0.0
        %7562 = vmatmul.mubr.f32.gmra.mrb[0].mxu0 %v7438
        %v7563 = vpop.f32.mrb[0].mxu0
        %v7564 = vadd.f32 %v7470, %v7563
        %v7565 = vpop.f32.mrb[0].mxu0
        %7566 = vmatprep.mubr.f32.mxu0 0.0
        %7567 = vmatmul.mubr.f32.gmra.mrb[0].mxu0 %v7439
        %v7568 = vpop.f32.mrb[0].mxu0
        %v7569 = vadd.f32 %v7470, %v7568
        %v7570 = vpop.f32.mrb[0].mxu0
        %7571 = vmatprep.mubr.f32.mxu0 0.0
        %7572 = vmatmul.mubr.f32.gmra.mrb[0].mxu0 %v7440
        %v7573 = vpop.f32.mrb[0].mxu0
        %v7574 = vadd.f32 %v7470, %v7573
        %v7575 = vpop.f32.mrb[0].mxu0
        %7576 = vmatprep.mubr.f32.mxu0 0.0
        %7577 = vmatmul.mubr.f32.gmra.mrb[0].mxu0 %v7441
        %v7578 = vpop.f32.mrb[0].mxu0
        %v7579 = vadd.f32 %v7470, %v7578
        %v7580 = vpop.f32.mrb[0].mxu0
        %7581 = vmatprep.mubr.f32.mxu0 0.0
        %7582 = vmatmul.mubr.f32.gmra.mrb[0].mxu0 %v7442
        %v7583 = vpop.f32.mrb[0].mxu0
        %v7584 = vadd.f32 %v7470, %v7583
        %v7585 = vpop.f32.mrb[0].mxu0
        %7586 = vmatprep.mubr.f32.mxu0 0.0
        %7587 = vmatmul.mubr.f32.gmra.mrb[0].mxu0 %v7443
        %v7588 = vpop.f32.mrb[0].mxu0
        %v7589 = vadd.f32 %v7470, %v7588
        %v7590 = vpop.f32.mrb[0].mxu0
        %7591 = vmatprep.mubr.f32.mxu0 0.0
        %7592 = vmatmul.mubr.f32.gmra.mrb[0].mxu0 %v7444
        %v7593 = vpop.f32.mrb[0].mxu0
        %v7594 = vadd.f32 %v7470, %v7593
        %v7595 = vpop.f32.mrb[0].mxu0
        %7596 = vmatprep.mubr.f32.mxu0 0.0
        %7597 = vmatmul.mubr.f32.gmra.mrb[0].mxu0 %v7445
        %v7598 = vpop.f32.mrb[0].mxu0
        %v7599 = vadd.f32 %v7470, %v7598
        %v7600 = vpop.f32.mrb[0].mxu0
        %7601 = vmatprep.mubr.f32.mxu0 0.0
        %7602 = vmatmul.mubr.f32.gmra.mrb[0].mxu0 %v7446
        %v7603 = vpop.f32.mrb[0].mxu0
        %v7604 = vadd.f32 %v7470, %v7603
        %v7605 = vpop.f32.mrb[0].mxu0
        %7606 = vmatprep.mubr.f32.mxu0 0.0
        %7607 = vmatmul.mubr.f32.gmra.mrb[0].mxu0 %v7447
        %v7608 = vpop.f32.mrb[0].mxu0
        %v7609 = vadd.f32 %v7470, %v7608
        %v7610 = vpop.f32.mrb[0].mxu0
        %7611 = vmatprep.mubr.f32.mxu0 0.0
        %7612 = vmatmul.mubr.f32.gmra.mrb[0].mxu0 %v7448
        %v7613 = vpop.f32.mrb[0].mxu0
        %v7614 = vadd.f32 %v7470, %v7613
        %v7615 = vpop.f32.mrb[0].mxu0
        %7616 = vdwg.mxu0
        %7617 = vst [vmem:[%s16] sm:$0xff] %v7539
        %7618 = vst [vmem:[%s16 + $0x8] sm:$0xff] %v7544
        %7619 = vst [vmem:[%s16 + $0x10] sm:$0xff] %v7549
        %7620 = vst [vmem:[%s16 + $0x18] sm:$0xff] %v7554
        %7621 = vst [vmem:[%s16 + $0x20] sm:$0xff] %v7559
        %7622 = vst [vmem:[%s16 + $0x28] sm:$0xff] %v7564
        %7623 = vst [vmem:[%s16 + $0x30] sm:$0xff] %v7569
        %7624 = vst [vmem:[%s16 + $0x38] sm:$0xff] %v7574
        %7625 = vst [vmem:[%s16 + $0x40] sm:$0xff] %v7579
        %7626 = vst [vmem:[%s16 + $0x48] sm:$0xff] %v7584
        %7627 = vst [vmem:[%s16 + $0x50] sm:$0xff] %v7589
        %7628 = vst [vmem:[%s16 + $0x58] sm:$0xff] %v7594
        %7629 = vst [vmem:[%s16 + $0x60] sm:$0xff] %v7599
        %7630 = vst [vmem:[%s16 + $0x68] sm:$0xff] %v7604
        %7631 = vst [vmem:[%s16 + $0x70] sm:$0xff] %v7609
        %7632 = vst [vmem:[%s16 + $0x78] sm:$0xff] %v7614
        %v7633 = vpack.c.bf16 %v7434, %v7433
        %v7634 = vpack.c.bf16 %v7436, %v7435
        %v7635 = vpack.c.bf16 %v7438, %v7437
        %v7636 = vpack.c.bf16 %v7440, %v7439
        %v7637 = vpack.c.bf16 %v7442, %v7441
        %v7638 = vpack.c.bf16 %v7444, %v7443
        %v7639 = vpack.c.bf16 %v7446, %v7445
        %v7640 = vpack.c.bf16 %v7448, %v7447
        %v7641 = vld [vmem:[%s7] sm:$0xff]
        %v7642 = vld [vmem:[%s7 + $0x8] sm:$0xff]
        %v7643 = vld [vmem:[%s7 + $0x10] sm:$0xff]
        %v7644 = vld [vmem:[%s7 + $0x18] sm:$0xff]
        %v7645 = vld [vmem:[%s7 + $0x20] sm:$0xf]
        %v7646 = vld [vmem:[%s7 + $0x24] sm:$0xff]
        %v7647 = vld [vmem:[%s7 + $0x2c] sm:$0xff]
        %v7648 = vld [vmem:[%s7 + $0x34] sm:$0xff]
        %v7649 = vld [vmem:[%s7 + $0x3c] sm:$0xff]
        %v7650 = vld [vmem:[%s7 + $0x44] sm:$0xf]
        %v7651 = vld [vmem:[%s7 + $0x48] sm:$0xff]
        %v7652 = vld [vmem:[%s7 + $0x50] sm:$0xff]
        %v7653 = vld [vmem:[%s7 + $0x58] sm:$0xff]
        %v7654 = vld [vmem:[%s7 + $0x60] sm:$0xff]
        %v7655 = vld [vmem:[%s7 + $0x68] sm:$0xf]
        %v7656 = vld [vmem:[%s7 + $0x6c] sm:$0xff]
        %v7657 = vld [vmem:[%s7 + $0x74] sm:$0xff]
        %v7658 = vld [vmem:[%s7 + $0x7c] sm:$0xff]
        %v7659 = vld [vmem:[%s7 + $0x84] sm:$0xff]
        %v7660 = vld [vmem:[%s7 + $0x8c] sm:$0xf]
        %v7661 = vld [vmem:[%s7 + $0x90] sm:$0xff]
        %v7662 = vld [vmem:[%s7 + $0x98] sm:$0xff]
        %v7663 = vld [vmem:[%s7 + $0xa0] sm:$0xff]
        %v7664 = vld [vmem:[%s7 + $0xa8] sm:$0xff]
        %v7665 = vld [vmem:[%s7 + $0xb0] sm:$0xf]
        %v7666 = vld [vmem:[%s7 + $0xb4] sm:$0xff]
        %v7667 = vld [vmem:[%s7 + $0xbc] sm:$0xff]
        %v7668 = vld [vmem:[%s7 + $0xc4] sm:$0xff]
        %v7669 = vld [vmem:[%s7 + $0xcc] sm:$0xff]
        %v7670 = vld [vmem:[%s7 + $0xd4] sm:$0xf]
        %v7671 = vld [vmem:[%s7 + $0xd8] sm:$0xff]
        %v7672 = vld [vmem:[%s7 + $0xe0] sm:$0xff]
        %v7673 = vld [vmem:[%s7 + $0xe8] sm:$0xff]
        %v7674 = vld [vmem:[%s7 + $0xf0] sm:$0xff]
        %v7675 = vld [vmem:[%s7 + $0xf8] sm:$0xf]
        %v7676 = vld [vmem:[%s7 + $0xfc] sm:$0xff]
        %v7677 = vld [vmem:[%s7 + $0x104] sm:$0xff]
        %v7678 = vld [vmem:[%s7 + $0x10c] sm:$0xff]
        %v7679 = vld [vmem:[%s7 + $0x114] sm:$0xff]
        %v7680 = vld [vmem:[%s7 + $0x11c] sm:$0xf]
        %v7681 = vld [vmem:[%s7 + $0x120] sm:$0xff]
        %v7682 = vld [vmem:[%s7 + $0x128] sm:$0xff]
        %v7683 = vld [vmem:[%s7 + $0x130] sm:$0xff]
        %v7684 = vld [vmem:[%s7 + $0x138] sm:$0xff]
        %v7685 = vld [vmem:[%s7 + $0x140] sm:$0xf]
        %v7686 = vld [vmem:[%s7 + $0x144] sm:$0xff]
        %v7687 = vld [vmem:[%s7 + $0x14c] sm:$0xff]
        %v7688 = vld [vmem:[%s7 + $0x154] sm:$0xff]
        %v7689 = vld [vmem:[%s7 + $0x15c] sm:$0xff]
        %v7690 = vld [vmem:[%s7 + $0x164] sm:$0xf]
        %v7691 = vld [vmem:[%s7 + $0x168] sm:$0xff]
        %v7692 = vld [vmem:[%s7 + $0x170] sm:$0xff]
        %v7693 = vld [vmem:[%s7 + $0x178] sm:$0xff]
        %v7694 = vld [vmem:[%s7 + $0x180] sm:$0xff]
        %v7695 = vld [vmem:[%s7 + $0x188] sm:$0xf]
        %v7696 = vld [vmem:[%s7 + $0x18c] sm:$0xff]
        %v7697 = vld [vmem:[%s7 + $0x194] sm:$0xff]
        %v7698 = vld [vmem:[%s7 + $0x19c] sm:$0xff]
        %v7699 = vld [vmem:[%s7 + $0x1a4] sm:$0xff]
        %v7700 = vld [vmem:[%s7 + $0x1ac] sm:$0xf]
        %v7701 = vld [vmem:[%s7 + $0x1b0] sm:$0xff]
        %v7702 = vld [vmem:[%s7 + $0x1b8] sm:$0xff]
        %v7703 = vld [vmem:[%s7 + $0x1c0] sm:$0xff]
        %v7704 = vld [vmem:[%s7 + $0x1c8] sm:$0xff]
        %v7705 = vld [vmem:[%s7 + $0x1d0] sm:$0xf]
        %v7706 = vld [vmem:[%s7 + $0x1d4] sm:$0xff]
        %v7707 = vld [vmem:[%s7 + $0x1dc] sm:$0xff]
        %v7708 = vld [vmem:[%s7 + $0x1e4] sm:$0xff]
        %v7709 = vld [vmem:[%s7 + $0x1ec] sm:$0xff]
        %v7710 = vld [vmem:[%s7 + $0x1f4] sm:$0xf]
        %v7711 = vld [vmem:[%s7 + $0x1f8] sm:$0xff]
        %v7712 = vld [vmem:[%s7 + $0x200] sm:$0xff]
        %v7713 = vld [vmem:[%s7 + $0x208] sm:$0xff]
        %v7714 = vld [vmem:[%s7 + $0x210] sm:$0xff]
        %v7715 = vld [vmem:[%s7 + $0x218] sm:$0xf]
        %v7716 = vld [vmem:[%s7 + $0x21c] sm:$0xff]
        %v7717 = vld [vmem:[%s7 + $0x224] sm:$0xff]
        %v7718 = vld [vmem:[%s7 + $0x22c] sm:$0xff]
        %v7719 = vld [vmem:[%s7 + $0x234] sm:$0xff]
        %v7720 = vld [vmem:[%s7 + $0x23c] sm:$0xf]
        %v7801 = vunpack.c.l.b16 %v7641
        %v7802 = vunpack.c.h.b16 %v7641
        %v7803 = vunpack.c.l.b16 %v7642
        %v7804 = vunpack.c.h.b16 %v7642
        %v7805 = vunpack.c.l.b16 %v7643
        %v7806 = vunpack.c.h.b16 %v7643
        %v7807 = vunpack.c.l.b16 %v7644
        %v7808 = vunpack.c.h.b16 %v7644
        %v7809 = vunpack.c.l.b16 %v7645
        %v7810 = vunpack.c.l.b16 %v7646
        %v7811 = vunpack.c.h.b16 %v7646
        %v7812 = vunpack.c.l.b16 %v7647
        %v7813 = vunpack.c.h.b16 %v7647
        %v7814 = vunpack.c.l.b16 %v7648
        %v7815 = vunpack.c.h.b16 %v7648
        %v7816 = vunpack.c.l.b16 %v7649
        %v7817 = vunpack.c.h.b16 %v7649
        %v7818 = vunpack.c.l.b16 %v7650
        %v7819 = vunpack.c.l.b16 %v7651
        %v7820 = vunpack.c.h.b16 %v7651
        %v7821 = vunpack.c.l.b16 %v7652
        %v7822 = vunpack.c.h.b16 %v7652
        %v7823 = vunpack.c.l.b16 %v7653
        %v7824 = vunpack.c.h.b16 %v7653
        %v7825 = vunpack.c.l.b16 %v7654
        %v7826 = vunpack.c.h.b16 %v7654
        %v7827 = vunpack.c.l.b16 %v7655
        %v7828 = vunpack.c.l.b16 %v7656
        %v7829 = vunpack.c.h.b16 %v7656
        %v7830 = vunpack.c.l.b16 %v7657
        %v7831 = vunpack.c.h.b16 %v7657
        %v7832 = vunpack.c.l.b16 %v7658
        %v7833 = vunpack.c.h.b16 %v7658
        %v7834 = vunpack.c.l.b16 %v7659
        %v7835 = vunpack.c.h.b16 %v7659
        %v7836 = vunpack.c.l.b16 %v7660
        %v7837 = vunpack.c.l.b16 %v7661
        %v7838 = vunpack.c.h.b16 %v7661
        %v7839 = vunpack.c.l.b16 %v7662
        %v7840 = vunpack.c.h.b16 %v7662
        %v7841 = vunpack.c.l.b16 %v7663
        %v7842 = vunpack.c.h.b16 %v7663
        %v7843 = vunpack.c.l.b16 %v7664
        %v7844 = vunpack.c.h.b16 %v7664
        %v7845 = vunpack.c.l.b16 %v7665
        %v7846 = vunpack.c.l.b16 %v7666
        %v7847 = vunpack.c.h.b16 %v7666
        %v7848 = vunpack.c.l.b16 %v7667
        %v7849 = vunpack.c.h.b16 %v7667
        %v7850 = vunpack.c.l.b16 %v7668
        %v7851 = vunpack.c.h.b16 %v7668
        %v7852 = vunpack.c.l.b16 %v7669
        %v7853 = vunpack.c.h.b16 %v7669
        %v7854 = vunpack.c.l.b16 %v7670
        %v7855 = vunpack.c.l.b16 %v7671
        %v7856 = vunpack.c.h.b16 %v7671
        %v7857 = vunpack.c.l.b16 %v7672
        %v7858 = vunpack.c.h.b16 %v7672
        %v7859 = vunpack.c.l.b16 %v7673
        %v7860 = vunpack.c.h.b16 %v7673
        %v7861 = vunpack.c.l.b16 %v7674
        %v7862 = vunpack.c.h.b16 %v7674
        %v7863 = vunpack.c.l.b16 %v7675
        %v7864 = vunpack.c.l.b16 %v7676
        %v7865 = vunpack.c.h.b16 %v7676
        %v7866 = vunpack.c.l.b16 %v7677
        %v7867 = vunpack.c.h.b16 %v7677
        %v7868 = vunpack.c.l.b16 %v7678
        %v7869 = vunpack.c.h.b16 %v7678
        %v7870 = vunpack.c.l.b16 %v7679
        %v7871 = vunpack.c.h.b16 %v7679
        %v7872 = vunpack.c.l.b16 %v7680
        %v7873 = vunpack.c.l.b16 %v7681
        %v7874 = vunpack.c.h.b16 %v7681
        %v7875 = vunpack.c.l.b16 %v7682
        %v7876 = vunpack.c.h.b16 %v7682
        %v7877 = vunpack.c.l.b16 %v7683
        %v7878 = vunpack.c.h.b16 %v7683
        %v7879 = vunpack.c.l.b16 %v7684
        %v7880 = vunpack.c.h.b16 %v7684
        %v7881 = vunpack.c.l.b16 %v7685
        %v7882 = vunpack.c.l.b16 %v7686
        %v7883 = vunpack.c.h.b16 %v7686
        %v7884 = vunpack.c.l.b16 %v7687
        %v7885 = vunpack.c.h.b16 %v7687
        %v7886 = vunpack.c.l.b16 %v7688
        %v7887 = vunpack.c.h.b16 %v7688
        %v7888 = vunpack.c.l.b16 %v7689
        %v7889 = vunpack.c.h.b16 %v7689
        %v7890 = vunpack.c.l.b16 %v7690
        %v7891 = vunpack.c.l.b16 %v7691
        %v7892 = vunpack.c.h.b16 %v7691
        %v7893 = vunpack.c.l.b16 %v7692
        %v7894 = vunpack.c.h.b16 %v7692
        %v7895 = vunpack.c.l.b16 %v7693
        %v7896 = vunpack.c.h.b16 %v7693
        %v7897 = vunpack.c.l.b16 %v7694
        %v7898 = vunpack.c.h.b16 %v7694
        %v7899 = vunpack.c.l.b16 %v7695
        %v7900 = vunpack.c.l.b16 %v7696
        %v7901 = vunpack.c.h.b16 %v7696
        %v7902 = vunpack.c.l.b16 %v7697
        %v7903 = vunpack.c.h.b16 %v7697
        %v7904 = vunpack.c.l.b16 %v7698
        %v7905 = vunpack.c.h.b16 %v7698
        %v7906 = vunpack.c.l.b16 %v7699
        %v7907 = vunpack.c.h.b16 %v7699
        %v7908 = vunpack.c.l.b16 %v7700
        %v7909 = vunpack.c.l.b16 %v7701
        %v7910 = vunpack.c.h.b16 %v7701
        %v7911 = vunpack.c.l.b16 %v7702
        %v7912 = vunpack.c.h.b16 %v7702
        %v7913 = vunpack.c.l.b16 %v7703
        %v7914 = vunpack.c.h.b16 %v7703
        %v7915 = vunpack.c.l.b16 %v7704
        %v7916 = vunpack.c.h.b16 %v7704
        %v7917 = vunpack.c.l.b16 %v7705
        %v7918 = vunpack.c.l.b16 %v7706
        %v7919 = vunpack.c.h.b16 %v7706
        %v7920 = vunpack.c.l.b16 %v7707
        %v7921 = vunpack.c.h.b16 %v7707
        %v7922 = vunpack.c.l.b16 %v7708
        %v7923 = vunpack.c.h.b16 %v7708
        %v7924 = vunpack.c.l.b16 %v7709
        %v7925 = vunpack.c.h.b16 %v7709
        %v7926 = vunpack.c.l.b16 %v7710
        %v7927 = vunpack.c.l.b16 %v7711
        %v7928 = vunpack.c.h.b16 %v7711
        %v7929 = vunpack.c.l.b16 %v7712
        %v7930 = vunpack.c.h.b16 %v7712
        %v7931 = vunpack.c.l.b16 %v7713
        %v7932 = vunpack.c.h.b16 %v7713
        %v7933 = vunpack.c.l.b16 %v7714
        %v7934 = vunpack.c.h.b16 %v7714
        %v7935 = vunpack.c.l.b16 %v7715
        %v7936 = vunpack.c.l.b16 %v7716
        %v7937 = vunpack.c.h.b16 %v7716
        %v7938 = vunpack.c.l.b16 %v7717
        %v7939 = vunpack.c.h.b16 %v7717
        %v7940 = vunpack.c.l.b16 %v7718
        %v7941 = vunpack.c.h.b16 %v7718
        %v7942 = vunpack.c.l.b16 %v7719
        %v7943 = vunpack.c.h.b16 %v7719
        %v7944 = vunpack.c.l.b16 %v7720
        %v7945 = vpack.c.b16 %v7810, %v7801
        %v7946 = vpack.c.b16 %v7811, %v7802
        %v7947 = vpack.c.b16 %v7812, %v7803
        %v7948 = vpack.c.b16 %v7813, %v7804
        %v7949 = vpack.c.b16 %v7814, %v7805
        %v7950 = vpack.c.b16 %v7815, %v7806
        %v7951 = vpack.c.b16 %v7816, %v7807
        %v7952 = vpack.c.b16 %v7817, %v7808
        %v7953 = vpack.c.b16 %v7818, %v7809
        %v7954 = vpack.c.b16 %v7828, %v7819
        %v7955 = vpack.c.b16 %v7829, %v7820
        %v7956 = vpack.c.b16 %v7830, %v7821
        %v7957 = vpack.c.b16 %v7831, %v7822
        %v7958 = vpack.c.b16 %v7832, %v7823
        %v7959 = vpack.c.b16 %v7833, %v7824
        %v7960 = vpack.c.b16 %v7834, %v7825
        %v7961 = vpack.c.b16 %v7835, %v7826
        %v7962 = vpack.c.b16 %v7836, %v7827
        %v7963 = vpack.c.b16 %v7846, %v7837
        %v7964 = vpack.c.b16 %v7847, %v7838
        %v7965 = vpack.c.b16 %v7848, %v7839
        %v7966 = vpack.c.b16 %v7849, %v7840
        %v7967 = vpack.c.b16 %v7850, %v7841
        %v7968 = vpack.c.b16 %v7851, %v7842
        %v7969 = vpack.c.b16 %v7852, %v7843
        %v7970 = vpack.c.b16 %v7853, %v7844
        %v7971 = vpack.c.b16 %v7854, %v7845
        %v7972 = vpack.c.b16 %v7864, %v7855
        %v7973 = vpack.c.b16 %v7865, %v7856
        %v7974 = vpack.c.b16 %v7866, %v7857
        %v7975 = vpack.c.b16 %v7867, %v7858
        %v7976 = vpack.c.b16 %v7868, %v7859
        %v7977 = vpack.c.b16 %v7869, %v7860
        %v7978 = vpack.c.b16 %v7870, %v7861
        %v7979 = vpack.c.b16 %v7871, %v7862
        %v7980 = vpack.c.b16 %v7872, %v7863
        %v7981 = vpack.c.b16 %v7882, %v7873
        %v7982 = vpack.c.b16 %v7883, %v7874
        %v7983 = vpack.c.b16 %v7884, %v7875
        %v7984 = vpack.c.b16 %v7885, %v7876
        %v7985 = vpack.c.b16 %v7886, %v7877
        %v7986 = vpack.c.b16 %v7887, %v7878
        %v7987 = vpack.c.b16 %v7888, %v7879
        %v7988 = vpack.c.b16 %v7889, %v7880
        %v7989 = vpack.c.b16 %v7890, %v7881
        %v7990 = vpack.c.b16 %v7900, %v7891
        %v7991 = vpack.c.b16 %v7901, %v7892
        %v7992 = vpack.c.b16 %v7902, %v7893
        %v7993 = vpack.c.b16 %v7903, %v7894
        %v7994 = vpack.c.b16 %v7904, %v7895
        %v7995 = vpack.c.b16 %v7905, %v7896
        %v7996 = vpack.c.b16 %v7906, %v7897
        %v7997 = vpack.c.b16 %v7907, %v7898
        %v7998 = vpack.c.b16 %v7908, %v7899
        %v7999 = vpack.c.b16 %v7918, %v7909
        %v8000 = vpack.c.b16 %v7919, %v7910
        %v8001 = vpack.c.b16 %v7920, %v7911
        %v8002 = vpack.c.b16 %v7921, %v7912
        %v8003 = vpack.c.b16 %v7922, %v7913
        %v8004 = vpack.c.b16 %v7923, %v7914
        %v8005 = vpack.c.b16 %v7924, %v7915
        %v8006 = vpack.c.b16 %v7925, %v7916
        %v8007 = vpack.c.b16 %v7926, %v7917
        %v8008 = vpack.c.b16 %v7936, %v7927
        %v8009 = vpack.c.b16 %v7937, %v7928
        %v8010 = vpack.c.b16 %v7938, %v7929
        %v8011 = vpack.c.b16 %v7939, %v7930
        %v8012 = vpack.c.b16 %v7940, %v7931
        %v8013 = vpack.c.b16 %v7941, %v7932
        %v8014 = vpack.c.b16 %v7942, %v7933
        %v8015 = vpack.c.b16 %v7943, %v7934
        %v8016 = vpack.c.b16 %v7944, %v7935
        %8089 = vmatprep.subr.bf16.mxu0 %v7946
        %8090 = vmatpush1.bf16.msra.mxu0 %v7945
        %8091 = vmatprep.subr.bf16.mxu0 %v7955
        %8092 = vmatpush1.bf16.msra.mxu0 %v7954
        %8093 = vmatprep.subr.bf16.mxu0 %v7964
        %8094 = vmatpush1.bf16.msra.mxu0 %v7963
        %8095 = vmatprep.subr.bf16.mxu0 %v7973
        %8096 = vmatpush1.bf16.msra.mxu0 %v7972
        %8097 = vmatprep.subr.bf16.mxu0 %v7982
        %8098 = vmatpush1.bf16.msra.mxu0 %v7981
        %8099 = vmatprep.subr.bf16.mxu0 %v7991
        %8100 = vmatpush1.bf16.msra.mxu0 %v7990
        %8101 = vmatprep.subr.bf16.mxu0 %v8000
        %8102 = vmatpush1.bf16.msra.mxu0 %v7999
        %8103 = vmatprep.subr.bf16.mxu0 %v8009
        %8104 = vmatpush1.bf16.msra.mxu0 %v8008
        %8105 = vmatprep.subr.bf16.mxu0 0
        %8106 = vmatpush1.bf16.msra.mxu0 0
        %8107 = vmatprep.subr.bf16.mxu0 0
        %8108 = vmatpush1.bf16.msra.mxu0 0
        %8109 = vmatprep.subr.bf16.mxu0 0
        %8110 = vmatpush1.bf16.msra.mxu0 0
        %8111 = vmatprep.subr.bf16.mxu0 0
        %8112 = vmatpush1.bf16.msra.mxu0 0
        %8113 = vmatprep.subr.bf16.mxu0 0
        %8114 = vmatpush1.bf16.msra.mxu0 0
        %8115 = vmatprep.subr.bf16.mxu0 0
        %8116 = vmatpush1.bf16.msra.mxu0 0
        %8117 = vmatprep.subr.bf16.mxu0 0
        %8118 = vmatpush1.bf16.msra.mxu0 0
        %8119 = vmatprep.subr.bf16.mxu0 0
        %8120 = vmatpush1.bf16.msra.mxu0 0
        %8121 = vmatprep.mubr.bf16.mxu0 0
        %8122 = vmatmul.mubr.bf16.gmra.mrb[0].mxu0 %v7633
        %v8123 = vpop.f32.mrb[0].mxu0
        %v8124 = vadd.f32 0.0, %v8123
        %v8125 = vpop.f32.mrb[0].mxu0
        %v8126 = vadd.f32 0.0, %v8125
        %v8127 = vpop.f32.mrb[0].mxu0
        %v8128 = vadd.f32 0.0, %v8127
        %v8129 = vpop.f32.mrb[0].mxu0
        %v8130 = vadd.f32 0.0, %v8129
        %8131 = vmatprep.mubr.bf16.mxu0 0
        %8132 = vmatmul.mubr.bf16.gmra.mrb[0].mxu0 %v7634
        %v8133 = vpop.f32.mrb[0].mxu0
        %v8134 = vadd.f32 0.0, %v8133
        %v8135 = vpop.f32.mrb[0].mxu0
        %v8136 = vadd.f32 0.0, %v8135
        %v8137 = vpop.f32.mrb[0].mxu0
        %v8138 = vadd.f32 0.0, %v8137
        %v8139 = vpop.f32.mrb[0].mxu0
        %v8140 = vadd.f32 0.0, %v8139
        %8141 = vmatprep.mubr.bf16.mxu0 0
        %8142 = vmatmul.mubr.bf16.gmra.mrb[0].mxu0 %v7635
        %v8143 = vpop.f32.mrb[0].mxu0
        %v8144 = vadd.f32 0.0, %v8143
        %v8145 = vpop.f32.mrb[0].mxu0
        %v8146 = vadd.f32 0.0, %v8145
        %v8147 = vpop.f32.mrb[0].mxu0
        %v8148 = vadd.f32 0.0, %v8147
        %v8149 = vpop.f32.mrb[0].mxu0
        %v8150 = vadd.f32 0.0, %v8149
        %8151 = vmatprep.mubr.bf16.mxu0 0
        %8152 = vmatmul.mubr.bf16.gmra.mrb[0].mxu0 %v7636
        %v8153 = vpop.f32.mrb[0].mxu0
        %v8154 = vadd.f32 0.0, %v8153
        %v8155 = vpop.f32.mrb[0].mxu0
        %v8156 = vadd.f32 0.0, %v8155
        %v8157 = vpop.f32.mrb[0].mxu0
        %v8158 = vadd.f32 0.0, %v8157
        %v8159 = vpop.f32.mrb[0].mxu0
        %v8160 = vadd.f32 0.0, %v8159
        %8161 = vmatprep.mubr.bf16.mxu0 0
        %8162 = vmatmul.mubr.bf16.gmra.mrb[0].mxu0 %v7637
        %v8163 = vpop.f32.mrb[0].mxu0
        %v8164 = vadd.f32 0.0, %v8163
        %v8165 = vpop.f32.mrb[0].mxu0
        %v8166 = vadd.f32 0.0, %v8165
        %v8167 = vpop.f32.mrb[0].mxu0
        %v8168 = vadd.f32 0.0, %v8167
        %v8169 = vpop.f32.mrb[0].mxu0
        %v8170 = vadd.f32 0.0, %v8169
        %8171 = vmatprep.mubr.bf16.mxu0 0
        %8172 = vmatmul.mubr.bf16.gmra.mrb[0].mxu0 %v7638
        %v8173 = vpop.f32.mrb[0].mxu0
        %v8174 = vadd.f32 0.0, %v8173
        %v8175 = vpop.f32.mrb[0].mxu0
        %v8176 = vadd.f32 0.0, %v8175
        %v8177 = vpop.f32.mrb[0].mxu0
        %v8178 = vadd.f32 0.0, %v8177
        %v8179 = vpop.f32.mrb[0].mxu0
        %v8180 = vadd.f32 0.0, %v8179
        %8181 = vmatprep.mubr.bf16.mxu0 0
        %8182 = vmatmul.mubr.bf16.gmra.mrb[0].mxu0 %v7639
        %v8183 = vpop.f32.mrb[0].mxu0
        %v8184 = vadd.f32 0.0, %v8183
        %v8185 = vpop.f32.mrb[0].mxu0
        %v8186 = vadd.f32 0.0, %v8185
        %v8187 = vpop.f32.mrb[0].mxu0
        %v8188 = vadd.f32 0.0, %v8187
        %v8189 = vpop.f32.mrb[0].mxu0
        %v8190 = vadd.f32 0.0, %v8189
        %8191 = vmatprep.mubr.bf16.mxu0 0
        %8192 = vmatmul.mubr.bf16.gmra.mrb[0].mxu0 %v7640
        %v8193 = vpop.f32.mrb[0].mxu0
        %v8194 = vadd.f32 0.0, %v8193
        %v8195 = vpop.f32.mrb[0].mxu0
        %v8196 = vadd.f32 0.0, %v8195
        %v8197 = vpop.f32.mrb[0].mxu0
        %v8198 = vadd.f32 0.0, %v8197
        %v8199 = vpop.f32.mrb[0].mxu0
        %v8200 = vadd.f32 0.0, %v8199
        %8201 = vdwg.mxu0
        %8202 = vmatprep.subr.bf16.mxu0 %v7948
        %8203 = vmatpush1.bf16.msra.mxu0 %v7947
        %8204 = vmatprep.subr.bf16.mxu0 %v7957
        %8205 = vmatpush1.bf16.msra.mxu0 %v7956
        %8206 = vmatprep.subr.bf16.mxu0 %v7966
        %8207 = vmatpush1.bf16.msra.mxu0 %v7965
        %8208 = vmatprep.subr.bf16.mxu0 %v7975
        %8209 = vmatpush1.bf16.msra.mxu0 %v7974
        %8210 = vmatprep.subr.bf16.mxu0 %v7984
        %8211 = vmatpush1.bf16.msra.mxu0 %v7983
        %8212 = vmatprep.subr.bf16.mxu0 %v7993
        %8213 = vmatpush1.bf16.msra.mxu0 %v7992
        %8214 = vmatprep.subr.bf16.mxu0 %v8002
        %8215 = vmatpush1.bf16.msra.mxu0 %v8001
        %8216 = vmatprep.subr.bf16.mxu0 %v8011
        %8217 = vmatpush1.bf16.msra.mxu0 %v8010
        %8218 = vmatprep.subr.bf16.mxu0 0
        %8219 = vmatpush1.bf16.msra.mxu0 0
        %8220 = vmatprep.subr.bf16.mxu0 0
        %8221 = vmatpush1.bf16.msra.mxu0 0
        %8222 = vmatprep.subr.bf16.mxu0 0
        %8223 = vmatpush1.bf16.msra.mxu0 0
        %8224 = vmatprep.subr.bf16.mxu0 0
        %8225 = vmatpush1.bf16.msra.mxu0 0
        %8226 = vmatprep.subr.bf16.mxu0 0
        %8227 = vmatpush1.bf16.msra.mxu0 0
        %8228 = vmatprep.subr.bf16.mxu0 0
        %8229 = vmatpush1.bf16.msra.mxu0 0
        %8230 = vmatprep.subr.bf16.mxu0 0
        %8231 = vmatpush1.bf16.msra.mxu0 0
        %8232 = vmatprep.subr.bf16.mxu0 0
        %8233 = vmatpush1.bf16.msra.mxu0 0
        %8234 = vmatprep.mubr.bf16.mxu0 0
        %8235 = vmatmul.mubr.bf16.gmra.mrb[0].mxu0 %v7633
        %v8236 = vpop.f32.mrb[0].mxu0
        %v8237 = vadd.f32 0.0, %v8236
        %v8238 = vpop.f32.mrb[0].mxu0
        %v8239 = vadd.f32 0.0, %v8238
        %v8240 = vpop.f32.mrb[0].mxu0
        %v8241 = vadd.f32 0.0, %v8240
        %v8242 = vpop.f32.mrb[0].mxu0
        %v8243 = vadd.f32 0.0, %v8242
        %8244 = vmatprep.mubr.bf16.mxu0 0
        %8245 = vmatmul.mubr.bf16.gmra.mrb[0].mxu0 %v7634
        %v8246 = vpop.f32.mrb[0].mxu0
        %v8247 = vadd.f32 0.0, %v8246
        %v8248 = vpop.f32.mrb[0].mxu0
        %v8249 = vadd.f32 0.0, %v8248
        %v8250 = vpop.f32.mrb[0].mxu0
        %v8251 = vadd.f32 0.0, %v8250
        %v8252 = vpop.f32.mrb[0].mxu0
        %v8253 = vadd.f32 0.0, %v8252
        %8254 = vmatprep.mubr.bf16.mxu0 0
        %8255 = vmatmul.mubr.bf16.gmra.mrb[0].mxu0 %v7635
        %v8256 = vpop.f32.mrb[0].mxu0
        %v8257 = vadd.f32 0.0, %v8256
        %v8258 = vpop.f32.mrb[0].mxu0
        %v8259 = vadd.f32 0.0, %v8258
        %v8260 = vpop.f32.mrb[0].mxu0
        %v8261 = vadd.f32 0.0, %v8260
        %v8262 = vpop.f32.mrb[0].mxu0
        %v8263 = vadd.f32 0.0, %v8262
        %8264 = vmatprep.mubr.bf16.mxu0 0
        %8265 = vmatmul.mubr.bf16.gmra.mrb[0].mxu0 %v7636
        %v8266 = vpop.f32.mrb[0].mxu0
        %v8267 = vadd.f32 0.0, %v8266
        %v8268 = vpop.f32.mrb[0].mxu0
        %v8269 = vadd.f32 0.0, %v8268
        %v8270 = vpop.f32.mrb[0].mxu0
        %v8271 = vadd.f32 0.0, %v8270
        %v8272 = vpop.f32.mrb[0].mxu0
        %v8273 = vadd.f32 0.0, %v8272
        %8274 = vmatprep.mubr.bf16.mxu0 0
        %8275 = vmatmul.mubr.bf16.gmra.mrb[0].mxu0 %v7637
        %v8276 = vpop.f32.mrb[0].mxu0
        %v8277 = vadd.f32 0.0, %v8276
        %v8278 = vpop.f32.mrb[0].mxu0
        %v8279 = vadd.f32 0.0, %v8278
        %v8280 = vpop.f32.mrb[0].mxu0
        %v8281 = vadd.f32 0.0, %v8280
        %v8282 = vpop.f32.mrb[0].mxu0
        %v8283 = vadd.f32 0.0, %v8282
        %8284 = vmatprep.mubr.bf16.mxu0 0
        %8285 = vmatmul.mubr.bf16.gmra.mrb[0].mxu0 %v7638
        %v8286 = vpop.f32.mrb[0].mxu0
        %v8287 = vadd.f32 0.0, %v8286
        %v8288 = vpop.f32.mrb[0].mxu0
        %v8289 = vadd.f32 0.0, %v8288
        %v8290 = vpop.f32.mrb[0].mxu0
        %v8291 = vadd.f32 0.0, %v8290
        %v8292 = vpop.f32.mrb[0].mxu0
        %v8293 = vadd.f32 0.0, %v8292
        %8294 = vmatprep.mubr.bf16.mxu0 0
        %8295 = vmatmul.mubr.bf16.gmra.mrb[0].mxu0 %v7639
        %v8296 = vpop.f32.mrb[0].mxu0
        %v8297 = vadd.f32 0.0, %v8296
        %v8298 = vpop.f32.mrb[0].mxu0
        %v8299 = vadd.f32 0.0, %v8298
        %v8300 = vpop.f32.mrb[0].mxu0
        %v8301 = vadd.f32 0.0, %v8300
        %v8302 = vpop.f32.mrb[0].mxu0
        %v8303 = vadd.f32 0.0, %v8302
        %8304 = vmatprep.mubr.bf16.mxu0 0
        %8305 = vmatmul.mubr.bf16.gmra.mrb[0].mxu0 %v7640
        %v8306 = vpop.f32.mrb[0].mxu0
        %v8307 = vadd.f32 0.0, %v8306
        %v8308 = vpop.f32.mrb[0].mxu0
        %v8309 = vadd.f32 0.0, %v8308
        %v8310 = vpop.f32.mrb[0].mxu0
        %v8311 = vadd.f32 0.0, %v8310
        %v8312 = vpop.f32.mrb[0].mxu0
        %v8313 = vadd.f32 0.0, %v8312
        %8314 = vdwg.mxu0
        %8315 = vmatprep.subr.bf16.mxu0 %v7950
        %8316 = vmatpush1.bf16.msra.mxu0 %v7949
        %8317 = vmatprep.subr.bf16.mxu0 %v7959
        %8318 = vmatpush1.bf16.msra.mxu0 %v7958
        %8319 = vmatprep.subr.bf16.mxu0 %v7968
        %8320 = vmatpush1.bf16.msra.mxu0 %v7967
        %8321 = vmatprep.subr.bf16.mxu0 %v7977
        %8322 = vmatpush1.bf16.msra.mxu0 %v7976
        %8323 = vmatprep.subr.bf16.mxu0 %v7986
        %8324 = vmatpush1.bf16.msra.mxu0 %v7985
        %8325 = vmatprep.subr.bf16.mxu0 %v7995
        %8326 = vmatpush1.bf16.msra.mxu0 %v7994
        %8327 = vmatprep.subr.bf16.mxu0 %v8004
        %8328 = vmatpush1.bf16.msra.mxu0 %v8003
        %8329 = vmatprep.subr.bf16.mxu0 %v8013
        %8330 = vmatpush1.bf16.msra.mxu0 %v8012
        %8331 = vmatprep.subr.bf16.mxu0 0
        %8332 = vmatpush1.bf16.msra.mxu0 0
        %8333 = vmatprep.subr.bf16.mxu0 0
        %8334 = vmatpush1.bf16.msra.mxu0 0
        %8335 = vmatprep.subr.bf16.mxu0 0
        %8336 = vmatpush1.bf16.msra.mxu0 0
        %8337 = vmatprep.subr.bf16.mxu0 0
        %8338 = vmatpush1.bf16.msra.mxu0 0
        %8339 = vmatprep.subr.bf16.mxu0 0
        %8340 = vmatpush1.bf16.msra.mxu0 0
        %8341 = vmatprep.subr.bf16.mxu0 0
        %8342 = vmatpush1.bf16.msra.mxu0 0
        %8343 = vmatprep.subr.bf16.mxu0 0
        %8344 = vmatpush1.bf16.msra.mxu0 0
        %8345 = vmatprep.subr.bf16.mxu0 0
        %8346 = vmatpush1.bf16.msra.mxu0 0
        %8347 = vmatprep.mubr.bf16.mxu0 0
        %8348 = vmatmul.mubr.bf16.gmra.mrb[0].mxu0 %v7633
        %v8349 = vpop.f32.mrb[0].mxu0
        %v8350 = vadd.f32 0.0, %v8349
        %v8351 = vpop.f32.mrb[0].mxu0
        %v8352 = vadd.f32 0.0, %v8351
        %v8353 = vpop.f32.mrb[0].mxu0
        %v8354 = vadd.f32 0.0, %v8353
        %v8355 = vpop.f32.mrb[0].mxu0
        %v8356 = vadd.f32 0.0, %v8355
        %8357 = vmatprep.mubr.bf16.mxu0 0
        %8358 = vmatmul.mubr.bf16.gmra.mrb[0].mxu0 %v7634
        %v8359 = vpop.f32.mrb[0].mxu0
        %v8360 = vadd.f32 0.0, %v8359
        %v8361 = vpop.f32.mrb[0].mxu0
        %v8362 = vadd.f32 0.0, %v8361
        %v8363 = vpop.f32.mrb[0].mxu0
        %v8364 = vadd.f32 0.0, %v8363
        %v8365 = vpop.f32.mrb[0].mxu0
        %v8366 = vadd.f32 0.0, %v8365
        %8367 = vmatprep.mubr.bf16.mxu0 0
        %8368 = vmatmul.mubr.bf16.gmra.mrb[0].mxu0 %v7635
        %v8369 = vpop.f32.mrb[0].mxu0
        %v8370 = vadd.f32 0.0, %v8369
        %v8371 = vpop.f32.mrb[0].mxu0
        %v8372 = vadd.f32 0.0, %v8371
        %v8373 = vpop.f32.mrb[0].mxu0
        %v8374 = vadd.f32 0.0, %v8373
        %v8375 = vpop.f32.mrb[0].mxu0
        %v8376 = vadd.f32 0.0, %v8375
        %8377 = vmatprep.mubr.bf16.mxu0 0
        %8378 = vmatmul.mubr.bf16.gmra.mrb[0].mxu0 %v7636
        %v8379 = vpop.f32.mrb[0].mxu0
        %v8380 = vadd.f32 0.0, %v8379
        %v8381 = vpop.f32.mrb[0].mxu0
        %v8382 = vadd.f32 0.0, %v8381
        %v8383 = vpop.f32.mrb[0].mxu0
        %v8384 = vadd.f32 0.0, %v8383
        %v8385 = vpop.f32.mrb[0].mxu0
        %v8386 = vadd.f32 0.0, %v8385
        %8387 = vmatprep.mubr.bf16.mxu0 0
        %8388 = vmatmul.mubr.bf16.gmra.mrb[0].mxu0 %v7637
        %v8389 = vpop.f32.mrb[0].mxu0
        %v8390 = vadd.f32 0.0, %v8389
        %v8391 = vpop.f32.mrb[0].mxu0
        %v8392 = vadd.f32 0.0, %v8391
        %v8393 = vpop.f32.mrb[0].mxu0
        %v8394 = vadd.f32 0.0, %v8393
        %v8395 = vpop.f32.mrb[0].mxu0
        %v8396 = vadd.f32 0.0, %v8395
        %8397 = vmatprep.mubr.bf16.mxu0 0
        %8398 = vmatmul.mubr.bf16.gmra.mrb[0].mxu0 %v7638
        %v8399 = vpop.f32.mrb[0].mxu0
        %v8400 = vadd.f32 0.0, %v8399
        %v8401 = vpop.f32.mrb[0].mxu0
        %v8402 = vadd.f32 0.0, %v8401
        %v8403 = vpop.f32.mrb[0].mxu0
        %v8404 = vadd.f32 0.0, %v8403
        %v8405 = vpop.f32.mrb[0].mxu0
        %v8406 = vadd.f32 0.0, %v8405
        %8407 = vmatprep.mubr.bf16.mxu0 0
        %8408 = vmatmul.mubr.bf16.gmra.mrb[0].mxu0 %v7639
        %v8409 = vpop.f32.mrb[0].mxu0
        %v8410 = vadd.f32 0.0, %v8409
        %v8411 = vpop.f32.mrb[0].mxu0
        %v8412 = vadd.f32 0.0, %v8411
        %v8413 = vpop.f32.mrb[0].mxu0
        %v8414 = vadd.f32 0.0, %v8413
        %v8415 = vpop.f32.mrb[0].mxu0
        %v8416 = vadd.f32 0.0, %v8415
        %8417 = vmatprep.mubr.bf16.mxu0 0
        %8418 = vmatmul.mubr.bf16.gmra.mrb[0].mxu0 %v7640
        %v8419 = vpop.f32.mrb[0].mxu0
        %v8420 = vadd.f32 0.0, %v8419
        %v8421 = vpop.f32.mrb[0].mxu0
        %v8422 = vadd.f32 0.0, %v8421
        %v8423 = vpop.f32.mrb[0].mxu0
        %v8424 = vadd.f32 0.0, %v8423
        %v8425 = vpop.f32.mrb[0].mxu0
        %v8426 = vadd.f32 0.0, %v8425
        %8427 = vdwg.mxu0
        %8428 = vmatprep.subr.bf16.mxu0 %v7952
        %8429 = vmatpush1.bf16.msra.mxu0 %v7951
        %8430 = vmatprep.subr.bf16.mxu0 %v7961
        %8431 = vmatpush1.bf16.msra.mxu0 %v7960
        %8432 = vmatprep.subr.bf16.mxu0 %v7970
        %8433 = vmatpush1.bf16.msra.mxu0 %v7969
        %8434 = vmatprep.subr.bf16.mxu0 %v7979
        %8435 = vmatpush1.bf16.msra.mxu0 %v7978
        %8436 = vmatprep.subr.bf16.mxu0 %v7988
        %8437 = vmatpush1.bf16.msra.mxu0 %v7987
        %8438 = vmatprep.subr.bf16.mxu0 %v7997
        %8439 = vmatpush1.bf16.msra.mxu0 %v7996
        %8440 = vmatprep.subr.bf16.mxu0 %v8006
        %8441 = vmatpush1.bf16.msra.mxu0 %v8005
        %8442 = vmatprep.subr.bf16.mxu0 %v8015
        %8443 = vmatpush1.bf16.msra.mxu0 %v8014
        %8444 = vmatprep.subr.bf16.mxu0 0
        %8445 = vmatpush1.bf16.msra.mxu0 0
        %8446 = vmatprep.subr.bf16.mxu0 0
        %8447 = vmatpush1.bf16.msra.mxu0 0
        %8448 = vmatprep.subr.bf16.mxu0 0
        %8449 = vmatpush1.bf16.msra.mxu0 0
        %8450 = vmatprep.subr.bf16.mxu0 0
        %8451 = vmatpush1.bf16.msra.mxu0 0
        %8452 = vmatprep.subr.bf16.mxu0 0
        %8453 = vmatpush1.bf16.msra.mxu0 0
        %8454 = vmatprep.subr.bf16.mxu0 0
        %8455 = vmatpush1.bf16.msra.mxu0 0
        %8456 = vmatprep.subr.bf16.mxu0 0
        %8457 = vmatpush1.bf16.msra.mxu0 0
        %8458 = vmatprep.subr.bf16.mxu0 0
        %8459 = vmatpush1.bf16.msra.mxu0 0
        %8460 = vmatprep.mubr.bf16.mxu0 0
        %8461 = vmatmul.mubr.bf16.gmra.mrb[0].mxu0 %v7633
        %v8462 = vpop.f32.mrb[0].mxu0
        %v8463 = vadd.f32 0.0, %v8462
        %v8464 = vpop.f32.mrb[0].mxu0
        %v8465 = vadd.f32 0.0, %v8464
        %v8466 = vpop.f32.mrb[0].mxu0
        %v8467 = vadd.f32 0.0, %v8466
        %v8468 = vpop.f32.mrb[0].mxu0
        %v8469 = vadd.f32 0.0, %v8468
        %8470 = vmatprep.mubr.bf16.mxu0 0
        %8471 = vmatmul.mubr.bf16.gmra.mrb[0].mxu0 %v7634
        %v8472 = vpop.f32.mrb[0].mxu0
        %v8473 = vadd.f32 0.0, %v8472
        %v8474 = vpop.f32.mrb[0].mxu0
        %v8475 = vadd.f32 0.0, %v8474
        %v8476 = vpop.f32.mrb[0].mxu0
        %v8477 = vadd.f32 0.0, %v8476
        %v8478 = vpop.f32.mrb[0].mxu0
        %v8479 = vadd.f32 0.0, %v8478
        %8480 = vmatprep.mubr.bf16.mxu0 0
        %8481 = vmatmul.mubr.bf16.gmra.mrb[0].mxu0 %v7635
        %v8482 = vpop.f32.mrb[0].mxu0
        %v8483 = vadd.f32 0.0, %v8482
        %v8484 = vpop.f32.mrb[0].mxu0
        %v8485 = vadd.f32 0.0, %v8484
        %v8486 = vpop.f32.mrb[0].mxu0
        %v8487 = vadd.f32 0.0, %v8486
        %v8488 = vpop.f32.mrb[0].mxu0
        %v8489 = vadd.f32 0.0, %v8488
        %8490 = vmatprep.mubr.bf16.mxu0 0
        %8491 = vmatmul.mubr.bf16.gmra.mrb[0].mxu0 %v7636
        %v8492 = vpop.f32.mrb[0].mxu0
        %v8493 = vadd.f32 0.0, %v8492
        %v8494 = vpop.f32.mrb[0].mxu0
        %v8495 = vadd.f32 0.0, %v8494
        %v8496 = vpop.f32.mrb[0].mxu0
        %v8497 = vadd.f32 0.0, %v8496
        %v8498 = vpop.f32.mrb[0].mxu0
        %v8499 = vadd.f32 0.0, %v8498
        %8500 = vmatprep.mubr.bf16.mxu0 0
        %8501 = vmatmul.mubr.bf16.gmra.mrb[0].mxu0 %v7637
        %v8502 = vpop.f32.mrb[0].mxu0
        %v8503 = vadd.f32 0.0, %v8502
        %v8504 = vpop.f32.mrb[0].mxu0
        %v8505 = vadd.f32 0.0, %v8504
        %v8506 = vpop.f32.mrb[0].mxu0
        %v8507 = vadd.f32 0.0, %v8506
        %v8508 = vpop.f32.mrb[0].mxu0
        %v8509 = vadd.f32 0.0, %v8508
        %8510 = vmatprep.mubr.bf16.mxu0 0
        %8511 = vmatmul.mubr.bf16.gmra.mrb[0].mxu0 %v7638
        %v8512 = vpop.f32.mrb[0].mxu0
        %v8513 = vadd.f32 0.0, %v8512
        %v8514 = vpop.f32.mrb[0].mxu0
        %v8515 = vadd.f32 0.0, %v8514
        %v8516 = vpop.f32.mrb[0].mxu0
        %v8517 = vadd.f32 0.0, %v8516
        %v8518 = vpop.f32.mrb[0].mxu0
        %v8519 = vadd.f32 0.0, %v8518
        %8520 = vmatprep.mubr.bf16.mxu0 0
        %8521 = vmatmul.mubr.bf16.gmra.mrb[0].mxu0 %v7639
        %v8522 = vpop.f32.mrb[0].mxu0
        %v8523 = vadd.f32 0.0, %v8522
        %v8524 = vpop.f32.mrb[0].mxu0
        %v8525 = vadd.f32 0.0, %v8524
        %v8526 = vpop.f32.mrb[0].mxu0
        %v8527 = vadd.f32 0.0, %v8526
        %v8528 = vpop.f32.mrb[0].mxu0
        %v8529 = vadd.f32 0.0, %v8528
        %8530 = vmatprep.mubr.bf16.mxu0 0
        %8531 = vmatmul.mubr.bf16.gmra.mrb[0].mxu0 %v7640
        %v8532 = vpop.f32.mrb[0].mxu0
        %v8533 = vadd.f32 0.0, %v8532
        %v8534 = vpop.f32.mrb[0].mxu0
        %v8535 = vadd.f32 0.0, %v8534
        %v8536 = vpop.f32.mrb[0].mxu0
        %v8537 = vadd.f32 0.0, %v8536
        %v8538 = vpop.f32.mrb[0].mxu0
        %v8539 = vadd.f32 0.0, %v8538
        %8540 = vdwg.mxu0
        %8541 = vmatprep.subr.bf16.mxu0 0
        %8542 = vmatpush1.bf16.msra.mxu0 %v7953
        %8543 = vmatprep.subr.bf16.mxu0 0
        %8544 = vmatpush1.bf16.msra.mxu0 %v7962
        %8545 = vmatprep.subr.bf16.mxu0 0
        %8546 = vmatpush1.bf16.msra.mxu0 %v7971
        %8547 = vmatprep.subr.bf16.mxu0 0
        %8548 = vmatpush1.bf16.msra.mxu0 %v7980
        %8549 = vmatprep.subr.bf16.mxu0 0
        %8550 = vmatpush1.bf16.msra.mxu0 %v7989
        %8551 = vmatprep.subr.bf16.mxu0 0
        %8552 = vmatpush1.bf16.msra.mxu0 %v7998
        %8553 = vmatprep.subr.bf16.mxu0 0
        %8554 = vmatpush1.bf16.msra.mxu0 %v8007
        %8555 = vmatprep.subr.bf16.mxu0 0
        %8556 = vmatpush1.bf16.msra.mxu0 %v8016
        %8557 = vmatprep.subr.bf16.mxu0 0
        %8558 = vmatpush1.bf16.msra.mxu0 0
        %8559 = vmatprep.subr.bf16.mxu0 0
        %8560 = vmatpush1.bf16.msra.mxu0 0
        %8561 = vmatprep.subr.bf16.mxu0 0
        %8562 = vmatpush1.bf16.msra.mxu0 0
        %8563 = vmatprep.subr.bf16.mxu0 0
        %8564 = vmatpush1.bf16.msra.mxu0 0
        %8565 = vmatprep.subr.bf16.mxu0 0
        %8566 = vmatpush1.bf16.msra.mxu0 0
        %8567 = vmatprep.subr.bf16.mxu0 0
        %8568 = vmatpush1.bf16.msra.mxu0 0
        %8569 = vmatprep.subr.bf16.mxu0 0
        %8570 = vmatpush1.bf16.msra.mxu0 0
        %8571 = vmatprep.subr.bf16.mxu0 0
        %8572 = vmatpush1.bf16.msra.mxu0 0
        %8573 = vmatprep.mubr.bf16.mxu0 0
        %8574 = vmatmul.mubr.bf16.gmra.mrb[0].mxu0 %v7633
        %v8575 = vpop.f32.mrb[0].mxu0
        %v8576 = vadd.f32 0.0, %v8575
        %v8577 = vpop.f32.mrb[0].mxu0
        %v8578 = vpop.f32.mrb[0].mxu0
        %v8579 = vadd.f32 0.0, %v8578
        %v8580 = vpop.f32.mrb[0].mxu0
        %8581 = vmatprep.mubr.bf16.mxu0 0
        %8582 = vmatmul.mubr.bf16.gmra.mrb[0].mxu0 %v7634
        %v8583 = vpop.f32.mrb[0].mxu0
        %v8584 = vadd.f32 0.0, %v8583
        %v8585 = vpop.f32.mrb[0].mxu0
        %v8586 = vpop.f32.mrb[0].mxu0
        %v8587 = vadd.f32 0.0, %v8586
        %v8588 = vpop.f32.mrb[0].mxu0
        %8589 = vmatprep.mubr.bf16.mxu0 0
        %8590 = vmatmul.mubr.bf16.gmra.mrb[0].mxu0 %v7635
        %v8591 = vpop.f32.mrb[0].mxu0
        %v8592 = vadd.f32 0.0, %v8591
        %v8593 = vpop.f32.mrb[0].mxu0
        %v8594 = vpop.f32.mrb[0].mxu0
        %v8595 = vadd.f32 0.0, %v8594
        %v8596 = vpop.f32.mrb[0].mxu0
        %8597 = vmatprep.mubr.bf16.mxu0 0
        %8598 = vmatmul.mubr.bf16.gmra.mrb[0].mxu0 %v7636
        %v8599 = vpop.f32.mrb[0].mxu0
        %v8600 = vadd.f32 0.0, %v8599
        %v8601 = vpop.f32.mrb[0].mxu0
        %v8602 = vpop.f32.mrb[0].mxu0
        %v8603 = vadd.f32 0.0, %v8602
        %v8604 = vpop.f32.mrb[0].mxu0
        %8605 = vmatprep.mubr.bf16.mxu0 0
        %8606 = vmatmul.mubr.bf16.gmra.mrb[0].mxu0 %v7637
        %v8607 = vpop.f32.mrb[0].mxu0
        %v8608 = vadd.f32 0.0, %v8607
        %v8609 = vpop.f32.mrb[0].mxu0
        %v8610 = vpop.f32.mrb[0].mxu0
        %v8611 = vadd.f32 0.0, %v8610
        %v8612 = vpop.f32.mrb[0].mxu0
        %8613 = vmatprep.mubr.bf16.mxu0 0
        %8614 = vmatmul.mubr.bf16.gmra.mrb[0].mxu0 %v7638
        %v8615 = vpop.f32.mrb[0].mxu0
        %v8616 = vadd.f32 0.0, %v8615
        %v8617 = vpop.f32.mrb[0].mxu0
        %v8618 = vpop.f32.mrb[0].mxu0
        %v8619 = vadd.f32 0.0, %v8618
        %v8620 = vpop.f32.mrb[0].mxu0
        %8621 = vmatprep.mubr.bf16.mxu0 0
        %8622 = vmatmul.mubr.bf16.gmra.mrb[0].mxu0 %v7639
        %v8623 = vpop.f32.mrb[0].mxu0
        %v8624 = vadd.f32 0.0, %v8623
        %v8625 = vpop.f32.mrb[0].mxu0
        %v8626 = vpop.f32.mrb[0].mxu0
        %v8627 = vadd.f32 0.0, %v8626
        %v8628 = vpop.f32.mrb[0].mxu0
        %8629 = vmatprep.mubr.bf16.mxu0 0
        %8630 = vmatmul.mubr.bf16.gmra.mrb[0].mxu0 %v7640
        %v8631 = vpop.f32.mrb[0].mxu0
        %v8632 = vadd.f32 0.0, %v8631
        %v8633 = vpop.f32.mrb[0].mxu0
        %v8634 = vpop.f32.mrb[0].mxu0
        %v8635 = vadd.f32 0.0, %v8634
        %v8636 = vpop.f32.mrb[0].mxu0
        %8637 = vdwg.mxu0
        %v8638 = vld [vmem:[%s6] sm:$0xf]
        %v8639 = vld [vmem:[%s6 + $0x4] sm:$0xf]
        %v8640 = vld [vmem:[%s6 + $0x8] sm:$0xf]
        %v8641 = vld [vmem:[%s6 + $0xc] sm:$0xf]
        %v8642 = vpack.c.bf16 %v8128, %v8124
        %v8643 = vpack.c.bf16 %v8138, %v8134
        %v8644 = vpack.c.bf16 %v8148, %v8144
        %v8645 = vpack.c.bf16 %v8158, %v8154
        %v8646 = vpack.c.bf16 %v8168, %v8164
        %v8647 = vpack.c.bf16 %v8178, %v8174
        %v8648 = vpack.c.bf16 %v8188, %v8184
        %v8649 = vpack.c.bf16 %v8198, %v8194
        %s8650 = scalar_lea.vmem %s6, 16
        %v8651 = vld [vmem:[%s8650] sm:$0xf]
        %v8652 = vld [vmem:[%s8650 + $0x4] sm:$0xf]
        %v8653 = vld [vmem:[%s8650 + $0x8] sm:$0xf]
        %v8654 = vld [vmem:[%s8650 + $0xc] sm:$0xf]
        %v8655 = vpack.c.bf16 %v8130, %v8126
        %v8656 = vpack.c.bf16 %v8140, %v8136
        %v8657 = vpack.c.bf16 %v8150, %v8146
        %v8658 = vpack.c.bf16 %v8160, %v8156
        %v8659 = vpack.c.bf16 %v8170, %v8166
        %v8660 = vpack.c.bf16 %v8180, %v8176
        %v8661 = vpack.c.bf16 %v8190, %v8186
        %v8662 = vpack.c.bf16 %v8200, %v8196
        %v8667 = vunpack.c.l.b16 %v8651
        %v8668 = vunpack.c.l.b16 %v8652
        %v8669 = vunpack.c.l.b16 %v8653
        %v8670 = vunpack.c.l.b16 %v8654
        %v8671 = vpack.c.b16 %v8668, %v8667
        %v8672 = vpack.c.b16 %v8670, %v8669
        %8675 = vmatprep.subr.bf16.mxu0 0
        %8676 = vmatpush1.bf16.msra.mxu0 %v8655
        %8677 = vmatprep.subr.bf16.mxu0 0
        %8678 = vmatpush1.bf16.msra.mxu0 %v8656
        %8679 = vmatprep.subr.bf16.mxu0 0
        %8680 = vmatpush1.bf16.msra.mxu0 %v8657
        %8681 = vmatprep.subr.bf16.mxu0 0
        %8682 = vmatpush1.bf16.msra.mxu0 %v8658
        %8683 = vmatprep.subr.bf16.mxu0 0
        %8684 = vmatpush1.bf16.msra.mxu0 %v8659
        %8685 = vmatprep.subr.bf16.mxu0 0
        %8686 = vmatpush1.bf16.msra.mxu0 %v8660
        %8687 = vmatprep.subr.bf16.mxu0 0
        %8688 = vmatpush1.bf16.msra.mxu0 %v8661
        %8689 = vmatprep.subr.bf16.mxu0 0
        %8690 = vmatpush1.bf16.msra.mxu0 %v8662
        %8691 = vmatprep.subr.bf16.mxu0 0
        %8692 = vmatpush1.bf16.msra.mxu0 0
        %8693 = vmatprep.subr.bf16.mxu0 0
        %8694 = vmatpush1.bf16.msra.mxu0 0
        %8695 = vmatprep.subr.bf16.mxu0 0
        %8696 = vmatpush1.bf16.msra.mxu0 0
        %8697 = vmatprep.subr.bf16.mxu0 0
        %8698 = vmatpush1.bf16.msra.mxu0 0
        %8699 = vmatprep.subr.bf16.mxu0 0
        %8700 = vmatpush1.bf16.msra.mxu0 0
        %8701 = vmatprep.subr.bf16.mxu0 0
        %8702 = vmatpush1.bf16.msra.mxu0 0
        %8703 = vmatprep.subr.bf16.mxu0 0
        %8704 = vmatpush1.bf16.msra.mxu0 0
        %8705 = vmatprep.subr.bf16.mxu0 0
        %8706 = vmatpush1.bf16.msra.mxu0 0
        %8707 = vmatprep.mubr.bf16.mxu0 0
        %8708 = vmatmul.mubr.bf16.gmra.mrb[0].mxu0 %v8671
        %v8709 = vpop.f32.mrb[0].mxu0
        %v8710 = vadd.f32 0.0, %v8709
        %v8711 = vpop.f32.mrb[0].mxu0
        %v8712 = vpop.f32.mrb[0].mxu0
        %v8713 = vadd.f32 0.0, %v8712
        %v8714 = vpop.f32.mrb[0].mxu0
        %8715 = vmatprep.mubr.bf16.mxu0 0
        %8716 = vmatmul.mubr.bf16.gmra.mrb[0].mxu0 %v8672
        %v8717 = vpop.f32.mrb[0].mxu0
        %v8718 = vadd.f32 0.0, %v8717
        %v8719 = vpop.f32.mrb[0].mxu0
        %v8720 = vpop.f32.mrb[0].mxu0
        %v8721 = vadd.f32 0.0, %v8720
        %v8722 = vpop.f32.mrb[0].mxu0
        %8723 = vdwg.mxu0
        %v8728 = vunpack.c.l.b16 %v8638
        %v8729 = vunpack.c.l.b16 %v8639
        %v8730 = vunpack.c.l.b16 %v8640
        %v8731 = vunpack.c.l.b16 %v8641
        %v8732 = vpack.c.b16 %v8729, %v8728
        %v8733 = vpack.c.b16 %v8731, %v8730
        %8736 = vmatprep.subr.bf16.mxu0 0
        %8737 = vmatpush1.bf16.msra.mxu0 %v8642
        %8738 = vmatprep.subr.bf16.mxu0 0
        %8739 = vmatpush1.bf16.msra.mxu0 %v8643
        %8740 = vmatprep.subr.bf16.mxu0 0
        %8741 = vmatpush1.bf16.msra.mxu0 %v8644
        %8742 = vmatprep.subr.bf16.mxu0 0
        %8743 = vmatpush1.bf16.msra.mxu0 %v8645
        %8744 = vmatprep.subr.bf16.mxu0 0
        %8745 = vmatpush1.bf16.msra.mxu0 %v8646
        %8746 = vmatprep.subr.bf16.mxu0 0
        %8747 = vmatpush1.bf16.msra.mxu0 %v8647
        %8748 = vmatprep.subr.bf16.mxu0 0
        %8749 = vmatpush1.bf16.msra.mxu0 %v8648
        %8750 = vmatprep.subr.bf16.mxu0 0
        %8751 = vmatpush1.bf16.msra.mxu0 %v8649
        %8752 = vmatprep.subr.bf16.mxu0 0
        %8753 = vmatpush1.bf16.msra.mxu0 0
        %8754 = vmatprep.subr.bf16.mxu0 0
        %8755 = vmatpush1.bf16.msra.mxu0 0
        %8756 = vmatprep.subr.bf16.mxu0 0
        %8757 = vmatpush1.bf16.msra.mxu0 0
        %8758 = vmatprep.subr.bf16.mxu0 0
        %8759 = vmatpush1.bf16.msra.mxu0 0
        %8760 = vmatprep.subr.bf16.mxu0 0
        %8761 = vmatpush1.bf16.msra.mxu0 0
        %8762 = vmatprep.subr.bf16.mxu0 0
        %8763 = vmatpush1.bf16.msra.mxu0 0
        %8764 = vmatprep.subr.bf16.mxu0 0
        %8765 = vmatpush1.bf16.msra.mxu0 0
        %8766 = vmatprep.subr.bf16.mxu0 0
        %8767 = vmatpush1.bf16.msra.mxu0 0
        %8768 = vmatprep.mubr.bf16.mxu0 0
        %8769 = vmatmul.mubr.bf16.gmra.mrb[0].mxu0 %v8732
        %v8770 = vpop.f32.mrb[0].mxu0
        %v8771 = vadd.f32 %v8710, %v8770
        %v8772 = vpop.f32.mrb[0].mxu0
        %v8773 = vpop.f32.mrb[0].mxu0
        %v8774 = vadd.f32 %v8713, %v8773
        %v8775 = vpop.f32.mrb[0].mxu0
        %8776 = vmatprep.mubr.bf16.mxu0 0
        %8777 = vmatmul.mubr.bf16.gmra.mrb[0].mxu0 %v8733
        %v8778 = vpop.f32.mrb[0].mxu0
        %v8779 = vadd.f32 %v8718, %v8778
        %v8780 = vpop.f32.mrb[0].mxu0
        %v8781 = vpop.f32.mrb[0].mxu0
        %v8782 = vadd.f32 %v8721, %v8781
        %v8783 = vpop.f32.mrb[0].mxu0
        %8784 = vdwg.mxu0
        %s8785 = scalar_lea.vmem %s6, 32
        %v8786 = vld [vmem:[%s8785] sm:$0xf]
        %v8787 = vld [vmem:[%s8785 + $0x4] sm:$0xf]
        %v8788 = vld [vmem:[%s8785 + $0x8] sm:$0xf]
        %v8789 = vld [vmem:[%s8785 + $0xc] sm:$0xf]
        %v8790 = vpack.c.bf16 %v8241, %v8237
        %v8791 = vpack.c.bf16 %v8251, %v8247
        %v8792 = vpack.c.bf16 %v8261, %v8257
        %v8793 = vpack.c.bf16 %v8271, %v8267
        %v8794 = vpack.c.bf16 %v8281, %v8277
        %v8795 = vpack.c.bf16 %v8291, %v8287
        %v8796 = vpack.c.bf16 %v8301, %v8297
        %v8797 = vpack.c.bf16 %v8311, %v8307
        %v8802 = vunpack.c.l.b16 %v8786
        %v8803 = vunpack.c.l.b16 %v8787
        %v8804 = vunpack.c.l.b16 %v8788
        %v8805 = vunpack.c.l.b16 %v8789
        %v8806 = vpack.c.b16 %v8803, %v8802
        %v8807 = vpack.c.b16 %v8805, %v8804
        %8810 = vmatprep.subr.bf16.mxu0 0
        %8811 = vmatpush1.bf16.msra.mxu0 %v8790
        %8812 = vmatprep.subr.bf16.mxu0 0
        %8813 = vmatpush1.bf16.msra.mxu0 %v8791
        %8814 = vmatprep.subr.bf16.mxu0 0
        %8815 = vmatpush1.bf16.msra.mxu0 %v8792
        %8816 = vmatprep.subr.bf16.mxu0 0
        %8817 = vmatpush1.bf16.msra.mxu0 %v8793
        %8818 = vmatprep.subr.bf16.mxu0 0
        %8819 = vmatpush1.bf16.msra.mxu0 %v8794
        %8820 = vmatprep.subr.bf16.mxu0 0
        %8821 = vmatpush1.bf16.msra.mxu0 %v8795
        %8822 = vmatprep.subr.bf16.mxu0 0
        %8823 = vmatpush1.bf16.msra.mxu0 %v8796
        %8824 = vmatprep.subr.bf16.mxu0 0
        %8825 = vmatpush1.bf16.msra.mxu0 %v8797
        %8826 = vmatprep.subr.bf16.mxu0 0
        %8827 = vmatpush1.bf16.msra.mxu0 0
        %8828 = vmatprep.subr.bf16.mxu0 0
        %8829 = vmatpush1.bf16.msra.mxu0 0
        %8830 = vmatprep.subr.bf16.mxu0 0
        %8831 = vmatpush1.bf16.msra.mxu0 0
        %8832 = vmatprep.subr.bf16.mxu0 0
        %8833 = vmatpush1.bf16.msra.mxu0 0
        %8834 = vmatprep.subr.bf16.mxu0 0
        %8835 = vmatpush1.bf16.msra.mxu0 0
        %8836 = vmatprep.subr.bf16.mxu0 0
        %8837 = vmatpush1.bf16.msra.mxu0 0
        %8838 = vmatprep.subr.bf16.mxu0 0
        %8839 = vmatpush1.bf16.msra.mxu0 0
        %8840 = vmatprep.subr.bf16.mxu0 0
        %8841 = vmatpush1.bf16.msra.mxu0 0
        %8842 = vmatprep.mubr.bf16.mxu0 0
        %8843 = vmatmul.mubr.bf16.gmra.mrb[0].mxu0 %v8806
        %v8844 = vpop.f32.mrb[0].mxu0
        %v8845 = vadd.f32 0.0, %v8844
        %v8846 = vpop.f32.mrb[0].mxu0
        %v8847 = vpop.f32.mrb[0].mxu0
        %v8848 = vadd.f32 0.0, %v8847
        %v8849 = vpop.f32.mrb[0].mxu0
        %8850 = vmatprep.mubr.bf16.mxu0 0
        %8851 = vmatmul.mubr.bf16.gmra.mrb[0].mxu0 %v8807
        %v8852 = vpop.f32.mrb[0].mxu0
        %v8853 = vadd.f32 0.0, %v8852
        %v8854 = vpop.f32.mrb[0].mxu0
        %v8855 = vpop.f32.mrb[0].mxu0
        %v8856 = vadd.f32 0.0, %v8855
        %v8857 = vpop.f32.mrb[0].mxu0
        %8858 = vdwg.mxu0
        %v8859 = vadd.f32 %v8771, %v8845
        %v8860 = vadd.f32 %v8774, %v8848
        %v8861 = vadd.f32 %v8779, %v8853
        %v8862 = vadd.f32 %v8782, %v8856
        %s8863 = scalar_lea.vmem %s6, 48
        %v8864 = vld [vmem:[%s8863] sm:$0xf]
        %v8865 = vld [vmem:[%s8863 + $0x4] sm:$0xf]
        %v8866 = vld [vmem:[%s8863 + $0x8] sm:$0xf]
        %v8867 = vld [vmem:[%s8863 + $0xc] sm:$0xf]
        %v8868 = vpack.c.bf16 %v8243, %v8239
        %v8869 = vpack.c.bf16 %v8253, %v8249
        %v8870 = vpack.c.bf16 %v8263, %v8259
        %v8871 = vpack.c.bf16 %v8273, %v8269
        %v8872 = vpack.c.bf16 %v8283, %v8279
        %v8873 = vpack.c.bf16 %v8293, %v8289
        %v8874 = vpack.c.bf16 %v8303, %v8299
        %v8875 = vpack.c.bf16 %v8313, %v8309
        %v8880 = vunpack.c.l.b16 %v8864
        %v8881 = vunpack.c.l.b16 %v8865
        %v8882 = vunpack.c.l.b16 %v8866
        %v8883 = vunpack.c.l.b16 %v8867
        %v8884 = vpack.c.b16 %v8881, %v8880
        %v8885 = vpack.c.b16 %v8883, %v8882
        %8888 = vmatprep.subr.bf16.mxu0 0
        %8889 = vmatpush1.bf16.msra.mxu0 %v8868
        %8890 = vmatprep.subr.bf16.mxu0 0
        %8891 = vmatpush1.bf16.msra.mxu0 %v8869
        %8892 = vmatprep.subr.bf16.mxu0 0
        %8893 = vmatpush1.bf16.msra.mxu0 %v8870
        %8894 = vmatprep.subr.bf16.mxu0 0
        %8895 = vmatpush1.bf16.msra.mxu0 %v8871
        %8896 = vmatprep.subr.bf16.mxu0 0
        %8897 = vmatpush1.bf16.msra.mxu0 %v8872
        %8898 = vmatprep.subr.bf16.mxu0 0
        %8899 = vmatpush1.bf16.msra.mxu0 %v8873
        %8900 = vmatprep.subr.bf16.mxu0 0
        %8901 = vmatpush1.bf16.msra.mxu0 %v8874
        %8902 = vmatprep.subr.bf16.mxu0 0
        %8903 = vmatpush1.bf16.msra.mxu0 %v8875
        %8904 = vmatprep.subr.bf16.mxu0 0
        %8905 = vmatpush1.bf16.msra.mxu0 0
        %8906 = vmatprep.subr.bf16.mxu0 0
        %8907 = vmatpush1.bf16.msra.mxu0 0
        %8908 = vmatprep.subr.bf16.mxu0 0
        %8909 = vmatpush1.bf16.msra.mxu0 0
        %8910 = vmatprep.subr.bf16.mxu0 0
        %8911 = vmatpush1.bf16.msra.mxu0 0
        %8912 = vmatprep.subr.bf16.mxu0 0
        %8913 = vmatpush1.bf16.msra.mxu0 0
        %8914 = vmatprep.subr.bf16.mxu0 0
        %8915 = vmatpush1.bf16.msra.mxu0 0
        %8916 = vmatprep.subr.bf16.mxu0 0
        %8917 = vmatpush1.bf16.msra.mxu0 0
        %8918 = vmatprep.subr.bf16.mxu0 0
        %8919 = vmatpush1.bf16.msra.mxu0 0
        %8920 = vmatprep.mubr.bf16.mxu0 0
        %8921 = vmatmul.mubr.bf16.gmra.mrb[0].mxu0 %v8884
        %v8922 = vpop.f32.mrb[0].mxu0
        %v8923 = vadd.f32 0.0, %v8922
        %v8924 = vpop.f32.mrb[0].mxu0
        %v8925 = vpop.f32.mrb[0].mxu0
        %v8926 = vadd.f32 0.0, %v8925
        %v8927 = vpop.f32.mrb[0].mxu0
        %8928 = vmatprep.mubr.bf16.mxu0 0
        %8929 = vmatmul.mubr.bf16.gmra.mrb[0].mxu0 %v8885
        %v8930 = vpop.f32.mrb[0].mxu0
        %v8931 = vadd.f32 0.0, %v8930
        %v8932 = vpop.f32.mrb[0].mxu0
        %v8933 = vpop.f32.mrb[0].mxu0
        %v8934 = vadd.f32 0.0, %v8933
        %v8935 = vpop.f32.mrb[0].mxu0
        %8936 = vdwg.mxu0
        %v8937 = vadd.f32 %v8859, %v8923
        %v8938 = vadd.f32 %v8860, %v8926
        %v8939 = vadd.f32 %v8861, %v8931
        %v8940 = vadd.f32 %v8862, %v8934
        %s8941 = scalar_lea.vmem %s6, 64
        %v8942 = vld [vmem:[%s8941] sm:$0xf]
        %v8943 = vld [vmem:[%s8941 + $0x4] sm:$0xf]
        %v8944 = vld [vmem:[%s8941 + $0x8] sm:$0xf]
        %v8945 = vld [vmem:[%s8941 + $0xc] sm:$0xf]
        %v8946 = vpack.c.bf16 %v8354, %v8350
        %v8947 = vpack.c.bf16 %v8364, %v8360
        %v8948 = vpack.c.bf16 %v8374, %v8370
        %v8949 = vpack.c.bf16 %v8384, %v8380
        %v8950 = vpack.c.bf16 %v8394, %v8390
        %v8951 = vpack.c.bf16 %v8404, %v8400
        %v8952 = vpack.c.bf16 %v8414, %v8410
        %v8953 = vpack.c.bf16 %v8424, %v8420
        %v8958 = vunpack.c.l.b16 %v8942
        %v8959 = vunpack.c.l.b16 %v8943
        %v8960 = vunpack.c.l.b16 %v8944
        %v8961 = vunpack.c.l.b16 %v8945
        %v8962 = vpack.c.b16 %v8959, %v8958
        %v8963 = vpack.c.b16 %v8961, %v8960
        %8966 = vmatprep.subr.bf16.mxu0 0
        %8967 = vmatpush1.bf16.msra.mxu0 %v8946
        %8968 = vmatprep.subr.bf16.mxu0 0
        %8969 = vmatpush1.bf16.msra.mxu0 %v8947
        %8970 = vmatprep.subr.bf16.mxu0 0
        %8971 = vmatpush1.bf16.msra.mxu0 %v8948
        %8972 = vmatprep.subr.bf16.mxu0 0
        %8973 = vmatpush1.bf16.msra.mxu0 %v8949
        %8974 = vmatprep.subr.bf16.mxu0 0
        %8975 = vmatpush1.bf16.msra.mxu0 %v8950
        %8976 = vmatprep.subr.bf16.mxu0 0
        %8977 = vmatpush1.bf16.msra.mxu0 %v8951
        %8978 = vmatprep.subr.bf16.mxu0 0
        %8979 = vmatpush1.bf16.msra.mxu0 %v8952
        %8980 = vmatprep.subr.bf16.mxu0 0
        %8981 = vmatpush1.bf16.msra.mxu0 %v8953
        %8982 = vmatprep.subr.bf16.mxu0 0
        %8983 = vmatpush1.bf16.msra.mxu0 0
        %8984 = vmatprep.subr.bf16.mxu0 0
        %8985 = vmatpush1.bf16.msra.mxu0 0
        %8986 = vmatprep.subr.bf16.mxu0 0
        %8987 = vmatpush1.bf16.msra.mxu0 0
        %8988 = vmatprep.subr.bf16.mxu0 0
        %8989 = vmatpush1.bf16.msra.mxu0 0
        %8990 = vmatprep.subr.bf16.mxu0 0
        %8991 = vmatpush1.bf16.msra.mxu0 0
        %8992 = vmatprep.subr.bf16.mxu0 0
        %8993 = vmatpush1.bf16.msra.mxu0 0
        %8994 = vmatprep.subr.bf16.mxu0 0
        %8995 = vmatpush1.bf16.msra.mxu0 0
        %8996 = vmatprep.subr.bf16.mxu0 0
        %8997 = vmatpush1.bf16.msra.mxu0 0
        %8998 = vmatprep.mubr.bf16.mxu0 0
        %8999 = vmatmul.mubr.bf16.gmra.mrb[0].mxu0 %v8962
        %v9000 = vpop.f32.mrb[0].mxu0
        %v9001 = vadd.f32 0.0, %v9000
        %v9002 = vpop.f32.mrb[0].mxu0
        %v9003 = vpop.f32.mrb[0].mxu0
        %v9004 = vadd.f32 0.0, %v9003
        %v9005 = vpop.f32.mrb[0].mxu0
        %9006 = vmatprep.mubr.bf16.mxu0 0
        %9007 = vmatmul.mubr.bf16.gmra.mrb[0].mxu0 %v8963
        %v9008 = vpop.f32.mrb[0].mxu0
        %v9009 = vadd.f32 0.0, %v9008
        %v9010 = vpop.f32.mrb[0].mxu0
        %v9011 = vpop.f32.mrb[0].mxu0
        %v9012 = vadd.f32 0.0, %v9011
        %v9013 = vpop.f32.mrb[0].mxu0
        %9014 = vdwg.mxu0
        %v9015 = vadd.f32 %v8937, %v9001
        %v9016 = vadd.f32 %v8938, %v9004
        %v9017 = vadd.f32 %v8939, %v9009
        %v9018 = vadd.f32 %v8940, %v9012
        %s9019 = scalar_lea.vmem %s6, 80
        %v9020 = vld [vmem:[%s9019] sm:$0xf]
        %v9021 = vld [vmem:[%s9019 + $0x4] sm:$0xf]
        %v9022 = vld [vmem:[%s9019 + $0x8] sm:$0xf]
        %v9023 = vld [vmem:[%s9019 + $0xc] sm:$0xf]
        %v9024 = vpack.c.bf16 %v8356, %v8352
        %v9025 = vpack.c.bf16 %v8366, %v8362
        %v9026 = vpack.c.bf16 %v8376, %v8372
        %v9027 = vpack.c.bf16 %v8386, %v8382
        %v9028 = vpack.c.bf16 %v8396, %v8392
        %v9029 = vpack.c.bf16 %v8406, %v8402
        %v9030 = vpack.c.bf16 %v8416, %v8412
        %v9031 = vpack.c.bf16 %v8426, %v8422
        %v9036 = vunpack.c.l.b16 %v9020
        %v9037 = vunpack.c.l.b16 %v9021
        %v9038 = vunpack.c.l.b16 %v9022
        %v9039 = vunpack.c.l.b16 %v9023
        %v9040 = vpack.c.b16 %v9037, %v9036
        %v9041 = vpack.c.b16 %v9039, %v9038
        %9044 = vmatprep.subr.bf16.mxu0 0
        %9045 = vmatpush1.bf16.msra.mxu0 %v9024
        %9046 = vmatprep.subr.bf16.mxu0 0
        %9047 = vmatpush1.bf16.msra.mxu0 %v9025
        %9048 = vmatprep.subr.bf16.mxu0 0
        %9049 = vmatpush1.bf16.msra.mxu0 %v9026
        %9050 = vmatprep.subr.bf16.mxu0 0
        %9051 = vmatpush1.bf16.msra.mxu0 %v9027
        %9052 = vmatprep.subr.bf16.mxu0 0
        %9053 = vmatpush1.bf16.msra.mxu0 %v9028
        %9054 = vmatprep.subr.bf16.mxu0 0
        %9055 = vmatpush1.bf16.msra.mxu0 %v9029
        %9056 = vmatprep.subr.bf16.mxu0 0
        %9057 = vmatpush1.bf16.msra.mxu0 %v9030
        %9058 = vmatprep.subr.bf16.mxu0 0
        %9059 = vmatpush1.bf16.msra.mxu0 %v9031
        %9060 = vmatprep.subr.bf16.mxu0 0
        %9061 = vmatpush1.bf16.msra.mxu0 0
        %9062 = vmatprep.subr.bf16.mxu0 0
        %9063 = vmatpush1.bf16.msra.mxu0 0
        %9064 = vmatprep.subr.bf16.mxu0 0
        %9065 = vmatpush1.bf16.msra.mxu0 0
        %9066 = vmatprep.subr.bf16.mxu0 0
        %9067 = vmatpush1.bf16.msra.mxu0 0
        %9068 = vmatprep.subr.bf16.mxu0 0
        %9069 = vmatpush1.bf16.msra.mxu0 0
        %9070 = vmatprep.subr.bf16.mxu0 0
        %9071 = vmatpush1.bf16.msra.mxu0 0
        %9072 = vmatprep.subr.bf16.mxu0 0
        %9073 = vmatpush1.bf16.msra.mxu0 0
        %9074 = vmatprep.subr.bf16.mxu0 0
        %9075 = vmatpush1.bf16.msra.mxu0 0
        %9076 = vmatprep.mubr.bf16.mxu0 0
        %9077 = vmatmul.mubr.bf16.gmra.mrb[0].mxu0 %v9040
        %v9078 = vpop.f32.mrb[0].mxu0
        %v9079 = vadd.f32 0.0, %v9078
        %v9080 = vpop.f32.mrb[0].mxu0
        %v9081 = vpop.f32.mrb[0].mxu0
        %v9082 = vadd.f32 0.0, %v9081
        %v9083 = vpop.f32.mrb[0].mxu0
        %9084 = vmatprep.mubr.bf16.mxu0 0
        %9085 = vmatmul.mubr.bf16.gmra.mrb[0].mxu0 %v9041
        %v9086 = vpop.f32.mrb[0].mxu0
        %v9087 = vadd.f32 0.0, %v9086
        %v9088 = vpop.f32.mrb[0].mxu0
        %v9089 = vpop.f32.mrb[0].mxu0
        %v9090 = vadd.f32 0.0, %v9089
        %v9091 = vpop.f32.mrb[0].mxu0
        %9092 = vdwg.mxu0
        %v9093 = vadd.f32 %v9015, %v9079
        %v9094 = vadd.f32 %v9016, %v9082
        %v9095 = vadd.f32 %v9017, %v9087
        %v9096 = vadd.f32 %v9018, %v9090
        %s9097 = scalar_lea.vmem %s6, 96
        %v9098 = vld [vmem:[%s9097] sm:$0xf]
        %v9099 = vld [vmem:[%s9097 + $0x4] sm:$0xf]
        %v9100 = vld [vmem:[%s9097 + $0x8] sm:$0xf]
        %v9101 = vld [vmem:[%s9097 + $0xc] sm:$0xf]
        %v9102 = vpack.c.bf16 %v8467, %v8463
        %v9103 = vpack.c.bf16 %v8477, %v8473
        %v9104 = vpack.c.bf16 %v8487, %v8483
        %v9105 = vpack.c.bf16 %v8497, %v8493
        %v9106 = vpack.c.bf16 %v8507, %v8503
        %v9107 = vpack.c.bf16 %v8517, %v8513
        %v9108 = vpack.c.bf16 %v8527, %v8523
        %v9109 = vpack.c.bf16 %v8537, %v8533
        %v9114 = vunpack.c.l.b16 %v9098
        %v9115 = vunpack.c.l.b16 %v9099
        %v9116 = vunpack.c.l.b16 %v9100
        %v9117 = vunpack.c.l.b16 %v9101
        %v9118 = vpack.c.b16 %v9115, %v9114
        %v9119 = vpack.c.b16 %v9117, %v9116
        %9122 = vmatprep.subr.bf16.mxu0 0
        %9123 = vmatpush1.bf16.msra.mxu0 %v9102
        %9124 = vmatprep.subr.bf16.mxu0 0
        %9125 = vmatpush1.bf16.msra.mxu0 %v9103
        %9126 = vmatprep.subr.bf16.mxu0 0
        %9127 = vmatpush1.bf16.msra.mxu0 %v9104
        %9128 = vmatprep.subr.bf16.mxu0 0
        %9129 = vmatpush1.bf16.msra.mxu0 %v9105
        %9130 = vmatprep.subr.bf16.mxu0 0
        %9131 = vmatpush1.bf16.msra.mxu0 %v9106
        %9132 = vmatprep.subr.bf16.mxu0 0
        %9133 = vmatpush1.bf16.msra.mxu0 %v9107
        %9134 = vmatprep.subr.bf16.mxu0 0
        %9135 = vmatpush1.bf16.msra.mxu0 %v9108
        %9136 = vmatprep.subr.bf16.mxu0 0
        %9137 = vmatpush1.bf16.msra.mxu0 %v9109
        %9138 = vmatprep.subr.bf16.mxu0 0
        %9139 = vmatpush1.bf16.msra.mxu0 0
        %9140 = vmatprep.subr.bf16.mxu0 0
        %9141 = vmatpush1.bf16.msra.mxu0 0
        %9142 = vmatprep.subr.bf16.mxu0 0
        %9143 = vmatpush1.bf16.msra.mxu0 0
        %9144 = vmatprep.subr.bf16.mxu0 0
        %9145 = vmatpush1.bf16.msra.mxu0 0
        %9146 = vmatprep.subr.bf16.mxu0 0
        %9147 = vmatpush1.bf16.msra.mxu0 0
        %9148 = vmatprep.subr.bf16.mxu0 0
        %9149 = vmatpush1.bf16.msra.mxu0 0
        %9150 = vmatprep.subr.bf16.mxu0 0
        %9151 = vmatpush1.bf16.msra.mxu0 0
        %9152 = vmatprep.subr.bf16.mxu0 0
        %9153 = vmatpush1.bf16.msra.mxu0 0
        %9154 = vmatprep.mubr.bf16.mxu0 0
        %9155 = vmatmul.mubr.bf16.gmra.mrb[0].mxu0 %v9118
        %v9156 = vpop.f32.mrb[0].mxu0
        %v9157 = vadd.f32 0.0, %v9156
        %v9158 = vpop.f32.mrb[0].mxu0
        %v9159 = vpop.f32.mrb[0].mxu0
        %v9160 = vadd.f32 0.0, %v9159
        %v9161 = vpop.f32.mrb[0].mxu0
        %9162 = vmatprep.mubr.bf16.mxu0 0
        %9163 = vmatmul.mubr.bf16.gmra.mrb[0].mxu0 %v9119
        %v9164 = vpop.f32.mrb[0].mxu0
        %v9165 = vadd.f32 0.0, %v9164
        %v9166 = vpop.f32.mrb[0].mxu0
        %v9167 = vpop.f32.mrb[0].mxu0
        %v9168 = vadd.f32 0.0, %v9167
        %v9169 = vpop.f32.mrb[0].mxu0
        %9170 = vdwg.mxu0
        %v9171 = vadd.f32 %v9093, %v9157
        %v9172 = vadd.f32 %v9094, %v9160
        %v9173 = vadd.f32 %v9095, %v9165
        %v9174 = vadd.f32 %v9096, %v9168
        %s9175 = scalar_lea.vmem %s6, 112
        %v9176 = vld [vmem:[%s9175] sm:$0xf]
        %v9177 = vld [vmem:[%s9175 + $0x4] sm:$0xf]
        %v9178 = vld [vmem:[%s9175 + $0x8] sm:$0xf]
        %v9179 = vld [vmem:[%s9175 + $0xc] sm:$0xf]
        %v9180 = vpack.c.bf16 %v8469, %v8465
        %v9181 = vpack.c.bf16 %v8479, %v8475
        %v9182 = vpack.c.bf16 %v8489, %v8485
        %v9183 = vpack.c.bf16 %v8499, %v8495
        %v9184 = vpack.c.bf16 %v8509, %v8505
        %v9185 = vpack.c.bf16 %v8519, %v8515
        %v9186 = vpack.c.bf16 %v8529, %v8525
        %v9187 = vpack.c.bf16 %v8539, %v8535
        %v9192 = vunpack.c.l.b16 %v9176
        %v9193 = vunpack.c.l.b16 %v9177
        %v9194 = vunpack.c.l.b16 %v9178
        %v9195 = vunpack.c.l.b16 %v9179
        %v9196 = vpack.c.b16 %v9193, %v9192
        %v9197 = vpack.c.b16 %v9195, %v9194
        %9200 = vmatprep.subr.bf16.mxu0 0
        %9201 = vmatpush1.bf16.msra.mxu0 %v9180
        %9202 = vmatprep.subr.bf16.mxu0 0
        %9203 = vmatpush1.bf16.msra.mxu0 %v9181
        %9204 = vmatprep.subr.bf16.mxu0 0
        %9205 = vmatpush1.bf16.msra.mxu0 %v9182
        %9206 = vmatprep.subr.bf16.mxu0 0
        %9207 = vmatpush1.bf16.msra.mxu0 %v9183
        %9208 = vmatprep.subr.bf16.mxu0 0
        %9209 = vmatpush1.bf16.msra.mxu0 %v9184
        %9210 = vmatprep.subr.bf16.mxu0 0
        %9211 = vmatpush1.bf16.msra.mxu0 %v9185
        %9212 = vmatprep.subr.bf16.mxu0 0
        %9213 = vmatpush1.bf16.msra.mxu0 %v9186
        %9214 = vmatprep.subr.bf16.mxu0 0
        %9215 = vmatpush1.bf16.msra.mxu0 %v9187
        %9216 = vmatprep.subr.bf16.mxu0 0
        %9217 = vmatpush1.bf16.msra.mxu0 0
        %9218 = vmatprep.subr.bf16.mxu0 0
        %9219 = vmatpush1.bf16.msra.mxu0 0
        %9220 = vmatprep.subr.bf16.mxu0 0
        %9221 = vmatpush1.bf16.msra.mxu0 0
        %9222 = vmatprep.subr.bf16.mxu0 0
        %9223 = vmatpush1.bf16.msra.mxu0 0
        %9224 = vmatprep.subr.bf16.mxu0 0
        %9225 = vmatpush1.bf16.msra.mxu0 0
        %9226 = vmatprep.subr.bf16.mxu0 0
        %9227 = vmatpush1.bf16.msra.mxu0 0
        %9228 = vmatprep.subr.bf16.mxu0 0
        %9229 = vmatpush1.bf16.msra.mxu0 0
        %9230 = vmatprep.subr.bf16.mxu0 0
        %9231 = vmatpush1.bf16.msra.mxu0 0
        %9232 = vmatprep.mubr.bf16.mxu0 0
        %9233 = vmatmul.mubr.bf16.gmra.mrb[0].mxu0 %v9196
        %v9234 = vpop.f32.mrb[0].mxu0
        %v9235 = vadd.f32 0.0, %v9234
        %v9236 = vpop.f32.mrb[0].mxu0
        %v9237 = vpop.f32.mrb[0].mxu0
        %v9238 = vadd.f32 0.0, %v9237
        %v9239 = vpop.f32.mrb[0].mxu0
        %9240 = vmatprep.mubr.bf16.mxu0 0
        %9241 = vmatmul.mubr.bf16.gmra.mrb[0].mxu0 %v9197
        %v9242 = vpop.f32.mrb[0].mxu0
        %v9243 = vadd.f32 0.0, %v9242
        %v9244 = vpop.f32.mrb[0].mxu0
        %v9245 = vpop.f32.mrb[0].mxu0
        %v9246 = vadd.f32 0.0, %v9245
        %v9247 = vpop.f32.mrb[0].mxu0
        %9248 = vdwg.mxu0
        %v9249 = vadd.f32 %v9171, %v9235
        %v9250 = vadd.f32 %v9172, %v9238
        %v9251 = vadd.f32 %v9173, %v9243
        %v9252 = vadd.f32 %v9174, %v9246
        %s9253 = scalar_lea.vmem %s6, 128
        %v9254 = vld [vmem:[%s9253] sm:$0xf]
        %v9255 = vld [vmem:[%s9253 + $0x4] sm:$0xf]
        %v9256 = vld [vmem:[%s9253 + $0x8] sm:$0xf]
        %v9257 = vld [vmem:[%s9253 + $0xc] sm:$0xf]
        %v9258 = vpack.c.bf16 %v8579, %v8576
        %v9259 = vpack.c.bf16 %v8587, %v8584
        %v9260 = vpack.c.bf16 %v8595, %v8592
        %v9261 = vpack.c.bf16 %v8603, %v8600
        %v9262 = vpack.c.bf16 %v8611, %v8608
        %v9263 = vpack.c.bf16 %v8619, %v8616
        %v9264 = vpack.c.bf16 %v8627, %v8624
        %v9265 = vpack.c.bf16 %v8635, %v8632
        %v9270 = vunpack.c.l.b16 %v9254
        %v9271 = vunpack.c.l.b16 %v9255
        %v9272 = vunpack.c.l.b16 %v9256
        %v9273 = vunpack.c.l.b16 %v9257
        %v9274 = vpack.c.b16 %v9271, %v9270
        %v9275 = vpack.c.b16 %v9273, %v9272
        %9278 = vmatprep.subr.bf16.mxu0 0
        %9279 = vmatpush1.bf16.msra.mxu0 %v9258
        %9280 = vmatprep.subr.bf16.mxu0 0
        %9281 = vmatpush1.bf16.msra.mxu0 %v9259
        %9282 = vmatprep.subr.bf16.mxu0 0
        %9283 = vmatpush1.bf16.msra.mxu0 %v9260
        %9284 = vmatprep.subr.bf16.mxu0 0
        %9285 = vmatpush1.bf16.msra.mxu0 %v9261
        %9286 = vmatprep.subr.bf16.mxu0 0
        %9287 = vmatpush1.bf16.msra.mxu0 %v9262
        %9288 = vmatprep.subr.bf16.mxu0 0
        %9289 = vmatpush1.bf16.msra.mxu0 %v9263
        %9290 = vmatprep.subr.bf16.mxu0 0
        %9291 = vmatpush1.bf16.msra.mxu0 %v9264
        %9292 = vmatprep.subr.bf16.mxu0 0
        %9293 = vmatpush1.bf16.msra.mxu0 %v9265
        %9294 = vmatprep.subr.bf16.mxu0 0
        %9295 = vmatpush1.bf16.msra.mxu0 0
        %9296 = vmatprep.subr.bf16.mxu0 0
        %9297 = vmatpush1.bf16.msra.mxu0 0
        %9298 = vmatprep.subr.bf16.mxu0 0
        %9299 = vmatpush1.bf16.msra.mxu0 0
        %9300 = vmatprep.subr.bf16.mxu0 0
        %9301 = vmatpush1.bf16.msra.mxu0 0
        %9302 = vmatprep.subr.bf16.mxu0 0
        %9303 = vmatpush1.bf16.msra.mxu0 0
        %9304 = vmatprep.subr.bf16.mxu0 0
        %9305 = vmatpush1.bf16.msra.mxu0 0
        %9306 = vmatprep.subr.bf16.mxu0 0
        %9307 = vmatpush1.bf16.msra.mxu0 0
        %9308 = vmatprep.subr.bf16.mxu0 0
        %9309 = vmatpush1.bf16.msra.mxu0 0
        %9310 = vmatprep.mubr.bf16.mxu0 0
        %9311 = vmatmul.mubr.bf16.gmra.mrb[0].mxu0 %v9274
        %v9312 = vpop.f32.mrb[0].mxu0
        %v9313 = vadd.f32 0.0, %v9312
        %v9314 = vpop.f32.mrb[0].mxu0
        %v9315 = vpop.f32.mrb[0].mxu0
        %v9316 = vadd.f32 0.0, %v9315
        %v9317 = vpop.f32.mrb[0].mxu0
        %9318 = vmatprep.mubr.bf16.mxu0 0
        %9319 = vmatmul.mubr.bf16.gmra.mrb[0].mxu0 %v9275
        %v9320 = vpop.f32.mrb[0].mxu0
        %v9321 = vadd.f32 0.0, %v9320
        %v9322 = vpop.f32.mrb[0].mxu0
        %v9323 = vpop.f32.mrb[0].mxu0
        %v9324 = vadd.f32 0.0, %v9323
        %v9325 = vpop.f32.mrb[0].mxu0
        %9326 = vdwg.mxu0
        %v9327 = vadd.f32 %v9249, %v9313
        %v9328 = vadd.f32 %v9250, %v9316
        %v9329 = vadd.f32 %v9251, %v9321
        %v9330 = vadd.f32 %v9252, %v9324
        %v9331 = vld [vmem:[%s8] sm:$0x1]
        %v9333 = vlaneseq
        %v9334 = vshrl.u32 %v9333, 7
        %v9335 = vsub.s32 0, %v9334
        %v9336 = vrot.slane %v9331, %v9335
        %v9338 = vadd.f32 %v9327, %v9336
        %v9339 = vadd.f32 %v9328, %v9336
        %v9340 = vadd.f32 %v9329, %v9336
        %v9341 = vadd.f32 %v9330, %v9336
        %v9342 = vmax.f32 %v9338, 0.0
        %v9343 = vmax.f32 %v9339, 0.0
        %v9344 = vmax.f32 %v9340, 0.0
        %v9345 = vmax.f32 %v9341, 0.0
        %v9346 = vld [vmem:[%s9] sm:$0xff]
        %v9347 = vld [vmem:[%s9 + $0x8] sm:$0xff]
        %v9348 = vld [vmem:[%s9 + $0x10] sm:$0xff]
        %v9349 = vld [vmem:[%s9 + $0x18] sm:$0xff]
        %v9350 = vld [vmem:[%s9 + $0x20] sm:$0xff]
        %v9351 = vld [vmem:[%s9 + $0x28] sm:$0xff]
        %v9352 = vld [vmem:[%s9 + $0x30] sm:$0xff]
        %v9353 = vld [vmem:[%s9 + $0x38] sm:$0xff]
        %v9354 = vld [vmem:[%s9 + $0x40] sm:$0xff]
        %v9355 = vld [vmem:[%s9 + $0x48] sm:$0xff]
        %v9356 = vld [vmem:[%s9 + $0x50] sm:$0xff]
        %v9357 = vld [vmem:[%s9 + $0x58] sm:$0xff]
        %v9358 = vld [vmem:[%s9 + $0x60] sm:$0xff]
        %v9359 = vld [vmem:[%s9 + $0x68] sm:$0xff]
        %v9360 = vld [vmem:[%s9 + $0x70] sm:$0xff]
        %v9361 = vld [vmem:[%s9 + $0x78] sm:$0xff]
        %v9362 = vld [vmem:[%s10] sm:$0x1]
        %v9364 = vlaneseq
        %v9365 = vshrl.u32 %v9364, 7
        %v9366 = vsub.s32 0, %v9365
        %v9367 = vrot.slane %v9362, %v9366
        %9369 = vmatprep.subr.mxu0 0.0
        %9370 = vmatpush1.msra.mxu0 %v9346
        %9371 = vmatprep.subr.mxu0 0.0
        %9372 = vmatpush1.msra.mxu0 %v9347
        %9373 = vmatprep.subr.mxu0 0.0
        %9374 = vmatpush1.msra.mxu0 %v9348
        %9375 = vmatprep.subr.mxu0 0.0
        %9376 = vmatpush1.msra.mxu0 %v9349
        %9377 = vmatprep.subr.mxu0 0.0
        %9378 = vmatpush1.msra.mxu0 %v9350
        %9379 = vmatprep.subr.mxu0 0.0
        %9380 = vmatpush1.msra.mxu0 %v9351
        %9381 = vmatprep.subr.mxu0 0.0
        %9382 = vmatpush1.msra.mxu0 %v9352
        %9383 = vmatprep.subr.mxu0 0.0
        %9384 = vmatpush1.msra.mxu0 %v9353
        %9385 = vmatprep.subr.mxu0 0.0
        %9386 = vmatpush1.msra.mxu0 %v9354
        %9387 = vmatprep.subr.mxu0 0.0
        %9388 = vmatpush1.msra.mxu0 %v9355
        %9389 = vmatprep.subr.mxu0 0.0
        %9390 = vmatpush1.msra.mxu0 %v9356
        %9391 = vmatprep.subr.mxu0 0.0
        %9392 = vmatpush1.msra.mxu0 %v9357
        %9393 = vmatprep.subr.mxu0 0.0
        %9394 = vmatpush1.msra.mxu0 %v9358
        %9395 = vmatprep.subr.mxu0 0.0
        %9396 = vmatpush1.msra.mxu0 %v9359
        %9397 = vmatprep.subr.mxu0 0.0
        %9398 = vmatpush1.msra.mxu0 %v9360
        %9399 = vmatprep.subr.mxu0 0.0
        %9400 = vmatpush1.msra.mxu0 %v9361
        %9401 = vmatprep.subr.mxu0 0.0
        %9402 = vmatpush1.msra.mxu0 0.0
        %9403 = vmatprep.subr.mxu0 0.0
        %9404 = vmatpush1.msra.mxu0 0.0
        %9405 = vmatprep.subr.mxu0 0.0
        %9406 = vmatpush1.msra.mxu0 0.0
        %9407 = vmatprep.subr.mxu0 0.0
        %9408 = vmatpush1.msra.mxu0 0.0
        %9409 = vmatprep.subr.mxu0 0.0
        %9410 = vmatpush1.msra.mxu0 0.0
        %9411 = vmatprep.subr.mxu0 0.0
        %9412 = vmatpush1.msra.mxu0 0.0
        %9413 = vmatprep.subr.mxu0 0.0
        %9414 = vmatpush1.msra.mxu0 0.0
        %9415 = vmatprep.subr.mxu0 0.0
        %9416 = vmatpush1.msra.mxu0 0.0
        %9417 = vmatprep.subr.mxu0 0.0
        %9418 = vmatpush1.msra.mxu0 0.0
        %9419 = vmatprep.subr.mxu0 0.0
        %9420 = vmatpush1.msra.mxu0 0.0
        %9421 = vmatprep.subr.mxu0 0.0
        %9422 = vmatpush1.msra.mxu0 0.0
        %9423 = vmatprep.subr.mxu0 0.0
        %9424 = vmatpush1.msra.mxu0 0.0
        %9425 = vmatprep.subr.mxu0 0.0
        %9426 = vmatpush1.msra.mxu0 0.0
        %9427 = vmatprep.subr.mxu0 0.0
        %9428 = vmatpush1.msra.mxu0 0.0
        %9429 = vmatprep.subr.mxu0 0.0
        %9430 = vmatpush1.msra.mxu0 0.0
        %9431 = vmatprep.subr.mxu0 0.0
        %9432 = vmatpush1.msra.mxu0 0.0
        %9433 = vmatprep.mubr.f32.mxu0 0.0
        %9434 = vmatmul.mubr.f32.gmra.mrb[0].mxu0 %v9342
        %v9435 = vpop.f32.mrb[0].mxu0
        %v9436 = vadd.f32 %v9367, %v9435
        %v9437 = vpop.f32.mrb[0].mxu0
        %9438 = vmatprep.mubr.f32.mxu0 0.0
        %9439 = vmatmul.mubr.f32.gmra.mrb[0].mxu0 %v9343
        %v9440 = vpop.f32.mrb[0].mxu0
        %v9441 = vadd.f32 %v9367, %v9440
        %v9442 = vpop.f32.mrb[0].mxu0
        %9443 = vmatprep.mubr.f32.mxu0 0.0
        %9444 = vmatmul.mubr.f32.gmra.mrb[0].mxu0 %v9344
        %v9445 = vpop.f32.mrb[0].mxu0
        %v9446 = vadd.f32 %v9367, %v9445
        %v9447 = vpop.f32.mrb[0].mxu0
        %9448 = vmatprep.mubr.f32.mxu0 0.0
        %9449 = vmatmul.mubr.f32.gmra.mrb[0].mxu0 %v9345
        %v9450 = vpop.f32.mrb[0].mxu0
        %v9451 = vadd.f32 %v9367, %v9450
        %v9452 = vpop.f32.mrb[0].mxu0
        %9453 = vdwg.mxu0
        %9454 = vst [vmem:[%s17] sm:$0xff] %v9436
        %9455 = vst [vmem:[%s17 + $0x8] sm:$0xff] %v9441
        %9456 = vst [vmem:[%s17 + $0x10] sm:$0xff] %v9446
        %9457 = vst [vmem:[%s17 + $0x18] sm:$0xff] %v9451
        %v9458 = vpack.c.bf16 %v9343, %v9342
        %v9459 = vpack.c.bf16 %v9345, %v9344
        %v9460 = vld [vmem:[%s12] sm:$0xff]
        %v9461 = vld [vmem:[%s12 + $0x8] sm:$0xff]
        %v9462 = vld [vmem:[%s12 + $0x10] sm:$0xff]
        %v9463 = vld [vmem:[%s12 + $0x18] sm:$0xff]
        %v9464 = vld [vmem:[%s12 + $0x20] sm:$0xf]
        %v9465 = vld [vmem:[%s12 + $0x24] sm:$0xff]
        %v9466 = vld [vmem:[%s12 + $0x2c] sm:$0xff]
        %v9467 = vld [vmem:[%s12 + $0x34] sm:$0xff]
        %v9468 = vld [vmem:[%s12 + $0x3c] sm:$0xff]
        %v9469 = vld [vmem:[%s12 + $0x44] sm:$0xf]
        %v9470 = vld [vmem:[%s12 + $0x48] sm:$0xff]
        %v9471 = vld [vmem:[%s12 + $0x50] sm:$0xff]
        %v9472 = vld [vmem:[%s12 + $0x58] sm:$0xff]
        %v9473 = vld [vmem:[%s12 + $0x60] sm:$0xff]
        %v9474 = vld [vmem:[%s12 + $0x68] sm:$0xf]
        %v9475 = vld [vmem:[%s12 + $0x6c] sm:$0xff]
        %v9476 = vld [vmem:[%s12 + $0x74] sm:$0xff]
        %v9477 = vld [vmem:[%s12 + $0x7c] sm:$0xff]
        %v9478 = vld [vmem:[%s12 + $0x84] sm:$0xff]
        %v9479 = vld [vmem:[%s12 + $0x8c] sm:$0xf]
        %v9480 = vld [vmem:[%s12 + $0x90] sm:$0xff]
        %v9481 = vld [vmem:[%s12 + $0x98] sm:$0xff]
        %v9482 = vld [vmem:[%s12 + $0xa0] sm:$0xff]
        %v9483 = vld [vmem:[%s12 + $0xa8] sm:$0xff]
        %v9484 = vld [vmem:[%s12 + $0xb0] sm:$0xf]
        %v9485 = vld [vmem:[%s12 + $0xb4] sm:$0xff]
        %v9486 = vld [vmem:[%s12 + $0xbc] sm:$0xff]
        %v9487 = vld [vmem:[%s12 + $0xc4] sm:$0xff]
        %v9488 = vld [vmem:[%s12 + $0xcc] sm:$0xff]
        %v9489 = vld [vmem:[%s12 + $0xd4] sm:$0xf]
        %v9490 = vld [vmem:[%s12 + $0xd8] sm:$0xff]
        %v9491 = vld [vmem:[%s12 + $0xe0] sm:$0xff]
        %v9492 = vld [vmem:[%s12 + $0xe8] sm:$0xff]
        %v9493 = vld [vmem:[%s12 + $0xf0] sm:$0xff]
        %v9494 = vld [vmem:[%s12 + $0xf8] sm:$0xf]
        %v9495 = vld [vmem:[%s12 + $0xfc] sm:$0xff]
        %v9496 = vld [vmem:[%s12 + $0x104] sm:$0xff]
        %v9497 = vld [vmem:[%s12 + $0x10c] sm:$0xff]
        %v9498 = vld [vmem:[%s12 + $0x114] sm:$0xff]
        %v9499 = vld [vmem:[%s12 + $0x11c] sm:$0xf]
        %v9500 = vld [vmem:[%s12 + $0x120] sm:$0xff]
        %v9501 = vld [vmem:[%s12 + $0x128] sm:$0xff]
        %v9502 = vld [vmem:[%s12 + $0x130] sm:$0xff]
        %v9503 = vld [vmem:[%s12 + $0x138] sm:$0xff]
        %v9504 = vld [vmem:[%s12 + $0x140] sm:$0xf]
        %v9505 = vld [vmem:[%s12 + $0x144] sm:$0xff]
        %v9506 = vld [vmem:[%s12 + $0x14c] sm:$0xff]
        %v9507 = vld [vmem:[%s12 + $0x154] sm:$0xff]
        %v9508 = vld [vmem:[%s12 + $0x15c] sm:$0xff]
        %v9509 = vld [vmem:[%s12 + $0x164] sm:$0xf]
        %v9510 = vld [vmem:[%s12 + $0x168] sm:$0xff]
        %v9511 = vld [vmem:[%s12 + $0x170] sm:$0xff]
        %v9512 = vld [vmem:[%s12 + $0x178] sm:$0xff]
        %v9513 = vld [vmem:[%s12 + $0x180] sm:$0xff]
        %v9514 = vld [vmem:[%s12 + $0x188] sm:$0xf]
        %v9515 = vld [vmem:[%s12 + $0x18c] sm:$0xff]
        %v9516 = vld [vmem:[%s12 + $0x194] sm:$0xff]
        %v9517 = vld [vmem:[%s12 + $0x19c] sm:$0xff]
        %v9518 = vld [vmem:[%s12 + $0x1a4] sm:$0xff]
        %v9519 = vld [vmem:[%s12 + $0x1ac] sm:$0xf]
        %v9520 = vld [vmem:[%s12 + $0x1b0] sm:$0xff]
        %v9521 = vld [vmem:[%s12 + $0x1b8] sm:$0xff]
        %v9522 = vld [vmem:[%s12 + $0x1c0] sm:$0xff]
        %v9523 = vld [vmem:[%s12 + $0x1c8] sm:$0xff]
        %v9524 = vld [vmem:[%s12 + $0x1d0] sm:$0xf]
        %v9525 = vld [vmem:[%s12 + $0x1d4] sm:$0xff]
        %v9526 = vld [vmem:[%s12 + $0x1dc] sm:$0xff]
        %v9527 = vld [vmem:[%s12 + $0x1e4] sm:$0xff]
        %v9528 = vld [vmem:[%s12 + $0x1ec] sm:$0xff]
        %v9529 = vld [vmem:[%s12 + $0x1f4] sm:$0xf]
        %v9530 = vld [vmem:[%s12 + $0x1f8] sm:$0xff]
        %v9531 = vld [vmem:[%s12 + $0x200] sm:$0xff]
        %v9532 = vld [vmem:[%s12 + $0x208] sm:$0xff]
        %v9533 = vld [vmem:[%s12 + $0x210] sm:$0xff]
        %v9534 = vld [vmem:[%s12 + $0x218] sm:$0xf]
        %v9535 = vld [vmem:[%s12 + $0x21c] sm:$0xff]
        %v9536 = vld [vmem:[%s12 + $0x224] sm:$0xff]
        %v9537 = vld [vmem:[%s12 + $0x22c] sm:$0xff]
        %v9538 = vld [vmem:[%s12 + $0x234] sm:$0xff]
        %v9539 = vld [vmem:[%s12 + $0x23c] sm:$0xf]
        %v9620 = vunpack.c.l.b16 %v9460
        %v9621 = vunpack.c.h.b16 %v9460
        %v9622 = vunpack.c.l.b16 %v9461
        %v9623 = vunpack.c.h.b16 %v9461
        %v9624 = vunpack.c.l.b16 %v9462
        %v9625 = vunpack.c.h.b16 %v9462
        %v9626 = vunpack.c.l.b16 %v9463
        %v9627 = vunpack.c.h.b16 %v9463
        %v9628 = vunpack.c.l.b16 %v9464
        %v9629 = vunpack.c.l.b16 %v9465
        %v9630 = vunpack.c.h.b16 %v9465
        %v9631 = vunpack.c.l.b16 %v9466
        %v9632 = vunpack.c.h.b16 %v9466
        %v9633 = vunpack.c.l.b16 %v9467
        %v9634 = vunpack.c.h.b16 %v9467
        %v9635 = vunpack.c.l.b16 %v9468
        %v9636 = vunpack.c.h.b16 %v9468
        %v9637 = vunpack.c.l.b16 %v9469
        %v9638 = vunpack.c.l.b16 %v9470
        %v9639 = vunpack.c.h.b16 %v9470
        %v9640 = vunpack.c.l.b16 %v9471
        %v9641 = vunpack.c.h.b16 %v9471
        %v9642 = vunpack.c.l.b16 %v9472
        %v9643 = vunpack.c.h.b16 %v9472
        %v9644 = vunpack.c.l.b16 %v9473
        %v9645 = vunpack.c.h.b16 %v9473
        %v9646 = vunpack.c.l.b16 %v9474
        %v9647 = vunpack.c.l.b16 %v9475
        %v9648 = vunpack.c.h.b16 %v9475
        %v9649 = vunpack.c.l.b16 %v9476
        %v9650 = vunpack.c.h.b16 %v9476
        %v9651 = vunpack.c.l.b16 %v9477
        %v9652 = vunpack.c.h.b16 %v9477
        %v9653 = vunpack.c.l.b16 %v9478
        %v9654 = vunpack.c.h.b16 %v9478
        %v9655 = vunpack.c.l.b16 %v9479
        %v9656 = vunpack.c.l.b16 %v9480
        %v9657 = vunpack.c.h.b16 %v9480
        %v9658 = vunpack.c.l.b16 %v9481
        %v9659 = vunpack.c.h.b16 %v9481
        %v9660 = vunpack.c.l.b16 %v9482
        %v9661 = vunpack.c.h.b16 %v9482
        %v9662 = vunpack.c.l.b16 %v9483
        %v9663 = vunpack.c.h.b16 %v9483
        %v9664 = vunpack.c.l.b16 %v9484
        %v9665 = vunpack.c.l.b16 %v9485
        %v9666 = vunpack.c.h.b16 %v9485
        %v9667 = vunpack.c.l.b16 %v9486
        %v9668 = vunpack.c.h.b16 %v9486
        %v9669 = vunpack.c.l.b16 %v9487
        %v9670 = vunpack.c.h.b16 %v9487
        %v9671 = vunpack.c.l.b16 %v9488
        %v9672 = vunpack.c.h.b16 %v9488
        %v9673 = vunpack.c.l.b16 %v9489
        %v9674 = vunpack.c.l.b16 %v9490
        %v9675 = vunpack.c.h.b16 %v9490
        %v9676 = vunpack.c.l.b16 %v9491
        %v9677 = vunpack.c.h.b16 %v9491
        %v9678 = vunpack.c.l.b16 %v9492
        %v9679 = vunpack.c.h.b16 %v9492
        %v9680 = vunpack.c.l.b16 %v9493
        %v9681 = vunpack.c.h.b16 %v9493
        %v9682 = vunpack.c.l.b16 %v9494
        %v9683 = vunpack.c.l.b16 %v9495
        %v9684 = vunpack.c.h.b16 %v9495
        %v9685 = vunpack.c.l.b16 %v9496
        %v9686 = vunpack.c.h.b16 %v9496
        %v9687 = vunpack.c.l.b16 %v9497
        %v9688 = vunpack.c.h.b16 %v9497
        %v9689 = vunpack.c.l.b16 %v9498
        %v9690 = vunpack.c.h.b16 %v9498
        %v9691 = vunpack.c.l.b16 %v9499
        %v9692 = vunpack.c.l.b16 %v9500
        %v9693 = vunpack.c.h.b16 %v9500
        %v9694 = vunpack.c.l.b16 %v9501
        %v9695 = vunpack.c.h.b16 %v9501
        %v9696 = vunpack.c.l.b16 %v9502
        %v9697 = vunpack.c.h.b16 %v9502
        %v9698 = vunpack.c.l.b16 %v9503
        %v9699 = vunpack.c.h.b16 %v9503
        %v9700 = vunpack.c.l.b16 %v9504
        %v9701 = vunpack.c.l.b16 %v9505
        %v9702 = vunpack.c.h.b16 %v9505
        %v9703 = vunpack.c.l.b16 %v9506
        %v9704 = vunpack.c.h.b16 %v9506
        %v9705 = vunpack.c.l.b16 %v9507
        %v9706 = vunpack.c.h.b16 %v9507
        %v9707 = vunpack.c.l.b16 %v9508
        %v9708 = vunpack.c.h.b16 %v9508
        %v9709 = vunpack.c.l.b16 %v9509
        %v9710 = vunpack.c.l.b16 %v9510
        %v9711 = vunpack.c.h.b16 %v9510
        %v9712 = vunpack.c.l.b16 %v9511
        %v9713 = vunpack.c.h.b16 %v9511
        %v9714 = vunpack.c.l.b16 %v9512
        %v9715 = vunpack.c.h.b16 %v9512
        %v9716 = vunpack.c.l.b16 %v9513
        %v9717 = vunpack.c.h.b16 %v9513
        %v9718 = vunpack.c.l.b16 %v9514
        %v9719 = vunpack.c.l.b16 %v9515
        %v9720 = vunpack.c.h.b16 %v9515
        %v9721 = vunpack.c.l.b16 %v9516
        %v9722 = vunpack.c.h.b16 %v9516
        %v9723 = vunpack.c.l.b16 %v9517
        %v9724 = vunpack.c.h.b16 %v9517
        %v9725 = vunpack.c.l.b16 %v9518
        %v9726 = vunpack.c.h.b16 %v9518
        %v9727 = vunpack.c.l.b16 %v9519
        %v9728 = vunpack.c.l.b16 %v9520
        %v9729 = vunpack.c.h.b16 %v9520
        %v9730 = vunpack.c.l.b16 %v9521
        %v9731 = vunpack.c.h.b16 %v9521
        %v9732 = vunpack.c.l.b16 %v9522
        %v9733 = vunpack.c.h.b16 %v9522
        %v9734 = vunpack.c.l.b16 %v9523
        %v9735 = vunpack.c.h.b16 %v9523
        %v9736 = vunpack.c.l.b16 %v9524
        %v9737 = vunpack.c.l.b16 %v9525
        %v9738 = vunpack.c.h.b16 %v9525
        %v9739 = vunpack.c.l.b16 %v9526
        %v9740 = vunpack.c.h.b16 %v9526
        %v9741 = vunpack.c.l.b16 %v9527
        %v9742 = vunpack.c.h.b16 %v9527
        %v9743 = vunpack.c.l.b16 %v9528
        %v9744 = vunpack.c.h.b16 %v9528
        %v9745 = vunpack.c.l.b16 %v9529
        %v9746 = vunpack.c.l.b16 %v9530
        %v9747 = vunpack.c.h.b16 %v9530
        %v9748 = vunpack.c.l.b16 %v9531
        %v9749 = vunpack.c.h.b16 %v9531
        %v9750 = vunpack.c.l.b16 %v9532
        %v9751 = vunpack.c.h.b16 %v9532
        %v9752 = vunpack.c.l.b16 %v9533
        %v9753 = vunpack.c.h.b16 %v9533
        %v9754 = vunpack.c.l.b16 %v9534
        %v9755 = vunpack.c.l.b16 %v9535
        %v9756 = vunpack.c.h.b16 %v9535
        %v9757 = vunpack.c.l.b16 %v9536
        %v9758 = vunpack.c.h.b16 %v9536
        %v9759 = vunpack.c.l.b16 %v9537
        %v9760 = vunpack.c.h.b16 %v9537
        %v9761 = vunpack.c.l.b16 %v9538
        %v9762 = vunpack.c.h.b16 %v9538
        %v9763 = vunpack.c.l.b16 %v9539
        %v9764 = vpack.c.b16 %v9629, %v9620
        %v9765 = vpack.c.b16 %v9630, %v9621
        %v9766 = vpack.c.b16 %v9631, %v9622
        %v9767 = vpack.c.b16 %v9632, %v9623
        %v9768 = vpack.c.b16 %v9633, %v9624
        %v9769 = vpack.c.b16 %v9634, %v9625
        %v9770 = vpack.c.b16 %v9635, %v9626
        %v9771 = vpack.c.b16 %v9636, %v9627
        %v9772 = vpack.c.b16 %v9637, %v9628
        %v9773 = vpack.c.b16 %v9647, %v9638
        %v9774 = vpack.c.b16 %v9648, %v9639
        %v9775 = vpack.c.b16 %v9649, %v9640
        %v9776 = vpack.c.b16 %v9650, %v9641
        %v9777 = vpack.c.b16 %v9651, %v9642
        %v9778 = vpack.c.b16 %v9652, %v9643
        %v9779 = vpack.c.b16 %v9653, %v9644
        %v9780 = vpack.c.b16 %v9654, %v9645
        %v9781 = vpack.c.b16 %v9655, %v9646
        %v9782 = vpack.c.b16 %v9665, %v9656
        %v9783 = vpack.c.b16 %v9666, %v9657
        %v9784 = vpack.c.b16 %v9667, %v9658
        %v9785 = vpack.c.b16 %v9668, %v9659
        %v9786 = vpack.c.b16 %v9669, %v9660
        %v9787 = vpack.c.b16 %v9670, %v9661
        %v9788 = vpack.c.b16 %v9671, %v9662
        %v9789 = vpack.c.b16 %v9672, %v9663
        %v9790 = vpack.c.b16 %v9673, %v9664
        %v9791 = vpack.c.b16 %v9683, %v9674
        %v9792 = vpack.c.b16 %v9684, %v9675
        %v9793 = vpack.c.b16 %v9685, %v9676
        %v9794 = vpack.c.b16 %v9686, %v9677
        %v9795 = vpack.c.b16 %v9687, %v9678
        %v9796 = vpack.c.b16 %v9688, %v9679
        %v9797 = vpack.c.b16 %v9689, %v9680
        %v9798 = vpack.c.b16 %v9690, %v9681
        %v9799 = vpack.c.b16 %v9691, %v9682
        %v9800 = vpack.c.b16 %v9701, %v9692
        %v9801 = vpack.c.b16 %v9702, %v9693
        %v9802 = vpack.c.b16 %v9703, %v9694
        %v9803 = vpack.c.b16 %v9704, %v9695
        %v9804 = vpack.c.b16 %v9705, %v9696
        %v9805 = vpack.c.b16 %v9706, %v9697
        %v9806 = vpack.c.b16 %v9707, %v9698
        %v9807 = vpack.c.b16 %v9708, %v9699
        %v9808 = vpack.c.b16 %v9709, %v9700
        %v9809 = vpack.c.b16 %v9719, %v9710
        %v9810 = vpack.c.b16 %v9720, %v9711
        %v9811 = vpack.c.b16 %v9721, %v9712
        %v9812 = vpack.c.b16 %v9722, %v9713
        %v9813 = vpack.c.b16 %v9723, %v9714
        %v9814 = vpack.c.b16 %v9724, %v9715
        %v9815 = vpack.c.b16 %v9725, %v9716
        %v9816 = vpack.c.b16 %v9726, %v9717
        %v9817 = vpack.c.b16 %v9727, %v9718
        %v9818 = vpack.c.b16 %v9737, %v9728
        %v9819 = vpack.c.b16 %v9738, %v9729
        %v9820 = vpack.c.b16 %v9739, %v9730
        %v9821 = vpack.c.b16 %v9740, %v9731
        %v9822 = vpack.c.b16 %v9741, %v9732
        %v9823 = vpack.c.b16 %v9742, %v9733
        %v9824 = vpack.c.b16 %v9743, %v9734
        %v9825 = vpack.c.b16 %v9744, %v9735
        %v9826 = vpack.c.b16 %v9745, %v9736
        %v9827 = vpack.c.b16 %v9755, %v9746
        %v9828 = vpack.c.b16 %v9756, %v9747
        %v9829 = vpack.c.b16 %v9757, %v9748
        %v9830 = vpack.c.b16 %v9758, %v9749
        %v9831 = vpack.c.b16 %v9759, %v9750
        %v9832 = vpack.c.b16 %v9760, %v9751
        %v9833 = vpack.c.b16 %v9761, %v9752
        %v9834 = vpack.c.b16 %v9762, %v9753
        %v9835 = vpack.c.b16 %v9763, %v9754
        %9908 = vmatprep.subr.bf16.mxu0 %v9765
        %9909 = vmatpush1.bf16.msra.mxu0 %v9764
        %9910 = vmatprep.subr.bf16.mxu0 %v9774
        %9911 = vmatpush1.bf16.msra.mxu0 %v9773
        %9912 = vmatprep.subr.bf16.mxu0 %v9783
        %9913 = vmatpush1.bf16.msra.mxu0 %v9782
        %9914 = vmatprep.subr.bf16.mxu0 %v9792
        %9915 = vmatpush1.bf16.msra.mxu0 %v9791
        %9916 = vmatprep.subr.bf16.mxu0 %v9801
        %9917 = vmatpush1.bf16.msra.mxu0 %v9800
        %9918 = vmatprep.subr.bf16.mxu0 %v9810
        %9919 = vmatpush1.bf16.msra.mxu0 %v9809
        %9920 = vmatprep.subr.bf16.mxu0 %v9819
        %9921 = vmatpush1.bf16.msra.mxu0 %v9818
        %9922 = vmatprep.subr.bf16.mxu0 %v9828
        %9923 = vmatpush1.bf16.msra.mxu0 %v9827
        %9924 = vmatprep.subr.bf16.mxu0 0
        %9925 = vmatpush1.bf16.msra.mxu0 0
        %9926 = vmatprep.subr.bf16.mxu0 0
        %9927 = vmatpush1.bf16.msra.mxu0 0
        %9928 = vmatprep.subr.bf16.mxu0 0
        %9929 = vmatpush1.bf16.msra.mxu0 0
        %9930 = vmatprep.subr.bf16.mxu0 0
        %9931 = vmatpush1.bf16.msra.mxu0 0
        %9932 = vmatprep.subr.bf16.mxu0 0
        %9933 = vmatpush1.bf16.msra.mxu0 0
        %9934 = vmatprep.subr.bf16.mxu0 0
        %9935 = vmatpush1.bf16.msra.mxu0 0
        %9936 = vmatprep.subr.bf16.mxu0 0
        %9937 = vmatpush1.bf16.msra.mxu0 0
        %9938 = vmatprep.subr.bf16.mxu0 0
        %9939 = vmatpush1.bf16.msra.mxu0 0
        %9940 = vmatprep.mubr.bf16.mxu0 0
        %9941 = vmatmul.mubr.bf16.gmra.mrb[0].mxu0 %v9458
        %v9942 = vpop.f32.mrb[0].mxu0
        %v9943 = vadd.f32 0.0, %v9942
        %v9944 = vpop.f32.mrb[0].mxu0
        %v9945 = vadd.f32 0.0, %v9944
        %v9946 = vpop.f32.mrb[0].mxu0
        %v9947 = vadd.f32 0.0, %v9946
        %v9948 = vpop.f32.mrb[0].mxu0
        %v9949 = vadd.f32 0.0, %v9948
        %9950 = vmatprep.mubr.bf16.mxu0 0
        %9951 = vmatmul.mubr.bf16.gmra.mrb[0].mxu0 %v9459
        %v9952 = vpop.f32.mrb[0].mxu0
        %v9953 = vadd.f32 0.0, %v9952
        %v9954 = vpop.f32.mrb[0].mxu0
        %v9955 = vadd.f32 0.0, %v9954
        %v9956 = vpop.f32.mrb[0].mxu0
        %v9957 = vadd.f32 0.0, %v9956
        %v9958 = vpop.f32.mrb[0].mxu0
        %v9959 = vadd.f32 0.0, %v9958
        %9960 = vdwg.mxu0
        %9961 = vmatprep.subr.bf16.mxu0 %v9767
        %9962 = vmatpush1.bf16.msra.mxu0 %v9766
        %9963 = vmatprep.subr.bf16.mxu0 %v9776
        %9964 = vmatpush1.bf16.msra.mxu0 %v9775
        %9965 = vmatprep.subr.bf16.mxu0 %v9785
        %9966 = vmatpush1.bf16.msra.mxu0 %v9784
        %9967 = vmatprep.subr.bf16.mxu0 %v9794
        %9968 = vmatpush1.bf16.msra.mxu0 %v9793
        %9969 = vmatprep.subr.bf16.mxu0 %v9803
        %9970 = vmatpush1.bf16.msra.mxu0 %v9802
        %9971 = vmatprep.subr.bf16.mxu0 %v9812
        %9972 = vmatpush1.bf16.msra.mxu0 %v9811
        %9973 = vmatprep.subr.bf16.mxu0 %v9821
        %9974 = vmatpush1.bf16.msra.mxu0 %v9820
        %9975 = vmatprep.subr.bf16.mxu0 %v9830
        %9976 = vmatpush1.bf16.msra.mxu0 %v9829
        %9977 = vmatprep.subr.bf16.mxu0 0
        %9978 = vmatpush1.bf16.msra.mxu0 0
        %9979 = vmatprep.subr.bf16.mxu0 0
        %9980 = vmatpush1.bf16.msra.mxu0 0
        %9981 = vmatprep.subr.bf16.mxu0 0
        %9982 = vmatpush1.bf16.msra.mxu0 0
        %9983 = vmatprep.subr.bf16.mxu0 0
        %9984 = vmatpush1.bf16.msra.mxu0 0
        %9985 = vmatprep.subr.bf16.mxu0 0
        %9986 = vmatpush1.bf16.msra.mxu0 0
        %9987 = vmatprep.subr.bf16.mxu0 0
        %9988 = vmatpush1.bf16.msra.mxu0 0
        %9989 = vmatprep.subr.bf16.mxu0 0
        %9990 = vmatpush1.bf16.msra.mxu0 0
        %9991 = vmatprep.subr.bf16.mxu0 0
        %9992 = vmatpush1.bf16.msra.mxu0 0
        %9993 = vmatprep.mubr.bf16.mxu0 0
        %9994 = vmatmul.mubr.bf16.gmra.mrb[0].mxu0 %v9458
        %v9995 = vpop.f32.mrb[0].mxu0
        %v9996 = vadd.f32 0.0, %v9995
        %v9997 = vpop.f32.mrb[0].mxu0
        %v9998 = vadd.f32 0.0, %v9997
        %v9999 = vpop.f32.mrb[0].mxu0
        %v10000 = vadd.f32 0.0, %v9999
        %v10001 = vpop.f32.mrb[0].mxu0
        %v10002 = vadd.f32 0.0, %v10001
        %10003 = vmatprep.mubr.bf16.mxu0 0
        %10004 = vmatmul.mubr.bf16.gmra.mrb[0].mxu0 %v9459
        %v10005 = vpop.f32.mrb[0].mxu0
        %v10006 = vadd.f32 0.0, %v10005
        %v10007 = vpop.f32.mrb[0].mxu0
        %v10008 = vadd.f32 0.0, %v10007
        %v10009 = vpop.f32.mrb[0].mxu0
        %v10010 = vadd.f32 0.0, %v10009
        %v10011 = vpop.f32.mrb[0].mxu0
        %v10012 = vadd.f32 0.0, %v10011
        %10013 = vdwg.mxu0
        %10014 = vmatprep.subr.bf16.mxu0 %v9769
        %10015 = vmatpush1.bf16.msra.mxu0 %v9768
        %10016 = vmatprep.subr.bf16.mxu0 %v9778
        %10017 = vmatpush1.bf16.msra.mxu0 %v9777
        %10018 = vmatprep.subr.bf16.mxu0 %v9787
        %10019 = vmatpush1.bf16.msra.mxu0 %v9786
        %10020 = vmatprep.subr.bf16.mxu0 %v9796
        %10021 = vmatpush1.bf16.msra.mxu0 %v9795
        %10022 = vmatprep.subr.bf16.mxu0 %v9805
        %10023 = vmatpush1.bf16.msra.mxu0 %v9804
        %10024 = vmatprep.subr.bf16.mxu0 %v9814
        %10025 = vmatpush1.bf16.msra.mxu0 %v9813
        %10026 = vmatprep.subr.bf16.mxu0 %v9823
        %10027 = vmatpush1.bf16.msra.mxu0 %v9822
        %10028 = vmatprep.subr.bf16.mxu0 %v9832
        %10029 = vmatpush1.bf16.msra.mxu0 %v9831
        %10030 = vmatprep.subr.bf16.mxu0 0
        %10031 = vmatpush1.bf16.msra.mxu0 0
        %10032 = vmatprep.subr.bf16.mxu0 0
        %10033 = vmatpush1.bf16.msra.mxu0 0
        %10034 = vmatprep.subr.bf16.mxu0 0
        %10035 = vmatpush1.bf16.msra.mxu0 0
        %10036 = vmatprep.subr.bf16.mxu0 0
        %10037 = vmatpush1.bf16.msra.mxu0 0
        %10038 = vmatprep.subr.bf16.mxu0 0
        %10039 = vmatpush1.bf16.msra.mxu0 0
        %10040 = vmatprep.subr.bf16.mxu0 0
        %10041 = vmatpush1.bf16.msra.mxu0 0
        %10042 = vmatprep.subr.bf16.mxu0 0
        %10043 = vmatpush1.bf16.msra.mxu0 0
        %10044 = vmatprep.subr.bf16.mxu0 0
        %10045 = vmatpush1.bf16.msra.mxu0 0
        %10046 = vmatprep.mubr.bf16.mxu0 0
        %10047 = vmatmul.mubr.bf16.gmra.mrb[0].mxu0 %v9458
        %v10048 = vpop.f32.mrb[0].mxu0
        %v10049 = vadd.f32 0.0, %v10048
        %v10050 = vpop.f32.mrb[0].mxu0
        %v10051 = vadd.f32 0.0, %v10050
        %v10052 = vpop.f32.mrb[0].mxu0
        %v10053 = vadd.f32 0.0, %v10052
        %v10054 = vpop.f32.mrb[0].mxu0
        %v10055 = vadd.f32 0.0, %v10054
        %10056 = vmatprep.mubr.bf16.mxu0 0
        %10057 = vmatmul.mubr.bf16.gmra.mrb[0].mxu0 %v9459
        %v10058 = vpop.f32.mrb[0].mxu0
        %v10059 = vadd.f32 0.0, %v10058
        %v10060 = vpop.f32.mrb[0].mxu0
        %v10061 = vadd.f32 0.0, %v10060
        %v10062 = vpop.f32.mrb[0].mxu0
        %v10063 = vadd.f32 0.0, %v10062
        %v10064 = vpop.f32.mrb[0].mxu0
        %v10065 = vadd.f32 0.0, %v10064
        %10066 = vdwg.mxu0
        %10067 = vmatprep.subr.bf16.mxu0 %v9771
        %10068 = vmatpush1.bf16.msra.mxu0 %v9770
        %10069 = vmatprep.subr.bf16.mxu0 %v9780
        %10070 = vmatpush1.bf16.msra.mxu0 %v9779
        %10071 = vmatprep.subr.bf16.mxu0 %v9789
        %10072 = vmatpush1.bf16.msra.mxu0 %v9788
        %10073 = vmatprep.subr.bf16.mxu0 %v9798
        %10074 = vmatpush1.bf16.msra.mxu0 %v9797
        %10075 = vmatprep.subr.bf16.mxu0 %v9807
        %10076 = vmatpush1.bf16.msra.mxu0 %v9806
        %10077 = vmatprep.subr.bf16.mxu0 %v9816
        %10078 = vmatpush1.bf16.msra.mxu0 %v9815
        %10079 = vmatprep.subr.bf16.mxu0 %v9825
        %10080 = vmatpush1.bf16.msra.mxu0 %v9824
        %10081 = vmatprep.subr.bf16.mxu0 %v9834
        %10082 = vmatpush1.bf16.msra.mxu0 %v9833
        %10083 = vmatprep.subr.bf16.mxu0 0
        %10084 = vmatpush1.bf16.msra.mxu0 0
        %10085 = vmatprep.subr.bf16.mxu0 0
        %10086 = vmatpush1.bf16.msra.mxu0 0
        %10087 = vmatprep.subr.bf16.mxu0 0
        %10088 = vmatpush1.bf16.msra.mxu0 0
        %10089 = vmatprep.subr.bf16.mxu0 0
        %10090 = vmatpush1.bf16.msra.mxu0 0
        %10091 = vmatprep.subr.bf16.mxu0 0
        %10092 = vmatpush1.bf16.msra.mxu0 0
        %10093 = vmatprep.subr.bf16.mxu0 0
        %10094 = vmatpush1.bf16.msra.mxu0 0
        %10095 = vmatprep.subr.bf16.mxu0 0
        %10096 = vmatpush1.bf16.msra.mxu0 0
        %10097 = vmatprep.subr.bf16.mxu0 0
        %10098 = vmatpush1.bf16.msra.mxu0 0
        %10099 = vmatprep.mubr.bf16.mxu0 0
        %10100 = vmatmul.mubr.bf16.gmra.mrb[0].mxu0 %v9458
        %v10101 = vpop.f32.mrb[0].mxu0
        %v10102 = vadd.f32 0.0, %v10101
        %v10103 = vpop.f32.mrb[0].mxu0
        %v10104 = vadd.f32 0.0, %v10103
        %v10105 = vpop.f32.mrb[0].mxu0
        %v10106 = vadd.f32 0.0, %v10105
        %v10107 = vpop.f32.mrb[0].mxu0
        %v10108 = vadd.f32 0.0, %v10107
        %10109 = vmatprep.mubr.bf16.mxu0 0
        %10110 = vmatmul.mubr.bf16.gmra.mrb[0].mxu0 %v9459
        %v10111 = vpop.f32.mrb[0].mxu0
        %v10112 = vadd.f32 0.0, %v10111
        %v10113 = vpop.f32.mrb[0].mxu0
        %v10114 = vadd.f32 0.0, %v10113
        %v10115 = vpop.f32.mrb[0].mxu0
        %v10116 = vadd.f32 0.0, %v10115
        %v10117 = vpop.f32.mrb[0].mxu0
        %v10118 = vadd.f32 0.0, %v10117
        %10119 = vdwg.mxu0
        %10120 = vmatprep.subr.bf16.mxu0 0
        %10121 = vmatpush1.bf16.msra.mxu0 %v9772
        %10122 = vmatprep.subr.bf16.mxu0 0
        %10123 = vmatpush1.bf16.msra.mxu0 %v9781
        %10124 = vmatprep.subr.bf16.mxu0 0
        %10125 = vmatpush1.bf16.msra.mxu0 %v9790
        %10126 = vmatprep.subr.bf16.mxu0 0
        %10127 = vmatpush1.bf16.msra.mxu0 %v9799
        %10128 = vmatprep.subr.bf16.mxu0 0
        %10129 = vmatpush1.bf16.msra.mxu0 %v9808
        %10130 = vmatprep.subr.bf16.mxu0 0
        %10131 = vmatpush1.bf16.msra.mxu0 %v9817
        %10132 = vmatprep.subr.bf16.mxu0 0
        %10133 = vmatpush1.bf16.msra.mxu0 %v9826
        %10134 = vmatprep.subr.bf16.mxu0 0
        %10135 = vmatpush1.bf16.msra.mxu0 %v9835
        %10136 = vmatprep.subr.bf16.mxu0 0
        %10137 = vmatpush1.bf16.msra.mxu0 0
        %10138 = vmatprep.subr.bf16.mxu0 0
        %10139 = vmatpush1.bf16.msra.mxu0 0
        %10140 = vmatprep.subr.bf16.mxu0 0
        %10141 = vmatpush1.bf16.msra.mxu0 0
        %10142 = vmatprep.subr.bf16.mxu0 0
        %10143 = vmatpush1.bf16.msra.mxu0 0
        %10144 = vmatprep.subr.bf16.mxu0 0
        %10145 = vmatpush1.bf16.msra.mxu0 0
        %10146 = vmatprep.subr.bf16.mxu0 0
        %10147 = vmatpush1.bf16.msra.mxu0 0
        %10148 = vmatprep.subr.bf16.mxu0 0
        %10149 = vmatpush1.bf16.msra.mxu0 0
        %10150 = vmatprep.subr.bf16.mxu0 0
        %10151 = vmatpush1.bf16.msra.mxu0 0
        %10152 = vmatprep.mubr.bf16.mxu0 0
        %10153 = vmatmul.mubr.bf16.gmra.mrb[0].mxu0 %v9458
        %v10154 = vpop.f32.mrb[0].mxu0
        %v10155 = vadd.f32 0.0, %v10154
        %v10156 = vpop.f32.mrb[0].mxu0
        %v10157 = vpop.f32.mrb[0].mxu0
        %v10158 = vadd.f32 0.0, %v10157
        %v10159 = vpop.f32.mrb[0].mxu0
        %10160 = vmatprep.mubr.bf16.mxu0 0
        %10161 = vmatmul.mubr.bf16.gmra.mrb[0].mxu0 %v9459
        %v10162 = vpop.f32.mrb[0].mxu0
        %v10163 = vadd.f32 0.0, %v10162
        %v10164 = vpop.f32.mrb[0].mxu0
        %v10165 = vpop.f32.mrb[0].mxu0
        %v10166 = vadd.f32 0.0, %v10165
        %v10167 = vpop.f32.mrb[0].mxu0
        %10168 = vdwg.mxu0
        %v10169 = vld [vmem:[%s11] sm:$0xf]
        %v10170 = vpack.c.bf16 %v9947, %v9943
        %v10171 = vpack.c.bf16 %v9957, %v9953
        %s10172 = scalar_lea.vmem %s11, 4
        %v10173 = vld [vmem:[%s10172] sm:$0xf]
        %v10174 = vpack.c.bf16 %v9949, %v9945
        %v10175 = vpack.c.bf16 %v9959, %v9955
        %vm10176 = vcmask 261120
        %v10178 = vsel %vm10176, %v10173, 0
        %10180 = vmatprep.subr.bf16.mxu0 0
        %10181 = vmatpush1.bf16.msra.mxu0 %v10174
        %10182 = vmatprep.subr.bf16.mxu0 0
        %10183 = vmatpush1.bf16.msra.mxu0 %v10175
        %10184 = vmatprep.subr.bf16.mxu0 0
        %10185 = vmatpush1.bf16.msra.mxu0 0
        %10186 = vmatprep.subr.bf16.mxu0 0
        %10187 = vmatpush1.bf16.msra.mxu0 0
        %10188 = vmatprep.subr.bf16.mxu0 0
        %10189 = vmatpush1.bf16.msra.mxu0 0
        %10190 = vmatprep.subr.bf16.mxu0 0
        %10191 = vmatpush1.bf16.msra.mxu0 0
        %10192 = vmatprep.subr.bf16.mxu0 0
        %10193 = vmatpush1.bf16.msra.mxu0 0
        %10194 = vmatprep.subr.bf16.mxu0 0
        %10195 = vmatpush1.bf16.msra.mxu0 0
        %10196 = vmatprep.subr.bf16.mxu0 0
        %10197 = vmatpush1.bf16.msra.mxu0 0
        %10198 = vmatprep.subr.bf16.mxu0 0
        %10199 = vmatpush1.bf16.msra.mxu0 0
        %10200 = vmatprep.subr.bf16.mxu0 0
        %10201 = vmatpush1.bf16.msra.mxu0 0
        %10202 = vmatprep.subr.bf16.mxu0 0
        %10203 = vmatpush1.bf16.msra.mxu0 0
        %10204 = vmatprep.subr.bf16.mxu0 0
        %10205 = vmatpush1.bf16.msra.mxu0 0
        %10206 = vmatprep.subr.bf16.mxu0 0
        %10207 = vmatpush1.bf16.msra.mxu0 0
        %10208 = vmatprep.subr.bf16.mxu0 0
        %10209 = vmatpush1.bf16.msra.mxu0 0
        %10210 = vmatprep.subr.bf16.mxu0 0
        %10211 = vmatpush1.bf16.msra.mxu0 0
        %10212 = vmatprep.mubr.bf16.mxu0 0
        %10213 = vmatmul.mubr.bf16.gmra.mrb[0].mxu0 %v10178
        %v10214 = vpop.f32.mrb[0].mxu0
        %v10215 = vadd.f32 0.0, %v10214
        %v10216 = vpop.f32.mrb[0].mxu0
        %v10217 = vpop.f32.mrb[0].mxu0
        %v10218 = vpop.f32.mrb[0].mxu0
        %10219 = vdwg.mxu0
        %v10221 = vsel %vm10176, %v10169, 0
        %10223 = vmatprep.subr.bf16.mxu0 0
        %10224 = vmatpush1.bf16.msra.mxu0 %v10170
        %10225 = vmatprep.subr.bf16.mxu0 0
        %10226 = vmatpush1.bf16.msra.mxu0 %v10171
        %10227 = vmatprep.subr.bf16.mxu0 0
        %10228 = vmatpush1.bf16.msra.mxu0 0
        %10229 = vmatprep.subr.bf16.mxu0 0
        %10230 = vmatpush1.bf16.msra.mxu0 0
        %10231 = vmatprep.subr.bf16.mxu0 0
        %10232 = vmatpush1.bf16.msra.mxu0 0
        %10233 = vmatprep.subr.bf16.mxu0 0
        %10234 = vmatpush1.bf16.msra.mxu0 0
        %10235 = vmatprep.subr.bf16.mxu0 0
        %10236 = vmatpush1.bf16.msra.mxu0 0
        %10237 = vmatprep.subr.bf16.mxu0 0
        %10238 = vmatpush1.bf16.msra.mxu0 0
        %10239 = vmatprep.subr.bf16.mxu0 0
        %10240 = vmatpush1.bf16.msra.mxu0 0
        %10241 = vmatprep.subr.bf16.mxu0 0
        %10242 = vmatpush1.bf16.msra.mxu0 0
        %10243 = vmatprep.subr.bf16.mxu0 0
        %10244 = vmatpush1.bf16.msra.mxu0 0
        %10245 = vmatprep.subr.bf16.mxu0 0
        %10246 = vmatpush1.bf16.msra.mxu0 0
        %10247 = vmatprep.subr.bf16.mxu0 0
        %10248 = vmatpush1.bf16.msra.mxu0 0
        %10249 = vmatprep.subr.bf16.mxu0 0
        %10250 = vmatpush1.bf16.msra.mxu0 0
        %10251 = vmatprep.subr.bf16.mxu0 0
        %10252 = vmatpush1.bf16.msra.mxu0 0
        %10253 = vmatprep.subr.bf16.mxu0 0
        %10254 = vmatpush1.bf16.msra.mxu0 0
        %10255 = vmatprep.mubr.bf16.mxu0 0
        %10256 = vmatmul.mubr.bf16.gmra.mrb[0].mxu0 %v10221
        %v10257 = vpop.f32.mrb[0].mxu0
        %v10258 = vadd.f32 %v10215, %v10257
        %v10259 = vpop.f32.mrb[0].mxu0
        %v10260 = vpop.f32.mrb[0].mxu0
        %v10261 = vpop.f32.mrb[0].mxu0
        %10262 = vdwg.mxu0
        %s10263 = scalar_lea.vmem %s11, 8
        %v10264 = vld [vmem:[%s10263] sm:$0xf]
        %v10265 = vpack.c.bf16 %v10000, %v9996
        %v10266 = vpack.c.bf16 %v10010, %v10006
        %v10268 = vsel %vm10176, %v10264, 0
        %10270 = vmatprep.subr.bf16.mxu0 0
        %10271 = vmatpush1.bf16.msra.mxu0 %v10265
        %10272 = vmatprep.subr.bf16.mxu0 0
        %10273 = vmatpush1.bf16.msra.mxu0 %v10266
        %10274 = vmatprep.subr.bf16.mxu0 0
        %10275 = vmatpush1.bf16.msra.mxu0 0
        %10276 = vmatprep.subr.bf16.mxu0 0
        %10277 = vmatpush1.bf16.msra.mxu0 0
        %10278 = vmatprep.subr.bf16.mxu0 0
        %10279 = vmatpush1.bf16.msra.mxu0 0
        %10280 = vmatprep.subr.bf16.mxu0 0
        %10281 = vmatpush1.bf16.msra.mxu0 0
        %10282 = vmatprep.subr.bf16.mxu0 0
        %10283 = vmatpush1.bf16.msra.mxu0 0
        %10284 = vmatprep.subr.bf16.mxu0 0
        %10285 = vmatpush1.bf16.msra.mxu0 0
        %10286 = vmatprep.subr.bf16.mxu0 0
        %10287 = vmatpush1.bf16.msra.mxu0 0
        %10288 = vmatprep.subr.bf16.mxu0 0
        %10289 = vmatpush1.bf16.msra.mxu0 0
        %10290 = vmatprep.subr.bf16.mxu0 0
        %10291 = vmatpush1.bf16.msra.mxu0 0
        %10292 = vmatprep.subr.bf16.mxu0 0
        %10293 = vmatpush1.bf16.msra.mxu0 0
        %10294 = vmatprep.subr.bf16.mxu0 0
        %10295 = vmatpush1.bf16.msra.mxu0 0
        %10296 = vmatprep.subr.bf16.mxu0 0
        %10297 = vmatpush1.bf16.msra.mxu0 0
        %10298 = vmatprep.subr.bf16.mxu0 0
        %10299 = vmatpush1.bf16.msra.mxu0 0
        %10300 = vmatprep.subr.bf16.mxu0 0
        %10301 = vmatpush1.bf16.msra.mxu0 0
        %10302 = vmatprep.mubr.bf16.mxu0 0
        %10303 = vmatmul.mubr.bf16.gmra.mrb[0].mxu0 %v10268
        %v10304 = vpop.f32.mrb[0].mxu0
        %v10305 = vadd.f32 0.0, %v10304
        %v10306 = vpop.f32.mrb[0].mxu0
        %v10307 = vpop.f32.mrb[0].mxu0
        %v10308 = vpop.f32.mrb[0].mxu0
        %10309 = vdwg.mxu0
        %v10310 = vadd.f32 %v10258, %v10305
        %s10311 = scalar_lea.vmem %s11, 12
        %v10312 = vld [vmem:[%s10311] sm:$0xf]
        %v10313 = vpack.c.bf16 %v10002, %v9998
        %v10314 = vpack.c.bf16 %v10012, %v10008
        %v10316 = vsel %vm10176, %v10312, 0
        %10318 = vmatprep.subr.bf16.mxu0 0
        %10319 = vmatpush1.bf16.msra.mxu0 %v10313
        %10320 = vmatprep.subr.bf16.mxu0 0
        %10321 = vmatpush1.bf16.msra.mxu0 %v10314
        %10322 = vmatprep.subr.bf16.mxu0 0
        %10323 = vmatpush1.bf16.msra.mxu0 0
        %10324 = vmatprep.subr.bf16.mxu0 0
        %10325 = vmatpush1.bf16.msra.mxu0 0
        %10326 = vmatprep.subr.bf16.mxu0 0
        %10327 = vmatpush1.bf16.msra.mxu0 0
        %10328 = vmatprep.subr.bf16.mxu0 0
        %10329 = vmatpush1.bf16.msra.mxu0 0
        %10330 = vmatprep.subr.bf16.mxu0 0
        %10331 = vmatpush1.bf16.msra.mxu0 0
        %10332 = vmatprep.subr.bf16.mxu0 0
        %10333 = vmatpush1.bf16.msra.mxu0 0
        %10334 = vmatprep.subr.bf16.mxu0 0
        %10335 = vmatpush1.bf16.msra.mxu0 0
        %10336 = vmatprep.subr.bf16.mxu0 0
        %10337 = vmatpush1.bf16.msra.mxu0 0
        %10338 = vmatprep.subr.bf16.mxu0 0
        %10339 = vmatpush1.bf16.msra.mxu0 0
        %10340 = vmatprep.subr.bf16.mxu0 0
        %10341 = vmatpush1.bf16.msra.mxu0 0
        %10342 = vmatprep.subr.bf16.mxu0 0
        %10343 = vmatpush1.bf16.msra.mxu0 0
        %10344 = vmatprep.subr.bf16.mxu0 0
        %10345 = vmatpush1.bf16.msra.mxu0 0
        %10346 = vmatprep.subr.bf16.mxu0 0
        %10347 = vmatpush1.bf16.msra.mxu0 0
        %10348 = vmatprep.subr.bf16.mxu0 0
        %10349 = vmatpush1.bf16.msra.mxu0 0
        %10350 = vmatprep.mubr.bf16.mxu0 0
        %10351 = vmatmul.mubr.bf16.gmra.mrb[0].mxu0 %v10316
        %v10352 = vpop.f32.mrb[0].mxu0
        %v10353 = vadd.f32 0.0, %v10352
        %v10354 = vpop.f32.mrb[0].mxu0
        %v10355 = vpop.f32.mrb[0].mxu0
        %v10356 = vpop.f32.mrb[0].mxu0
        %10357 = vdwg.mxu0
        %v10358 = vadd.f32 %v10310, %v10353
        %s10359 = scalar_lea.vmem %s11, 16
        %v10360 = vld [vmem:[%s10359] sm:$0xf]
        %v10361 = vpack.c.bf16 %v10053, %v10049
        %v10362 = vpack.c.bf16 %v10063, %v10059
        %v10364 = vsel %vm10176, %v10360, 0
        %10366 = vmatprep.subr.bf16.mxu0 0
        %10367 = vmatpush1.bf16.msra.mxu0 %v10361
        %10368 = vmatprep.subr.bf16.mxu0 0
        %10369 = vmatpush1.bf16.msra.mxu0 %v10362
        %10370 = vmatprep.subr.bf16.mxu0 0
        %10371 = vmatpush1.bf16.msra.mxu0 0
        %10372 = vmatprep.subr.bf16.mxu0 0
        %10373 = vmatpush1.bf16.msra.mxu0 0
        %10374 = vmatprep.subr.bf16.mxu0 0
        %10375 = vmatpush1.bf16.msra.mxu0 0
        %10376 = vmatprep.subr.bf16.mxu0 0
        %10377 = vmatpush1.bf16.msra.mxu0 0
        %10378 = vmatprep.subr.bf16.mxu0 0
        %10379 = vmatpush1.bf16.msra.mxu0 0
        %10380 = vmatprep.subr.bf16.mxu0 0
        %10381 = vmatpush1.bf16.msra.mxu0 0
        %10382 = vmatprep.subr.bf16.mxu0 0
        %10383 = vmatpush1.bf16.msra.mxu0 0
        %10384 = vmatprep.subr.bf16.mxu0 0
        %10385 = vmatpush1.bf16.msra.mxu0 0
        %10386 = vmatprep.subr.bf16.mxu0 0
        %10387 = vmatpush1.bf16.msra.mxu0 0
        %10388 = vmatprep.subr.bf16.mxu0 0
        %10389 = vmatpush1.bf16.msra.mxu0 0
        %10390 = vmatprep.subr.bf16.mxu0 0
        %10391 = vmatpush1.bf16.msra.mxu0 0
        %10392 = vmatprep.subr.bf16.mxu0 0
        %10393 = vmatpush1.bf16.msra.mxu0 0
        %10394 = vmatprep.subr.bf16.mxu0 0
        %10395 = vmatpush1.bf16.msra.mxu0 0
        %10396 = vmatprep.subr.bf16.mxu0 0
        %10397 = vmatpush1.bf16.msra.mxu0 0
        %10398 = vmatprep.mubr.bf16.mxu0 0
        %10399 = vmatmul.mubr.bf16.gmra.mrb[0].mxu0 %v10364
        %v10400 = vpop.f32.mrb[0].mxu0
        %v10401 = vadd.f32 0.0, %v10400
        %v10402 = vpop.f32.mrb[0].mxu0
        %v10403 = vpop.f32.mrb[0].mxu0
        %v10404 = vpop.f32.mrb[0].mxu0
        %10405 = vdwg.mxu0
        %v10406 = vadd.f32 %v10358, %v10401
        %s10407 = scalar_lea.vmem %s11, 20
        %v10408 = vld [vmem:[%s10407] sm:$0xf]
        %v10409 = vpack.c.bf16 %v10055, %v10051
        %v10410 = vpack.c.bf16 %v10065, %v10061
        %v10412 = vsel %vm10176, %v10408, 0
        %10414 = vmatprep.subr.bf16.mxu0 0
        %10415 = vmatpush1.bf16.msra.mxu0 %v10409
        %10416 = vmatprep.subr.bf16.mxu0 0
        %10417 = vmatpush1.bf16.msra.mxu0 %v10410
        %10418 = vmatprep.subr.bf16.mxu0 0
        %10419 = vmatpush1.bf16.msra.mxu0 0
        %10420 = vmatprep.subr.bf16.mxu0 0
        %10421 = vmatpush1.bf16.msra.mxu0 0
        %10422 = vmatprep.subr.bf16.mxu0 0
        %10423 = vmatpush1.bf16.msra.mxu0 0
        %10424 = vmatprep.subr.bf16.mxu0 0
        %10425 = vmatpush1.bf16.msra.mxu0 0
        %10426 = vmatprep.subr.bf16.mxu0 0
        %10427 = vmatpush1.bf16.msra.mxu0 0
        %10428 = vmatprep.subr.bf16.mxu0 0
        %10429 = vmatpush1.bf16.msra.mxu0 0
        %10430 = vmatprep.subr.bf16.mxu0 0
        %10431 = vmatpush1.bf16.msra.mxu0 0
        %10432 = vmatprep.subr.bf16.mxu0 0
        %10433 = vmatpush1.bf16.msra.mxu0 0
        %10434 = vmatprep.subr.bf16.mxu0 0
        %10435 = vmatpush1.bf16.msra.mxu0 0
        %10436 = vmatprep.subr.bf16.mxu0 0
        %10437 = vmatpush1.bf16.msra.mxu0 0
        %10438 = vmatprep.subr.bf16.mxu0 0
        %10439 = vmatpush1.bf16.msra.mxu0 0
        %10440 = vmatprep.subr.bf16.mxu0 0
        %10441 = vmatpush1.bf16.msra.mxu0 0
        %10442 = vmatprep.subr.bf16.mxu0 0
        %10443 = vmatpush1.bf16.msra.mxu0 0
        %10444 = vmatprep.subr.bf16.mxu0 0
        %10445 = vmatpush1.bf16.msra.mxu0 0
        %10446 = vmatprep.mubr.bf16.mxu0 0
        %10447 = vmatmul.mubr.bf16.gmra.mrb[0].mxu0 %v10412
        %v10448 = vpop.f32.mrb[0].mxu0
        %v10449 = vadd.f32 0.0, %v10448
        %v10450 = vpop.f32.mrb[0].mxu0
        %v10451 = vpop.f32.mrb[0].mxu0
        %v10452 = vpop.f32.mrb[0].mxu0
        %10453 = vdwg.mxu0
        %v10454 = vadd.f32 %v10406, %v10449
        %s10455 = scalar_lea.vmem %s11, 24
        %v10456 = vld [vmem:[%s10455] sm:$0xf]
        %v10457 = vpack.c.bf16 %v10106, %v10102
        %v10458 = vpack.c.bf16 %v10116, %v10112
        %v10460 = vsel %vm10176, %v10456, 0
        %10462 = vmatprep.subr.bf16.mxu0 0
        %10463 = vmatpush1.bf16.msra.mxu0 %v10457
        %10464 = vmatprep.subr.bf16.mxu0 0
        %10465 = vmatpush1.bf16.msra.mxu0 %v10458
        %10466 = vmatprep.subr.bf16.mxu0 0
        %10467 = vmatpush1.bf16.msra.mxu0 0
        %10468 = vmatprep.subr.bf16.mxu0 0
        %10469 = vmatpush1.bf16.msra.mxu0 0
        %10470 = vmatprep.subr.bf16.mxu0 0
        %10471 = vmatpush1.bf16.msra.mxu0 0
        %10472 = vmatprep.subr.bf16.mxu0 0
        %10473 = vmatpush1.bf16.msra.mxu0 0
        %10474 = vmatprep.subr.bf16.mxu0 0
        %10475 = vmatpush1.bf16.msra.mxu0 0
        %10476 = vmatprep.subr.bf16.mxu0 0
        %10477 = vmatpush1.bf16.msra.mxu0 0
        %10478 = vmatprep.subr.bf16.mxu0 0
        %10479 = vmatpush1.bf16.msra.mxu0 0
        %10480 = vmatprep.subr.bf16.mxu0 0
        %10481 = vmatpush1.bf16.msra.mxu0 0
        %10482 = vmatprep.subr.bf16.mxu0 0
        %10483 = vmatpush1.bf16.msra.mxu0 0
        %10484 = vmatprep.subr.bf16.mxu0 0
        %10485 = vmatpush1.bf16.msra.mxu0 0
        %10486 = vmatprep.subr.bf16.mxu0 0
        %10487 = vmatpush1.bf16.msra.mxu0 0
        %10488 = vmatprep.subr.bf16.mxu0 0
        %10489 = vmatpush1.bf16.msra.mxu0 0
        %10490 = vmatprep.subr.bf16.mxu0 0
        %10491 = vmatpush1.bf16.msra.mxu0 0
        %10492 = vmatprep.subr.bf16.mxu0 0
        %10493 = vmatpush1.bf16.msra.mxu0 0
        %10494 = vmatprep.mubr.bf16.mxu0 0
        %10495 = vmatmul.mubr.bf16.gmra.mrb[0].mxu0 %v10460
        %v10496 = vpop.f32.mrb[0].mxu0
        %v10497 = vadd.f32 0.0, %v10496
        %v10498 = vpop.f32.mrb[0].mxu0
        %v10499 = vpop.f32.mrb[0].mxu0
        %v10500 = vpop.f32.mrb[0].mxu0
        %10501 = vdwg.mxu0
        %v10502 = vadd.f32 %v10454, %v10497
        %s10503 = scalar_lea.vmem %s11, 28
        %v10504 = vld [vmem:[%s10503] sm:$0xf]
        %v10505 = vpack.c.bf16 %v10108, %v10104
        %v10506 = vpack.c.bf16 %v10118, %v10114
        %v10508 = vsel %vm10176, %v10504, 0
        %10510 = vmatprep.subr.bf16.mxu0 0
        %10511 = vmatpush1.bf16.msra.mxu0 %v10505
        %10512 = vmatprep.subr.bf16.mxu0 0
        %10513 = vmatpush1.bf16.msra.mxu0 %v10506
        %10514 = vmatprep.subr.bf16.mxu0 0
        %10515 = vmatpush1.bf16.msra.mxu0 0
        %10516 = vmatprep.subr.bf16.mxu0 0
        %10517 = vmatpush1.bf16.msra.mxu0 0
        %10518 = vmatprep.subr.bf16.mxu0 0
        %10519 = vmatpush1.bf16.msra.mxu0 0
        %10520 = vmatprep.subr.bf16.mxu0 0
        %10521 = vmatpush1.bf16.msra.mxu0 0
        %10522 = vmatprep.subr.bf16.mxu0 0
        %10523 = vmatpush1.bf16.msra.mxu0 0
        %10524 = vmatprep.subr.bf16.mxu0 0
        %10525 = vmatpush1.bf16.msra.mxu0 0
        %10526 = vmatprep.subr.bf16.mxu0 0
        %10527 = vmatpush1.bf16.msra.mxu0 0
        %10528 = vmatprep.subr.bf16.mxu0 0
        %10529 = vmatpush1.bf16.msra.mxu0 0
        %10530 = vmatprep.subr.bf16.mxu0 0
        %10531 = vmatpush1.bf16.msra.mxu0 0
        %10532 = vmatprep.subr.bf16.mxu0 0
        %10533 = vmatpush1.bf16.msra.mxu0 0
        %10534 = vmatprep.subr.bf16.mxu0 0
        %10535 = vmatpush1.bf16.msra.mxu0 0
        %10536 = vmatprep.subr.bf16.mxu0 0
        %10537 = vmatpush1.bf16.msra.mxu0 0
        %10538 = vmatprep.subr.bf16.mxu0 0
        %10539 = vmatpush1.bf16.msra.mxu0 0
        %10540 = vmatprep.subr.bf16.mxu0 0
        %10541 = vmatpush1.bf16.msra.mxu0 0
        %10542 = vmatprep.mubr.bf16.mxu0 0
        %10543 = vmatmul.mubr.bf16.gmra.mrb[0].mxu0 %v10508
        %v10544 = vpop.f32.mrb[0].mxu0
        %v10545 = vadd.f32 0.0, %v10544
        %v10546 = vpop.f32.mrb[0].mxu0
        %v10547 = vpop.f32.mrb[0].mxu0
        %v10548 = vpop.f32.mrb[0].mxu0
        %10549 = vdwg.mxu0
        %v10550 = vadd.f32 %v10502, %v10545
        %s10551 = scalar_lea.vmem %s11, 32
        %v10552 = vld [vmem:[%s10551] sm:$0xf]
        %v10553 = vpack.c.bf16 %v10158, %v10155
        %v10554 = vpack.c.bf16 %v10166, %v10163
        %v10556 = vsel %vm10176, %v10552, 0
        %10558 = vmatprep.subr.bf16.mxu0 0
        %10559 = vmatpush1.bf16.msra.mxu0 %v10553
        %10560 = vmatprep.subr.bf16.mxu0 0
        %10561 = vmatpush1.bf16.msra.mxu0 %v10554
        %10562 = vmatprep.subr.bf16.mxu0 0
        %10563 = vmatpush1.bf16.msra.mxu0 0
        %10564 = vmatprep.subr.bf16.mxu0 0
        %10565 = vmatpush1.bf16.msra.mxu0 0
        %10566 = vmatprep.subr.bf16.mxu0 0
        %10567 = vmatpush1.bf16.msra.mxu0 0
        %10568 = vmatprep.subr.bf16.mxu0 0
        %10569 = vmatpush1.bf16.msra.mxu0 0
        %10570 = vmatprep.subr.bf16.mxu0 0
        %10571 = vmatpush1.bf16.msra.mxu0 0
        %10572 = vmatprep.subr.bf16.mxu0 0
        %10573 = vmatpush1.bf16.msra.mxu0 0
        %10574 = vmatprep.subr.bf16.mxu0 0
        %10575 = vmatpush1.bf16.msra.mxu0 0
        %10576 = vmatprep.subr.bf16.mxu0 0
        %10577 = vmatpush1.bf16.msra.mxu0 0
        %10578 = vmatprep.subr.bf16.mxu0 0
        %10579 = vmatpush1.bf16.msra.mxu0 0
        %10580 = vmatprep.subr.bf16.mxu0 0
        %10581 = vmatpush1.bf16.msra.mxu0 0
        %10582 = vmatprep.subr.bf16.mxu0 0
        %10583 = vmatpush1.bf16.msra.mxu0 0
        %10584 = vmatprep.subr.bf16.mxu0 0
        %10585 = vmatpush1.bf16.msra.mxu0 0
        %10586 = vmatprep.subr.bf16.mxu0 0
        %10587 = vmatpush1.bf16.msra.mxu0 0
        %10588 = vmatprep.subr.bf16.mxu0 0
        %10589 = vmatpush1.bf16.msra.mxu0 0
        %10590 = vmatprep.mubr.bf16.mxu0 0
        %10591 = vmatmul.mubr.bf16.gmra.mrb[0].mxu0 %v10556
        %v10592 = vpop.f32.mrb[0].mxu0
        %v10593 = vadd.f32 0.0, %v10592
        %v10594 = vpop.f32.mrb[0].mxu0
        %v10595 = vpop.f32.mrb[0].mxu0
        %v10596 = vpop.f32.mrb[0].mxu0
        %10597 = vdwg.mxu0
        %v10598 = vadd.f32 %v10550, %v10593
        %v10599 = vld [vmem:[%s13] sm:$0x1]
        %v10601 = vlaneseq
        %v10602 = vshrl.u32 %v10601, 7
        %v10603 = vsub.s32 0, %v10602
        %v10604 = vrot.slane %v10599, %v10603
        %v10606 = vadd.f32 %v10598, %v10604
        %v10607 = vmax.f32 %v10606, 0.0
        %v10608 = vld [vmem:[%s14] sm:$0xff]
        %v10609 = vld [vmem:[%s14 + $0x8] sm:$0xff]
        %v10610 = vld [vmem:[%s14 + $0x10] sm:$0xff]
        %v10611 = vld [vmem:[%s14 + $0x18] sm:$0xff]
        %v10612 = vld [vmem:[%s14 + $0x20] sm:$0xff]
        %v10613 = vld [vmem:[%s14 + $0x28] sm:$0xff]
        %v10614 = vld [vmem:[%s14 + $0x30] sm:$0xff]
        %v10615 = vld [vmem:[%s14 + $0x38] sm:$0xff]
        %v10616 = vld [vmem:[%s14 + $0x40] sm:$0xff]
        %v10617 = vld [vmem:[%s14 + $0x48] sm:$0xff]
        %v10618 = vld [vmem:[%s14 + $0x50] sm:$0xff]
        %v10619 = vld [vmem:[%s14 + $0x58] sm:$0xff]
        %v10620 = vld [vmem:[%s14 + $0x60] sm:$0xff]
        %v10621 = vld [vmem:[%s14 + $0x68] sm:$0xff]
        %v10622 = vld [vmem:[%s14 + $0x70] sm:$0xff]
        %v10623 = vld [vmem:[%s14 + $0x78] sm:$0xff]
        %v10624 = vld [vmem:[%s15] sm:$0x1]
        %v10626 = vlaneseq
        %v10627 = vshrl.u32 %v10626, 7
        %v10628 = vsub.s32 0, %v10627
        %v10629 = vrot.slane %v10624, %v10628
        %10631 = vmatprep.subr.mxu0 0.0
        %10632 = vmatpush1.msra.mxu0 %v10608
        %10633 = vmatprep.subr.mxu0 0.0
        %10634 = vmatpush1.msra.mxu0 %v10609
        %10635 = vmatprep.subr.mxu0 0.0
        %10636 = vmatpush1.msra.mxu0 %v10610
        %10637 = vmatprep.subr.mxu0 0.0
        %10638 = vmatpush1.msra.mxu0 %v10611
        %10639 = vmatprep.subr.mxu0 0.0
        %10640 = vmatpush1.msra.mxu0 %v10612
        %10641 = vmatprep.subr.mxu0 0.0
        %10642 = vmatpush1.msra.mxu0 %v10613
        %10643 = vmatprep.subr.mxu0 0.0
        %10644 = vmatpush1.msra.mxu0 %v10614
        %10645 = vmatprep.subr.mxu0 0.0
        %10646 = vmatpush1.msra.mxu0 %v10615
        %10647 = vmatprep.subr.mxu0 0.0
        %10648 = vmatpush1.msra.mxu0 %v10616
        %10649 = vmatprep.subr.mxu0 0.0
        %10650 = vmatpush1.msra.mxu0 %v10617
        %10651 = vmatprep.subr.mxu0 0.0
        %10652 = vmatpush1.msra.mxu0 %v10618
        %10653 = vmatprep.subr.mxu0 0.0
        %10654 = vmatpush1.msra.mxu0 %v10619
        %10655 = vmatprep.subr.mxu0 0.0
        %10656 = vmatpush1.msra.mxu0 %v10620
        %10657 = vmatprep.subr.mxu0 0.0
        %10658 = vmatpush1.msra.mxu0 %v10621
        %10659 = vmatprep.subr.mxu0 0.0
        %10660 = vmatpush1.msra.mxu0 %v10622
        %10661 = vmatprep.subr.mxu0 0.0
        %10662 = vmatpush1.msra.mxu0 %v10623
        %10663 = vmatprep.subr.mxu0 0.0
        %10664 = vmatpush1.msra.mxu0 0.0
        %10665 = vmatprep.subr.mxu0 0.0
        %10666 = vmatpush1.msra.mxu0 0.0
        %10667 = vmatprep.subr.mxu0 0.0
        %10668 = vmatpush1.msra.mxu0 0.0
        %10669 = vmatprep.subr.mxu0 0.0
        %10670 = vmatpush1.msra.mxu0 0.0
        %10671 = vmatprep.subr.mxu0 0.0
        %10672 = vmatpush1.msra.mxu0 0.0
        %10673 = vmatprep.subr.mxu0 0.0
        %10674 = vmatpush1.msra.mxu0 0.0
        %10675 = vmatprep.subr.mxu0 0.0
        %10676 = vmatpush1.msra.mxu0 0.0
        %10677 = vmatprep.subr.mxu0 0.0
        %10678 = vmatpush1.msra.mxu0 0.0
        %10679 = vmatprep.subr.mxu0 0.0
        %10680 = vmatpush1.msra.mxu0 0.0
        %10681 = vmatprep.subr.mxu0 0.0
        %10682 = vmatpush1.msra.mxu0 0.0
        %10683 = vmatprep.subr.mxu0 0.0
        %10684 = vmatpush1.msra.mxu0 0.0
        %10685 = vmatprep.subr.mxu0 0.0
        %10686 = vmatpush1.msra.mxu0 0.0
        %10687 = vmatprep.subr.mxu0 0.0
        %10688 = vmatpush1.msra.mxu0 0.0
        %10689 = vmatprep.subr.mxu0 0.0
        %10690 = vmatpush1.msra.mxu0 0.0
        %10691 = vmatprep.subr.mxu0 0.0
        %10692 = vmatpush1.msra.mxu0 0.0
        %10693 = vmatprep.subr.mxu0 0.0
        %10694 = vmatpush1.msra.mxu0 0.0
        %10695 = vmatprep.mubr.f32.mxu0 0.0
        %10696 = vmatmul.mubr.f32.gmra.mrb[0].mxu0 %v10607
        %v10697 = vpop.f32.mrb[0].mxu0
        %v10698 = vadd.f32 %v10629, %v10697
        %v10699 = vpop.f32.mrb[0].mxu0
        %10700 = vdwg.mxu0
        %10701 = vst [vmem:[%s18] sm:$0xff] %v10698
      $region92: #{proposal_net.1} parent=83 // pred_fallthru
        _
      // Predicated region
      $region93: #{proposal_net.1} parent=83 // pred_check
        %p10702 = pneg %p389
      $region94: #{proposal_net.1} parent=83 // pred_check_branch
        %10704 = sbr.rel (%p10702) target = $region96
      $region95: #{proposal_net.1} parent=83 // pred_region
        _
      $region96: #{proposal_net.1} parent=83 // pred_fallthru
        _
      // Predicated region
      $region97: #{proposal_net.1} parent=83 // pred_check
        %p10705 = pneg %p410
      $region98: #{proposal_net.1} parent=83 // pred_check_branch
        %10707 = sbr.rel (%p10705) target = $region100
      $region99: #{proposal_net.1} parent=83 // pred_region
        _
      $region100: #{proposal_net.1} parent=83 // pred_fallthru
        _
      // Predicated region
      $region101: #{proposal_net.1} parent=83 // pred_check
        %p10708 = pneg %p431
      $region102: #{proposal_net.1} parent=83 // pred_check_branch
        %10710 = sbr.rel (%p10708) target = $region104
      $region103: #{proposal_net.1} parent=83 // pred_region
        _
      $region104: #{proposal_net.1} parent=83 // pred_fallthru
        _
      // Predicated region
      $region105: #{proposal_net.1} parent=83 // pred_check
        %p10711 = pneg %p389
      $region106: #{proposal_net.1} parent=83 // pred_check_branch
        %10713 = sbr.rel (%p10711) target = $region108
      $region107: #{proposal_net.1} parent=83 // pred_region
        _
      $region108: #{proposal_net.1} parent=83 // pred_fallthru
        _
      // Predicated region
      $region109: #{proposal_net.1} parent=83 // pred_check
        %p10714 = pneg %p410
      $region110: #{proposal_net.1} parent=83 // pred_check_branch
        %10716 = sbr.rel (%p10714) target = $region112
      $region111: #{proposal_net.1} parent=83 // pred_region
        _
      $region112: #{proposal_net.1} parent=83 // pred_fallthru
        _
      // Predicated region
      $region113: #{proposal_net.1} parent=83 // pred_check
        %p10717 = pneg %p431
      $region114: #{proposal_net.1} parent=83 // pred_check_branch
        %10719 = sbr.rel (%p10717) target = $region116
      $region115: #{proposal_net.1} parent=83 // pred_region
        _
      $region116: #{proposal_net.1} parent=83 // pred_fallthru
        _
    $region84: #{proposal_net.1} parent=5 // pred_fallthru
      _
    %p10720 = scmp.le.s32.totalorder 2, %s25
    // Predicated region
    $region117: #{proposal_net.1} parent=5 // pred_check
      %p10721 = pneg %p10720
    $region118: #{proposal_net.1} parent=5 // pred_check_branch
      %10723 = sbr.rel (%p10721) target = $region120
    $region119: #{proposal_net.1} parent=5 // pred_region
      %s10724 = ssub.s32 %s25, 2
    $region120: #{proposal_net.1} parent=5 // pred_fallthru
      _
  $region6: #{proposal_net.1} parent=0 // loop_footer
    %s29 = sadd.s32 1, %s25
  $region7: #{proposal_net.1} parent=0 // loop_footer_branch
    %24 = sbr.rel target = $region3
  $region8: #{proposal_net.1} parent=0 // loop_exit
    _

</llo_original>
